<compile_context>
chip_gen: v7x
topology: tpu7x:2x2x1
jax: 0.10.0
libtpu: 0.0.40
codegen_flags: <defaults>
</compile_context>

<pallas_src>
import math
from functools import partial

import jax
import jax.numpy as jnp
from jax.experimental import pallas as pl
from jax.experimental.pallas import tpu as pltpu

NEG_INF = -1e30       # plain Python float (never capture jnp scalars inside kernels)
LN_EPS = 1e-5         # PyTorch LayerNorm default


def _round_up(x, m):
    return ((x + m - 1) // m) * m


# ----------------------------- in-kernel helpers -----------------------------

def _ln(x, g, b, inv_n):
    """LayerNorm over the real feature count; padded lanes stay zero because the
    inputs and gamma/beta are zero there (var via E[x^2]-mean^2, all-lane sums)."""
    mean = jnp.sum(x, axis=-1, keepdims=True) * inv_n
    var = jnp.sum(x * x, axis=-1, keepdims=True) * inv_n - mean * mean
    return (x - mean) * jax.lax.rsqrt(var + LN_EPS) * g + b


def _mm(x, w, b):
    """bf16 MXU matmul with f32 accumulation: x @ W + b (bias added once)."""
    return jnp.dot(x.astype(jnp.bfloat16), w, preferred_element_type=jnp.float32) + b


def _attention(q, k, v, mask, w_o, b_o, nhead, dh_pad, scale):
    """Multi-head attention core + fused output projection, fully in VMEM.

    q        (Lq, H*dh_pad) f32  -- 128-aligned per-head lane blocks
    k, v     (Lk, H*dh_pad) f32
    mask     additive f32, broadcastable to (H, Lq, Lk)
    w_o      (H*dh_pad, Ep) bf16, b_o (1, Ep) f32
    """
    hs = lambda t, h: t[:, h * dh_pad:(h + 1) * dh_pad]          # 128-aligned lane slice
    qh = jnp.stack([hs(q, h) for h in range(nhead)], axis=0)     # (H, Lq, D)
    kh = jnp.stack([hs(k, h) for h in range(nhead)], axis=0)     # (H, Lk, D)
    vh = jnp.stack([hs(v, h) for h in range(nhead)], axis=0)     # (H, Lk, D)
    s = jnp.einsum("hqd,hkd->hqk", qh, kh,
                   preferred_element_type=jnp.float32) * scale + mask
    p = jnp.exp(s - jnp.max(s, axis=-1, keepdims=True))
    p = p / jnp.sum(p, axis=-1, keepdims=True)
    pv = jnp.einsum("hqk,hkd->hqd", p, vh,
                    preferred_element_type=jnp.float32)          # (H, Lq, D)
    ctx = jnp.concatenate([pv[h] for h in range(nhead)], axis=1)  # (Lq, H*D) lane-dense
    return _mm(ctx, w_o, b_o)                                     # single fused out-proj


# ----------------------------- fused stack kernels -----------------------------

def _encoder_stack_kernel(x_ref, kpm_ref,
                          wqkv_ref, bqkv_ref, wo_ref, bo_ref,
                          w1_ref, b1_ref, w2_ref, b2_ref,
                          ln_ref, fin_ref, o_ref,
                          *, nlayers, nhead, dh_pad, inv_e, scale):
    HD = nhead * dh_pad
    h = x_ref[0]                       # (S, Ep) f32, one batch element per grid step
    kpm = kpm_ref[0]                   # (1, S)  additive key-padding mask
    for l in range(nlayers):           # whole encoder stack in ONE launch
        ln = ln_ref[l]                 # (4, 1, Ep)
        # --- self attention: single fused QKV matmul, add & norm 1 ---
        qkv = _mm(h, wqkv_ref[l], bqkv_ref[l])                   # (S, 3*HD)
        attn = _attention(qkv[:, :HD], qkv[:, HD:2 * HD], qkv[:, 2 * HD:],
                          kpm, wo_ref[l], bo_ref[l], nhead, dh_pad, scale)
        h = _ln(h + attn, ln[0], ln[1], inv_e)
        # --- ReLU FFN, add & norm 2 ---
        f = jnp.maximum(_mm(h, w1_ref[l], b1_ref[l]), 0.0)
        f = _mm(f, w2_ref[l], b2_ref[l])
        h = _ln(h + f, ln[2], ln[3], inv_e)
    fin = fin_ref[...]                 # (2, 1, Ep) encoder-stack final LayerNorm
    o_ref[0] = _ln(h, fin[0], fin[1], inv_e)


def _decoder_stack_kernel(y_ref, mem_ref, causal_ref, tkpm_ref, mkpm_ref,
                          swqkv_ref, sbqkv_ref, swo_ref, sbo_ref,
                          cwq_ref, cbq_ref, cwkv_ref, cbkv_ref, cwo_ref, cbo_ref,
                          w1_ref, b1_ref, w2_ref, b2_ref,
                          ln_ref, fin_ref, pw_ref, pb_ref, o_ref,
                          *, nlayers, nhead, dh_pad, inv_e, scale):
    HD = nhead * dh_pad
    h = y_ref[0]                                  # (T, Ep)
    mem = mem_ref[0]                              # (S, Ep) encoder memory for this batch
    self_mask = causal_ref[...] + tkpm_ref[0]     # (T,T) + (1,T) -> (T,T)
    mem_mask = mkpm_ref[0]                        # (1, S)
    for l in range(nlayers):                      # whole decoder stack in ONE launch
        ln = ln_ref[l]                            # (6, 1, Ep)
        # --- masked self attention, add & norm 1 ---
        qkv = _mm(h, swqkv_ref[l], sbqkv_ref[l])
        attn = _attention(qkv[:, :HD], qkv[:, HD:2 * HD], qkv[:, 2 * HD:],
                          self_mask, swo_ref[l], sbo_ref[l], nhead, dh_pad, scale)
        h = _ln(h + attn, ln[0], ln[1], inv_e)
        # --- cross attention over encoder memory, add & norm 2 ---
        q = _mm(h, cwq_ref[l], cbq_ref[l])        # (T, HD)
        kv = _mm(mem, cwkv_ref[l], cbkv_ref[l])   # (S, 2*HD)
        attn = _attention(q, kv[:, :HD], kv[:, HD:],
                          mem_mask, cwo_ref[l], cbo_ref[l], nhead, dh_pad, scale)
        h = _ln(h + attn, ln[2], ln[3], inv_e)
        # --- ReLU FFN, add & norm 3 ---
        f = jnp.maximum(_mm(h, w1_ref[l], b1_ref[l]), 0.0)
        f = _mm(f, w2_ref[l], b2_ref[l])
        h = _ln(h + f, ln[4], ln[5], inv_e)
    fin = fin_ref[...]
    h = _ln(h, fin[0], fin[1], inv_e)
    # fused final LayerNorm + lane-dense (padded) vocab projection
    o_ref[0] = _mm(h, pw_ref[...], pb_ref[...])


# ----------------------------- pallas_call wrappers -----------------------------

def _fullblock(arr):
    nd = arr.ndim
    return pl.BlockSpec(arr.shape, lambda b, _n=nd: (0,) * _n)


def _nbytes(arrs):
    return int(sum(a.size * a.dtype.itemsize for a in arrs))


def encoder_stack(x, src_kpm, p, cfg):
    B, S, Ep = x.shape
    L, H, D, Fp = cfg["nlayers"], cfg["nhead"], cfg["dh_pad"], cfg["Fp"]
    HD = H * D
    ws = [p["e_wqkv"], p["e_bqkv"], p["e_wo"], p["e_bo"],
          p["e_w1"], p["e_b1"], p["e_w2"], p["e_b2"],
          p["e_ln"], p["e_fin"]]
    kern = partial(_encoder_stack_kernel, nlayers=L, nhead=H, dh_pad=D,
                   inv_e=1.0 / cfg["E"], scale=1.0 / math.sqrt(cfg["dh"]))
    flops = 2 * B * L * (S * Ep * 3 * HD + 2 * H * S * S * D + S * HD * Ep
                         + S * Ep * Fp + S * Fp * Ep)
    ce = pl.CostEstimate(flops=int(flops), transcendentals=int(B * L * H * S * S),
                         bytes_accessed=_nbytes([x, src_kpm] + ws) + int(B * S * Ep * 4))
    return pl.pallas_call(
        kern,
        out_shape=jax.ShapeDtypeStruct((B, S, Ep), jnp.float32),
        grid=(B,),
        in_specs=[pl.BlockSpec((1, S, Ep), lambda b: (b, 0, 0)),
                  pl.BlockSpec((1, 1, S), lambda b: (b, 0, 0))] +
                 [_fullblock(w) for w in ws],
        out_specs=pl.BlockSpec((1, S, Ep), lambda b: (b, 0, 0)),
        compiler_params=pltpu.CompilerParams(dimension_semantics=("parallel",)),
        cost_estimate=ce,
    )(x, src_kpm, *ws)


def decoder_stack(y, memory, causal, tgt_kpm, mem_kpm, p, cfg):
    B, T, Ep = y.shape
    S = memory.shape[1]
    L, H, D, Fp, Vp = cfg["nlayers"], cfg["nhead"], cfg["dh_pad"], cfg["Fp"], cfg["Vpad"]
    HD = H * D
    ws = [p["d_swqkv"], p["d_sbqkv"], p["d_swo"], p["d_sbo"],
          p["d_cwq"], p["d_cbq"], p["d_cwkv"], p["d_cbkv"], p["d_cwo"], p["d_cbo"],
          p["d_w1"], p["d_b1"], p["d_w2"], p["d_b2"],
          p["d_ln"], p["d_fin"], p["prj_w"], p["prj_b"]]
    kern = partial(_decoder_stack_kernel, nlayers=L, nhead=H, dh_pad=D,
                   inv_e=1.0 / cfg["E"], scale=1.0 / math.sqrt(cfg["dh"]))
    flops = 2 * B * (L * (T * Ep * 3 * HD + 2 * H * T * T * D + T * HD * Ep
                          + T * Ep * HD + S * Ep * 2 * HD + 2 * H * T * S * D + T * HD * Ep
                          + T * Ep * Fp + T * Fp * Ep)
                     + T * Ep * Vp)
    ce = pl.CostEstimate(flops=int(flops),
                         transcendentals=int(B * L * H * (T * T + T * S)),
                         bytes_accessed=_nbytes([y, memory, causal, tgt_kpm, mem_kpm] + ws)
                                        + int(B * T * Vp * 4))
    return pl.pallas_call(
        kern,
        out_shape=jax.ShapeDtypeStruct((B, T, Vp), jnp.float32),
        grid=(B,),
        in_specs=[pl.BlockSpec((1, T, Ep), lambda b: (b, 0, 0)),
                  pl.BlockSpec((1, S, Ep), lambda b: (b, 0, 0)),
                  _fullblock(causal),
                  pl.BlockSpec((1, 1, T), lambda b: (b, 0, 0)),
                  pl.BlockSpec((1, 1, S), lambda b: (b, 0, 0))] +
                 [_fullblock(w) for w in ws],
        out_specs=pl.BlockSpec((1, T, Vp), lambda b: (b, 0, 0)),
        compiler_params=pltpu.CompilerParams(dimension_semantics=("parallel",)),
        cost_estimate=ce,
    )(y, memory, causal, tgt_kpm, mem_kpm, *ws)


# ----------------------------- model glue -----------------------------

def transformer_forward(params, src, targets, cfg):
    E, V = cfg["E"], cfg["vocab"]
    N, S = src.shape
    _, T = targets.shape

    # tiny additive masks, built in XLA and passed to the kernels
    src_kpm = jnp.where(src == 0, NEG_INF, 0.0).astype(jnp.float32)[:, None, :]   # (N,1,S)
    tgt_kpm = jnp.where(targets == 0, NEG_INF, 0.0).astype(jnp.float32)[:, None, :]
    row = jnp.arange(T, dtype=jnp.int32)[:, None]
    col = jnp.arange(T, dtype=jnp.int32)[None, :]
    causal = jnp.where(col > row, NEG_INF, 0.0).astype(jnp.float32)               # (T,T)

    sqrt_e = math.sqrt(E)
    # NOTE: reproduces the reference quirk — pe is indexed by batch (x.size(0)) and
    # broadcast over sequence positions, because pos_encoder runs before transpose.
    pe = params["pe"][:N][:, None, :]                        # (N, 1, Ep)
    x = params["emb"][src] * sqrt_e + pe                     # (N, S, Ep)
    y = params["emb"][targets] * sqrt_e + pe                 # (N, T, Ep)

    memory = encoder_stack(x, src_kpm, params, cfg)          # (N, S, Ep)
    logits_pad = decoder_stack(y, memory, causal, tgt_kpm, src_kpm, params, cfg)
    return logits_pad[:, :, :V]                              # x_logit_scale = 1.0


# ----------------------------- init -----------------------------

def _xavier(key, shape):
    a = math.sqrt(6.0 / (shape[0] + shape[1]))
    return jax.random.uniform(key, shape, jnp.float32, -a, a)


def _pad2(w, rows, cols):
    out = jnp.zeros((rows, cols), jnp.float32)
    return out.at[:w.shape[0], :w.shape[1]].set(w)


def _pack_head_cols(w, nhead, dh, Ep, dh_pad):
    """(E, E) 'apply'-form q/k/v projection -> (Ep, H*dh_pad), 128-aligned head cols."""
    E = w.shape[0]
    out = jnp.zeros((Ep, nhead * dh_pad), jnp.float32)
    for h in range(nhead):
        out = out.at[:E, h * dh_pad:h * dh_pad + dh].set(w[:, h * dh:(h + 1) * dh])
    return out


def _pack_head_rows(w, nhead, dh, Ep, dh_pad):
    """(E, E) 'apply'-form out projection -> (H*dh_pad, Ep), 128-aligned head rows."""
    E = w.shape[1]
    out = jnp.zeros((nhead * dh_pad, Ep), jnp.float32)
    for h in range(nhead):
        out = out.at[h * dh_pad:h * dh_pad + dh, :E].set(w[h * dh:(h + 1) * dh, :])
    return out


def _pe_table(max_len, E, Ep):
    pos = jnp.arange(max_len, dtype=jnp.float32)[:, None]
    div = jnp.exp(jnp.arange(0, E, 2, dtype=jnp.float32) * (-math.log(10000.0) / E))
    pe = jnp.zeros((max_len, Ep), jnp.float32)
    pe = pe.at[:, 0:E:2].set(jnp.sin(pos * div))
    pe = pe.at[:, 1:E:2].set(jnp.cos(pos * div))
    return pe


def init_params(key, cfg):
    E, Ep, H, dh, D = cfg["E"], cfg["Ep"], cfg["nhead"], cfg["dh"], cfg["dh_pad"]
    HD = H * D
    F, Fp = cfg["nhid"], cfg["Fp"]
    V, Vp = cfg["vocab"], cfg["Vpad"]
    L, max_len = cfg["nlayers"], cfg["max_len"]
    keys = iter(jax.random.split(key, 64))

    def attn_weights(k):
        kq, kk, kv, ko = jax.random.split(k, 4)
        wq = _pack_head_cols(_xavier(kq, (E, E)), H, dh, Ep, D)
        wk = _pack_head_cols(_xavier(kk, (E, E)), H, dh, Ep, D)
        wv = _pack_head_cols(_xavier(kv, (E, E)), H, dh, Ep, D)
        wo = _pack_head_rows(_xavier(ko, (E, E)), H, dh, Ep, D)
        return wq, wk, wv, wo

    def ffn_weights(k):
        k1, k2, kb1, kb2 = jax.random.split(k, 4)
        w1 = _pad2(_xavier(k1, (E, F)), Ep, Fp)
        w2 = _pad2(_xavier(k2, (F, E)), Fp, Ep)
        b1 = _pad2(jax.random.uniform(kb1, (1, F), jnp.float32,
                                      -1.0 / math.sqrt(E), 1.0 / math.sqrt(E)), 1, Fp)
        b2 = _pad2(jax.random.uniform(kb2, (1, E), jnp.float32,
                                      -1.0 / math.sqrt(F), 1.0 / math.sqrt(F)), 1, Ep)
        return w1, b1, w2, b2

    # LayerNorm params: zero gamma/beta in padded lanes keeps the padding invariant.
    ln_g = jnp.zeros((1, Ep), jnp.float32).at[:, :E].set(1.0)
    ln_b = jnp.zeros((1, Ep), jnp.float32)

    # ---- encoder layers (stacked over the layer dim) ----
    e_wqkv, e_wo, e_w1, e_b1, e_w2, e_b2 = [], [], [], [], [], []
    for _ in range(L):
        wq, wk, wv, wo = attn_weights(next(keys))
        e_wqkv.append(jnp.concatenate([wq, wk, wv], axis=1))
        e_wo.append(wo)
        w1, b1, w2, b2 = ffn_weights(next(keys))
        e_w1.append(w1); e_b1.append(b1); e_w2.append(w2); e_b2.append(b2)
    e_ln = jnp.stack([jnp.stack([ln_g, ln_b, ln_g, ln_b], axis=0)] * L, axis=0)   # (L,4,1,Ep)

    # ---- decoder layers ----
    d_swqkv, d_swo, d_cwq, d_cwkv, d_cwo = [], [], [], [], []
    d_w1, d_b1, d_w2, d_b2 = [], [], [], []
    for _ in range(L):
        wq, wk, wv, wo = attn_weights(next(keys))
        d_swqkv.append(jnp.concatenate([wq, wk, wv], axis=1)); d_swo.append(wo)
        wq, wk, wv, wo = attn_weights(next(keys))
        d_cwq.append(wq); d_cwkv.append(jnp.concatenate([wk, wv], axis=1)); d_cwo.append(wo)
        w1, b1, w2, b2 = ffn_weights(next(keys))
        d_w1.append(w1); d_b1.append(b1); d_w2.append(w2); d_b2.append(b2)
    d_ln = jnp.stack([jnp.stack([ln_g, ln_b, ln_g, ln_b, ln_g, ln_b], axis=0)] * L, axis=0)

    fin_ln = jnp.stack([ln_g, ln_b], axis=0)                                      # (2,1,Ep)

    # shared src/trg embedding (emb_src_trg_weight_sharing=True), padding_idx=0
    emb = jnp.zeros((V, Ep), jnp.float32)
    emb = emb.at[:, :E].set(jax.random.uniform(next(keys), (V, E), jnp.float32, -0.1, 0.1))
    emb = emb.at[0].set(0.0)

    # output projection (bias zeroed per init_weights), lane-dense padded vocab dim
    prj_w = _pad2(jax.random.uniform(next(keys), (E, V), jnp.float32, -0.1, 0.1), Ep, Vp)

    bf = lambda a: a.astype(jnp.bfloat16)
    st = lambda lst: jnp.stack(lst, axis=0)
    return {
        "emb": emb,
        "pe": _pe_table(max_len, E, Ep),
        # encoder stack
        "e_wqkv": bf(st(e_wqkv)), "e_bqkv": jnp.zeros((L, 1, 3 * HD), jnp.float32),
        "e_wo": bf(st(e_wo)), "e_bo": jnp.zeros((L, 1, Ep), jnp.float32),
        "e_w1": bf(st(e_w1)), "e_b1": st(e_b1),
        "e_w2": bf(st(e_w2)), "e_b2": st(e_b2),
        "e_ln": e_ln, "e_fin": fin_ln,
        # decoder stack
        "d_swqkv": bf(st(d_swqkv)), "d_sbqkv": jnp.zeros((L, 1, 3 * HD), jnp.float32),
        "d_swo": bf(st(d_swo)), "d_sbo": jnp.zeros((L, 1, Ep), jnp.float32),
        "d_cwq": bf(st(d_cwq)), "d_cbq": jnp.zeros((L, 1, HD), jnp.float32),
        "d_cwkv": bf(st(d_cwkv)), "d_cbkv": jnp.zeros((L, 1, 2 * HD), jnp.float32),
        "d_cwo": bf(st(d_cwo)), "d_cbo": jnp.zeros((L, 1, Ep), jnp.float32),
        "d_w1": bf(st(d_w1)), "d_b1": st(d_b1),
        "d_w2": bf(st(d_w2)), "d_b2": st(d_b2),
        "d_ln": d_ln, "d_fin": fin_ln,
        "prj_w": bf(prj_w), "prj_b": jnp.zeros((1, Vp), jnp.float32),
    }


# ----------------------------- main -----------------------------

if __name__ == "__main__":
    vocab_size = 50
    ninp = 32          # d_model
    nhead = 2
    nhid = 64
    nlayers = 2
    max_len = 512
    batch = 2
    src_len = 8
    tgt_len = 8

    cfg = dict(vocab=vocab_size, E=ninp, nhead=nhead, dh=ninp // nhead,
               nhid=nhid, nlayers=nlayers, max_len=max_len,
               Ep=_round_up(ninp, 128),
               Fp=_round_up(nhid, 128),
               Vpad=_round_up(vocab_size, 128),
               dh_pad=_round_up(ninp // nhead, 128))

    root = jax.random.PRNGKey(0)
    k_par, k_src, k_tgt = jax.random.split(root, 3)
    params = init_params(k_par, cfg)

    src = jax.random.randint(k_src, (batch, src_len), 1, vocab_size, dtype=jnp.int32)
    targets = jax.random.randint(k_tgt, (batch, tgt_len), 1, vocab_size, dtype=jnp.int32)
    # put a padding token (id 0) at the end of each sequence to exercise the masks
    src = src.at[:, -1].set(0)
    targets = targets.at[:, -1].set(0)

    fwd = jax.jit(partial(transformer_forward, cfg=cfg))
    logits = jax.block_until_ready(fwd(params, src, targets))
    assert logits.shape == (batch, tgt_len, vocab_size)
    assert bool(jnp.all(jnp.isfinite(logits)))
    print("KERNEL_OK")
</pallas_src>

<mosaic_0001>
module attributes {stable_mosaic.version = 11 : i64} {
  func.func @_decoder_stack_kernel(%arg0: i32, %arg1: memref<1x8x128xf32, #tpu.memory_space<vmem>>, %arg2: memref<1x8x128xf32, #tpu.memory_space<vmem>>, %arg3: memref<8x8xf32, #tpu.memory_space<vmem>>, %arg4: memref<1x1x8xf32, #tpu.memory_space<vmem>>, %arg5: memref<1x1x8xf32, #tpu.memory_space<vmem>>, %arg6: memref<2x128x768xbf16, #tpu.memory_space<vmem>>, %arg7: memref<2x1x768xf32, #tpu.memory_space<vmem>>, %arg8: memref<2x256x128xbf16, #tpu.memory_space<vmem>>, %arg9: memref<2x1x128xf32, #tpu.memory_space<vmem>>, %arg10: memref<2x128x256xbf16, #tpu.memory_space<vmem>>, %arg11: memref<2x1x256xf32, #tpu.memory_space<vmem>>, %arg12: memref<2x128x512xbf16, #tpu.memory_space<vmem>>, %arg13: memref<2x1x512xf32, #tpu.memory_space<vmem>>, %arg14: memref<2x256x128xbf16, #tpu.memory_space<vmem>>, %arg15: memref<2x1x128xf32, #tpu.memory_space<vmem>>, %arg16: memref<2x128x128xbf16, #tpu.memory_space<vmem>>, %arg17: memref<2x1x128xf32, #tpu.memory_space<vmem>>, %arg18: memref<2x128x128xbf16, #tpu.memory_space<vmem>>, %arg19: memref<2x1x128xf32, #tpu.memory_space<vmem>>, %arg20: memref<2x6x1x128xf32, #tpu.memory_space<vmem>>, %arg21: memref<2x1x128xf32, #tpu.memory_space<vmem>>, %arg22: memref<128x128xbf16, #tpu.memory_space<vmem>>, %arg23: memref<1x128xf32, #tpu.memory_space<vmem>>, %arg24: memref<1x8x128xf32, #tpu.memory_space<vmem>>) attributes {dimension_semantics = [#tpu.dimension_semantics<parallel>], iteration_bounds = array<i64: 2>, scalar_prefetch = 0 : i64, scratch_operands = 0 : i64, tpu.core_type = #tpu.core_type<tc>, window_params = [{transform_indices = @transform_0, window_bounds = array<i64: 1, 8, 128>}, {transform_indices = @transform_1, window_bounds = array<i64: 1, 8, 128>}, {pipeline_mode = #tpu.pipeline_mode<synchronous>, transform_indices = @transform_2, window_bounds = array<i64: 8, 8>}, {transform_indices = @transform_3, window_bounds = array<i64: 1, 1, 8>}, {transform_indices = @transform_4, window_bounds = array<i64: 1, 1, 8>}, {pipeline_mode = #tpu.pipeline_mode<synchronous>, transform_indices = @transform_5, window_bounds = array<i64: 2, 128, 768>}, {pipeline_mode = #tpu.pipeline_mode<synchronous>, transform_indices = @transform_6, window_bounds = array<i64: 2, 1, 768>}, {pipeline_mode = #tpu.pipeline_mode<synchronous>, transform_indices = @transform_7, window_bounds = array<i64: 2, 256, 128>}, {pipeline_mode = #tpu.pipeline_mode<synchronous>, transform_indices = @transform_8, window_bounds = array<i64: 2, 1, 128>}, {pipeline_mode = #tpu.pipeline_mode<synchronous>, transform_indices = @transform_9, window_bounds = array<i64: 2, 128, 256>}, {pipeline_mode = #tpu.pipeline_mode<synchronous>, transform_indices = @transform_10, window_bounds = array<i64: 2, 1, 256>}, {pipeline_mode = #tpu.pipeline_mode<synchronous>, transform_indices = @transform_11, window_bounds = array<i64: 2, 128, 512>}, {pipeline_mode = #tpu.pipeline_mode<synchronous>, transform_indices = @transform_12, window_bounds = array<i64: 2, 1, 512>}, {pipeline_mode = #tpu.pipeline_mode<synchronous>, transform_indices = @transform_13, window_bounds = array<i64: 2, 256, 128>}, {pipeline_mode = #tpu.pipeline_mode<synchronous>, transform_indices = @transform_14, window_bounds = array<i64: 2, 1, 128>}, {pipeline_mode = #tpu.pipeline_mode<synchronous>, transform_indices = @transform_15, window_bounds = array<i64: 2, 128, 128>}, {pipeline_mode = #tpu.pipeline_mode<synchronous>, transform_indices = @transform_16, window_bounds = array<i64: 2, 1, 128>}, {pipeline_mode = #tpu.pipeline_mode<synchronous>, transform_indices = @transform_17, window_bounds = array<i64: 2, 128, 128>}, {pipeline_mode = #tpu.pipeline_mode<synchronous>, transform_indices = @transform_18, window_bounds = array<i64: 2, 1, 128>}, {pipeline_mode = #tpu.pipeline_mode<synchronous>, transform_indices = @transform_19, window_bounds = array<i64: 2, 6, 1, 128>}, {pipeline_mode = #tpu.pipeline_mode<synchronous>, transform_indices = @transform_20, window_bounds = array<i64: 2, 1, 128>}, {pipeline_mode = #tpu.pipeline_mode<synchronous>, transform_indices = @transform_21, window_bounds = array<i64: 128, 128>}, {pipeline_mode = #tpu.pipeline_mode<synchronous>, transform_indices = @transform_22, window_bounds = array<i64: 1, 128>}, {transform_indices = @transform_23, window_bounds = array<i64: 1, 8, 128>}]} {
    %c0 = arith.constant 0 : index
    %c0_0 = arith.constant 0 : index
    %c0_1 = arith.constant 0 : index
    %0 = vector.load %arg1[%c0, %c0_0, %c0_1] : memref<1x8x128xf32, #tpu.memory_space<vmem>>, vector<1x8x128xf32>
    %1 = vector.shape_cast %0 : vector<1x8x128xf32> to vector<8x128xf32>
    %c0_2 = arith.constant 0 : index
    %c0_3 = arith.constant 0 : index
    %c0_4 = arith.constant 0 : index
    %2 = vector.load %arg2[%c0_2, %c0_3, %c0_4] : memref<1x8x128xf32, #tpu.memory_space<vmem>>, vector<1x8x128xf32>
    %3 = vector.shape_cast %2 : vector<1x8x128xf32> to vector<8x128xf32>
    %c0_5 = arith.constant 0 : index
    %c0_6 = arith.constant 0 : index
    %4 = vector.load %arg3[%c0_5, %c0_6] : memref<8x8xf32, #tpu.memory_space<vmem>>, vector<8x8xf32>
    %c0_7 = arith.constant 0 : index
    %c0_8 = arith.constant 0 : index
    %c0_9 = arith.constant 0 : index
    %5 = vector.load %arg4[%c0_7, %c0_8, %c0_9] : memref<1x1x8xf32, #tpu.memory_space<vmem>>, vector<1x1x8xf32>
    %6 = vector.shape_cast %5 : vector<1x1x8xf32> to vector<1x8xf32>
    %7 = vector.broadcast %6 : vector<1x8xf32> to vector<8x8xf32>
    %8 = arith.addf %4, %7 : vector<8x8xf32>
    %c0_10 = arith.constant 0 : index
    %c0_11 = arith.constant 0 : index
    %c0_12 = arith.constant 0 : index
    %9 = vector.load %arg5[%c0_10, %c0_11, %c0_12] : memref<1x1x8xf32, #tpu.memory_space<vmem>>, vector<1x1x8xf32>
    %10 = vector.shape_cast %9 : vector<1x1x8xf32> to vector<1x8xf32>
    %c0_13 = arith.constant 0 : index
    %c0_14 = arith.constant 0 : index
    %c0_15 = arith.constant 0 : index
    %c0_16 = arith.constant 0 : index
    %11 = vector.load %arg20[%c0_13, %c0_14, %c0_15, %c0_16] : memref<2x6x1x128xf32, #tpu.memory_space<vmem>>, vector<1x6x1x128xf32>
    %12 = vector.shape_cast %11 : vector<1x6x1x128xf32> to vector<6x1x128xf32>
    %c0_17 = arith.constant 0 : index
    %c0_18 = arith.constant 0 : index
    %c0_19 = arith.constant 0 : index
    %13 = vector.load %arg6[%c0_17, %c0_18, %c0_19] : memref<2x128x768xbf16, #tpu.memory_space<vmem>>, vector<1x128x768xbf16>
    %14 = vector.shape_cast %13 : vector<1x128x768xbf16> to vector<128x768xbf16>
    %c0_20 = arith.constant 0 : index
    %c0_21 = arith.constant 0 : index
    %c0_22 = arith.constant 0 : index
    %15 = vector.load %arg7[%c0_20, %c0_21, %c0_22] : memref<2x1x768xf32, #tpu.memory_space<vmem>>, vector<1x1x768xf32>
    %16 = vector.shape_cast %15 : vector<1x1x768xf32> to vector<1x768xf32>
    %17 = arith.truncf %1 : vector<8x128xf32> to vector<8x128xbf16>
    %cst = arith.constant dense<0.000000e+00> : vector<8x768xf32>
    %18 = tpu.matmul %17, %14, %cst {dimension_numbers = #tpu.dot_dimension_numbers<[1], [0], [0], [1], [0, 0, 1, 1], [], []>} : vector<8x128xbf16>, vector<128x768xbf16>, vector<8x768xf32> -> vector<8x768xf32>
    %19 = vector.broadcast %16 : vector<1x768xf32> to vector<8x768xf32>
    %20 = arith.addf %18, %19 : vector<8x768xf32>
    %21 = vector.extract_strided_slice %20 {offsets = [0, 0], sizes = [8, 256], strides = [1, 1]} : vector<8x768xf32> to vector<8x256xf32>
    %22 = vector.extract_strided_slice %20 {offsets = [0, 256], sizes = [8, 256], strides = [1, 1]} : vector<8x768xf32> to vector<8x256xf32>
    %23 = vector.extract_strided_slice %20 {offsets = [0, 512], sizes = [8, 256], strides = [1, 1]} : vector<8x768xf32> to vector<8x256xf32>
    %c0_23 = arith.constant 0 : index
    %c0_24 = arith.constant 0 : index
    %c0_25 = arith.constant 0 : index
    %24 = vector.load %arg8[%c0_23, %c0_24, %c0_25] : memref<2x256x128xbf16, #tpu.memory_space<vmem>>, vector<1x256x128xbf16>
    %25 = vector.shape_cast %24 : vector<1x256x128xbf16> to vector<256x128xbf16>
    %c0_26 = arith.constant 0 : index
    %c0_27 = arith.constant 0 : index
    %c0_28 = arith.constant 0 : index
    %26 = vector.load %arg9[%c0_26, %c0_27, %c0_28] : memref<2x1x128xf32, #tpu.memory_space<vmem>>, vector<1x1x128xf32>
    %27 = vector.shape_cast %26 : vector<1x1x128xf32> to vector<1x128xf32>
    %28 = vector.extract_strided_slice %21 {offsets = [0, 0], sizes = [8, 128], strides = [1, 1]} : vector<8x256xf32> to vector<8x128xf32>
    %29 = vector.extract_strided_slice %21 {offsets = [0, 128], sizes = [8, 128], strides = [1, 1]} : vector<8x256xf32> to vector<8x128xf32>
    %30 = vector.shape_cast %28 : vector<8x128xf32> to vector<1x8x128xf32>
    %31 = vector.shape_cast %29 : vector<8x128xf32> to vector<1x8x128xf32>
    %32 = tpu.concatenate %30, %31 in 0 : vector<1x8x128xf32>, vector<1x8x128xf32> -> vector<2x8x128xf32>
    %33 = vector.extract_strided_slice %22 {offsets = [0, 0], sizes = [8, 128], strides = [1, 1]} : vector<8x256xf32> to vector<8x128xf32>
    %34 = vector.extract_strided_slice %22 {offsets = [0, 128], sizes = [8, 128], strides = [1, 1]} : vector<8x256xf32> to vector<8x128xf32>
    %35 = vector.shape_cast %33 : vector<8x128xf32> to vector<1x8x128xf32>
    %36 = vector.shape_cast %34 : vector<8x128xf32> to vector<1x8x128xf32>
    %37 = tpu.concatenate %35, %36 in 0 : vector<1x8x128xf32>, vector<1x8x128xf32> -> vector<2x8x128xf32>
    %38 = vector.extract_strided_slice %23 {offsets = [0, 0], sizes = [8, 128], strides = [1, 1]} : vector<8x256xf32> to vector<8x128xf32>
    %39 = vector.extract_strided_slice %23 {offsets = [0, 128], sizes = [8, 128], strides = [1, 1]} : vector<8x256xf32> to vector<8x128xf32>
    %40 = vector.shape_cast %38 : vector<8x128xf32> to vector<1x8x128xf32>
    %41 = vector.shape_cast %39 : vector<8x128xf32> to vector<1x8x128xf32>
    %42 = tpu.concatenate %40, %41 in 0 : vector<1x8x128xf32>, vector<1x8x128xf32> -> vector<2x8x128xf32>
    "tpu.trace_start"() <{level = 10 : i32, message = "hqd,hkd->hqk"}> : () -> ()
    %cst_29 = arith.constant dense<0.000000e+00> : vector<2x8x8xf32>
    %43 = tpu.matmul %32, %37, %cst_29 {dimension_numbers = #tpu.dot_dimension_numbers<[2], [2], [1], [1], [0, 0, 0, 1, 1, 1], [0], [0]>} : vector<2x8x128xf32>, vector<2x8x128xf32>, vector<2x8x8xf32> -> vector<2x8x8xf32>
    "tpu.trace_stop"() : () -> ()
    %cst_30 = arith.constant 2.500000e-01 : f32
    %44 = vector.broadcast %cst_30 : f32 to vector<2x8x8xf32>
    %45 = arith.mulf %43, %44 : vector<2x8x8xf32>
    %46 = vector.shape_cast %8 : vector<8x8xf32> to vector<1x8x8xf32>
    %47 = vector.broadcast %46 : vector<1x8x8xf32> to vector<2x8x8xf32>
    %48 = arith.addf %45, %47 : vector<2x8x8xf32>
    %cst_31 = arith.constant dense<0xFF800000> : vector<2x8xf32>
    %49 = vector.multi_reduction <maximumf>, %48, %cst_31 [2] : vector<2x8x8xf32> to vector<2x8xf32>
    %50 = vector.shape_cast %49 : vector<2x8xf32> to vector<2x8x1xf32>
    %51 = vector.broadcast %50 : vector<2x8x1xf32> to vector<2x8x8xf32>
    %52 = arith.subf %48, %51 : vector<2x8x8xf32>
    %53 = math.exp %52 : vector<2x8x8xf32>
    %cst_32 = arith.constant dense<0.000000e+00> : vector<2x8xf32>
    %54 = vector.multi_reduction <add>, %53, %cst_32 [2] : vector<2x8x8xf32> to vector<2x8xf32>
    %55 = vector.shape_cast %54 : vector<2x8xf32> to vector<2x8x1xf32>
    %56 = vector.broadcast %55 : vector<2x8x1xf32> to vector<2x8x8xf32>
    %57 = arith.divf %53, %56 : vector<2x8x8xf32>
    "tpu.trace_start"() <{level = 10 : i32, message = "hqk,hkd->hqd"}> : () -> ()
    %cst_33 = arith.constant dense<0.000000e+00> : vector<2x8x128xf32>
    %58 = tpu.matmul %57, %42, %cst_33 {dimension_numbers = #tpu.dot_dimension_numbers<[2], [1], [1], [2], [0, 0, 0, 1, 1, 2], [0], [0]>} : vector<2x8x8xf32>, vector<2x8x128xf32>, vector<2x8x128xf32> -> vector<2x8x128xf32>
    "tpu.trace_stop"() : () -> ()
    %59 = vector.extract_strided_slice %58 {offsets = [0, 0, 0], sizes = [1, 8, 128], strides = [1, 1, 1]} : vector<2x8x128xf32> to vector<1x8x128xf32>
    %60 = vector.shape_cast %59 : vector<1x8x128xf32> to vector<8x128xf32>
    %61 = vector.extract_strided_slice %58 {offsets = [1, 0, 0], sizes = [1, 8, 128], strides = [1, 1, 1]} : vector<2x8x128xf32> to vector<1x8x128xf32>
    %62 = vector.shape_cast %61 : vector<1x8x128xf32> to vector<8x128xf32>
    %63 = tpu.concatenate %60, %62 in 1 : vector<8x128xf32>, vector<8x128xf32> -> vector<8x256xf32>
    %64 = arith.truncf %63 : vector<8x256xf32> to vector<8x256xbf16>
    %cst_34 = arith.constant dense<0.000000e+00> : vector<8x128xf32>
    %65 = tpu.matmul %64, %25, %cst_34 {dimension_numbers = #tpu.dot_dimension_numbers<[1], [0], [0], [1], [0, 0, 1, 1], [], []>} : vector<8x256xbf16>, vector<256x128xbf16>, vector<8x128xf32> -> vector<8x128xf32>
    %66 = vector.broadcast %27 : vector<1x128xf32> to vector<8x128xf32>
    %67 = arith.addf %65, %66 : vector<8x128xf32>
    %68 = arith.addf %1, %67 : vector<8x128xf32>
    %69 = vector.extract_strided_slice %12 {offsets = [0, 0, 0], sizes = [1, 1, 128], strides = [1, 1, 1]} : vector<6x1x128xf32> to vector<1x1x128xf32>
    %70 = vector.shape_cast %69 : vector<1x1x128xf32> to vector<1x128xf32>
    %71 = vector.extract_strided_slice %12 {offsets = [1, 0, 0], sizes = [1, 1, 128], strides = [1, 1, 1]} : vector<6x1x128xf32> to vector<1x1x128xf32>
    %72 = vector.shape_cast %71 : vector<1x1x128xf32> to vector<1x128xf32>
    %cst_35 = arith.constant dense<0.000000e+00> : vector<8xf32>
    %73 = vector.multi_reduction <add>, %68, %cst_35 [1] : vector<8x128xf32> to vector<8xf32>
    %74 = vector.shape_cast %73 : vector<8xf32> to vector<8x1xf32>
    %cst_36 = arith.constant 3.125000e-02 : f32
    %75 = vector.broadcast %cst_36 : f32 to vector<8x1xf32>
    %76 = arith.mulf %74, %75 : vector<8x1xf32>
    %77 = arith.mulf %68, %68 : vector<8x128xf32>
    %cst_37 = arith.constant dense<0.000000e+00> : vector<8xf32>
    %78 = vector.multi_reduction <add>, %77, %cst_37 [1] : vector<8x128xf32> to vector<8xf32>
    %79 = vector.shape_cast %78 : vector<8xf32> to vector<8x1xf32>
    %cst_38 = arith.constant 3.125000e-02 : f32
    %80 = vector.broadcast %cst_38 : f32 to vector<8x1xf32>
    %81 = arith.mulf %79, %80 : vector<8x1xf32>
    %82 = arith.mulf %76, %76 : vector<8x1xf32>
    %83 = arith.subf %81, %82 : vector<8x1xf32>
    %84 = vector.broadcast %76 : vector<8x1xf32> to vector<8x128xf32>
    %85 = arith.subf %68, %84 : vector<8x128xf32>
    %cst_39 = arith.constant 9.99999974E-6 : f32
    %86 = vector.broadcast %cst_39 : f32 to vector<8x1xf32>
    %87 = arith.addf %83, %86 : vector<8x1xf32>
    %88 = math.rsqrt %87 : vector<8x1xf32>
    %89 = vector.broadcast %88 : vector<8x1xf32> to vector<8x128xf32>
    %90 = arith.mulf %85, %89 : vector<8x128xf32>
    %91 = vector.broadcast %70 : vector<1x128xf32> to vector<8x128xf32>
    %92 = arith.mulf %90, %91 : vector<8x128xf32>
    %93 = vector.broadcast %72 : vector<1x128xf32> to vector<8x128xf32>
    %94 = arith.addf %92, %93 : vector<8x128xf32>
    %c0_40 = arith.constant 0 : index
    %c0_41 = arith.constant 0 : index
    %c0_42 = arith.constant 0 : index
    %95 = vector.load %arg10[%c0_40, %c0_41, %c0_42] : memref<2x128x256xbf16, #tpu.memory_space<vmem>>, vector<1x128x256xbf16>
    %96 = vector.shape_cast %95 : vector<1x128x256xbf16> to vector<128x256xbf16>
    %c0_43 = arith.constant 0 : index
    %c0_44 = arith.constant 0 : index
    %c0_45 = arith.constant 0 : index
    %97 = vector.load %arg11[%c0_43, %c0_44, %c0_45] : memref<2x1x256xf32, #tpu.memory_space<vmem>>, vector<1x1x256xf32>
    %98 = vector.shape_cast %97 : vector<1x1x256xf32> to vector<1x256xf32>
    %99 = arith.truncf %94 : vector<8x128xf32> to vector<8x128xbf16>
    %cst_46 = arith.constant dense<0.000000e+00> : vector<8x256xf32>
    %100 = tpu.matmul %99, %96, %cst_46 {dimension_numbers = #tpu.dot_dimension_numbers<[1], [0], [0], [1], [0, 0, 1, 1], [], []>} : vector<8x128xbf16>, vector<128x256xbf16>, vector<8x256xf32> -> vector<8x256xf32>
    %101 = vector.broadcast %98 : vector<1x256xf32> to vector<8x256xf32>
    %102 = arith.addf %100, %101 : vector<8x256xf32>
    %c0_47 = arith.constant 0 : index
    %c0_48 = arith.constant 0 : index
    %c0_49 = arith.constant 0 : index
    %103 = vector.load %arg12[%c0_47, %c0_48, %c0_49] : memref<2x128x512xbf16, #tpu.memory_space<vmem>>, vector<1x128x512xbf16>
    %104 = vector.shape_cast %103 : vector<1x128x512xbf16> to vector<128x512xbf16>
    %c0_50 = arith.constant 0 : index
    %c0_51 = arith.constant 0 : index
    %c0_52 = arith.constant 0 : index
    %105 = vector.load %arg13[%c0_50, %c0_51, %c0_52] : memref<2x1x512xf32, #tpu.memory_space<vmem>>, vector<1x1x512xf32>
    %106 = vector.shape_cast %105 : vector<1x1x512xf32> to vector<1x512xf32>
    %107 = arith.truncf %3 : vector<8x128xf32> to vector<8x128xbf16>
    %cst_53 = arith.constant dense<0.000000e+00> : vector<8x512xf32>
    %108 = tpu.matmul %107, %104, %cst_53 {dimension_numbers = #tpu.dot_dimension_numbers<[1], [0], [0], [1], [0, 0, 1, 1], [], []>} : vector<8x128xbf16>, vector<128x512xbf16>, vector<8x512xf32> -> vector<8x512xf32>
    %109 = vector.broadcast %106 : vector<1x512xf32> to vector<8x512xf32>
    %110 = arith.addf %108, %109 : vector<8x512xf32>
    %111 = vector.extract_strided_slice %110 {offsets = [0, 0], sizes = [8, 256], strides = [1, 1]} : vector<8x512xf32> to vector<8x256xf32>
    %112 = vector.extract_strided_slice %110 {offsets = [0, 256], sizes = [8, 256], strides = [1, 1]} : vector<8x512xf32> to vector<8x256xf32>
    %c0_54 = arith.constant 0 : index
    %c0_55 = arith.constant 0 : index
    %c0_56 = arith.constant 0 : index
    %113 = vector.load %arg14[%c0_54, %c0_55, %c0_56] : memref<2x256x128xbf16, #tpu.memory_space<vmem>>, vector<1x256x128xbf16>
    %114 = vector.shape_cast %113 : vector<1x256x128xbf16> to vector<256x128xbf16>
    %c0_57 = arith.constant 0 : index
    %c0_58 = arith.constant 0 : index
    %c0_59 = arith.constant 0 : index
    %115 = vector.load %arg15[%c0_57, %c0_58, %c0_59] : memref<2x1x128xf32, #tpu.memory_space<vmem>>, vector<1x1x128xf32>
    %116 = vector.shape_cast %115 : vector<1x1x128xf32> to vector<1x128xf32>
    %117 = vector.extract_strided_slice %102 {offsets = [0, 0], sizes = [8, 128], strides = [1, 1]} : vector<8x256xf32> to vector<8x128xf32>
    %118 = vector.extract_strided_slice %102 {offsets = [0, 128], sizes = [8, 128], strides = [1, 1]} : vector<8x256xf32> to vector<8x128xf32>
    %119 = vector.shape_cast %117 : vector<8x128xf32> to vector<1x8x128xf32>
    %120 = vector.shape_cast %118 : vector<8x128xf32> to vector<1x8x128xf32>
    %121 = tpu.concatenate %119, %120 in 0 : vector<1x8x128xf32>, vector<1x8x128xf32> -> vector<2x8x128xf32>
    %122 = vector.extract_strided_slice %111 {offsets = [0, 0], sizes = [8, 128], strides = [1, 1]} : vector<8x256xf32> to vector<8x128xf32>
    %123 = vector.extract_strided_slice %111 {offsets = [0, 128], sizes = [8, 128], strides = [1, 1]} : vector<8x256xf32> to vector<8x128xf32>
    %124 = vector.shape_cast %122 : vector<8x128xf32> to vector<1x8x128xf32>
    %125 = vector.shape_cast %123 : vector<8x128xf32> to vector<1x8x128xf32>
    %126 = tpu.concatenate %124, %125 in 0 : vector<1x8x128xf32>, vector<1x8x128xf32> -> vector<2x8x128xf32>
    %127 = vector.extract_strided_slice %112 {offsets = [0, 0], sizes = [8, 128], strides = [1, 1]} : vector<8x256xf32> to vector<8x128xf32>
    %128 = vector.extract_strided_slice %112 {offsets = [0, 128], sizes = [8, 128], strides = [1, 1]} : vector<8x256xf32> to vector<8x128xf32>
    %129 = vector.shape_cast %127 : vector<8x128xf32> to vector<1x8x128xf32>
    %130 = vector.shape_cast %128 : vector<8x128xf32> to vector<1x8x128xf32>
    %131 = tpu.concatenate %129, %130 in 0 : vector<1x8x128xf32>, vector<1x8x128xf32> -> vector<2x8x128xf32>
    "tpu.trace_start"() <{level = 10 : i32, message = "hqd,hkd->hqk"}> : () -> ()
    %cst_60 = arith.constant dense<0.000000e+00> : vector<2x8x8xf32>
    %132 = tpu.matmul %121, %126, %cst_60 {dimension_numbers = #tpu.dot_dimension_numbers<[2], [2], [1], [1], [0, 0, 0, 1, 1, 1], [0], [0]>} : vector<2x8x128xf32>, vector<2x8x128xf32>, vector<2x8x8xf32> -> vector<2x8x8xf32>
    "tpu.trace_stop"() : () -> ()
    %cst_61 = arith.constant 2.500000e-01 : f32
    %133 = vector.broadcast %cst_61 : f32 to vector<2x8x8xf32>
    %134 = arith.mulf %132, %133 : vector<2x8x8xf32>
    %135 = vector.shape_cast %10 : vector<1x8xf32> to vector<1x1x8xf32>
    %136 = vector.broadcast %135 : vector<1x1x8xf32> to vector<2x8x8xf32>
    %137 = arith.addf %134, %136 : vector<2x8x8xf32>
    %cst_62 = arith.constant dense<0xFF800000> : vector<2x8xf32>
    %138 = vector.multi_reduction <maximumf>, %137, %cst_62 [2] : vector<2x8x8xf32> to vector<2x8xf32>
    %139 = vector.shape_cast %138 : vector<2x8xf32> to vector<2x8x1xf32>
    %140 = vector.broadcast %139 : vector<2x8x1xf32> to vector<2x8x8xf32>
    %141 = arith.subf %137, %140 : vector<2x8x8xf32>
    %142 = math.exp %141 : vector<2x8x8xf32>
    %cst_63 = arith.constant dense<0.000000e+00> : vector<2x8xf32>
    %143 = vector.multi_reduction <add>, %142, %cst_63 [2] : vector<2x8x8xf32> to vector<2x8xf32>
    %144 = vector.shape_cast %143 : vector<2x8xf32> to vector<2x8x1xf32>
    %145 = vector.broadcast %144 : vector<2x8x1xf32> to vector<2x8x8xf32>
    %146 = arith.divf %142, %145 : vector<2x8x8xf32>
    "tpu.trace_start"() <{level = 10 : i32, message = "hqk,hkd->hqd"}> : () -> ()
    %cst_64 = arith.constant dense<0.000000e+00> : vector<2x8x128xf32>
    %147 = tpu.matmul %146, %131, %cst_64 {dimension_numbers = #tpu.dot_dimension_numbers<[2], [1], [1], [2], [0, 0, 0, 1, 1, 2], [0], [0]>} : vector<2x8x8xf32>, vector<2x8x128xf32>, vector<2x8x128xf32> -> vector<2x8x128xf32>
    "tpu.trace_stop"() : () -> ()
    %148 = vector.extract_strided_slice %147 {offsets = [0, 0, 0], sizes = [1, 8, 128], strides = [1, 1, 1]} : vector<2x8x128xf32> to vector<1x8x128xf32>
    %149 = vector.shape_cast %148 : vector<1x8x128xf32> to vector<8x128xf32>
    %150 = vector.extract_strided_slice %147 {offsets = [1, 0, 0], sizes = [1, 8, 128], strides = [1, 1, 1]} : vector<2x8x128xf32> to vector<1x8x128xf32>
    %151 = vector.shape_cast %150 : vector<1x8x128xf32> to vector<8x128xf32>
    %152 = tpu.concatenate %149, %151 in 1 : vector<8x128xf32>, vector<8x128xf32> -> vector<8x256xf32>
    %153 = arith.truncf %152 : vector<8x256xf32> to vector<8x256xbf16>
    %cst_65 = arith.constant dense<0.000000e+00> : vector<8x128xf32>
    %154 = tpu.matmul %153, %114, %cst_65 {dimension_numbers = #tpu.dot_dimension_numbers<[1], [0], [0], [1], [0, 0, 1, 1], [], []>} : vector<8x256xbf16>, vector<256x128xbf16>, vector<8x128xf32> -> vector<8x128xf32>
    %155 = vector.broadcast %116 : vector<1x128xf32> to vector<8x128xf32>
    %156 = arith.addf %154, %155 : vector<8x128xf32>
    %157 = arith.addf %94, %156 : vector<8x128xf32>
    %158 = vector.extract_strided_slice %12 {offsets = [2, 0, 0], sizes = [1, 1, 128], strides = [1, 1, 1]} : vector<6x1x128xf32> to vector<1x1x128xf32>
    %159 = vector.shape_cast %158 : vector<1x1x128xf32> to vector<1x128xf32>
    %160 = vector.extract_strided_slice %12 {offsets = [3, 0, 0], sizes = [1, 1, 128], strides = [1, 1, 1]} : vector<6x1x128xf32> to vector<1x1x128xf32>
    %161 = vector.shape_cast %160 : vector<1x1x128xf32> to vector<1x128xf32>
    %cst_66 = arith.constant dense<0.000000e+00> : vector<8xf32>
    %162 = vector.multi_reduction <add>, %157, %cst_66 [1] : vector<8x128xf32> to vector<8xf32>
    %163 = vector.shape_cast %162 : vector<8xf32> to vector<8x1xf32>
    %cst_67 = arith.constant 3.125000e-02 : f32
    %164 = vector.broadcast %cst_67 : f32 to vector<8x1xf32>
    %165 = arith.mulf %163, %164 : vector<8x1xf32>
    %166 = arith.mulf %157, %157 : vector<8x128xf32>
    %cst_68 = arith.constant dense<0.000000e+00> : vector<8xf32>
    %167 = vector.multi_reduction <add>, %166, %cst_68 [1] : vector<8x128xf32> to vector<8xf32>
    %168 = vector.shape_cast %167 : vector<8xf32> to vector<8x1xf32>
    %cst_69 = arith.constant 3.125000e-02 : f32
    %169 = vector.broadcast %cst_69 : f32 to vector<8x1xf32>
    %170 = arith.mulf %168, %169 : vector<8x1xf32>
    %171 = arith.mulf %165, %165 : vector<8x1xf32>
    %172 = arith.subf %170, %171 : vector<8x1xf32>
    %173 = vector.broadcast %165 : vector<8x1xf32> to vector<8x128xf32>
    %174 = arith.subf %157, %173 : vector<8x128xf32>
    %cst_70 = arith.constant 9.99999974E-6 : f32
    %175 = vector.broadcast %cst_70 : f32 to vector<8x1xf32>
    %176 = arith.addf %172, %175 : vector<8x1xf32>
    %177 = math.rsqrt %176 : vector<8x1xf32>
    %178 = vector.broadcast %177 : vector<8x1xf32> to vector<8x128xf32>
    %179 = arith.mulf %174, %178 : vector<8x128xf32>
    %180 = vector.broadcast %159 : vector<1x128xf32> to vector<8x128xf32>
    %181 = arith.mulf %179, %180 : vector<8x128xf32>
    %182 = vector.broadcast %161 : vector<1x128xf32> to vector<8x128xf32>
    %183 = arith.addf %181, %182 : vector<8x128xf32>
    %c0_71 = arith.constant 0 : index
    %c0_72 = arith.constant 0 : index
    %c0_73 = arith.constant 0 : index
    %184 = vector.load %arg16[%c0_71, %c0_72, %c0_73] : memref<2x128x128xbf16, #tpu.memory_space<vmem>>, vector<1x128x128xbf16>
    %185 = vector.shape_cast %184 : vector<1x128x128xbf16> to vector<128x128xbf16>
    %c0_74 = arith.constant 0 : index
    %c0_75 = arith.constant 0 : index
    %c0_76 = arith.constant 0 : index
    %186 = vector.load %arg17[%c0_74, %c0_75, %c0_76] : memref<2x1x128xf32, #tpu.memory_space<vmem>>, vector<1x1x128xf32>
    %187 = vector.shape_cast %186 : vector<1x1x128xf32> to vector<1x128xf32>
    %188 = arith.truncf %183 : vector<8x128xf32> to vector<8x128xbf16>
    %cst_77 = arith.constant dense<0.000000e+00> : vector<8x128xf32>
    %189 = tpu.matmul %188, %185, %cst_77 {dimension_numbers = #tpu.dot_dimension_numbers<[1], [0], [0], [1], [0, 0, 1, 1], [], []>} : vector<8x128xbf16>, vector<128x128xbf16>, vector<8x128xf32> -> vector<8x128xf32>
    %190 = vector.broadcast %187 : vector<1x128xf32> to vector<8x128xf32>
    %191 = arith.addf %189, %190 : vector<8x128xf32>
    %cst_78 = arith.constant 0.000000e+00 : f32
    %192 = vector.broadcast %cst_78 : f32 to vector<8x128xf32>
    %193 = arith.maximumf %191, %192 : vector<8x128xf32>
    %c0_79 = arith.constant 0 : index
    %c0_80 = arith.constant 0 : index
    %c0_81 = arith.constant 0 : index
    %194 = vector.load %arg18[%c0_79, %c0_80, %c0_81] : memref<2x128x128xbf16, #tpu.memory_space<vmem>>, vector<1x128x128xbf16>
    %195 = vector.shape_cast %194 : vector<1x128x128xbf16> to vector<128x128xbf16>
    %c0_82 = arith.constant 0 : index
    %c0_83 = arith.constant 0 : index
    %c0_84 = arith.constant 0 : index
    %196 = vector.load %arg19[%c0_82, %c0_83, %c0_84] : memref<2x1x128xf32, #tpu.memory_space<vmem>>, vector<1x1x128xf32>
    %197 = vector.shape_cast %196 : vector<1x1x128xf32> to vector<1x128xf32>
    %198 = arith.truncf %193 : vector<8x128xf32> to vector<8x128xbf16>
    %cst_85 = arith.constant dense<0.000000e+00> : vector<8x128xf32>
    %199 = tpu.matmul %198, %195, %cst_85 {dimension_numbers = #tpu.dot_dimension_numbers<[1], [0], [0], [1], [0, 0, 1, 1], [], []>} : vector<8x128xbf16>, vector<128x128xbf16>, vector<8x128xf32> -> vector<8x128xf32>
    %200 = vector.broadcast %197 : vector<1x128xf32> to vector<8x128xf32>
    %201 = arith.addf %199, %200 : vector<8x128xf32>
    %202 = arith.addf %183, %201 : vector<8x128xf32>
    %203 = vector.extract_strided_slice %12 {offsets = [4, 0, 0], sizes = [1, 1, 128], strides = [1, 1, 1]} : vector<6x1x128xf32> to vector<1x1x128xf32>
    %204 = vector.shape_cast %203 : vector<1x1x128xf32> to vector<1x128xf32>
    %205 = vector.extract_strided_slice %12 {offsets = [5, 0, 0], sizes = [1, 1, 128], strides = [1, 1, 1]} : vector<6x1x128xf32> to vector<1x1x128xf32>
    %206 = vector.shape_cast %205 : vector<1x1x128xf32> to vector<1x128xf32>
    %cst_86 = arith.constant dense<0.000000e+00> : vector<8xf32>
    %207 = vector.multi_reduction <add>, %202, %cst_86 [1] : vector<8x128xf32> to vector<8xf32>
    %208 = vector.shape_cast %207 : vector<8xf32> to vector<8x1xf32>
    %cst_87 = arith.constant 3.125000e-02 : f32
    %209 = vector.broadcast %cst_87 : f32 to vector<8x1xf32>
    %210 = arith.mulf %208, %209 : vector<8x1xf32>
    %211 = arith.mulf %202, %202 : vector<8x128xf32>
    %cst_88 = arith.constant dense<0.000000e+00> : vector<8xf32>
    %212 = vector.multi_reduction <add>, %211, %cst_88 [1] : vector<8x128xf32> to vector<8xf32>
    %213 = vector.shape_cast %212 : vector<8xf32> to vector<8x1xf32>
    %cst_89 = arith.constant 3.125000e-02 : f32
    %214 = vector.broadcast %cst_89 : f32 to vector<8x1xf32>
    %215 = arith.mulf %213, %214 : vector<8x1xf32>
    %216 = arith.mulf %210, %210 : vector<8x1xf32>
    %217 = arith.subf %215, %216 : vector<8x1xf32>
    %218 = vector.broadcast %210 : vector<8x1xf32> to vector<8x128xf32>
    %219 = arith.subf %202, %218 : vector<8x128xf32>
    %cst_90 = arith.constant 9.99999974E-6 : f32
    %220 = vector.broadcast %cst_90 : f32 to vector<8x1xf32>
    %221 = arith.addf %217, %220 : vector<8x1xf32>
    %222 = math.rsqrt %221 : vector<8x1xf32>
    %223 = vector.broadcast %222 : vector<8x1xf32> to vector<8x128xf32>
    %224 = arith.mulf %219, %223 : vector<8x128xf32>
    %225 = vector.broadcast %204 : vector<1x128xf32> to vector<8x128xf32>
    %226 = arith.mulf %224, %225 : vector<8x128xf32>
    %227 = vector.broadcast %206 : vector<1x128xf32> to vector<8x128xf32>
    %228 = arith.addf %226, %227 : vector<8x128xf32>
    %c1 = arith.constant 1 : index
    %c0_91 = arith.constant 0 : index
    %c0_92 = arith.constant 0 : index
    %c0_93 = arith.constant 0 : index
    %229 = vector.load %arg20[%c1, %c0_91, %c0_92, %c0_93] : memref<2x6x1x128xf32, #tpu.memory_space<vmem>>, vector<1x6x1x128xf32>
    %230 = vector.shape_cast %229 : vector<1x6x1x128xf32> to vector<6x1x128xf32>
    %c1_94 = arith.constant 1 : index
    %c0_95 = arith.constant 0 : index
    %c0_96 = arith.constant 0 : index
    %231 = vector.load %arg6[%c1_94, %c0_95, %c0_96] : memref<2x128x768xbf16, #tpu.memory_space<vmem>>, vector<1x128x768xbf16>
    %232 = vector.shape_cast %231 : vector<1x128x768xbf16> to vector<128x768xbf16>
    %c1_97 = arith.constant 1 : index
    %c0_98 = arith.constant 0 : index
    %c0_99 = arith.constant 0 : index
    %233 = vector.load %arg7[%c1_97, %c0_98, %c0_99] : memref<2x1x768xf32, #tpu.memory_space<vmem>>, vector<1x1x768xf32>
    %234 = vector.shape_cast %233 : vector<1x1x768xf32> to vector<1x768xf32>
    %235 = arith.truncf %228 : vector<8x128xf32> to vector<8x128xbf16>
    %cst_100 = arith.constant dense<0.000000e+00> : vector<8x768xf32>
    %236 = tpu.matmul %235, %232, %cst_100 {dimension_numbers = #tpu.dot_dimension_numbers<[1], [0], [0], [1], [0, 0, 1, 1], [], []>} : vector<8x128xbf16>, vector<128x768xbf16>, vector<8x768xf32> -> vector<8x768xf32>
    %237 = vector.broadcast %234 : vector<1x768xf32> to vector<8x768xf32>
    %238 = arith.addf %236, %237 : vector<8x768xf32>
    %239 = vector.extract_strided_slice %238 {offsets = [0, 0], sizes = [8, 256], strides = [1, 1]} : vector<8x768xf32> to vector<8x256xf32>
    %240 = vector.extract_strided_slice %238 {offsets = [0, 256], sizes = [8, 256], strides = [1, 1]} : vector<8x768xf32> to vector<8x256xf32>
    %241 = vector.extract_strided_slice %238 {offsets = [0, 512], sizes = [8, 256], strides = [1, 1]} : vector<8x768xf32> to vector<8x256xf32>
    %c1_101 = arith.constant 1 : index
    %c0_102 = arith.constant 0 : index
    %c0_103 = arith.constant 0 : index
    %242 = vector.load %arg8[%c1_101, %c0_102, %c0_103] : memref<2x256x128xbf16, #tpu.memory_space<vmem>>, vector<1x256x128xbf16>
    %243 = vector.shape_cast %242 : vector<1x256x128xbf16> to vector<256x128xbf16>
    %c1_104 = arith.constant 1 : index
    %c0_105 = arith.constant 0 : index
    %c0_106 = arith.constant 0 : index
    %244 = vector.load %arg9[%c1_104, %c0_105, %c0_106] : memref<2x1x128xf32, #tpu.memory_space<vmem>>, vector<1x1x128xf32>
    %245 = vector.shape_cast %244 : vector<1x1x128xf32> to vector<1x128xf32>
    %246 = vector.extract_strided_slice %239 {offsets = [0, 0], sizes = [8, 128], strides = [1, 1]} : vector<8x256xf32> to vector<8x128xf32>
    %247 = vector.extract_strided_slice %239 {offsets = [0, 128], sizes = [8, 128], strides = [1, 1]} : vector<8x256xf32> to vector<8x128xf32>
    %248 = vector.shape_cast %246 : vector<8x128xf32> to vector<1x8x128xf32>
    %249 = vector.shape_cast %247 : vector<8x128xf32> to vector<1x8x128xf32>
    %250 = tpu.concatenate %248, %249 in 0 : vector<1x8x128xf32>, vector<1x8x128xf32> -> vector<2x8x128xf32>
    %251 = vector.extract_strided_slice %240 {offsets = [0, 0], sizes = [8, 128], strides = [1, 1]} : vector<8x256xf32> to vector<8x128xf32>
    %252 = vector.extract_strided_slice %240 {offsets = [0, 128], sizes = [8, 128], strides = [1, 1]} : vector<8x256xf32> to vector<8x128xf32>
    %253 = vector.shape_cast %251 : vector<8x128xf32> to vector<1x8x128xf32>
    %254 = vector.shape_cast %252 : vector<8x128xf32> to vector<1x8x128xf32>
    %255 = tpu.concatenate %253, %254 in 0 : vector<1x8x128xf32>, vector<1x8x128xf32> -> vector<2x8x128xf32>
    %256 = vector.extract_strided_slice %241 {offsets = [0, 0], sizes = [8, 128], strides = [1, 1]} : vector<8x256xf32> to vector<8x128xf32>
    %257 = vector.extract_strided_slice %241 {offsets = [0, 128], sizes = [8, 128], strides = [1, 1]} : vector<8x256xf32> to vector<8x128xf32>
    %258 = vector.shape_cast %256 : vector<8x128xf32> to vector<1x8x128xf32>
    %259 = vector.shape_cast %257 : vector<8x128xf32> to vector<1x8x128xf32>
    %260 = tpu.concatenate %258, %259 in 0 : vector<1x8x128xf32>, vector<1x8x128xf32> -> vector<2x8x128xf32>
    "tpu.trace_start"() <{level = 10 : i32, message = "hqd,hkd->hqk"}> : () -> ()
    %cst_107 = arith.constant dense<0.000000e+00> : vector<2x8x8xf32>
    %261 = tpu.matmul %250, %255, %cst_107 {dimension_numbers = #tpu.dot_dimension_numbers<[2], [2], [1], [1], [0, 0, 0, 1, 1, 1], [0], [0]>} : vector<2x8x128xf32>, vector<2x8x128xf32>, vector<2x8x8xf32> -> vector<2x8x8xf32>
    "tpu.trace_stop"() : () -> ()
    %cst_108 = arith.constant 2.500000e-01 : f32
    %262 = vector.broadcast %cst_108 : f32 to vector<2x8x8xf32>
    %263 = arith.mulf %261, %262 : vector<2x8x8xf32>
    %264 = vector.shape_cast %8 : vector<8x8xf32> to vector<1x8x8xf32>
    %265 = vector.broadcast %264 : vector<1x8x8xf32> to vector<2x8x8xf32>
    %266 = arith.addf %263, %265 : vector<2x8x8xf32>
    %cst_109 = arith.constant dense<0xFF800000> : vector<2x8xf32>
    %267 = vector.multi_reduction <maximumf>, %266, %cst_109 [2] : vector<2x8x8xf32> to vector<2x8xf32>
    %268 = vector.shape_cast %267 : vector<2x8xf32> to vector<2x8x1xf32>
    %269 = vector.broadcast %268 : vector<2x8x1xf32> to vector<2x8x8xf32>
    %270 = arith.subf %266, %269 : vector<2x8x8xf32>
    %271 = math.exp %270 : vector<2x8x8xf32>
    %cst_110 = arith.constant dense<0.000000e+00> : vector<2x8xf32>
    %272 = vector.multi_reduction <add>, %271, %cst_110 [2] : vector<2x8x8xf32> to vector<2x8xf32>
    %273 = vector.shape_cast %272 : vector<2x8xf32> to vector<2x8x1xf32>
    %274 = vector.broadcast %273 : vector<2x8x1xf32> to vector<2x8x8xf32>
    %275 = arith.divf %271, %274 : vector<2x8x8xf32>
    "tpu.trace_start"() <{level = 10 : i32, message = "hqk,hkd->hqd"}> : () -> ()
    %cst_111 = arith.constant dense<0.000000e+00> : vector<2x8x128xf32>
    %276 = tpu.matmul %275, %260, %cst_111 {dimension_numbers = #tpu.dot_dimension_numbers<[2], [1], [1], [2], [0, 0, 0, 1, 1, 2], [0], [0]>} : vector<2x8x8xf32>, vector<2x8x128xf32>, vector<2x8x128xf32> -> vector<2x8x128xf32>
    "tpu.trace_stop"() : () -> ()
    %277 = vector.extract_strided_slice %276 {offsets = [0, 0, 0], sizes = [1, 8, 128], strides = [1, 1, 1]} : vector<2x8x128xf32> to vector<1x8x128xf32>
    %278 = vector.shape_cast %277 : vector<1x8x128xf32> to vector<8x128xf32>
    %279 = vector.extract_strided_slice %276 {offsets = [1, 0, 0], sizes = [1, 8, 128], strides = [1, 1, 1]} : vector<2x8x128xf32> to vector<1x8x128xf32>
    %280 = vector.shape_cast %279 : vector<1x8x128xf32> to vector<8x128xf32>
    %281 = tpu.concatenate %278, %280 in 1 : vector<8x128xf32>, vector<8x128xf32> -> vector<8x256xf32>
    %282 = arith.truncf %281 : vector<8x256xf32> to vector<8x256xbf16>
    %cst_112 = arith.constant dense<0.000000e+00> : vector<8x128xf32>
    %283 = tpu.matmul %282, %243, %cst_112 {dimension_numbers = #tpu.dot_dimension_numbers<[1], [0], [0], [1], [0, 0, 1, 1], [], []>} : vector<8x256xbf16>, vector<256x128xbf16>, vector<8x128xf32> -> vector<8x128xf32>
    %284 = vector.broadcast %245 : vector<1x128xf32> to vector<8x128xf32>
    %285 = arith.addf %283, %284 : vector<8x128xf32>
    %286 = arith.addf %228, %285 : vector<8x128xf32>
    %287 = vector.extract_strided_slice %230 {offsets = [0, 0, 0], sizes = [1, 1, 128], strides = [1, 1, 1]} : vector<6x1x128xf32> to vector<1x1x128xf32>
    %288 = vector.shape_cast %287 : vector<1x1x128xf32> to vector<1x128xf32>
    %289 = vector.extract_strided_slice %230 {offsets = [1, 0, 0], sizes = [1, 1, 128], strides = [1, 1, 1]} : vector<6x1x128xf32> to vector<1x1x128xf32>
    %290 = vector.shape_cast %289 : vector<1x1x128xf32> to vector<1x128xf32>
    %cst_113 = arith.constant dense<0.000000e+00> : vector<8xf32>
    %291 = vector.multi_reduction <add>, %286, %cst_113 [1] : vector<8x128xf32> to vector<8xf32>
    %292 = vector.shape_cast %291 : vector<8xf32> to vector<8x1xf32>
    %cst_114 = arith.constant 3.125000e-02 : f32
    %293 = vector.broadcast %cst_114 : f32 to vector<8x1xf32>
    %294 = arith.mulf %292, %293 : vector<8x1xf32>
    %295 = arith.mulf %286, %286 : vector<8x128xf32>
    %cst_115 = arith.constant dense<0.000000e+00> : vector<8xf32>
    %296 = vector.multi_reduction <add>, %295, %cst_115 [1] : vector<8x128xf32> to vector<8xf32>
    %297 = vector.shape_cast %296 : vector<8xf32> to vector<8x1xf32>
    %cst_116 = arith.constant 3.125000e-02 : f32
    %298 = vector.broadcast %cst_116 : f32 to vector<8x1xf32>
    %299 = arith.mulf %297, %298 : vector<8x1xf32>
    %300 = arith.mulf %294, %294 : vector<8x1xf32>
    %301 = arith.subf %299, %300 : vector<8x1xf32>
    %302 = vector.broadcast %294 : vector<8x1xf32> to vector<8x128xf32>
    %303 = arith.subf %286, %302 : vector<8x128xf32>
    %cst_117 = arith.constant 9.99999974E-6 : f32
    %304 = vector.broadcast %cst_117 : f32 to vector<8x1xf32>
    %305 = arith.addf %301, %304 : vector<8x1xf32>
    %306 = math.rsqrt %305 : vector<8x1xf32>
    %307 = vector.broadcast %306 : vector<8x1xf32> to vector<8x128xf32>
    %308 = arith.mulf %303, %307 : vector<8x128xf32>
    %309 = vector.broadcast %288 : vector<1x128xf32> to vector<8x128xf32>
    %310 = arith.mulf %308, %309 : vector<8x128xf32>
    %311 = vector.broadcast %290 : vector<1x128xf32> to vector<8x128xf32>
    %312 = arith.addf %310, %311 : vector<8x128xf32>
    %c1_118 = arith.constant 1 : index
    %c0_119 = arith.constant 0 : index
    %c0_120 = arith.constant 0 : index
    %313 = vector.load %arg10[%c1_118, %c0_119, %c0_120] : memref<2x128x256xbf16, #tpu.memory_space<vmem>>, vector<1x128x256xbf16>
    %314 = vector.shape_cast %313 : vector<1x128x256xbf16> to vector<128x256xbf16>
    %c1_121 = arith.constant 1 : index
    %c0_122 = arith.constant 0 : index
    %c0_123 = arith.constant 0 : index
    %315 = vector.load %arg11[%c1_121, %c0_122, %c0_123] : memref<2x1x256xf32, #tpu.memory_space<vmem>>, vector<1x1x256xf32>
    %316 = vector.shape_cast %315 : vector<1x1x256xf32> to vector<1x256xf32>
    %317 = arith.truncf %312 : vector<8x128xf32> to vector<8x128xbf16>
    %cst_124 = arith.constant dense<0.000000e+00> : vector<8x256xf32>
    %318 = tpu.matmul %317, %314, %cst_124 {dimension_numbers = #tpu.dot_dimension_numbers<[1], [0], [0], [1], [0, 0, 1, 1], [], []>} : vector<8x128xbf16>, vector<128x256xbf16>, vector<8x256xf32> -> vector<8x256xf32>
    %319 = vector.broadcast %316 : vector<1x256xf32> to vector<8x256xf32>
    %320 = arith.addf %318, %319 : vector<8x256xf32>
    %c1_125 = arith.constant 1 : index
    %c0_126 = arith.constant 0 : index
    %c0_127 = arith.constant 0 : index
    %321 = vector.load %arg12[%c1_125, %c0_126, %c0_127] : memref<2x128x512xbf16, #tpu.memory_space<vmem>>, vector<1x128x512xbf16>
    %322 = vector.shape_cast %321 : vector<1x128x512xbf16> to vector<128x512xbf16>
    %c1_128 = arith.constant 1 : index
    %c0_129 = arith.constant 0 : index
    %c0_130 = arith.constant 0 : index
    %323 = vector.load %arg13[%c1_128, %c0_129, %c0_130] : memref<2x1x512xf32, #tpu.memory_space<vmem>>, vector<1x1x512xf32>
    %324 = vector.shape_cast %323 : vector<1x1x512xf32> to vector<1x512xf32>
    %325 = arith.truncf %3 : vector<8x128xf32> to vector<8x128xbf16>
    %cst_131 = arith.constant dense<0.000000e+00> : vector<8x512xf32>
    %326 = tpu.matmul %325, %322, %cst_131 {dimension_numbers = #tpu.dot_dimension_numbers<[1], [0], [0], [1], [0, 0, 1, 1], [], []>} : vector<8x128xbf16>, vector<128x512xbf16>, vector<8x512xf32> -> vector<8x512xf32>
    %327 = vector.broadcast %324 : vector<1x512xf32> to vector<8x512xf32>
    %328 = arith.addf %326, %327 : vector<8x512xf32>
    %329 = vector.extract_strided_slice %328 {offsets = [0, 0], sizes = [8, 256], strides = [1, 1]} : vector<8x512xf32> to vector<8x256xf32>
    %330 = vector.extract_strided_slice %328 {offsets = [0, 256], sizes = [8, 256], strides = [1, 1]} : vector<8x512xf32> to vector<8x256xf32>
    %c1_132 = arith.constant 1 : index
    %c0_133 = arith.constant 0 : index
    %c0_134 = arith.constant 0 : index
    %331 = vector.load %arg14[%c1_132, %c0_133, %c0_134] : memref<2x256x128xbf16, #tpu.memory_space<vmem>>, vector<1x256x128xbf16>
    %332 = vector.shape_cast %331 : vector<1x256x128xbf16> to vector<256x128xbf16>
    %c1_135 = arith.constant 1 : index
    %c0_136 = arith.constant 0 : index
    %c0_137 = arith.constant 0 : index
    %333 = vector.load %arg15[%c1_135, %c0_136, %c0_137] : memref<2x1x128xf32, #tpu.memory_space<vmem>>, vector<1x1x128xf32>
    %334 = vector.shape_cast %333 : vector<1x1x128xf32> to vector<1x128xf32>
    %335 = vector.extract_strided_slice %320 {offsets = [0, 0], sizes = [8, 128], strides = [1, 1]} : vector<8x256xf32> to vector<8x128xf32>
    %336 = vector.extract_strided_slice %320 {offsets = [0, 128], sizes = [8, 128], strides = [1, 1]} : vector<8x256xf32> to vector<8x128xf32>
    %337 = vector.shape_cast %335 : vector<8x128xf32> to vector<1x8x128xf32>
    %338 = vector.shape_cast %336 : vector<8x128xf32> to vector<1x8x128xf32>
    %339 = tpu.concatenate %337, %338 in 0 : vector<1x8x128xf32>, vector<1x8x128xf32> -> vector<2x8x128xf32>
    %340 = vector.extract_strided_slice %329 {offsets = [0, 0], sizes = [8, 128], strides = [1, 1]} : vector<8x256xf32> to vector<8x128xf32>
    %341 = vector.extract_strided_slice %329 {offsets = [0, 128], sizes = [8, 128], strides = [1, 1]} : vector<8x256xf32> to vector<8x128xf32>
    %342 = vector.shape_cast %340 : vector<8x128xf32> to vector<1x8x128xf32>
    %343 = vector.shape_cast %341 : vector<8x128xf32> to vector<1x8x128xf32>
    %344 = tpu.concatenate %342, %343 in 0 : vector<1x8x128xf32>, vector<1x8x128xf32> -> vector<2x8x128xf32>
    %345 = vector.extract_strided_slice %330 {offsets = [0, 0], sizes = [8, 128], strides = [1, 1]} : vector<8x256xf32> to vector<8x128xf32>
    %346 = vector.extract_strided_slice %330 {offsets = [0, 128], sizes = [8, 128], strides = [1, 1]} : vector<8x256xf32> to vector<8x128xf32>
    %347 = vector.shape_cast %345 : vector<8x128xf32> to vector<1x8x128xf32>
    %348 = vector.shape_cast %346 : vector<8x128xf32> to vector<1x8x128xf32>
    %349 = tpu.concatenate %347, %348 in 0 : vector<1x8x128xf32>, vector<1x8x128xf32> -> vector<2x8x128xf32>
    "tpu.trace_start"() <{level = 10 : i32, message = "hqd,hkd->hqk"}> : () -> ()
    %cst_138 = arith.constant dense<0.000000e+00> : vector<2x8x8xf32>
    %350 = tpu.matmul %339, %344, %cst_138 {dimension_numbers = #tpu.dot_dimension_numbers<[2], [2], [1], [1], [0, 0, 0, 1, 1, 1], [0], [0]>} : vector<2x8x128xf32>, vector<2x8x128xf32>, vector<2x8x8xf32> -> vector<2x8x8xf32>
    "tpu.trace_stop"() : () -> ()
    %cst_139 = arith.constant 2.500000e-01 : f32
    %351 = vector.broadcast %cst_139 : f32 to vector<2x8x8xf32>
    %352 = arith.mulf %350, %351 : vector<2x8x8xf32>
    %353 = vector.shape_cast %10 : vector<1x8xf32> to vector<1x1x8xf32>
    %354 = vector.broadcast %353 : vector<1x1x8xf32> to vector<2x8x8xf32>
    %355 = arith.addf %352, %354 : vector<2x8x8xf32>
    %cst_140 = arith.constant dense<0xFF800000> : vector<2x8xf32>
    %356 = vector.multi_reduction <maximumf>, %355, %cst_140 [2] : vector<2x8x8xf32> to vector<2x8xf32>
    %357 = vector.shape_cast %356 : vector<2x8xf32> to vector<2x8x1xf32>
    %358 = vector.broadcast %357 : vector<2x8x1xf32> to vector<2x8x8xf32>
    %359 = arith.subf %355, %358 : vector<2x8x8xf32>
    %360 = math.exp %359 : vector<2x8x8xf32>
    %cst_141 = arith.constant dense<0.000000e+00> : vector<2x8xf32>
    %361 = vector.multi_reduction <add>, %360, %cst_141 [2] : vector<2x8x8xf32> to vector<2x8xf32>
    %362 = vector.shape_cast %361 : vector<2x8xf32> to vector<2x8x1xf32>
    %363 = vector.broadcast %362 : vector<2x8x1xf32> to vector<2x8x8xf32>
    %364 = arith.divf %360, %363 : vector<2x8x8xf32>
    "tpu.trace_start"() <{level = 10 : i32, message = "hqk,hkd->hqd"}> : () -> ()
    %cst_142 = arith.constant dense<0.000000e+00> : vector<2x8x128xf32>
    %365 = tpu.matmul %364, %349, %cst_142 {dimension_numbers = #tpu.dot_dimension_numbers<[2], [1], [1], [2], [0, 0, 0, 1, 1, 2], [0], [0]>} : vector<2x8x8xf32>, vector<2x8x128xf32>, vector<2x8x128xf32> -> vector<2x8x128xf32>
    "tpu.trace_stop"() : () -> ()
    %366 = vector.extract_strided_slice %365 {offsets = [0, 0, 0], sizes = [1, 8, 128], strides = [1, 1, 1]} : vector<2x8x128xf32> to vector<1x8x128xf32>
    %367 = vector.shape_cast %366 : vector<1x8x128xf32> to vector<8x128xf32>
    %368 = vector.extract_strided_slice %365 {offsets = [1, 0, 0], sizes = [1, 8, 128], strides = [1, 1, 1]} : vector<2x8x128xf32> to vector<1x8x128xf32>
    %369 = vector.shape_cast %368 : vector<1x8x128xf32> to vector<8x128xf32>
    %370 = tpu.concatenate %367, %369 in 1 : vector<8x128xf32>, vector<8x128xf32> -> vector<8x256xf32>
    %371 = arith.truncf %370 : vector<8x256xf32> to vector<8x256xbf16>
    %cst_143 = arith.constant dense<0.000000e+00> : vector<8x128xf32>
    %372 = tpu.matmul %371, %332, %cst_143 {dimension_numbers = #tpu.dot_dimension_numbers<[1], [0], [0], [1], [0, 0, 1, 1], [], []>} : vector<8x256xbf16>, vector<256x128xbf16>, vector<8x128xf32> -> vector<8x128xf32>
    %373 = vector.broadcast %334 : vector<1x128xf32> to vector<8x128xf32>
    %374 = arith.addf %372, %373 : vector<8x128xf32>
    %375 = arith.addf %312, %374 : vector<8x128xf32>
    %376 = vector.extract_strided_slice %230 {offsets = [2, 0, 0], sizes = [1, 1, 128], strides = [1, 1, 1]} : vector<6x1x128xf32> to vector<1x1x128xf32>
    %377 = vector.shape_cast %376 : vector<1x1x128xf32> to vector<1x128xf32>
    %378 = vector.extract_strided_slice %230 {offsets = [3, 0, 0], sizes = [1, 1, 128], strides = [1, 1, 1]} : vector<6x1x128xf32> to vector<1x1x128xf32>
    %379 = vector.shape_cast %378 : vector<1x1x128xf32> to vector<1x128xf32>
    %cst_144 = arith.constant dense<0.000000e+00> : vector<8xf32>
    %380 = vector.multi_reduction <add>, %375, %cst_144 [1] : vector<8x128xf32> to vector<8xf32>
    %381 = vector.shape_cast %380 : vector<8xf32> to vector<8x1xf32>
    %cst_145 = arith.constant 3.125000e-02 : f32
    %382 = vector.broadcast %cst_145 : f32 to vector<8x1xf32>
    %383 = arith.mulf %381, %382 : vector<8x1xf32>
    %384 = arith.mulf %375, %375 : vector<8x128xf32>
    %cst_146 = arith.constant dense<0.000000e+00> : vector<8xf32>
    %385 = vector.multi_reduction <add>, %384, %cst_146 [1] : vector<8x128xf32> to vector<8xf32>
    %386 = vector.shape_cast %385 : vector<8xf32> to vector<8x1xf32>
    %cst_147 = arith.constant 3.125000e-02 : f32
    %387 = vector.broadcast %cst_147 : f32 to vector<8x1xf32>
    %388 = arith.mulf %386, %387 : vector<8x1xf32>
    %389 = arith.mulf %383, %383 : vector<8x1xf32>
    %390 = arith.subf %388, %389 : vector<8x1xf32>
    %391 = vector.broadcast %383 : vector<8x1xf32> to vector<8x128xf32>
    %392 = arith.subf %375, %391 : vector<8x128xf32>
    %cst_148 = arith.constant 9.99999974E-6 : f32
    %393 = vector.broadcast %cst_148 : f32 to vector<8x1xf32>
    %394 = arith.addf %390, %393 : vector<8x1xf32>
    %395 = math.rsqrt %394 : vector<8x1xf32>
    %396 = vector.broadcast %395 : vector<8x1xf32> to vector<8x128xf32>
    %397 = arith.mulf %392, %396 : vector<8x128xf32>
    %398 = vector.broadcast %377 : vector<1x128xf32> to vector<8x128xf32>
    %399 = arith.mulf %397, %398 : vector<8x128xf32>
    %400 = vector.broadcast %379 : vector<1x128xf32> to vector<8x128xf32>
    %401 = arith.addf %399, %400 : vector<8x128xf32>
    %c1_149 = arith.constant 1 : index
    %c0_150 = arith.constant 0 : index
    %c0_151 = arith.constant 0 : index
    %402 = vector.load %arg16[%c1_149, %c0_150, %c0_151] : memref<2x128x128xbf16, #tpu.memory_space<vmem>>, vector<1x128x128xbf16>
    %403 = vector.shape_cast %402 : vector<1x128x128xbf16> to vector<128x128xbf16>
    %c1_152 = arith.constant 1 : index
    %c0_153 = arith.constant 0 : index
    %c0_154 = arith.constant 0 : index
    %404 = vector.load %arg17[%c1_152, %c0_153, %c0_154] : memref<2x1x128xf32, #tpu.memory_space<vmem>>, vector<1x1x128xf32>
    %405 = vector.shape_cast %404 : vector<1x1x128xf32> to vector<1x128xf32>
    %406 = arith.truncf %401 : vector<8x128xf32> to vector<8x128xbf16>
    %cst_155 = arith.constant dense<0.000000e+00> : vector<8x128xf32>
    %407 = tpu.matmul %406, %403, %cst_155 {dimension_numbers = #tpu.dot_dimension_numbers<[1], [0], [0], [1], [0, 0, 1, 1], [], []>} : vector<8x128xbf16>, vector<128x128xbf16>, vector<8x128xf32> -> vector<8x128xf32>
    %408 = vector.broadcast %405 : vector<1x128xf32> to vector<8x128xf32>
    %409 = arith.addf %407, %408 : vector<8x128xf32>
    %cst_156 = arith.constant 0.000000e+00 : f32
    %410 = vector.broadcast %cst_156 : f32 to vector<8x128xf32>
    %411 = arith.maximumf %409, %410 : vector<8x128xf32>
    %c1_157 = arith.constant 1 : index
    %c0_158 = arith.constant 0 : index
    %c0_159 = arith.constant 0 : index
    %412 = vector.load %arg18[%c1_157, %c0_158, %c0_159] : memref<2x128x128xbf16, #tpu.memory_space<vmem>>, vector<1x128x128xbf16>
    %413 = vector.shape_cast %412 : vector<1x128x128xbf16> to vector<128x128xbf16>
    %c1_160 = arith.constant 1 : index
    %c0_161 = arith.constant 0 : index
    %c0_162 = arith.constant 0 : index
    %414 = vector.load %arg19[%c1_160, %c0_161, %c0_162] : memref<2x1x128xf32, #tpu.memory_space<vmem>>, vector<1x1x128xf32>
    %415 = vector.shape_cast %414 : vector<1x1x128xf32> to vector<1x128xf32>
    %416 = arith.truncf %411 : vector<8x128xf32> to vector<8x128xbf16>
    %cst_163 = arith.constant dense<0.000000e+00> : vector<8x128xf32>
    %417 = tpu.matmul %416, %413, %cst_163 {dimension_numbers = #tpu.dot_dimension_numbers<[1], [0], [0], [1], [0, 0, 1, 1], [], []>} : vector<8x128xbf16>, vector<128x128xbf16>, vector<8x128xf32> -> vector<8x128xf32>
    %418 = vector.broadcast %415 : vector<1x128xf32> to vector<8x128xf32>
    %419 = arith.addf %417, %418 : vector<8x128xf32>
    %420 = arith.addf %401, %419 : vector<8x128xf32>
    %421 = vector.extract_strided_slice %230 {offsets = [4, 0, 0], sizes = [1, 1, 128], strides = [1, 1, 1]} : vector<6x1x128xf32> to vector<1x1x128xf32>
    %422 = vector.shape_cast %421 : vector<1x1x128xf32> to vector<1x128xf32>
    %423 = vector.extract_strided_slice %230 {offsets = [5, 0, 0], sizes = [1, 1, 128], strides = [1, 1, 1]} : vector<6x1x128xf32> to vector<1x1x128xf32>
    %424 = vector.shape_cast %423 : vector<1x1x128xf32> to vector<1x128xf32>
    %cst_164 = arith.constant dense<0.000000e+00> : vector<8xf32>
    %425 = vector.multi_reduction <add>, %420, %cst_164 [1] : vector<8x128xf32> to vector<8xf32>
    %426 = vector.shape_cast %425 : vector<8xf32> to vector<8x1xf32>
    %cst_165 = arith.constant 3.125000e-02 : f32
    %427 = vector.broadcast %cst_165 : f32 to vector<8x1xf32>
    %428 = arith.mulf %426, %427 : vector<8x1xf32>
    %429 = arith.mulf %420, %420 : vector<8x128xf32>
    %cst_166 = arith.constant dense<0.000000e+00> : vector<8xf32>
    %430 = vector.multi_reduction <add>, %429, %cst_166 [1] : vector<8x128xf32> to vector<8xf32>
    %431 = vector.shape_cast %430 : vector<8xf32> to vector<8x1xf32>
    %cst_167 = arith.constant 3.125000e-02 : f32
    %432 = vector.broadcast %cst_167 : f32 to vector<8x1xf32>
    %433 = arith.mulf %431, %432 : vector<8x1xf32>
    %434 = arith.mulf %428, %428 : vector<8x1xf32>
    %435 = arith.subf %433, %434 : vector<8x1xf32>
    %436 = vector.broadcast %428 : vector<8x1xf32> to vector<8x128xf32>
    %437 = arith.subf %420, %436 : vector<8x128xf32>
    %cst_168 = arith.constant 9.99999974E-6 : f32
    %438 = vector.broadcast %cst_168 : f32 to vector<8x1xf32>
    %439 = arith.addf %435, %438 : vector<8x1xf32>
    %440 = math.rsqrt %439 : vector<8x1xf32>
    %441 = vector.broadcast %440 : vector<8x1xf32> to vector<8x128xf32>
    %442 = arith.mulf %437, %441 : vector<8x128xf32>
    %443 = vector.broadcast %422 : vector<1x128xf32> to vector<8x128xf32>
    %444 = arith.mulf %442, %443 : vector<8x128xf32>
    %445 = vector.broadcast %424 : vector<1x128xf32> to vector<8x128xf32>
    %446 = arith.addf %444, %445 : vector<8x128xf32>
    %c0_169 = arith.constant 0 : index
    %c0_170 = arith.constant 0 : index
    %c0_171 = arith.constant 0 : index
    %447 = vector.load %arg21[%c0_169, %c0_170, %c0_171] : memref<2x1x128xf32, #tpu.memory_space<vmem>>, vector<2x1x128xf32>
    %448 = vector.extract_strided_slice %447 {offsets = [0, 0, 0], sizes = [1, 1, 128], strides = [1, 1, 1]} : vector<2x1x128xf32> to vector<1x1x128xf32>
    %449 = vector.shape_cast %448 : vector<1x1x128xf32> to vector<1x128xf32>
    %450 = vector.extract_strided_slice %447 {offsets = [1, 0, 0], sizes = [1, 1, 128], strides = [1, 1, 1]} : vector<2x1x128xf32> to vector<1x1x128xf32>
    %451 = vector.shape_cast %450 : vector<1x1x128xf32> to vector<1x128xf32>
    %cst_172 = arith.constant dense<0.000000e+00> : vector<8xf32>
    %452 = vector.multi_reduction <add>, %446, %cst_172 [1] : vector<8x128xf32> to vector<8xf32>
    %453 = vector.shape_cast %452 : vector<8xf32> to vector<8x1xf32>
    %cst_173 = arith.constant 3.125000e-02 : f32
    %454 = vector.broadcast %cst_173 : f32 to vector<8x1xf32>
    %455 = arith.mulf %453, %454 : vector<8x1xf32>
    %456 = arith.mulf %446, %446 : vector<8x128xf32>
    %cst_174 = arith.constant dense<0.000000e+00> : vector<8xf32>
    %457 = vector.multi_reduction <add>, %456, %cst_174 [1] : vector<8x128xf32> to vector<8xf32>
    %458 = vector.shape_cast %457 : vector<8xf32> to vector<8x1xf32>
    %cst_175 = arith.constant 3.125000e-02 : f32
    %459 = vector.broadcast %cst_175 : f32 to vector<8x1xf32>
    %460 = arith.mulf %458, %459 : vector<8x1xf32>
    %461 = arith.mulf %455, %455 : vector<8x1xf32>
    %462 = arith.subf %460, %461 : vector<8x1xf32>
    %463 = vector.broadcast %455 : vector<8x1xf32> to vector<8x128xf32>
    %464 = arith.subf %446, %463 : vector<8x128xf32>
    %cst_176 = arith.constant 9.99999974E-6 : f32
    %465 = vector.broadcast %cst_176 : f32 to vector<8x1xf32>
    %466 = arith.addf %462, %465 : vector<8x1xf32>
    %467 = math.rsqrt %466 : vector<8x1xf32>
    %468 = vector.broadcast %467 : vector<8x1xf32> to vector<8x128xf32>
    %469 = arith.mulf %464, %468 : vector<8x128xf32>
    %470 = vector.broadcast %449 : vector<1x128xf32> to vector<8x128xf32>
    %471 = arith.mulf %469, %470 : vector<8x128xf32>
    %472 = vector.broadcast %451 : vector<1x128xf32> to vector<8x128xf32>
    %473 = arith.addf %471, %472 : vector<8x128xf32>
    %c0_177 = arith.constant 0 : index
    %c0_178 = arith.constant 0 : index
    %474 = vector.load %arg22[%c0_177, %c0_178] : memref<128x128xbf16, #tpu.memory_space<vmem>>, vector<128x128xbf16>
    %c0_179 = arith.constant 0 : index
    %c0_180 = arith.constant 0 : index
    %475 = vector.load %arg23[%c0_179, %c0_180] : memref<1x128xf32, #tpu.memory_space<vmem>>, vector<1x128xf32>
    %476 = arith.truncf %473 : vector<8x128xf32> to vector<8x128xbf16>
    %cst_181 = arith.constant dense<0.000000e+00> : vector<8x128xf32>
    %477 = tpu.matmul %476, %474, %cst_181 {dimension_numbers = #tpu.dot_dimension_numbers<[1], [0], [0], [1], [0, 0, 1, 1], [], []>} : vector<8x128xbf16>, vector<128x128xbf16>, vector<8x128xf32> -> vector<8x128xf32>
    %478 = vector.broadcast %475 : vector<1x128xf32> to vector<8x128xf32>
    %479 = arith.addf %477, %478 : vector<8x128xf32>
    %c0_182 = arith.constant 0 : index
    %c0_183 = arith.constant 0 : index
    %c0_184 = arith.constant 0 : index
    %480 = vector.load %arg24[%c0_182, %c0_183, %c0_184] : memref<1x8x128xf32, #tpu.memory_space<vmem>>, vector<1x8x128xf32>
    %481 = vector.shape_cast %480 : vector<1x8x128xf32> to vector<8x128xf32>
    %482 = vector.shape_cast %479 : vector<8x128xf32> to vector<1x8x128xf32>
    tpu.vector_store %arg24[%c0_182, %c0_183, %c0_184], %482 {strides = array<i32>} : memref<1x8x128xf32, #tpu.memory_space<vmem>>, vector<1x8x128xf32>,
    return
  }
  func.func @transform_0(%arg0: i32) -> (i32, i32, i32) {
    %c0_i32 = arith.constant 0 : i32
    %c0_i32_0 = arith.constant 0 : i32
    %c0_i32_1 = arith.constant 0 : i32
    return %arg0, %c0_i32, %c0_i32_0 : i32, i32, i32
  }
  func.func @transform_1(%arg0: i32) -> (i32, i32, i32) {
    %c0_i32 = arith.constant 0 : i32
    %c0_i32_0 = arith.constant 0 : i32
    %c0_i32_1 = arith.constant 0 : i32
    return %arg0, %c0_i32, %c0_i32_0 : i32, i32, i32
  }
  func.func @transform_2(%arg0: i32) -> (i32, i32) {
    %c0_i32 = arith.constant 0 : i32
    %c0_i32_0 = arith.constant 0 : i32
    %c0_i32_1 = arith.constant 0 : i32
    return %c0_i32, %c0_i32_0 : i32, i32
  }
  func.func @transform_3(%arg0: i32) -> (i32, i32, i32) {
    %c0_i32 = arith.constant 0 : i32
    %c0_i32_0 = arith.constant 0 : i32
    %c0_i32_1 = arith.constant 0 : i32
    return %arg0, %c0_i32, %c0_i32_0 : i32, i32, i32
  }
  func.func @transform_4(%arg0: i32) -> (i32, i32, i32) {
    %c0_i32 = arith.constant 0 : i32
    %c0_i32_0 = arith.constant 0 : i32
    %c0_i32_1 = arith.constant 0 : i32
    return %arg0, %c0_i32, %c0_i32_0 : i32, i32, i32
  }
  func.func @transform_5(%arg0: i32) -> (i32, i32, i32) {
    %c0_i32 = arith.constant 0 : i32
    %c0_i32_0 = arith.constant 0 : i32
    %c0_i32_1 = arith.constant 0 : i32
    %c0_i32_2 = arith.constant 0 : i32
    return %c0_i32, %c0_i32_0, %c0_i32_1 : i32, i32, i32
  }
  func.func @transform_6(%arg0: i32) -> (i32, i32, i32) {
    %c0_i32 = arith.constant 0 : i32
    %c0_i32_0 = arith.constant 0 : i32
    %c0_i32_1 = arith.constant 0 : i32
    %c0_i32_2 = arith.constant 0 : i32
    return %c0_i32, %c0_i32_0, %c0_i32_1 : i32, i32, i32
  }
  func.func @transform_7(%arg0: i32) -> (i32, i32, i32) {
    %c0_i32 = arith.constant 0 : i32
    %c0_i32_0 = arith.constant 0 : i32
    %c0_i32_1 = arith.constant 0 : i32
    %c0_i32_2 = arith.constant 0 : i32
    return %c0_i32, %c0_i32_0, %c0_i32_1 : i32, i32, i32
  }
  func.func @transform_8(%arg0: i32) -> (i32, i32, i32) {
    %c0_i32 = arith.constant 0 : i32
    %c0_i32_0 = arith.constant 0 : i32
    %c0_i32_1 = arith.constant 0 : i32
    %c0_i32_2 = arith.constant 0 : i32
    return %c0_i32, %c0_i32_0, %c0_i32_1 : i32, i32, i32
  }
  func.func @transform_9(%arg0: i32) -> (i32, i32, i32) {
    %c0_i32 = arith.constant 0 : i32
    %c0_i32_0 = arith.constant 0 : i32
    %c0_i32_1 = arith.constant 0 : i32
    %c0_i32_2 = arith.constant 0 : i32
    return %c0_i32, %c0_i32_0, %c0_i32_1 : i32, i32, i32
  }
  func.func @transform_10(%arg0: i32) -> (i32, i32, i32) {
    %c0_i32 = arith.constant 0 : i32
    %c0_i32_0 = arith.constant 0 : i32
    %c0_i32_1 = arith.constant 0 : i32
    %c0_i32_2 = arith.constant 0 : i32
    return %c0_i32, %c0_i32_0, %c0_i32_1 : i32, i32, i32
  }
  func.func @transform_11(%arg0: i32) -> (i32, i32, i32) {
    %c0_i32 = arith.constant 0 : i32
    %c0_i32_0 = arith.constant 0 : i32
    %c0_i32_1 = arith.constant 0 : i32
    %c0_i32_2 = arith.constant 0 : i32
    return %c0_i32, %c0_i32_0, %c0_i32_1 : i32, i32, i32
  }
  func.func @transform_12(%arg0: i32) -> (i32, i32, i32) {
    %c0_i32 = arith.constant 0 : i32
    %c0_i32_0 = arith.constant 0 : i32
    %c0_i32_1 = arith.constant 0 : i32
    %c0_i32_2 = arith.constant 0 : i32
    return %c0_i32, %c0_i32_0, %c0_i32_1 : i32, i32, i32
  }
  func.func @transform_13(%arg0: i32) -> (i32, i32, i32) {
    %c0_i32 = arith.constant 0 : i32
    %c0_i32_0 = arith.constant 0 : i32
    %c0_i32_1 = arith.constant 0 : i32
    %c0_i32_2 = arith.constant 0 : i32
    return %c0_i32, %c0_i32_0, %c0_i32_1 : i32, i32, i32
  }
  func.func @transform_14(%arg0: i32) -> (i32, i32, i32) {
    %c0_i32 = arith.constant 0 : i32
    %c0_i32_0 = arith.constant 0 : i32
    %c0_i32_1 = arith.constant 0 : i32
    %c0_i32_2 = arith.constant 0 : i32
    return %c0_i32, %c0_i32_0, %c0_i32_1 : i32, i32, i32
  }
  func.func @transform_15(%arg0: i32) -> (i32, i32, i32) {
    %c0_i32 = arith.constant 0 : i32
    %c0_i32_0 = arith.constant 0 : i32
    %c0_i32_1 = arith.constant 0 : i32
    %c0_i32_2 = arith.constant 0 : i32
    return %c0_i32, %c0_i32_0, %c0_i32_1 : i32, i32, i32
  }
  func.func @transform_16(%arg0: i32) -> (i32, i32, i32) {
    %c0_i32 = arith.constant 0 : i32
    %c0_i32_0 = arith.constant 0 : i32
    %c0_i32_1 = arith.constant 0 : i32
    %c0_i32_2 = arith.constant 0 : i32
    return %c0_i32, %c0_i32_0, %c0_i32_1 : i32, i32, i32
  }
  func.func @transform_17(%arg0: i32) -> (i32, i32, i32) {
    %c0_i32 = arith.constant 0 : i32
    %c0_i32_0 = arith.constant 0 : i32
    %c0_i32_1 = arith.constant 0 : i32
    %c0_i32_2 = arith.constant 0 : i32
    return %c0_i32, %c0_i32_0, %c0_i32_1 : i32, i32, i32
  }
  func.func @transform_18(%arg0: i32) -> (i32, i32, i32) {
    %c0_i32 = arith.constant 0 : i32
    %c0_i32_0 = arith.constant 0 : i32
    %c0_i32_1 = arith.constant 0 : i32
    %c0_i32_2 = arith.constant 0 : i32
    return %c0_i32, %c0_i32_0, %c0_i32_1 : i32, i32, i32
  }
  func.func @transform_19(%arg0: i32) -> (i32, i32, i32, i32) {
    %c0_i32 = arith.constant 0 : i32
    %c0_i32_0 = arith.constant 0 : i32
    %c0_i32_1 = arith.constant 0 : i32
    %c0_i32_2 = arith.constant 0 : i32
    %c0_i32_3 = arith.constant 0 : i32
    return %c0_i32, %c0_i32_0, %c0_i32_1, %c0_i32_2 : i32, i32, i32, i32
  }
  func.func @transform_20(%arg0: i32) -> (i32, i32, i32) {
    %c0_i32 = arith.constant 0 : i32
    %c0_i32_0 = arith.constant 0 : i32
    %c0_i32_1 = arith.constant 0 : i32
    %c0_i32_2 = arith.constant 0 : i32
    return %c0_i32, %c0_i32_0, %c0_i32_1 : i32, i32, i32
  }
  func.func @transform_21(%arg0: i32) -> (i32, i32) {
    %c0_i32 = arith.constant 0 : i32
    %c0_i32_0 = arith.constant 0 : i32
    %c0_i32_1 = arith.constant 0 : i32
    return %c0_i32, %c0_i32_0 : i32, i32
  }
  func.func @transform_22(%arg0: i32) -> (i32, i32) {
    %c0_i32 = arith.constant 0 : i32
    %c0_i32_0 = arith.constant 0 : i32
    %c0_i32_1 = arith.constant 0 : i32
    return %c0_i32, %c0_i32_0 : i32, i32
  }
  func.func @transform_23(%arg0: i32) -> (i32, i32, i32) {
    %c0_i32 = arith.constant 0 : i32
    %c0_i32_0 = arith.constant 0 : i32
    %c0_i32_1 = arith.constant 0 : i32
    return %arg0, %c0_i32, %c0_i32_0 : i32, i32, i32
  }
}

module attributes {stable_mosaic.version = 11 : i64} {
  func.func @_encoder_stack_kernel(%arg0: i32, %arg1: memref<1x8x128xf32, #tpu.memory_space<vmem>>, %arg2: memref<1x1x8xf32, #tpu.memory_space<vmem>>, %arg3: memref<2x128x768xbf16, #tpu.memory_space<vmem>>, %arg4: memref<2x1x768xf32, #tpu.memory_space<vmem>>, %arg5: memref<2x256x128xbf16, #tpu.memory_space<vmem>>, %arg6: memref<2x1x128xf32, #tpu.memory_space<vmem>>, %arg7: memref<2x128x128xbf16, #tpu.memory_space<vmem>>, %arg8: memref<2x1x128xf32, #tpu.memory_space<vmem>>, %arg9: memref<2x128x128xbf16, #tpu.memory_space<vmem>>, %arg10: memref<2x1x128xf32, #tpu.memory_space<vmem>>, %arg11: memref<2x4x1x128xf32, #tpu.memory_space<vmem>>, %arg12: memref<2x1x128xf32, #tpu.memory_space<vmem>>, %arg13: memref<1x8x128xf32, #tpu.memory_space<vmem>>) attributes {dimension_semantics = [#tpu.dimension_semantics<parallel>], iteration_bounds = array<i64: 2>, scalar_prefetch = 0 : i64, scratch_operands = 0 : i64, tpu.core_type = #tpu.core_type<tc>, window_params = [{transform_indices = @transform_0, window_bounds = array<i64: 1, 8, 128>}, {transform_indices = @transform_1, window_bounds = array<i64: 1, 1, 8>}, {pipeline_mode = #tpu.pipeline_mode<synchronous>, transform_indices = @transform_2, window_bounds = array<i64: 2, 128, 768>}, {pipeline_mode = #tpu.pipeline_mode<synchronous>, transform_indices = @transform_3, window_bounds = array<i64: 2, 1, 768>}, {pipeline_mode = #tpu.pipeline_mode<synchronous>, transform_indices = @transform_4, window_bounds = array<i64: 2, 256, 128>}, {pipeline_mode = #tpu.pipeline_mode<synchronous>, transform_indices = @transform_5, window_bounds = array<i64: 2, 1, 128>}, {pipeline_mode = #tpu.pipeline_mode<synchronous>, transform_indices = @transform_6, window_bounds = array<i64: 2, 128, 128>}, {pipeline_mode = #tpu.pipeline_mode<synchronous>, transform_indices = @transform_7, window_bounds = array<i64: 2, 1, 128>}, {pipeline_mode = #tpu.pipeline_mode<synchronous>, transform_indices = @transform_8, window_bounds = array<i64: 2, 128, 128>}, {pipeline_mode = #tpu.pipeline_mode<synchronous>, transform_indices = @transform_9, window_bounds = array<i64: 2, 1, 128>}, {pipeline_mode = #tpu.pipeline_mode<synchronous>, transform_indices = @transform_10, window_bounds = array<i64: 2, 4, 1, 128>}, {pipeline_mode = #tpu.pipeline_mode<synchronous>, transform_indices = @transform_11, window_bounds = array<i64: 2, 1, 128>}, {transform_indices = @transform_12, window_bounds = array<i64: 1, 8, 128>}]} {
    %c0 = arith.constant 0 : index
    %c0_0 = arith.constant 0 : index
    %c0_1 = arith.constant 0 : index
    %0 = vector.load %arg1[%c0, %c0_0, %c0_1] : memref<1x8x128xf32, #tpu.memory_space<vmem>>, vector<1x8x128xf32>
    %1 = vector.shape_cast %0 : vector<1x8x128xf32> to vector<8x128xf32>
    %c0_2 = arith.constant 0 : index
    %c0_3 = arith.constant 0 : index
    %c0_4 = arith.constant 0 : index
    %2 = vector.load %arg2[%c0_2, %c0_3, %c0_4] : memref<1x1x8xf32, #tpu.memory_space<vmem>>, vector<1x1x8xf32>
    %3 = vector.shape_cast %2 : vector<1x1x8xf32> to vector<1x8xf32>
    %c0_5 = arith.constant 0 : index
    %c0_6 = arith.constant 0 : index
    %c0_7 = arith.constant 0 : index
    %c0_8 = arith.constant 0 : index
    %4 = vector.load %arg11[%c0_5, %c0_6, %c0_7, %c0_8] : memref<2x4x1x128xf32, #tpu.memory_space<vmem>>, vector<1x4x1x128xf32>
    %5 = vector.shape_cast %4 : vector<1x4x1x128xf32> to vector<4x1x128xf32>
    %c0_9 = arith.constant 0 : index
    %c0_10 = arith.constant 0 : index
    %c0_11 = arith.constant 0 : index
    %6 = vector.load %arg3[%c0_9, %c0_10, %c0_11] : memref<2x128x768xbf16, #tpu.memory_space<vmem>>, vector<1x128x768xbf16>
    %7 = vector.shape_cast %6 : vector<1x128x768xbf16> to vector<128x768xbf16>
    %c0_12 = arith.constant 0 : index
    %c0_13 = arith.constant 0 : index
    %c0_14 = arith.constant 0 : index
    %8 = vector.load %arg4[%c0_12, %c0_13, %c0_14] : memref<2x1x768xf32, #tpu.memory_space<vmem>>, vector<1x1x768xf32>
    %9 = vector.shape_cast %8 : vector<1x1x768xf32> to vector<1x768xf32>
    %10 = arith.truncf %1 : vector<8x128xf32> to vector<8x128xbf16>
    %cst = arith.constant dense<0.000000e+00> : vector<8x768xf32>
    %11 = tpu.matmul %10, %7, %cst {dimension_numbers = #tpu.dot_dimension_numbers<[1], [0], [0], [1], [0, 0, 1, 1], [], []>} : vector<8x128xbf16>, vector<128x768xbf16>, vector<8x768xf32> -> vector<8x768xf32>
    %12 = vector.broadcast %9 : vector<1x768xf32> to vector<8x768xf32>
    %13 = arith.addf %11, %12 : vector<8x768xf32>
    %14 = vector.extract_strided_slice %13 {offsets = [0, 0], sizes = [8, 256], strides = [1, 1]} : vector<8x768xf32> to vector<8x256xf32>
    %15 = vector.extract_strided_slice %13 {offsets = [0, 256], sizes = [8, 256], strides = [1, 1]} : vector<8x768xf32> to vector<8x256xf32>
    %16 = vector.extract_strided_slice %13 {offsets = [0, 512], sizes = [8, 256], strides = [1, 1]} : vector<8x768xf32> to vector<8x256xf32>
    %c0_15 = arith.constant 0 : index
    %c0_16 = arith.constant 0 : index
    %c0_17 = arith.constant 0 : index
    %17 = vector.load %arg5[%c0_15, %c0_16, %c0_17] : memref<2x256x128xbf16, #tpu.memory_space<vmem>>, vector<1x256x128xbf16>
    %18 = vector.shape_cast %17 : vector<1x256x128xbf16> to vector<256x128xbf16>
    %c0_18 = arith.constant 0 : index
    %c0_19 = arith.constant 0 : index
    %c0_20 = arith.constant 0 : index
    %19 = vector.load %arg6[%c0_18, %c0_19, %c0_20] : memref<2x1x128xf32, #tpu.memory_space<vmem>>, vector<1x1x128xf32>
    %20 = vector.shape_cast %19 : vector<1x1x128xf32> to vector<1x128xf32>
    %21 = vector.extract_strided_slice %14 {offsets = [0, 0], sizes = [8, 128], strides = [1, 1]} : vector<8x256xf32> to vector<8x128xf32>
    %22 = vector.extract_strided_slice %14 {offsets = [0, 128], sizes = [8, 128], strides = [1, 1]} : vector<8x256xf32> to vector<8x128xf32>
    %23 = vector.shape_cast %21 : vector<8x128xf32> to vector<1x8x128xf32>
    %24 = vector.shape_cast %22 : vector<8x128xf32> to vector<1x8x128xf32>
    %25 = tpu.concatenate %23, %24 in 0 : vector<1x8x128xf32>, vector<1x8x128xf32> -> vector<2x8x128xf32>
    %26 = vector.extract_strided_slice %15 {offsets = [0, 0], sizes = [8, 128], strides = [1, 1]} : vector<8x256xf32> to vector<8x128xf32>
    %27 = vector.extract_strided_slice %15 {offsets = [0, 128], sizes = [8, 128], strides = [1, 1]} : vector<8x256xf32> to vector<8x128xf32>
    %28 = vector.shape_cast %26 : vector<8x128xf32> to vector<1x8x128xf32>
    %29 = vector.shape_cast %27 : vector<8x128xf32> to vector<1x8x128xf32>
    %30 = tpu.concatenate %28, %29 in 0 : vector<1x8x128xf32>, vector<1x8x128xf32> -> vector<2x8x128xf32>
    %31 = vector.extract_strided_slice %16 {offsets = [0, 0], sizes = [8, 128], strides = [1, 1]} : vector<8x256xf32> to vector<8x128xf32>
    %32 = vector.extract_strided_slice %16 {offsets = [0, 128], sizes = [8, 128], strides = [1, 1]} : vector<8x256xf32> to vector<8x128xf32>
    %33 = vector.shape_cast %31 : vector<8x128xf32> to vector<1x8x128xf32>
    %34 = vector.shape_cast %32 : vector<8x128xf32> to vector<1x8x128xf32>
    %35 = tpu.concatenate %33, %34 in 0 : vector<1x8x128xf32>, vector<1x8x128xf32> -> vector<2x8x128xf32>
    "tpu.trace_start"() <{level = 10 : i32, message = "hqd,hkd->hqk"}> : () -> ()
    %cst_21 = arith.constant dense<0.000000e+00> : vector<2x8x8xf32>
    %36 = tpu.matmul %25, %30, %cst_21 {dimension_numbers = #tpu.dot_dimension_numbers<[2], [2], [1], [1], [0, 0, 0, 1, 1, 1], [0], [0]>} : vector<2x8x128xf32>, vector<2x8x128xf32>, vector<2x8x8xf32> -> vector<2x8x8xf32>
    "tpu.trace_stop"() : () -> ()
    %cst_22 = arith.constant 2.500000e-01 : f32
    %37 = vector.broadcast %cst_22 : f32 to vector<2x8x8xf32>
    %38 = arith.mulf %36, %37 : vector<2x8x8xf32>
    %39 = vector.shape_cast %3 : vector<1x8xf32> to vector<1x1x8xf32>
    %40 = vector.broadcast %39 : vector<1x1x8xf32> to vector<2x8x8xf32>
    %41 = arith.addf %38, %40 : vector<2x8x8xf32>
    %cst_23 = arith.constant dense<0xFF800000> : vector<2x8xf32>
    %42 = vector.multi_reduction <maximumf>, %41, %cst_23 [2] : vector<2x8x8xf32> to vector<2x8xf32>
    %43 = vector.shape_cast %42 : vector<2x8xf32> to vector<2x8x1xf32>
    %44 = vector.broadcast %43 : vector<2x8x1xf32> to vector<2x8x8xf32>
    %45 = arith.subf %41, %44 : vector<2x8x8xf32>
    %46 = math.exp %45 : vector<2x8x8xf32>
    %cst_24 = arith.constant dense<0.000000e+00> : vector<2x8xf32>
    %47 = vector.multi_reduction <add>, %46, %cst_24 [2] : vector<2x8x8xf32> to vector<2x8xf32>
    %48 = vector.shape_cast %47 : vector<2x8xf32> to vector<2x8x1xf32>
    %49 = vector.broadcast %48 : vector<2x8x1xf32> to vector<2x8x8xf32>
    %50 = arith.divf %46, %49 : vector<2x8x8xf32>
    "tpu.trace_start"() <{level = 10 : i32, message = "hqk,hkd->hqd"}> : () -> ()
    %cst_25 = arith.constant dense<0.000000e+00> : vector<2x8x128xf32>
    %51 = tpu.matmul %50, %35, %cst_25 {dimension_numbers = #tpu.dot_dimension_numbers<[2], [1], [1], [2], [0, 0, 0, 1, 1, 2], [0], [0]>} : vector<2x8x8xf32>, vector<2x8x128xf32>, vector<2x8x128xf32> -> vector<2x8x128xf32>
    "tpu.trace_stop"() : () -> ()
    %52 = vector.extract_strided_slice %51 {offsets = [0, 0, 0], sizes = [1, 8, 128], strides = [1, 1, 1]} : vector<2x8x128xf32> to vector<1x8x128xf32>
    %53 = vector.shape_cast %52 : vector<1x8x128xf32> to vector<8x128xf32>
    %54 = vector.extract_strided_slice %51 {offsets = [1, 0, 0], sizes = [1, 8, 128], strides = [1, 1, 1]} : vector<2x8x128xf32> to vector<1x8x128xf32>
    %55 = vector.shape_cast %54 : vector<1x8x128xf32> to vector<8x128xf32>
    %56 = tpu.concatenate %53, %55 in 1 : vector<8x128xf32>, vector<8x128xf32> -> vector<8x256xf32>
    %57 = arith.truncf %56 : vector<8x256xf32> to vector<8x256xbf16>
    %cst_26 = arith.constant dense<0.000000e+00> : vector<8x128xf32>
    %58 = tpu.matmul %57, %18, %cst_26 {dimension_numbers = #tpu.dot_dimension_numbers<[1], [0], [0], [1], [0, 0, 1, 1], [], []>} : vector<8x256xbf16>, vector<256x128xbf16>, vector<8x128xf32> -> vector<8x128xf32>
    %59 = vector.broadcast %20 : vector<1x128xf32> to vector<8x128xf32>
    %60 = arith.addf %58, %59 : vector<8x128xf32>
    %61 = arith.addf %1, %60 : vector<8x128xf32>
    %62 = vector.extract_strided_slice %5 {offsets = [0, 0, 0], sizes = [1, 1, 128], strides = [1, 1, 1]} : vector<4x1x128xf32> to vector<1x1x128xf32>
    %63 = vector.shape_cast %62 : vector<1x1x128xf32> to vector<1x128xf32>
    %64 = vector.extract_strided_slice %5 {offsets = [1, 0, 0], sizes = [1, 1, 128], strides = [1, 1, 1]} : vector<4x1x128xf32> to vector<1x1x128xf32>
    %65 = vector.shape_cast %64 : vector<1x1x128xf32> to vector<1x128xf32>
    %cst_27 = arith.constant dense<0.000000e+00> : vector<8xf32>
    %66 = vector.multi_reduction <add>, %61, %cst_27 [1] : vector<8x128xf32> to vector<8xf32>
    %67 = vector.shape_cast %66 : vector<8xf32> to vector<8x1xf32>
    %cst_28 = arith.constant 3.125000e-02 : f32
    %68 = vector.broadcast %cst_28 : f32 to vector<8x1xf32>
    %69 = arith.mulf %67, %68 : vector<8x1xf32>
    %70 = arith.mulf %61, %61 : vector<8x128xf32>
    %cst_29 = arith.constant dense<0.000000e+00> : vector<8xf32>
    %71 = vector.multi_reduction <add>, %70, %cst_29 [1] : vector<8x128xf32> to vector<8xf32>
    %72 = vector.shape_cast %71 : vector<8xf32> to vector<8x1xf32>
    %cst_30 = arith.constant 3.125000e-02 : f32
    %73 = vector.broadcast %cst_30 : f32 to vector<8x1xf32>
    %74 = arith.mulf %72, %73 : vector<8x1xf32>
    %75 = arith.mulf %69, %69 : vector<8x1xf32>
    %76 = arith.subf %74, %75 : vector<8x1xf32>
    %77 = vector.broadcast %69 : vector<8x1xf32> to vector<8x128xf32>
    %78 = arith.subf %61, %77 : vector<8x128xf32>
    %cst_31 = arith.constant 9.99999974E-6 : f32
    %79 = vector.broadcast %cst_31 : f32 to vector<8x1xf32>
    %80 = arith.addf %76, %79 : vector<8x1xf32>
    %81 = math.rsqrt %80 : vector<8x1xf32>
    %82 = vector.broadcast %81 : vector<8x1xf32> to vector<8x128xf32>
    %83 = arith.mulf %78, %82 : vector<8x128xf32>
    %84 = vector.broadcast %63 : vector<1x128xf32> to vector<8x128xf32>
    %85 = arith.mulf %83, %84 : vector<8x128xf32>
    %86 = vector.broadcast %65 : vector<1x128xf32> to vector<8x128xf32>
    %87 = arith.addf %85, %86 : vector<8x128xf32>
    %c0_32 = arith.constant 0 : index
    %c0_33 = arith.constant 0 : index
    %c0_34 = arith.constant 0 : index
    %88 = vector.load %arg7[%c0_32, %c0_33, %c0_34] : memref<2x128x128xbf16, #tpu.memory_space<vmem>>, vector<1x128x128xbf16>
    %89 = vector.shape_cast %88 : vector<1x128x128xbf16> to vector<128x128xbf16>
    %c0_35 = arith.constant 0 : index
    %c0_36 = arith.constant 0 : index
    %c0_37 = arith.constant 0 : index
    %90 = vector.load %arg8[%c0_35, %c0_36, %c0_37] : memref<2x1x128xf32, #tpu.memory_space<vmem>>, vector<1x1x128xf32>
    %91 = vector.shape_cast %90 : vector<1x1x128xf32> to vector<1x128xf32>
    %92 = arith.truncf %87 : vector<8x128xf32> to vector<8x128xbf16>
    %cst_38 = arith.constant dense<0.000000e+00> : vector<8x128xf32>
    %93 = tpu.matmul %92, %89, %cst_38 {dimension_numbers = #tpu.dot_dimension_numbers<[1], [0], [0], [1], [0, 0, 1, 1], [], []>} : vector<8x128xbf16>, vector<128x128xbf16>, vector<8x128xf32> -> vector<8x128xf32>
    %94 = vector.broadcast %91 : vector<1x128xf32> to vector<8x128xf32>
    %95 = arith.addf %93, %94 : vector<8x128xf32>
    %cst_39 = arith.constant 0.000000e+00 : f32
    %96 = vector.broadcast %cst_39 : f32 to vector<8x128xf32>
    %97 = arith.maximumf %95, %96 : vector<8x128xf32>
    %c0_40 = arith.constant 0 : index
    %c0_41 = arith.constant 0 : index
    %c0_42 = arith.constant 0 : index
    %98 = vector.load %arg9[%c0_40, %c0_41, %c0_42] : memref<2x128x128xbf16, #tpu.memory_space<vmem>>, vector<1x128x128xbf16>
    %99 = vector.shape_cast %98 : vector<1x128x128xbf16> to vector<128x128xbf16>
    %c0_43 = arith.constant 0 : index
    %c0_44 = arith.constant 0 : index
    %c0_45 = arith.constant 0 : index
    %100 = vector.load %arg10[%c0_43, %c0_44, %c0_45] : memref<2x1x128xf32, #tpu.memory_space<vmem>>, vector<1x1x128xf32>
    %101 = vector.shape_cast %100 : vector<1x1x128xf32> to vector<1x128xf32>
    %102 = arith.truncf %97 : vector<8x128xf32> to vector<8x128xbf16>
    %cst_46 = arith.constant dense<0.000000e+00> : vector<8x128xf32>
    %103 = tpu.matmul %102, %99, %cst_46 {dimension_numbers = #tpu.dot_dimension_numbers<[1], [0], [0], [1], [0, 0, 1, 1], [], []>} : vector<8x128xbf16>, vector<128x128xbf16>, vector<8x128xf32> -> vector<8x128xf32>
    %104 = vector.broadcast %101 : vector<1x128xf32> to vector<8x128xf32>
    %105 = arith.addf %103, %104 : vector<8x128xf32>
    %106 = arith.addf %87, %105 : vector<8x128xf32>
    %107 = vector.extract_strided_slice %5 {offsets = [2, 0, 0], sizes = [1, 1, 128], strides = [1, 1, 1]} : vector<4x1x128xf32> to vector<1x1x128xf32>
    %108 = vector.shape_cast %107 : vector<1x1x128xf32> to vector<1x128xf32>
    %109 = vector.extract_strided_slice %5 {offsets = [3, 0, 0], sizes = [1, 1, 128], strides = [1, 1, 1]} : vector<4x1x128xf32> to vector<1x1x128xf32>
    %110 = vector.shape_cast %109 : vector<1x1x128xf32> to vector<1x128xf32>
    %cst_47 = arith.constant dense<0.000000e+00> : vector<8xf32>
    %111 = vector.multi_reduction <add>, %106, %cst_47 [1] : vector<8x128xf32> to vector<8xf32>
    %112 = vector.shape_cast %111 : vector<8xf32> to vector<8x1xf32>
    %cst_48 = arith.constant 3.125000e-02 : f32
    %113 = vector.broadcast %cst_48 : f32 to vector<8x1xf32>
    %114 = arith.mulf %112, %113 : vector<8x1xf32>
    %115 = arith.mulf %106, %106 : vector<8x128xf32>
    %cst_49 = arith.constant dense<0.000000e+00> : vector<8xf32>
    %116 = vector.multi_reduction <add>, %115, %cst_49 [1] : vector<8x128xf32> to vector<8xf32>
    %117 = vector.shape_cast %116 : vector<8xf32> to vector<8x1xf32>
    %cst_50 = arith.constant 3.125000e-02 : f32
    %118 = vector.broadcast %cst_50 : f32 to vector<8x1xf32>
    %119 = arith.mulf %117, %118 : vector<8x1xf32>
    %120 = arith.mulf %114, %114 : vector<8x1xf32>
    %121 = arith.subf %119, %120 : vector<8x1xf32>
    %122 = vector.broadcast %114 : vector<8x1xf32> to vector<8x128xf32>
    %123 = arith.subf %106, %122 : vector<8x128xf32>
    %cst_51 = arith.constant 9.99999974E-6 : f32
    %124 = vector.broadcast %cst_51 : f32 to vector<8x1xf32>
    %125 = arith.addf %121, %124 : vector<8x1xf32>
    %126 = math.rsqrt %125 : vector<8x1xf32>
    %127 = vector.broadcast %126 : vector<8x1xf32> to vector<8x128xf32>
    %128 = arith.mulf %123, %127 : vector<8x128xf32>
    %129 = vector.broadcast %108 : vector<1x128xf32> to vector<8x128xf32>
    %130 = arith.mulf %128, %129 : vector<8x128xf32>
    %131 = vector.broadcast %110 : vector<1x128xf32> to vector<8x128xf32>
    %132 = arith.addf %130, %131 : vector<8x128xf32>
    %c1 = arith.constant 1 : index
    %c0_52 = arith.constant 0 : index
    %c0_53 = arith.constant 0 : index
    %c0_54 = arith.constant 0 : index
    %133 = vector.load %arg11[%c1, %c0_52, %c0_53, %c0_54] : memref<2x4x1x128xf32, #tpu.memory_space<vmem>>, vector<1x4x1x128xf32>
    %134 = vector.shape_cast %133 : vector<1x4x1x128xf32> to vector<4x1x128xf32>
    %c1_55 = arith.constant 1 : index
    %c0_56 = arith.constant 0 : index
    %c0_57 = arith.constant 0 : index
    %135 = vector.load %arg3[%c1_55, %c0_56, %c0_57] : memref<2x128x768xbf16, #tpu.memory_space<vmem>>, vector<1x128x768xbf16>
    %136 = vector.shape_cast %135 : vector<1x128x768xbf16> to vector<128x768xbf16>
    %c1_58 = arith.constant 1 : index
    %c0_59 = arith.constant 0 : index
    %c0_60 = arith.constant 0 : index
    %137 = vector.load %arg4[%c1_58, %c0_59, %c0_60] : memref<2x1x768xf32, #tpu.memory_space<vmem>>, vector<1x1x768xf32>
    %138 = vector.shape_cast %137 : vector<1x1x768xf32> to vector<1x768xf32>
    %139 = arith.truncf %132 : vector<8x128xf32> to vector<8x128xbf16>
    %cst_61 = arith.constant dense<0.000000e+00> : vector<8x768xf32>
    %140 = tpu.matmul %139, %136, %cst_61 {dimension_numbers = #tpu.dot_dimension_numbers<[1], [0], [0], [1], [0, 0, 1, 1], [], []>} : vector<8x128xbf16>, vector<128x768xbf16>, vector<8x768xf32> -> vector<8x768xf32>
    %141 = vector.broadcast %138 : vector<1x768xf32> to vector<8x768xf32>
    %142 = arith.addf %140, %141 : vector<8x768xf32>
    %143 = vector.extract_strided_slice %142 {offsets = [0, 0], sizes = [8, 256], strides = [1, 1]} : vector<8x768xf32> to vector<8x256xf32>
    %144 = vector.extract_strided_slice %142 {offsets = [0, 256], sizes = [8, 256], strides = [1, 1]} : vector<8x768xf32> to vector<8x256xf32>
    %145 = vector.extract_strided_slice %142 {offsets = [0, 512], sizes = [8, 256], strides = [1, 1]} : vector<8x768xf32> to vector<8x256xf32>
    %c1_62 = arith.constant 1 : index
    %c0_63 = arith.constant 0 : index
    %c0_64 = arith.constant 0 : index
    %146 = vector.load %arg5[%c1_62, %c0_63, %c0_64] : memref<2x256x128xbf16, #tpu.memory_space<vmem>>, vector<1x256x128xbf16>
    %147 = vector.shape_cast %146 : vector<1x256x128xbf16> to vector<256x128xbf16>
    %c1_65 = arith.constant 1 : index
    %c0_66 = arith.constant 0 : index
    %c0_67 = arith.constant 0 : index
    %148 = vector.load %arg6[%c1_65, %c0_66, %c0_67] : memref<2x1x128xf32, #tpu.memory_space<vmem>>, vector<1x1x128xf32>
    %149 = vector.shape_cast %148 : vector<1x1x128xf32> to vector<1x128xf32>
    %150 = vector.extract_strided_slice %143 {offsets = [0, 0], sizes = [8, 128], strides = [1, 1]} : vector<8x256xf32> to vector<8x128xf32>
    %151 = vector.extract_strided_slice %143 {offsets = [0, 128], sizes = [8, 128], strides = [1, 1]} : vector<8x256xf32> to vector<8x128xf32>
    %152 = vector.shape_cast %150 : vector<8x128xf32> to vector<1x8x128xf32>
    %153 = vector.shape_cast %151 : vector<8x128xf32> to vector<1x8x128xf32>
    %154 = tpu.concatenate %152, %153 in 0 : vector<1x8x128xf32>, vector<1x8x128xf32> -> vector<2x8x128xf32>
    %155 = vector.extract_strided_slice %144 {offsets = [0, 0], sizes = [8, 128], strides = [1, 1]} : vector<8x256xf32> to vector<8x128xf32>
    %156 = vector.extract_strided_slice %144 {offsets = [0, 128], sizes = [8, 128], strides = [1, 1]} : vector<8x256xf32> to vector<8x128xf32>
    %157 = vector.shape_cast %155 : vector<8x128xf32> to vector<1x8x128xf32>
    %158 = vector.shape_cast %156 : vector<8x128xf32> to vector<1x8x128xf32>
    %159 = tpu.concatenate %157, %158 in 0 : vector<1x8x128xf32>, vector<1x8x128xf32> -> vector<2x8x128xf32>
    %160 = vector.extract_strided_slice %145 {offsets = [0, 0], sizes = [8, 128], strides = [1, 1]} : vector<8x256xf32> to vector<8x128xf32>
    %161 = vector.extract_strided_slice %145 {offsets = [0, 128], sizes = [8, 128], strides = [1, 1]} : vector<8x256xf32> to vector<8x128xf32>
    %162 = vector.shape_cast %160 : vector<8x128xf32> to vector<1x8x128xf32>
    %163 = vector.shape_cast %161 : vector<8x128xf32> to vector<1x8x128xf32>
    %164 = tpu.concatenate %162, %163 in 0 : vector<1x8x128xf32>, vector<1x8x128xf32> -> vector<2x8x128xf32>
    "tpu.trace_start"() <{level = 10 : i32, message = "hqd,hkd->hqk"}> : () -> ()
    %cst_68 = arith.constant dense<0.000000e+00> : vector<2x8x8xf32>
    %165 = tpu.matmul %154, %159, %cst_68 {dimension_numbers = #tpu.dot_dimension_numbers<[2], [2], [1], [1], [0, 0, 0, 1, 1, 1], [0], [0]>} : vector<2x8x128xf32>, vector<2x8x128xf32>, vector<2x8x8xf32> -> vector<2x8x8xf32>
    "tpu.trace_stop"() : () -> ()
    %cst_69 = arith.constant 2.500000e-01 : f32
    %166 = vector.broadcast %cst_69 : f32 to vector<2x8x8xf32>
    %167 = arith.mulf %165, %166 : vector<2x8x8xf32>
    %168 = vector.shape_cast %3 : vector<1x8xf32> to vector<1x1x8xf32>
    %169 = vector.broadcast %168 : vector<1x1x8xf32> to vector<2x8x8xf32>
    %170 = arith.addf %167, %169 : vector<2x8x8xf32>
    %cst_70 = arith.constant dense<0xFF800000> : vector<2x8xf32>
    %171 = vector.multi_reduction <maximumf>, %170, %cst_70 [2] : vector<2x8x8xf32> to vector<2x8xf32>
    %172 = vector.shape_cast %171 : vector<2x8xf32> to vector<2x8x1xf32>
    %173 = vector.broadcast %172 : vector<2x8x1xf32> to vector<2x8x8xf32>
    %174 = arith.subf %170, %173 : vector<2x8x8xf32>
    %175 = math.exp %174 : vector<2x8x8xf32>
    %cst_71 = arith.constant dense<0.000000e+00> : vector<2x8xf32>
    %176 = vector.multi_reduction <add>, %175, %cst_71 [2] : vector<2x8x8xf32> to vector<2x8xf32>
    %177 = vector.shape_cast %176 : vector<2x8xf32> to vector<2x8x1xf32>
    %178 = vector.broadcast %177 : vector<2x8x1xf32> to vector<2x8x8xf32>
    %179 = arith.divf %175, %178 : vector<2x8x8xf32>
    "tpu.trace_start"() <{level = 10 : i32, message = "hqk,hkd->hqd"}> : () -> ()
    %cst_72 = arith.constant dense<0.000000e+00> : vector<2x8x128xf32>
    %180 = tpu.matmul %179, %164, %cst_72 {dimension_numbers = #tpu.dot_dimension_numbers<[2], [1], [1], [2], [0, 0, 0, 1, 1, 2], [0], [0]>} : vector<2x8x8xf32>, vector<2x8x128xf32>, vector<2x8x128xf32> -> vector<2x8x128xf32>
    "tpu.trace_stop"() : () -> ()
    %181 = vector.extract_strided_slice %180 {offsets = [0, 0, 0], sizes = [1, 8, 128], strides = [1, 1, 1]} : vector<2x8x128xf32> to vector<1x8x128xf32>
    %182 = vector.shape_cast %181 : vector<1x8x128xf32> to vector<8x128xf32>
    %183 = vector.extract_strided_slice %180 {offsets = [1, 0, 0], sizes = [1, 8, 128], strides = [1, 1, 1]} : vector<2x8x128xf32> to vector<1x8x128xf32>
    %184 = vector.shape_cast %183 : vector<1x8x128xf32> to vector<8x128xf32>
    %185 = tpu.concatenate %182, %184 in 1 : vector<8x128xf32>, vector<8x128xf32> -> vector<8x256xf32>
    %186 = arith.truncf %185 : vector<8x256xf32> to vector<8x256xbf16>
    %cst_73 = arith.constant dense<0.000000e+00> : vector<8x128xf32>
    %187 = tpu.matmul %186, %147, %cst_73 {dimension_numbers = #tpu.dot_dimension_numbers<[1], [0], [0], [1], [0, 0, 1, 1], [], []>} : vector<8x256xbf16>, vector<256x128xbf16>, vector<8x128xf32> -> vector<8x128xf32>
    %188 = vector.broadcast %149 : vector<1x128xf32> to vector<8x128xf32>
    %189 = arith.addf %187, %188 : vector<8x128xf32>
    %190 = arith.addf %132, %189 : vector<8x128xf32>
    %191 = vector.extract_strided_slice %134 {offsets = [0, 0, 0], sizes = [1, 1, 128], strides = [1, 1, 1]} : vector<4x1x128xf32> to vector<1x1x128xf32>
    %192 = vector.shape_cast %191 : vector<1x1x128xf32> to vector<1x128xf32>
    %193 = vector.extract_strided_slice %134 {offsets = [1, 0, 0], sizes = [1, 1, 128], strides = [1, 1, 1]} : vector<4x1x128xf32> to vector<1x1x128xf32>
    %194 = vector.shape_cast %193 : vector<1x1x128xf32> to vector<1x128xf32>
    %cst_74 = arith.constant dense<0.000000e+00> : vector<8xf32>
    %195 = vector.multi_reduction <add>, %190, %cst_74 [1] : vector<8x128xf32> to vector<8xf32>
    %196 = vector.shape_cast %195 : vector<8xf32> to vector<8x1xf32>
    %cst_75 = arith.constant 3.125000e-02 : f32
    %197 = vector.broadcast %cst_75 : f32 to vector<8x1xf32>
    %198 = arith.mulf %196, %197 : vector<8x1xf32>
    %199 = arith.mulf %190, %190 : vector<8x128xf32>
    %cst_76 = arith.constant dense<0.000000e+00> : vector<8xf32>
    %200 = vector.multi_reduction <add>, %199, %cst_76 [1] : vector<8x128xf32> to vector<8xf32>
    %201 = vector.shape_cast %200 : vector<8xf32> to vector<8x1xf32>
    %cst_77 = arith.constant 3.125000e-02 : f32
    %202 = vector.broadcast %cst_77 : f32 to vector<8x1xf32>
    %203 = arith.mulf %201, %202 : vector<8x1xf32>
    %204 = arith.mulf %198, %198 : vector<8x1xf32>
    %205 = arith.subf %203, %204 : vector<8x1xf32>
    %206 = vector.broadcast %198 : vector<8x1xf32> to vector<8x128xf32>
    %207 = arith.subf %190, %206 : vector<8x128xf32>
    %cst_78 = arith.constant 9.99999974E-6 : f32
    %208 = vector.broadcast %cst_78 : f32 to vector<8x1xf32>
    %209 = arith.addf %205, %208 : vector<8x1xf32>
    %210 = math.rsqrt %209 : vector<8x1xf32>
    %211 = vector.broadcast %210 : vector<8x1xf32> to vector<8x128xf32>
    %212 = arith.mulf %207, %211 : vector<8x128xf32>
    %213 = vector.broadcast %192 : vector<1x128xf32> to vector<8x128xf32>
    %214 = arith.mulf %212, %213 : vector<8x128xf32>
    %215 = vector.broadcast %194 : vector<1x128xf32> to vector<8x128xf32>
    %216 = arith.addf %214, %215 : vector<8x128xf32>
    %c1_79 = arith.constant 1 : index
    %c0_80 = arith.constant 0 : index
    %c0_81 = arith.constant 0 : index
    %217 = vector.load %arg7[%c1_79, %c0_80, %c0_81] : memref<2x128x128xbf16, #tpu.memory_space<vmem>>, vector<1x128x128xbf16>
    %218 = vector.shape_cast %217 : vector<1x128x128xbf16> to vector<128x128xbf16>
    %c1_82 = arith.constant 1 : index
    %c0_83 = arith.constant 0 : index
    %c0_84 = arith.constant 0 : index
    %219 = vector.load %arg8[%c1_82, %c0_83, %c0_84] : memref<2x1x128xf32, #tpu.memory_space<vmem>>, vector<1x1x128xf32>
    %220 = vector.shape_cast %219 : vector<1x1x128xf32> to vector<1x128xf32>
    %221 = arith.truncf %216 : vector<8x128xf32> to vector<8x128xbf16>
    %cst_85 = arith.constant dense<0.000000e+00> : vector<8x128xf32>
    %222 = tpu.matmul %221, %218, %cst_85 {dimension_numbers = #tpu.dot_dimension_numbers<[1], [0], [0], [1], [0, 0, 1, 1], [], []>} : vector<8x128xbf16>, vector<128x128xbf16>, vector<8x128xf32> -> vector<8x128xf32>
    %223 = vector.broadcast %220 : vector<1x128xf32> to vector<8x128xf32>
    %224 = arith.addf %222, %223 : vector<8x128xf32>
    %cst_86 = arith.constant 0.000000e+00 : f32
    %225 = vector.broadcast %cst_86 : f32 to vector<8x128xf32>
    %226 = arith.maximumf %224, %225 : vector<8x128xf32>
    %c1_87 = arith.constant 1 : index
    %c0_88 = arith.constant 0 : index
    %c0_89 = arith.constant 0 : index
    %227 = vector.load %arg9[%c1_87, %c0_88, %c0_89] : memref<2x128x128xbf16, #tpu.memory_space<vmem>>, vector<1x128x128xbf16>
    %228 = vector.shape_cast %227 : vector<1x128x128xbf16> to vector<128x128xbf16>
    %c1_90 = arith.constant 1 : index
    %c0_91 = arith.constant 0 : index
    %c0_92 = arith.constant 0 : index
    %229 = vector.load %arg10[%c1_90, %c0_91, %c0_92] : memref<2x1x128xf32, #tpu.memory_space<vmem>>, vector<1x1x128xf32>
    %230 = vector.shape_cast %229 : vector<1x1x128xf32> to vector<1x128xf32>
    %231 = arith.truncf %226 : vector<8x128xf32> to vector<8x128xbf16>
    %cst_93 = arith.constant dense<0.000000e+00> : vector<8x128xf32>
    %232 = tpu.matmul %231, %228, %cst_93 {dimension_numbers = #tpu.dot_dimension_numbers<[1], [0], [0], [1], [0, 0, 1, 1], [], []>} : vector<8x128xbf16>, vector<128x128xbf16>, vector<8x128xf32> -> vector<8x128xf32>
    %233 = vector.broadcast %230 : vector<1x128xf32> to vector<8x128xf32>
    %234 = arith.addf %232, %233 : vector<8x128xf32>
    %235 = arith.addf %216, %234 : vector<8x128xf32>
    %236 = vector.extract_strided_slice %134 {offsets = [2, 0, 0], sizes = [1, 1, 128], strides = [1, 1, 1]} : vector<4x1x128xf32> to vector<1x1x128xf32>
    %237 = vector.shape_cast %236 : vector<1x1x128xf32> to vector<1x128xf32>
    %238 = vector.extract_strided_slice %134 {offsets = [3, 0, 0], sizes = [1, 1, 128], strides = [1, 1, 1]} : vector<4x1x128xf32> to vector<1x1x128xf32>
    %239 = vector.shape_cast %238 : vector<1x1x128xf32> to vector<1x128xf32>
    %cst_94 = arith.constant dense<0.000000e+00> : vector<8xf32>
    %240 = vector.multi_reduction <add>, %235, %cst_94 [1] : vector<8x128xf32> to vector<8xf32>
    %241 = vector.shape_cast %240 : vector<8xf32> to vector<8x1xf32>
    %cst_95 = arith.constant 3.125000e-02 : f32
    %242 = vector.broadcast %cst_95 : f32 to vector<8x1xf32>
    %243 = arith.mulf %241, %242 : vector<8x1xf32>
    %244 = arith.mulf %235, %235 : vector<8x128xf32>
    %cst_96 = arith.constant dense<0.000000e+00> : vector<8xf32>
    %245 = vector.multi_reduction <add>, %244, %cst_96 [1] : vector<8x128xf32> to vector<8xf32>
    %246 = vector.shape_cast %245 : vector<8xf32> to vector<8x1xf32>
    %cst_97 = arith.constant 3.125000e-02 : f32
    %247 = vector.broadcast %cst_97 : f32 to vector<8x1xf32>
    %248 = arith.mulf %246, %247 : vector<8x1xf32>
    %249 = arith.mulf %243, %243 : vector<8x1xf32>
    %250 = arith.subf %248, %249 : vector<8x1xf32>
    %251 = vector.broadcast %243 : vector<8x1xf32> to vector<8x128xf32>
    %252 = arith.subf %235, %251 : vector<8x128xf32>
    %cst_98 = arith.constant 9.99999974E-6 : f32
    %253 = vector.broadcast %cst_98 : f32 to vector<8x1xf32>
    %254 = arith.addf %250, %253 : vector<8x1xf32>
    %255 = math.rsqrt %254 : vector<8x1xf32>
    %256 = vector.broadcast %255 : vector<8x1xf32> to vector<8x128xf32>
    %257 = arith.mulf %252, %256 : vector<8x128xf32>
    %258 = vector.broadcast %237 : vector<1x128xf32> to vector<8x128xf32>
    %259 = arith.mulf %257, %258 : vector<8x128xf32>
    %260 = vector.broadcast %239 : vector<1x128xf32> to vector<8x128xf32>
    %261 = arith.addf %259, %260 : vector<8x128xf32>
    %c0_99 = arith.constant 0 : index
    %c0_100 = arith.constant 0 : index
    %c0_101 = arith.constant 0 : index
    %262 = vector.load %arg12[%c0_99, %c0_100, %c0_101] : memref<2x1x128xf32, #tpu.memory_space<vmem>>, vector<2x1x128xf32>
    %263 = vector.extract_strided_slice %262 {offsets = [0, 0, 0], sizes = [1, 1, 128], strides = [1, 1, 1]} : vector<2x1x128xf32> to vector<1x1x128xf32>
    %264 = vector.shape_cast %263 : vector<1x1x128xf32> to vector<1x128xf32>
    %265 = vector.extract_strided_slice %262 {offsets = [1, 0, 0], sizes = [1, 1, 128], strides = [1, 1, 1]} : vector<2x1x128xf32> to vector<1x1x128xf32>
    %266 = vector.shape_cast %265 : vector<1x1x128xf32> to vector<1x128xf32>
    %cst_102 = arith.constant dense<0.000000e+00> : vector<8xf32>
    %267 = vector.multi_reduction <add>, %261, %cst_102 [1] : vector<8x128xf32> to vector<8xf32>
    %268 = vector.shape_cast %267 : vector<8xf32> to vector<8x1xf32>
    %cst_103 = arith.constant 3.125000e-02 : f32
    %269 = vector.broadcast %cst_103 : f32 to vector<8x1xf32>
    %270 = arith.mulf %268, %269 : vector<8x1xf32>
    %271 = arith.mulf %261, %261 : vector<8x128xf32>
    %cst_104 = arith.constant dense<0.000000e+00> : vector<8xf32>
    %272 = vector.multi_reduction <add>, %271, %cst_104 [1] : vector<8x128xf32> to vector<8xf32>
    %273 = vector.shape_cast %272 : vector<8xf32> to vector<8x1xf32>
    %cst_105 = arith.constant 3.125000e-02 : f32
    %274 = vector.broadcast %cst_105 : f32 to vector<8x1xf32>
    %275 = arith.mulf %273, %274 : vector<8x1xf32>
    %276 = arith.mulf %270, %270 : vector<8x1xf32>
    %277 = arith.subf %275, %276 : vector<8x1xf32>
    %278 = vector.broadcast %270 : vector<8x1xf32> to vector<8x128xf32>
    %279 = arith.subf %261, %278 : vector<8x128xf32>
    %cst_106 = arith.constant 9.99999974E-6 : f32
    %280 = vector.broadcast %cst_106 : f32 to vector<8x1xf32>
    %281 = arith.addf %277, %280 : vector<8x1xf32>
    %282 = math.rsqrt %281 : vector<8x1xf32>
    %283 = vector.broadcast %282 : vector<8x1xf32> to vector<8x128xf32>
    %284 = arith.mulf %279, %283 : vector<8x128xf32>
    %285 = vector.broadcast %264 : vector<1x128xf32> to vector<8x128xf32>
    %286 = arith.mulf %284, %285 : vector<8x128xf32>
    %287 = vector.broadcast %266 : vector<1x128xf32> to vector<8x128xf32>
    %288 = arith.addf %286, %287 : vector<8x128xf32>
    %c0_107 = arith.constant 0 : index
    %c0_108 = arith.constant 0 : index
    %c0_109 = arith.constant 0 : index
    %289 = vector.load %arg13[%c0_107, %c0_108, %c0_109] : memref<1x8x128xf32, #tpu.memory_space<vmem>>, vector<1x8x128xf32>
    %290 = vector.shape_cast %289 : vector<1x8x128xf32> to vector<8x128xf32>
    %291 = vector.shape_cast %288 : vector<8x128xf32> to vector<1x8x128xf32>
    tpu.vector_store %arg13[%c0_107, %c0_108, %c0_109], %291 {strides = array<i32>} : memref<1x8x128xf32, #tpu.memory_space<vmem>>, vector<1x8x128xf32>,
    return
  }
  func.func @transform_0(%arg0: i32) -> (i32, i32, i32) {
    %c0_i32 = arith.constant 0 : i32
    %c0_i32_0 = arith.constant 0 : i32
    %c0_i32_1 = arith.constant 0 : i32
    return %arg0, %c0_i32, %c0_i32_0 : i32, i32, i32
  }
  func.func @transform_1(%arg0: i32) -> (i32, i32, i32) {
    %c0_i32 = arith.constant 0 : i32
    %c0_i32_0 = arith.constant 0 : i32
    %c0_i32_1 = arith.constant 0 : i32
    return %arg0, %c0_i32, %c0_i32_0 : i32, i32, i32
  }
  func.func @transform_2(%arg0: i32) -> (i32, i32, i32) {
    %c0_i32 = arith.constant 0 : i32
    %c0_i32_0 = arith.constant 0 : i32
    %c0_i32_1 = arith.constant 0 : i32
    %c0_i32_2 = arith.constant 0 : i32
    return %c0_i32, %c0_i32_0, %c0_i32_1 : i32, i32, i32
  }
  func.func @transform_3(%arg0: i32) -> (i32, i32, i32) {
    %c0_i32 = arith.constant 0 : i32
    %c0_i32_0 = arith.constant 0 : i32
    %c0_i32_1 = arith.constant 0 : i32
    %c0_i32_2 = arith.constant 0 : i32
    return %c0_i32, %c0_i32_0, %c0_i32_1 : i32, i32, i32
  }
  func.func @transform_4(%arg0: i32) -> (i32, i32, i32) {
    %c0_i32 = arith.constant 0 : i32
    %c0_i32_0 = arith.constant 0 : i32
    %c0_i32_1 = arith.constant 0 : i32
    %c0_i32_2 = arith.constant 0 : i32
    return %c0_i32, %c0_i32_0, %c0_i32_1 : i32, i32, i32
  }
  func.func @transform_5(%arg0: i32) -> (i32, i32, i32) {
    %c0_i32 = arith.constant 0 : i32
    %c0_i32_0 = arith.constant 0 : i32
    %c0_i32_1 = arith.constant 0 : i32
    %c0_i32_2 = arith.constant 0 : i32
    return %c0_i32, %c0_i32_0, %c0_i32_1 : i32, i32, i32
  }
  func.func @transform_6(%arg0: i32) -> (i32, i32, i32) {
    %c0_i32 = arith.constant 0 : i32
    %c0_i32_0 = arith.constant 0 : i32
    %c0_i32_1 = arith.constant 0 : i32
    %c0_i32_2 = arith.constant 0 : i32
    return %c0_i32, %c0_i32_0, %c0_i32_1 : i32, i32, i32
  }
  func.func @transform_7(%arg0: i32) -> (i32, i32, i32) {
    %c0_i32 = arith.constant 0 : i32
    %c0_i32_0 = arith.constant 0 : i32
    %c0_i32_1 = arith.constant 0 : i32
    %c0_i32_2 = arith.constant 0 : i32
    return %c0_i32, %c0_i32_0, %c0_i32_1 : i32, i32, i32
  }
  func.func @transform_8(%arg0: i32) -> (i32, i32, i32) {
    %c0_i32 = arith.constant 0 : i32
    %c0_i32_0 = arith.constant 0 : i32
    %c0_i32_1 = arith.constant 0 : i32
    %c0_i32_2 = arith.constant 0 : i32
    return %c0_i32, %c0_i32_0, %c0_i32_1 : i32, i32, i32
  }
  func.func @transform_9(%arg0: i32) -> (i32, i32, i32) {
    %c0_i32 = arith.constant 0 : i32
    %c0_i32_0 = arith.constant 0 : i32
    %c0_i32_1 = arith.constant 0 : i32
    %c0_i32_2 = arith.constant 0 : i32
    return %c0_i32, %c0_i32_0, %c0_i32_1 : i32, i32, i32
  }
  func.func @transform_10(%arg0: i32) -> (i32, i32, i32, i32) {
    %c0_i32 = arith.constant 0 : i32
    %c0_i32_0 = arith.constant 0 : i32
    %c0_i32_1 = arith.constant 0 : i32
    %c0_i32_2 = arith.constant 0 : i32
    %c0_i32_3 = arith.constant 0 : i32
    return %c0_i32, %c0_i32_0, %c0_i32_1, %c0_i32_2 : i32, i32, i32, i32
  }
  func.func @transform_11(%arg0: i32) -> (i32, i32, i32) {
    %c0_i32 = arith.constant 0 : i32
    %c0_i32_0 = arith.constant 0 : i32
    %c0_i32_1 = arith.constant 0 : i32
    %c0_i32_2 = arith.constant 0 : i32
    return %c0_i32, %c0_i32_0, %c0_i32_1 : i32, i32, i32
  }
  func.func @transform_12(%arg0: i32) -> (i32, i32, i32) {
    %c0_i32 = arith.constant 0 : i32
    %c0_i32_0 = arith.constant 0 : i32
    %c0_i32_1 = arith.constant 0 : i32
    return %arg0, %c0_i32, %c0_i32_0 : i32, i32, i32
  }
}

</mosaic_0001>

<llo_original>
// kernel: transformer_forward.2
$region0: #{transformer_forward.2}
  #allocation0 [shape = 'u32[]', space=smem, size = 0x4, offset = 0x4, fixed_abs, tag = 'smem constant byte address 0x4 - core index']
  #allocation1 [shape = 'u32[144,128]{1,0:T(1,128)}', space=vmem, size = 0x12000, scoped, tag = 'internal scratch']
  %s0 = inlined_call_operand.vmem [shape: f32[2,8,128], index: 0, kind: input, shape index: {}]
  %s1 = inlined_call_operand.vmem [shape: f32[2,1,8], index: 1, kind: input, shape index: {}]
  %s2 = inlined_call_operand.hbm [shape: bf16[2,128,768], index: 2, kind: input, shape index: {}]
  %s3 = inlined_call_operand.vmem [shape: f32[2,1,768], index: 3, kind: input, shape index: {}]
  %s4 = inlined_call_operand.vmem [shape: bf16[2,256,128], index: 4, kind: input, shape index: {}]
  %s5 = inlined_call_operand.vmem [shape: f32[2,1,128], index: 5, kind: input, shape index: {}]
  %s6 = inlined_call_operand.hbm [shape: bf16[2,128,128], index: 6, kind: input, shape index: {}]
  %s7 = inlined_call_operand.vmem [shape: f32[2,1,128], index: 7, kind: input, shape index: {}]
  %s8 = inlined_call_operand.hbm [shape: bf16[2,128,128], index: 8, kind: input, shape index: {}]
  %s9 = inlined_call_operand.vmem [shape: f32[2,1,128], index: 9, kind: input, shape index: {}]
  %s10 = inlined_call_operand.vmem [shape: f32[2,4,1,128], index: 10, kind: input, shape index: {}]
  %s11 = inlined_call_operand.vmem [shape: f32[2,1,128], index: 11, kind: input, shape index: {}]
  %s12 = inlined_call_operand.vmem [shape: f32[2,8,128], index: 12, kind: output, shape index: {}]
  %s13 = sld [smem:[#allocation0]]
  $region93: #{transformer_forward.2} parent=0
    _
  %s15 = ssub.s32 1, %s13
  %s16 = scalar_select 0, %s15, %s13
  $region1: #{transformer_forward.2} parent=0
    #allocation2 [shape = 'u8[393216]{0}', space=vmem, size = 0x60000, scoped, tag = 'input window, operand 2, single buffered']
    #allocation3 [shape = 's32[2]{0}', space=sflag, size = 0x8, scoped, tag = 'scoped memory for transformer_forward.2']
    #allocation4 [shape = 'u8[65536]{0}', space=vmem, size = 0x10000, scoped, tag = 'input window, operand 6, single buffered']
    #allocation5 [shape = 's32[1]{0}', space=sflag, size = 0x4, scoped, tag = 'scoped memory for transformer_forward.2']
    #allocation6 [shape = 'u8[65536]{0}', space=vmem, size = 0x10000, scoped, tag = 'input window, operand 8, single buffered']
    %17 = vsyncpa [#allocation3], 0
    %18 = vsyncpa [#allocation5], 0
    loop: start=0, step=1, limit=4
    $region2: #{transformer_forward.2} parent=1 // loop_pre_header
      _
    $region3: #{transformer_forward.2} parent=1 // loop_header
      %s20 = sphi 0, %s24
      %p21 = scmp.ge.s32.totalorder %s20, 4
      %s30 = sphi 0, %s32
      %s33 = sphi 0, %s30
      %s34 = sphi 0, %s33
      %s50 = sphi 0, %s34
      %s56 = sphi 0, %s58
      %s59 = sphi 0, %s56
      %s60 = sphi 0, %s59
      %s76 = sphi 0, %s60
      %s80 = sphi 0, %s80
      %s82 = sphi 0, %s80
      %s83 = sphi 0, %s82
      %s97 = sphi 0, %s83
      %s101 = sphi 0, %s101
      %s103 = sphi 0, %s101
      %s104 = sphi 0, %s103
      %s118 = sphi 0, %s104
      %s122 = sphi 0, %s122
      %s124 = sphi 0, %s122
      %s125 = sphi 0, %s124
      %s139 = sphi 0, %s125
      %s143 = sphi 0, %s143
      %s145 = sphi 0, %s143
      %s146 = sphi 0, %s145
      %s160 = sphi 0, %s146
      %s164 = sphi 0, %s164
      %s166 = sphi 0, %s164
      %s167 = sphi 0, %s166
      %s181 = sphi 0, %s167
      %s185 = sphi 0, %s185
      %s187 = sphi 0, %s185
      %s188 = sphi 0, %s187
      %s202 = sphi 0, %s188
      %s206 = sphi 0, %s206
      %s208 = sphi 0, %s206
      %s209 = sphi 0, %s208
      %s223 = sphi 0, %s209
      %s227 = sphi 0, %s227
      %s229 = sphi 0, %s227
      %s230 = sphi 0, %s229
      %s244 = sphi 0, %s230
      %s248 = sphi 0, %s248
      %s250 = sphi 0, %s248
      %s251 = sphi 0, %s250
      %s265 = sphi 0, %s251
      %s269 = sphi 0, %s269
      %s271 = sphi 0, %s269
      %s272 = sphi 0, %s271
      %s286 = sphi 0, %s272
      %s292 = sphi 0, %s294
      %s295 = sphi 0, %s292
      %s296 = sphi 0, %s295
      %s312 = sphi 0, %s296
    $region4: #{transformer_forward.2} parent=1 // loop_header_branch
      %23 = sbr.rel (%p21) target = $region8
    $region5: #{transformer_forward.2} parent=1 // loop_body
      %s25 = ssub.s32 %s20, 1
      %s26 = ssub.s32 %s20, 2
      %s27 = sadd.s32 %s20, 1
      %s28 = ssub.s32 %s20, %s27
      %p29 = scmp.eq.s32.totalorder %s28, 0
      %s31 = sadd.s32 %s30, 1
      %s32 = scalar_select %p29, %s30, %s31
      %p35 = pneg %p29
      %p36 = scmp.eq.s32.totalorder %s20, 1
      %p37 = por %p35, %p36
      %p38 = scmp.ne.s32.totalorder %s30, %s33
      %p39 = scmp.eq.s32.totalorder %s20, 0
      %p40 = por %p38, %p39
      %p41 = scmp.ne.s32.totalorder %s30, %s33
      %p42 = scmp.eq.s32.totalorder %s25, 1
      %p43 = por %p41, %p42
      %p44 = scmp.ne.s32.totalorder %s33, %s34
      %p45 = scmp.eq.s32.totalorder %s25, 0
      %p46 = por %p44, %p45
      %p47 = scmp.ne.s32.totalorder %s33, %s34
      %p48 = scmp.eq.s32.totalorder %s26, 1
      %p49 = por %p47, %p48
      %p51 = scmp.ne.s32.totalorder %s34, %s50
      %p52 = scmp.eq.s32.totalorder %s26, 0
      %p53 = por %p51, %p52
      %s54 = ssub.s32 %s20, %s27
      %p55 = scmp.eq.s32.totalorder %s54, 0
      %s57 = sadd.s32 %s56, 1
      %s58 = scalar_select %p55, %s56, %s57
      %p61 = pneg %p55
      %p62 = scmp.eq.s32.totalorder %s20, 1
      %p63 = por %p61, %p62
      %p64 = scmp.ne.s32.totalorder %s56, %s59
      %p65 = scmp.eq.s32.totalorder %s20, 0
      %p66 = por %p64, %p65
      %p67 = scmp.ne.s32.totalorder %s56, %s59
      %p68 = scmp.eq.s32.totalorder %s25, 1
      %p69 = por %p67, %p68
      %p70 = scmp.ne.s32.totalorder %s59, %s60
      %p71 = scmp.eq.s32.totalorder %s25, 0
      %p72 = por %p70, %p71
      %p73 = scmp.ne.s32.totalorder %s59, %s60
      %p74 = scmp.eq.s32.totalorder %s26, 1
      %p75 = por %p73, %p74
      %p77 = scmp.ne.s32.totalorder %s60, %s76
      %p78 = scmp.eq.s32.totalorder %s26, 0
      %p79 = por %p77, %p78
      %s81 = sadd.s32 %s80, 1
      %p84 = scmp.eq.s32.totalorder %s20, 1
      %p85 = scmp.ne.s32.totalorder %s80, %s82
      %p86 = scmp.eq.s32.totalorder %s20, 0
      %p87 = por %p85, %p86
      %p88 = scmp.ne.s32.totalorder %s80, %s82
      %p89 = scmp.eq.s32.totalorder %s25, 1
      %p90 = por %p88, %p89
      %p91 = scmp.ne.s32.totalorder %s82, %s83
      %p92 = scmp.eq.s32.totalorder %s25, 0
      %p93 = por %p91, %p92
      %p94 = scmp.ne.s32.totalorder %s82, %s83
      %p95 = scmp.eq.s32.totalorder %s26, 1
      %p96 = por %p94, %p95
      %p98 = scmp.ne.s32.totalorder %s83, %s97
      %p99 = scmp.eq.s32.totalorder %s26, 0
      %p100 = por %p98, %p99
      %s102 = sadd.s32 %s101, 1
      %p105 = scmp.eq.s32.totalorder %s20, 1
      %p106 = scmp.ne.s32.totalorder %s101, %s103
      %p107 = scmp.eq.s32.totalorder %s20, 0
      %p108 = por %p106, %p107
      %p109 = scmp.ne.s32.totalorder %s101, %s103
      %p110 = scmp.eq.s32.totalorder %s25, 1
      %p111 = por %p109, %p110
      %p112 = scmp.ne.s32.totalorder %s103, %s104
      %p113 = scmp.eq.s32.totalorder %s25, 0
      %p114 = por %p112, %p113
      %p115 = scmp.ne.s32.totalorder %s103, %s104
      %p116 = scmp.eq.s32.totalorder %s26, 1
      %p117 = por %p115, %p116
      %p119 = scmp.ne.s32.totalorder %s104, %s118
      %p120 = scmp.eq.s32.totalorder %s26, 0
      %p121 = por %p119, %p120
      %s123 = sadd.s32 %s122, 1
      %p126 = scmp.eq.s32.totalorder %s20, 1
      %p127 = scmp.ne.s32.totalorder %s122, %s124
      %p128 = scmp.eq.s32.totalorder %s20, 0
      %p129 = por %p127, %p128
      %p130 = scmp.ne.s32.totalorder %s122, %s124
      %p131 = scmp.eq.s32.totalorder %s25, 1
      %p132 = por %p130, %p131
      %p133 = scmp.ne.s32.totalorder %s124, %s125
      %p134 = scmp.eq.s32.totalorder %s25, 0
      %p135 = por %p133, %p134
      %p136 = scmp.ne.s32.totalorder %s124, %s125
      %p137 = scmp.eq.s32.totalorder %s26, 1
      %p138 = por %p136, %p137
      %p140 = scmp.ne.s32.totalorder %s125, %s139
      %p141 = scmp.eq.s32.totalorder %s26, 0
      %p142 = por %p140, %p141
      %s144 = sadd.s32 %s143, 1
      %p147 = scmp.eq.s32.totalorder %s20, 1
      %p148 = scmp.ne.s32.totalorder %s143, %s145
      %p149 = scmp.eq.s32.totalorder %s20, 0
      %p150 = por %p148, %p149
      %p151 = scmp.ne.s32.totalorder %s143, %s145
      %p152 = scmp.eq.s32.totalorder %s25, 1
      %p153 = por %p151, %p152
      %p154 = scmp.ne.s32.totalorder %s145, %s146
      %p155 = scmp.eq.s32.totalorder %s25, 0
      %p156 = por %p154, %p155
      %p157 = scmp.ne.s32.totalorder %s145, %s146
      %p158 = scmp.eq.s32.totalorder %s26, 1
      %p159 = por %p157, %p158
      %p161 = scmp.ne.s32.totalorder %s146, %s160
      %p162 = scmp.eq.s32.totalorder %s26, 0
      %p163 = por %p161, %p162
      %s165 = sadd.s32 %s164, 1
      %p168 = scmp.eq.s32.totalorder %s20, 1
      %p169 = scmp.ne.s32.totalorder %s164, %s166
      %p170 = scmp.eq.s32.totalorder %s20, 0
      %p171 = por %p169, %p170
      %p172 = scmp.ne.s32.totalorder %s164, %s166
      %p173 = scmp.eq.s32.totalorder %s25, 1
      %p174 = por %p172, %p173
      %p175 = scmp.ne.s32.totalorder %s166, %s167
      %p176 = scmp.eq.s32.totalorder %s25, 0
      %p177 = por %p175, %p176
      %p178 = scmp.ne.s32.totalorder %s166, %s167
      %p179 = scmp.eq.s32.totalorder %s26, 1
      %p180 = por %p178, %p179
      %p182 = scmp.ne.s32.totalorder %s167, %s181
      %p183 = scmp.eq.s32.totalorder %s26, 0
      %p184 = por %p182, %p183
      %s186 = sadd.s32 %s185, 1
      %p189 = scmp.eq.s32.totalorder %s20, 1
      %p190 = scmp.ne.s32.totalorder %s185, %s187
      %p191 = scmp.eq.s32.totalorder %s20, 0
      %p192 = por %p190, %p191
      %p193 = scmp.ne.s32.totalorder %s185, %s187
      %p194 = scmp.eq.s32.totalorder %s25, 1
      %p195 = por %p193, %p194
      %p196 = scmp.ne.s32.totalorder %s187, %s188
      %p197 = scmp.eq.s32.totalorder %s25, 0
      %p198 = por %p196, %p197
      %p199 = scmp.ne.s32.totalorder %s187, %s188
      %p200 = scmp.eq.s32.totalorder %s26, 1
      %p201 = por %p199, %p200
      %p203 = scmp.ne.s32.totalorder %s188, %s202
      %p204 = scmp.eq.s32.totalorder %s26, 0
      %p205 = por %p203, %p204
      %s207 = sadd.s32 %s206, 1
      %p210 = scmp.eq.s32.totalorder %s20, 1
      %p211 = scmp.ne.s32.totalorder %s206, %s208
      %p212 = scmp.eq.s32.totalorder %s20, 0
      %p213 = por %p211, %p212
      %p214 = scmp.ne.s32.totalorder %s206, %s208
      %p215 = scmp.eq.s32.totalorder %s25, 1
      %p216 = por %p214, %p215
      %p217 = scmp.ne.s32.totalorder %s208, %s209
      %p218 = scmp.eq.s32.totalorder %s25, 0
      %p219 = por %p217, %p218
      %p220 = scmp.ne.s32.totalorder %s208, %s209
      %p221 = scmp.eq.s32.totalorder %s26, 1
      %p222 = por %p220, %p221
      %p224 = scmp.ne.s32.totalorder %s209, %s223
      %p225 = scmp.eq.s32.totalorder %s26, 0
      %p226 = por %p224, %p225
      %s228 = sadd.s32 %s227, 1
      %p231 = scmp.eq.s32.totalorder %s20, 1
      %p232 = scmp.ne.s32.totalorder %s227, %s229
      %p233 = scmp.eq.s32.totalorder %s20, 0
      %p234 = por %p232, %p233
      %p235 = scmp.ne.s32.totalorder %s227, %s229
      %p236 = scmp.eq.s32.totalorder %s25, 1
      %p237 = por %p235, %p236
      %p238 = scmp.ne.s32.totalorder %s229, %s230
      %p239 = scmp.eq.s32.totalorder %s25, 0
      %p240 = por %p238, %p239
      %p241 = scmp.ne.s32.totalorder %s229, %s230
      %p242 = scmp.eq.s32.totalorder %s26, 1
      %p243 = por %p241, %p242
      %p245 = scmp.ne.s32.totalorder %s230, %s244
      %p246 = scmp.eq.s32.totalorder %s26, 0
      %p247 = por %p245, %p246
      %s249 = sadd.s32 %s248, 1
      %p252 = scmp.eq.s32.totalorder %s20, 1
      %p253 = scmp.ne.s32.totalorder %s248, %s250
      %p254 = scmp.eq.s32.totalorder %s20, 0
      %p255 = por %p253, %p254
      %p256 = scmp.ne.s32.totalorder %s248, %s250
      %p257 = scmp.eq.s32.totalorder %s25, 1
      %p258 = por %p256, %p257
      %p259 = scmp.ne.s32.totalorder %s250, %s251
      %p260 = scmp.eq.s32.totalorder %s25, 0
      %p261 = por %p259, %p260
      %p262 = scmp.ne.s32.totalorder %s250, %s251
      %p263 = scmp.eq.s32.totalorder %s26, 1
      %p264 = por %p262, %p263
      %p266 = scmp.ne.s32.totalorder %s251, %s265
      %p267 = scmp.eq.s32.totalorder %s26, 0
      %p268 = por %p266, %p267
      %s270 = sadd.s32 %s269, 1
      %p273 = scmp.eq.s32.totalorder %s20, 1
      %p274 = scmp.ne.s32.totalorder %s269, %s271
      %p275 = scmp.eq.s32.totalorder %s20, 0
      %p276 = por %p274, %p275
      %p277 = scmp.ne.s32.totalorder %s269, %s271
      %p278 = scmp.eq.s32.totalorder %s25, 1
      %p279 = por %p277, %p278
      %p280 = scmp.ne.s32.totalorder %s271, %s272
      %p281 = scmp.eq.s32.totalorder %s25, 0
      %p282 = por %p280, %p281
      %p283 = scmp.ne.s32.totalorder %s271, %s272
      %p284 = scmp.eq.s32.totalorder %s26, 1
      %p285 = por %p283, %p284
      %p287 = scmp.ne.s32.totalorder %s272, %s286
      %p288 = scmp.eq.s32.totalorder %s26, 0
      %p289 = por %p287, %p288
      %s290 = ssub.s32 %s20, %s27
      %p291 = scmp.eq.s32.totalorder %s290, 0
      %s293 = sadd.s32 %s292, 1
      %s294 = scalar_select %p291, %s292, %s293
      %p297 = pneg %p291
      %p298 = scmp.eq.s32.totalorder %s20, 1
      %p299 = por %p297, %p298
      %p300 = scmp.ne.s32.totalorder %s292, %s295
      %p301 = scmp.eq.s32.totalorder %s20, 0
      %p302 = por %p300, %p301
      %p303 = scmp.ne.s32.totalorder %s292, %s295
      %p304 = scmp.eq.s32.totalorder %s25, 1
      %p305 = por %p303, %p304
      %p306 = scmp.ne.s32.totalorder %s295, %s296
      %p307 = scmp.eq.s32.totalorder %s25, 0
      %p308 = por %p306, %p307
      %p309 = scmp.ne.s32.totalorder %s295, %s296
      %p310 = scmp.eq.s32.totalorder %s26, 1
      %p311 = por %p309, %p310
      %p313 = scmp.ne.s32.totalorder %s296, %s312
      %p314 = scmp.eq.s32.totalorder %s26, 0
      %p315 = por %p313, %p314
      %p316 = scmp.le.s32.totalorder 1, %s20
      %p317 = scmp.lt.s32.totalorder %s20, 3
      %p318 = pnand %p316, %p317
      %p319 = pneg %p318
      // Predicated region
      $region9: #{transformer_forward.2} parent=5 // pred_check
        _
      $region10: #{transformer_forward.2} parent=5 // pred_check_branch
        %321 = sbr.rel (%p318) target = $region12
      $region11: #{transformer_forward.2} parent=5 // pred_region
        %s322 = ssub.s32 %s20, 1
        // Predicated region
        $region13: #{transformer_forward.2} parent=11 // pred_check
          %p323 = pneg %p93
        $region14: #{transformer_forward.2} parent=11 // pred_check_branch
          %325 = sbr.rel (%p323) target = $region16
        $region15: #{transformer_forward.2} parent=11 // pred_region
          %s327 = ssub.s32 12288, 12288
          %328 = vsyncadd [#allocation3], %s327
          %s329 = sshll.u32 [#allocation2], 4
          %s330 = int_to_ptr.vmem [resolvable:$true] %s329
          %335 = dma.hbm_to_vmem [thread:$0]  %s2, 12288, %s330, [#allocation3], 384, 384, 24
        $region16: #{transformer_forward.2} parent=11 // pred_fallthru
          _
        // Predicated region
        $region17: #{transformer_forward.2} parent=11 // pred_check
          %p336 = pneg %p114
        $region18: #{transformer_forward.2} parent=11 // pred_check_branch
          %338 = sbr.rel (%p336) target = $region20
        $region19: #{transformer_forward.2} parent=11 // pred_region
          _
        $region20: #{transformer_forward.2} parent=11 // pred_fallthru
          _
        // Predicated region
        $region21: #{transformer_forward.2} parent=11 // pred_check
          %p339 = pneg %p135
        $region22: #{transformer_forward.2} parent=11 // pred_check_branch
          %341 = sbr.rel (%p339) target = $region24
        $region23: #{transformer_forward.2} parent=11 // pred_region
          _
        $region24: #{transformer_forward.2} parent=11 // pred_fallthru
          _
        // Predicated region
        $region25: #{transformer_forward.2} parent=11 // pred_check
          %p342 = pneg %p156
        $region26: #{transformer_forward.2} parent=11 // pred_check_branch
          %344 = sbr.rel (%p342) target = $region28
        $region27: #{transformer_forward.2} parent=11 // pred_region
          _
        $region28: #{transformer_forward.2} parent=11 // pred_fallthru
          _
        // Predicated region
        $region29: #{transformer_forward.2} parent=11 // pred_check
          %p345 = pneg %p177
        $region30: #{transformer_forward.2} parent=11 // pred_check_branch
          %347 = sbr.rel (%p345) target = $region32
        $region31: #{transformer_forward.2} parent=11 // pred_region
          %s349 = ssub.s32 2048, 2048
          %350 = vsyncadd [#allocation5], %s349
          %s351 = sshll.u32 [#allocation4], 4
          %s352 = int_to_ptr.vmem [resolvable:$true] %s351
          %357 = dma.hbm_to_vmem [thread:$0]  %s6, 2048, %s352, [#allocation5], 64, 64, 4
        $region32: #{transformer_forward.2} parent=11 // pred_fallthru
          _
        // Predicated region
        $region33: #{transformer_forward.2} parent=11 // pred_check
          %p358 = pneg %p198
        $region34: #{transformer_forward.2} parent=11 // pred_check_branch
          %360 = sbr.rel (%p358) target = $region36
        $region35: #{transformer_forward.2} parent=11 // pred_region
          _
        $region36: #{transformer_forward.2} parent=11 // pred_fallthru
          _
        // Predicated region
        $region37: #{transformer_forward.2} parent=11 // pred_check
          %p361 = pneg %p219
        $region38: #{transformer_forward.2} parent=11 // pred_check_branch
          %363 = sbr.rel (%p361) target = $region40
        $region39: #{transformer_forward.2} parent=11 // pred_region
          %s365 = ssub.s32 2048, 2048
          %366 = vsyncadd [#allocation5], %s365
          %s367 = sshll.u32 [#allocation6], 4
          %s368 = int_to_ptr.vmem [resolvable:$true] %s367
          %373 = dma.hbm_to_vmem [thread:$0]  %s8, 2048, %s368, [#allocation5], 64, 64, 4
        $region40: #{transformer_forward.2} parent=11 // pred_fallthru
          _
        // Predicated region
        $region41: #{transformer_forward.2} parent=11 // pred_check
          %p374 = pneg %p240
        $region42: #{transformer_forward.2} parent=11 // pred_check_branch
          %376 = sbr.rel (%p374) target = $region44
        $region43: #{transformer_forward.2} parent=11 // pred_region
          _
        $region44: #{transformer_forward.2} parent=11 // pred_fallthru
          _
        // Predicated region
        $region45: #{transformer_forward.2} parent=11 // pred_check
          %p377 = pneg %p261
        $region46: #{transformer_forward.2} parent=11 // pred_check_branch
          %379 = sbr.rel (%p377) target = $region48
        $region47: #{transformer_forward.2} parent=11 // pred_region
          _
        $region48: #{transformer_forward.2} parent=11 // pred_fallthru
          _
        // Predicated region
        $region49: #{transformer_forward.2} parent=11 // pred_check
          %p380 = pneg %p282
        $region50: #{transformer_forward.2} parent=11 // pred_check_branch
          %382 = sbr.rel (%p380) target = $region52
        $region51: #{transformer_forward.2} parent=11 // pred_region
          _
        $region52: #{transformer_forward.2} parent=11 // pred_fallthru
          _
      $region12: #{transformer_forward.2} parent=5 // pred_fallthru
        _
      %p383 = scmp.lt.s32.totalorder %s20, 2
      // Predicated region
      $region53: #{transformer_forward.2} parent=5 // pred_check
        %p384 = pneg %p383
      $region54: #{transformer_forward.2} parent=5 // pred_check_branch
        %386 = sbr.rel (%p384) target = $region56
      $region55: #{transformer_forward.2} parent=5 // pred_region
        // Predicated region
        $region57: #{transformer_forward.2} parent=55 // pred_check
          %p387 = pneg %p40
        $region58: #{transformer_forward.2} parent=55 // pred_check_branch
          %389 = sbr.rel (%p387) target = $region60
        $region59: #{transformer_forward.2} parent=55 // pred_region
          %p390 = scmp.lt.s32.totalorder %s20, 1
          %s391 = scalar_select %p390, %s20, 1
          %s392 = smul.addr %s391, 8
          %s393 = scalar_lea.vmem %s0, %s392
        $region60: #{transformer_forward.2} parent=55 // pred_fallthru
          _
        // Predicated region
        $region61: #{transformer_forward.2} parent=55 // pred_check
          %p394 = pneg %p66
        $region62: #{transformer_forward.2} parent=55 // pred_check_branch
          %396 = sbr.rel (%p394) target = $region64
        $region63: #{transformer_forward.2} parent=55 // pred_region
          %p397 = scmp.lt.s32.totalorder %s20, 1
          %s398 = scalar_select %p397, %s20, 1
          %s399 = scalar_lea.vmem %s1, %s398
        $region64: #{transformer_forward.2} parent=55 // pred_fallthru
          _
      $region56: #{transformer_forward.2} parent=5 // pred_fallthru
        _
      %p400 = scmp.le.s32.totalorder 1, %s20
      %p401 = scmp.lt.s32.totalorder %s20, 3
      %p402 = pnand %p400, %p401
      %p403 = pneg %p402
      // Predicated region
      $region65: #{transformer_forward.2} parent=5 // pred_check
        _
      $region66: #{transformer_forward.2} parent=5 // pred_check_branch
        %405 = sbr.rel (%p402) target = $region68
      $region67: #{transformer_forward.2} parent=5 // pred_region
        %s406 = ssub.s32 %s20, 1
        // Predicated region
        $region69: #{transformer_forward.2} parent=67 // pred_check
          %p407 = pneg %p93
        $region70: #{transformer_forward.2} parent=67 // pred_check_branch
          %409 = sbr.rel (%p407) target = $region72
        $region71: #{transformer_forward.2} parent=67 // pred_region
          %410 = dma.done [#allocation3], 12288
        $region72: #{transformer_forward.2} parent=67 // pred_fallthru
          _
        // Predicated region
        $region73: #{transformer_forward.2} parent=67 // pred_check
          %p411 = pneg %p177
        $region74: #{transformer_forward.2} parent=67 // pred_check_branch
          %413 = sbr.rel (%p411) target = $region76
        $region75: #{transformer_forward.2} parent=67 // pred_region
          %414 = dma.done [#allocation5], 2048
        $region76: #{transformer_forward.2} parent=67 // pred_fallthru
          _
        // Predicated region
        $region77: #{transformer_forward.2} parent=67 // pred_check
          %p415 = pneg %p219
        $region78: #{transformer_forward.2} parent=67 // pred_check_branch
          %417 = sbr.rel (%p415) target = $region80
        $region79: #{transformer_forward.2} parent=67 // pred_region
          %418 = dma.done [#allocation5], 2048
        $region80: #{transformer_forward.2} parent=67 // pred_fallthru
          _
        %p419 = scmp.lt.s32.totalorder %s25, 1
        %s420 = scalar_select %p419, %s25, 1
        %s421 = smul.addr %s420, 8
        %s422 = scalar_lea.vmem %s0, %s421
        %p423 = pneg %p46
        %p424 = pneg %p43
        %p425 = scmp.lt.s32.totalorder %s25, 1
        %s426 = scalar_select %p425, %s25, 1
        %s427 = scalar_lea.vmem %s1, %s426
        %p428 = pneg %p72
        %p429 = pneg %p69
        %p430 = pneg %p93
        %p431 = pneg %p90
        %p432 = pneg %p114
        %p433 = pneg %p111
        %p434 = pneg %p135
        %p435 = pneg %p132
        %p436 = pneg %p156
        %p437 = pneg %p153
        %p438 = pneg %p177
        %p439 = pneg %p174
        %p440 = pneg %p198
        %p441 = pneg %p195
        %p442 = pneg %p219
        %p443 = pneg %p216
        %p444 = pneg %p240
        %p445 = pneg %p237
        %p446 = pneg %p261
        %p447 = pneg %p258
        %p448 = pneg %p282
        %p449 = pneg %p279
        %p450 = pneg %p308
        %p451 = pneg %p305
        %p452 = scmp.lt.s32.totalorder %s25, 1
        %s453 = scalar_select %p452, %s25, 1
        %s454 = smul.addr %s453, 8
        %s455 = scalar_lea.vmem %s12, %s454
        %p456 = scmp.lt.s32.totalorder %s25, 1
        %s457 = scalar_select %p456, %s25, 1
        %s458 = smul.addr %s457, 8
        %s459 = scalar_lea.vmem %s0, %s458
        %p460 = scmp.lt.s32.totalorder %s25, 1
        %s461 = scalar_select %p460, %s25, 1
        %s462 = scalar_lea.vmem %s1, %s461
        %p463 = scmp.lt.s32.totalorder %s25, 1
        %s464 = scalar_select %p463, %s25, 1
        %s465 = smul.addr %s464, 8
        %s466 = scalar_lea.vmem %s12, %s465
        %v468 = vld [vmem:[%s459] sm:$0xff]
        %v469 = vld [vmem:[%s462] sm:$0x1]
        %v470 = vld [vmem:[%s10] sm:$0x1]
        %v471 = vld [vmem:[%s10 + $0x1] sm:$0x1]
        %v472 = vld [vmem:[%s10 + $0x2] sm:$0x1]
        %v473 = vld [vmem:[%s10 + $0x3] sm:$0x1]
        %v474 = vld [vmem:[#allocation2] sm:$0xff]
        %v475 = vld [vmem:[#allocation2 + $0x8] sm:$0xff]
        %v476 = vld [vmem:[#allocation2 + $0x10] sm:$0xff]
        %v477 = vld [vmem:[#allocation2 + $0x18] sm:$0xff]
        %v478 = vld [vmem:[#allocation2 + $0x20] sm:$0xff]
        %v479 = vld [vmem:[#allocation2 + $0x28] sm:$0xff]
        %v480 = vld [vmem:[#allocation2 + $0x30] sm:$0xff]
        %v481 = vld [vmem:[#allocation2 + $0x38] sm:$0xff]
        %v482 = vld [vmem:[#allocation2 + $0x40] sm:$0xff]
        %v483 = vld [vmem:[#allocation2 + $0x48] sm:$0xff]
        %v484 = vld [vmem:[#allocation2 + $0x50] sm:$0xff]
        %v485 = vld [vmem:[#allocation2 + $0x58] sm:$0xff]
        %v486 = vld [vmem:[#allocation2 + $0x60] sm:$0xff]
        %v487 = vld [vmem:[#allocation2 + $0x68] sm:$0xff]
        %v488 = vld [vmem:[#allocation2 + $0x70] sm:$0xff]
        %v489 = vld [vmem:[#allocation2 + $0x78] sm:$0xff]
        %v490 = vld [vmem:[#allocation2 + $0x80] sm:$0xff]
        %v491 = vld [vmem:[#allocation2 + $0x88] sm:$0xff]
        %v492 = vld [vmem:[#allocation2 + $0x90] sm:$0xff]
        %v493 = vld [vmem:[#allocation2 + $0x98] sm:$0xff]
        %v494 = vld [vmem:[#allocation2 + $0xa0] sm:$0xff]
        %v495 = vld [vmem:[#allocation2 + $0xa8] sm:$0xff]
        %v496 = vld [vmem:[#allocation2 + $0xb0] sm:$0xff]
        %v497 = vld [vmem:[#allocation2 + $0xb8] sm:$0xff]
        %v498 = vld [vmem:[#allocation2 + $0xc0] sm:$0xff]
        %v499 = vld [vmem:[#allocation2 + $0xc8] sm:$0xff]
        %v500 = vld [vmem:[#allocation2 + $0xd0] sm:$0xff]
        %v501 = vld [vmem:[#allocation2 + $0xd8] sm:$0xff]
        %v502 = vld [vmem:[#allocation2 + $0xe0] sm:$0xff]
        %v503 = vld [vmem:[#allocation2 + $0xe8] sm:$0xff]
        %v504 = vld [vmem:[#allocation2 + $0xf0] sm:$0xff]
        %v505 = vld [vmem:[#allocation2 + $0xf8] sm:$0xff]
        %v506 = vld [vmem:[#allocation2 + $0x100] sm:$0xff]
        %v507 = vld [vmem:[#allocation2 + $0x108] sm:$0xff]
        %v508 = vld [vmem:[#allocation2 + $0x110] sm:$0xff]
        %v509 = vld [vmem:[#allocation2 + $0x118] sm:$0xff]
        %v510 = vld [vmem:[#allocation2 + $0x120] sm:$0xff]
        %v511 = vld [vmem:[#allocation2 + $0x128] sm:$0xff]
        %v512 = vld [vmem:[#allocation2 + $0x130] sm:$0xff]
        %v513 = vld [vmem:[#allocation2 + $0x138] sm:$0xff]
        %v514 = vld [vmem:[#allocation2 + $0x140] sm:$0xff]
        %v515 = vld [vmem:[#allocation2 + $0x148] sm:$0xff]
        %v516 = vld [vmem:[#allocation2 + $0x150] sm:$0xff]
        %v517 = vld [vmem:[#allocation2 + $0x158] sm:$0xff]
        %v518 = vld [vmem:[#allocation2 + $0x160] sm:$0xff]
        %v519 = vld [vmem:[#allocation2 + $0x168] sm:$0xff]
        %v520 = vld [vmem:[#allocation2 + $0x170] sm:$0xff]
        %v521 = vld [vmem:[#allocation2 + $0x178] sm:$0xff]
        %v522 = vld [vmem:[%s3] sm:$0x3f]
        %v523 = vpack.c.bf16 %v468, %v468
        %v525 = vlaneseq
        %v526 = vshrl.u32 %v525, 7
        %v527 = vsub.s32 0, %v526
        %v528 = vrot.slane %v522, %v527
        %v529 = vlaneseq
        %v530 = vshrl.u32 %v529, 7
        %v531 = vsub.s32 1, %v530
        %v532 = vrot.slane %v522, %v531
        %v533 = vlaneseq
        %v534 = vshrl.u32 %v533, 7
        %v535 = vsub.s32 2, %v534
        %v536 = vrot.slane %v522, %v535
        %v537 = vlaneseq
        %v538 = vshrl.u32 %v537, 7
        %v539 = vsub.s32 3, %v538
        %v540 = vrot.slane %v522, %v539
        %v541 = vlaneseq
        %v542 = vshrl.u32 %v541, 7
        %v543 = vsub.s32 4, %v542
        %v544 = vrot.slane %v522, %v543
        %v545 = vlaneseq
        %v546 = vshrl.u32 %v545, 7
        %v547 = vsub.s32 5, %v546
        %v548 = vrot.slane %v522, %v547
        %v603 = vunpack.c.l.b16 %v474
        %v604 = vunpack.c.h.b16 %v474
        %v605 = vunpack.c.l.b16 %v475
        %v606 = vunpack.c.h.b16 %v475
        %v607 = vunpack.c.l.b16 %v476
        %v608 = vunpack.c.h.b16 %v476
        %v609 = vunpack.c.l.b16 %v477
        %v610 = vunpack.c.h.b16 %v477
        %v611 = vunpack.c.l.b16 %v478
        %v612 = vunpack.c.h.b16 %v478
        %v613 = vunpack.c.l.b16 %v479
        %v614 = vunpack.c.h.b16 %v479
        %v615 = vunpack.c.l.b16 %v480
        %v616 = vunpack.c.h.b16 %v480
        %v617 = vunpack.c.l.b16 %v481
        %v618 = vunpack.c.h.b16 %v481
        %v619 = vunpack.c.l.b16 %v482
        %v620 = vunpack.c.h.b16 %v482
        %v621 = vunpack.c.l.b16 %v483
        %v622 = vunpack.c.h.b16 %v483
        %v623 = vunpack.c.l.b16 %v484
        %v624 = vunpack.c.h.b16 %v484
        %v625 = vunpack.c.l.b16 %v485
        %v626 = vunpack.c.h.b16 %v485
        %v627 = vunpack.c.l.b16 %v486
        %v628 = vunpack.c.h.b16 %v486
        %v629 = vunpack.c.l.b16 %v487
        %v630 = vunpack.c.h.b16 %v487
        %v631 = vunpack.c.l.b16 %v488
        %v632 = vunpack.c.h.b16 %v488
        %v633 = vunpack.c.l.b16 %v489
        %v634 = vunpack.c.h.b16 %v489
        %v635 = vunpack.c.l.b16 %v490
        %v636 = vunpack.c.h.b16 %v490
        %v637 = vunpack.c.l.b16 %v491
        %v638 = vunpack.c.h.b16 %v491
        %v639 = vunpack.c.l.b16 %v492
        %v640 = vunpack.c.h.b16 %v492
        %v641 = vunpack.c.l.b16 %v493
        %v642 = vunpack.c.h.b16 %v493
        %v643 = vunpack.c.l.b16 %v494
        %v644 = vunpack.c.h.b16 %v494
        %v645 = vunpack.c.l.b16 %v495
        %v646 = vunpack.c.h.b16 %v495
        %v647 = vunpack.c.l.b16 %v496
        %v648 = vunpack.c.h.b16 %v496
        %v649 = vunpack.c.l.b16 %v497
        %v650 = vunpack.c.h.b16 %v497
        %v651 = vunpack.c.l.b16 %v498
        %v652 = vunpack.c.h.b16 %v498
        %v653 = vunpack.c.l.b16 %v499
        %v654 = vunpack.c.h.b16 %v499
        %v655 = vunpack.c.l.b16 %v500
        %v656 = vunpack.c.h.b16 %v500
        %v657 = vunpack.c.l.b16 %v501
        %v658 = vunpack.c.h.b16 %v501
        %v659 = vunpack.c.l.b16 %v502
        %v660 = vunpack.c.h.b16 %v502
        %v661 = vunpack.c.l.b16 %v503
        %v662 = vunpack.c.h.b16 %v503
        %v663 = vunpack.c.l.b16 %v504
        %v664 = vunpack.c.h.b16 %v504
        %v665 = vunpack.c.l.b16 %v505
        %v666 = vunpack.c.h.b16 %v505
        %v667 = vunpack.c.l.b16 %v506
        %v668 = vunpack.c.h.b16 %v506
        %v669 = vunpack.c.l.b16 %v507
        %v670 = vunpack.c.h.b16 %v507
        %v671 = vunpack.c.l.b16 %v508
        %v672 = vunpack.c.h.b16 %v508
        %v673 = vunpack.c.l.b16 %v509
        %v674 = vunpack.c.h.b16 %v509
        %v675 = vunpack.c.l.b16 %v510
        %v676 = vunpack.c.h.b16 %v510
        %v677 = vunpack.c.l.b16 %v511
        %v678 = vunpack.c.h.b16 %v511
        %v679 = vunpack.c.l.b16 %v512
        %v680 = vunpack.c.h.b16 %v512
        %v681 = vunpack.c.l.b16 %v513
        %v682 = vunpack.c.h.b16 %v513
        %v683 = vunpack.c.l.b16 %v514
        %v684 = vunpack.c.h.b16 %v514
        %v685 = vunpack.c.l.b16 %v515
        %v686 = vunpack.c.h.b16 %v515
        %v687 = vunpack.c.l.b16 %v516
        %v688 = vunpack.c.h.b16 %v516
        %v689 = vunpack.c.l.b16 %v517
        %v690 = vunpack.c.h.b16 %v517
        %v691 = vunpack.c.l.b16 %v518
        %v692 = vunpack.c.h.b16 %v518
        %v693 = vunpack.c.l.b16 %v519
        %v694 = vunpack.c.h.b16 %v519
        %v695 = vunpack.c.l.b16 %v520
        %v696 = vunpack.c.h.b16 %v520
        %v697 = vunpack.c.l.b16 %v521
        %v698 = vunpack.c.h.b16 %v521
        %v699 = vpack.c.b16 %v609, %v603
        %v700 = vpack.c.b16 %v610, %v604
        %v701 = vpack.c.b16 %v611, %v605
        %v702 = vpack.c.b16 %v612, %v606
        %v703 = vpack.c.b16 %v613, %v607
        %v704 = vpack.c.b16 %v614, %v608
        %v705 = vpack.c.b16 %v621, %v615
        %v706 = vpack.c.b16 %v622, %v616
        %v707 = vpack.c.b16 %v623, %v617
        %v708 = vpack.c.b16 %v624, %v618
        %v709 = vpack.c.b16 %v625, %v619
        %v710 = vpack.c.b16 %v626, %v620
        %v711 = vpack.c.b16 %v633, %v627
        %v712 = vpack.c.b16 %v634, %v628
        %v713 = vpack.c.b16 %v635, %v629
        %v714 = vpack.c.b16 %v636, %v630
        %v715 = vpack.c.b16 %v637, %v631
        %v716 = vpack.c.b16 %v638, %v632
        %v717 = vpack.c.b16 %v645, %v639
        %v718 = vpack.c.b16 %v646, %v640
        %v719 = vpack.c.b16 %v647, %v641
        %v720 = vpack.c.b16 %v648, %v642
        %v721 = vpack.c.b16 %v649, %v643
        %v722 = vpack.c.b16 %v650, %v644
        %v723 = vpack.c.b16 %v657, %v651
        %v724 = vpack.c.b16 %v658, %v652
        %v725 = vpack.c.b16 %v659, %v653
        %v726 = vpack.c.b16 %v660, %v654
        %v727 = vpack.c.b16 %v661, %v655
        %v728 = vpack.c.b16 %v662, %v656
        %v729 = vpack.c.b16 %v669, %v663
        %v730 = vpack.c.b16 %v670, %v664
        %v731 = vpack.c.b16 %v671, %v665
        %v732 = vpack.c.b16 %v672, %v666
        %v733 = vpack.c.b16 %v673, %v667
        %v734 = vpack.c.b16 %v674, %v668
        %v735 = vpack.c.b16 %v681, %v675
        %v736 = vpack.c.b16 %v682, %v676
        %v737 = vpack.c.b16 %v683, %v677
        %v738 = vpack.c.b16 %v684, %v678
        %v739 = vpack.c.b16 %v685, %v679
        %v740 = vpack.c.b16 %v686, %v680
        %v741 = vpack.c.b16 %v693, %v687
        %v742 = vpack.c.b16 %v694, %v688
        %v743 = vpack.c.b16 %v695, %v689
        %v744 = vpack.c.b16 %v696, %v690
        %v745 = vpack.c.b16 %v697, %v691
        %v746 = vpack.c.b16 %v698, %v692
        %795 = vmatprep.subr.bf16.mxu0 %v700
        %796 = vmatpush1.bf16.msra.mxu0 %v699
        %797 = vmatprep.subr.bf16.mxu0 %v706
        %798 = vmatpush1.bf16.msra.mxu0 %v705
        %799 = vmatprep.subr.bf16.mxu0 %v712
        %800 = vmatpush1.bf16.msra.mxu0 %v711
        %801 = vmatprep.subr.bf16.mxu0 %v718
        %802 = vmatpush1.bf16.msra.mxu0 %v717
        %803 = vmatprep.subr.bf16.mxu0 %v724
        %804 = vmatpush1.bf16.msra.mxu0 %v723
        %805 = vmatprep.subr.bf16.mxu0 %v730
        %806 = vmatpush1.bf16.msra.mxu0 %v729
        %807 = vmatprep.subr.bf16.mxu0 %v736
        %808 = vmatpush1.bf16.msra.mxu0 %v735
        %809 = vmatprep.subr.bf16.mxu0 %v742
        %810 = vmatpush1.bf16.msra.mxu0 %v741
        %811 = vmatprep.subr.bf16.mxu0 0
        %812 = vmatpush1.bf16.msra.mxu0 0
        %813 = vmatprep.subr.bf16.mxu0 0
        %814 = vmatpush1.bf16.msra.mxu0 0
        %815 = vmatprep.subr.bf16.mxu0 0
        %816 = vmatpush1.bf16.msra.mxu0 0
        %817 = vmatprep.subr.bf16.mxu0 0
        %818 = vmatpush1.bf16.msra.mxu0 0
        %819 = vmatprep.subr.bf16.mxu0 0
        %820 = vmatpush1.bf16.msra.mxu0 0
        %821 = vmatprep.subr.bf16.mxu0 0
        %822 = vmatpush1.bf16.msra.mxu0 0
        %823 = vmatprep.subr.bf16.mxu0 0
        %824 = vmatpush1.bf16.msra.mxu0 0
        %825 = vmatprep.subr.bf16.mxu0 0
        %826 = vmatpush1.bf16.msra.mxu0 0
        %827 = vmatprep.mubr.bf16.mxu0 0
        %828 = vmatmul.mubr.bf16.gmra.mrb[0].mxu0 %v523
        %v829 = vpop.f32.mrb[0].mxu0
        %v830 = vadd.f32 %v528, %v829
        %v831 = vpop.f32.mrb[0].mxu0
        %v832 = vadd.f32 %v532, %v831
        %v833 = vpop.f32.mrb[0].mxu0
        %v834 = vpop.f32.mrb[0].mxu0
        %835 = vdwg.mxu0
        %836 = vmatprep.subr.bf16.mxu0 %v702
        %837 = vmatpush1.bf16.msra.mxu0 %v701
        %838 = vmatprep.subr.bf16.mxu0 %v708
        %839 = vmatpush1.bf16.msra.mxu0 %v707
        %840 = vmatprep.subr.bf16.mxu0 %v714
        %841 = vmatpush1.bf16.msra.mxu0 %v713
        %842 = vmatprep.subr.bf16.mxu0 %v720
        %843 = vmatpush1.bf16.msra.mxu0 %v719
        %844 = vmatprep.subr.bf16.mxu0 %v726
        %845 = vmatpush1.bf16.msra.mxu0 %v725
        %846 = vmatprep.subr.bf16.mxu0 %v732
        %847 = vmatpush1.bf16.msra.mxu0 %v731
        %848 = vmatprep.subr.bf16.mxu0 %v738
        %849 = vmatpush1.bf16.msra.mxu0 %v737
        %850 = vmatprep.subr.bf16.mxu0 %v744
        %851 = vmatpush1.bf16.msra.mxu0 %v743
        %852 = vmatprep.subr.bf16.mxu0 0
        %853 = vmatpush1.bf16.msra.mxu0 0
        %854 = vmatprep.subr.bf16.mxu0 0
        %855 = vmatpush1.bf16.msra.mxu0 0
        %856 = vmatprep.subr.bf16.mxu0 0
        %857 = vmatpush1.bf16.msra.mxu0 0
        %858 = vmatprep.subr.bf16.mxu0 0
        %859 = vmatpush1.bf16.msra.mxu0 0
        %860 = vmatprep.subr.bf16.mxu0 0
        %861 = vmatpush1.bf16.msra.mxu0 0
        %862 = vmatprep.subr.bf16.mxu0 0
        %863 = vmatpush1.bf16.msra.mxu0 0
        %864 = vmatprep.subr.bf16.mxu0 0
        %865 = vmatpush1.bf16.msra.mxu0 0
        %866 = vmatprep.subr.bf16.mxu0 0
        %867 = vmatpush1.bf16.msra.mxu0 0
        %868 = vmatprep.mubr.bf16.mxu0 0
        %869 = vmatmul.mubr.bf16.gmra.mrb[0].mxu0 %v523
        %v870 = vpop.f32.mrb[0].mxu0
        %v871 = vadd.f32 %v536, %v870
        %v872 = vpop.f32.mrb[0].mxu0
        %v873 = vadd.f32 %v540, %v872
        %v874 = vpop.f32.mrb[0].mxu0
        %v875 = vpop.f32.mrb[0].mxu0
        %876 = vdwg.mxu0
        %877 = vmatprep.subr.bf16.mxu0 %v704
        %878 = vmatpush1.bf16.msra.mxu0 %v703
        %879 = vmatprep.subr.bf16.mxu0 %v710
        %880 = vmatpush1.bf16.msra.mxu0 %v709
        %881 = vmatprep.subr.bf16.mxu0 %v716
        %882 = vmatpush1.bf16.msra.mxu0 %v715
        %883 = vmatprep.subr.bf16.mxu0 %v722
        %884 = vmatpush1.bf16.msra.mxu0 %v721
        %885 = vmatprep.subr.bf16.mxu0 %v728
        %886 = vmatpush1.bf16.msra.mxu0 %v727
        %887 = vmatprep.subr.bf16.mxu0 %v734
        %888 = vmatpush1.bf16.msra.mxu0 %v733
        %889 = vmatprep.subr.bf16.mxu0 %v740
        %890 = vmatpush1.bf16.msra.mxu0 %v739
        %891 = vmatprep.subr.bf16.mxu0 %v746
        %892 = vmatpush1.bf16.msra.mxu0 %v745
        %893 = vmatprep.subr.bf16.mxu0 0
        %894 = vmatpush1.bf16.msra.mxu0 0
        %895 = vmatprep.subr.bf16.mxu0 0
        %896 = vmatpush1.bf16.msra.mxu0 0
        %897 = vmatprep.subr.bf16.mxu0 0
        %898 = vmatpush1.bf16.msra.mxu0 0
        %899 = vmatprep.subr.bf16.mxu0 0
        %900 = vmatpush1.bf16.msra.mxu0 0
        %901 = vmatprep.subr.bf16.mxu0 0
        %902 = vmatpush1.bf16.msra.mxu0 0
        %903 = vmatprep.subr.bf16.mxu0 0
        %904 = vmatpush1.bf16.msra.mxu0 0
        %905 = vmatprep.subr.bf16.mxu0 0
        %906 = vmatpush1.bf16.msra.mxu0 0
        %907 = vmatprep.subr.bf16.mxu0 0
        %908 = vmatpush1.bf16.msra.mxu0 0
        %909 = vmatprep.mubr.bf16.mxu0 0
        %910 = vmatmul.mubr.bf16.gmra.mrb[0].mxu0 %v523
        %v911 = vpop.f32.mrb[0].mxu0
        %v912 = vadd.f32 %v544, %v911
        %v913 = vpop.f32.mrb[0].mxu0
        %v914 = vadd.f32 %v548, %v913
        %v915 = vpop.f32.mrb[0].mxu0
        %v916 = vpop.f32.mrb[0].mxu0
        %917 = vdwg.mxu0
        %v918 = vld [vmem:[%s4] sm:$0xf]
        %v919 = vld [vmem:[%s4 + $0x4] sm:$0xf]
        %v920 = vld [vmem:[%s4 + $0x8] sm:$0xf]
        %v921 = vld [vmem:[%s4 + $0xc] sm:$0xf]
        %v922 = vld [vmem:[%s4 + $0x10] sm:$0xf]
        %v923 = vld [vmem:[%s4 + $0x14] sm:$0xf]
        %v924 = vld [vmem:[%s4 + $0x18] sm:$0xf]
        %v925 = vld [vmem:[%s4 + $0x1c] sm:$0xf]
        %v926 = vld [vmem:[%s4 + $0x20] sm:$0xf]
        %v927 = vld [vmem:[%s4 + $0x24] sm:$0xf]
        %v928 = vld [vmem:[%s4 + $0x28] sm:$0xf]
        %v929 = vld [vmem:[%s4 + $0x2c] sm:$0xf]
        %v930 = vld [vmem:[%s4 + $0x30] sm:$0xf]
        %v931 = vld [vmem:[%s4 + $0x34] sm:$0xf]
        %v932 = vld [vmem:[%s4 + $0x38] sm:$0xf]
        %v933 = vld [vmem:[%s4 + $0x3c] sm:$0xf]
        %v934 = vld [vmem:[%s4 + $0x40] sm:$0xf]
        %v935 = vld [vmem:[%s4 + $0x44] sm:$0xf]
        %v936 = vld [vmem:[%s4 + $0x48] sm:$0xf]
        %v937 = vld [vmem:[%s4 + $0x4c] sm:$0xf]
        %v938 = vld [vmem:[%s4 + $0x50] sm:$0xf]
        %v939 = vld [vmem:[%s4 + $0x54] sm:$0xf]
        %v940 = vld [vmem:[%s4 + $0x58] sm:$0xf]
        %v941 = vld [vmem:[%s4 + $0x5c] sm:$0xf]
        %v942 = vld [vmem:[%s4 + $0x60] sm:$0xf]
        %v943 = vld [vmem:[%s4 + $0x64] sm:$0xf]
        %v944 = vld [vmem:[%s4 + $0x68] sm:$0xf]
        %v945 = vld [vmem:[%s4 + $0x6c] sm:$0xf]
        %v946 = vld [vmem:[%s4 + $0x70] sm:$0xf]
        %v947 = vld [vmem:[%s4 + $0x74] sm:$0xf]
        %v948 = vld [vmem:[%s4 + $0x78] sm:$0xf]
        %v949 = vld [vmem:[%s4 + $0x7c] sm:$0xf]
        %v950 = vld [vmem:[%s5] sm:$0x1]
        %951 = vmatprep.subr.mxu0 0.0
        %952 = vmatpush1.xpose.msra.mxu0 %v871
        %953 = vmatprep.subr.mxu0 0.0
        %954 = vmatpush1.xpose.msra.mxu0 0.0
        %955 = vmatprep.subr.mxu0 0.0
        %956 = vmatpush1.xpose.msra.mxu0 0.0
        %957 = vmatprep.subr.mxu0 0.0
        %958 = vmatpush1.xpose.msra.mxu0 0.0
        %959 = vmatprep.subr.mxu0 0.0
        %960 = vmatpush1.xpose.msra.mxu0 0.0
        %961 = vmatprep.subr.mxu0 0.0
        %962 = vmatpush1.xpose.msra.mxu0 0.0
        %963 = vmatprep.subr.mxu0 0.0
        %964 = vmatpush1.xpose.msra.mxu0 0.0
        %965 = vmatprep.subr.mxu0 0.0
        %966 = vmatpush1.xpose.msra.mxu0 0.0
        %967 = vmatprep.subr.mxu0 0.0
        %968 = vmatpush1.xpose.msra.mxu0 0.0
        %969 = vmatprep.subr.mxu0 0.0
        %970 = vmatpush1.xpose.msra.mxu0 0.0
        %971 = vmatprep.subr.mxu0 0.0
        %972 = vmatpush1.xpose.msra.mxu0 0.0
        %973 = vmatprep.subr.mxu0 0.0
        %974 = vmatpush1.xpose.msra.mxu0 0.0
        %975 = vmatprep.subr.mxu0 0.0
        %976 = vmatpush1.xpose.msra.mxu0 0.0
        %977 = vmatprep.subr.mxu0 0.0
        %978 = vmatpush1.xpose.msra.mxu0 0.0
        %979 = vmatprep.subr.mxu0 0.0
        %980 = vmatpush1.xpose.msra.mxu0 0.0
        %981 = vmatprep.subr.mxu0 0.0
        %982 = vmatpush1.xpose.msra.mxu0 0.0
        %983 = vmatprep.subr.mxu0 0.0
        %984 = vmatpush1.xpose.msra.mxu0 0.0
        %985 = vmatprep.subr.mxu0 0.0
        %986 = vmatpush1.xpose.msra.mxu0 0.0
        %987 = vmatprep.subr.mxu0 0.0
        %988 = vmatpush1.xpose.msra.mxu0 0.0
        %989 = vmatprep.subr.mxu0 0.0
        %990 = vmatpush1.xpose.msra.mxu0 0.0
        %991 = vmatprep.subr.mxu0 0.0
        %992 = vmatpush1.xpose.msra.mxu0 0.0
        %993 = vmatprep.subr.mxu0 0.0
        %994 = vmatpush1.xpose.msra.mxu0 0.0
        %995 = vmatprep.subr.mxu0 0.0
        %996 = vmatpush1.xpose.msra.mxu0 0.0
        %997 = vmatprep.subr.mxu0 0.0
        %998 = vmatpush1.xpose.msra.mxu0 0.0
        %999 = vmatprep.subr.mxu0 0.0
        %1000 = vmatpush1.xpose.msra.mxu0 0.0
        %1001 = vmatprep.subr.mxu0 0.0
        %1002 = vmatpush1.xpose.msra.mxu0 0.0
        %1003 = vmatprep.subr.mxu0 0.0
        %1004 = vmatpush1.xpose.msra.mxu0 0.0
        %1005 = vmatprep.subr.mxu0 0.0
        %1006 = vmatpush1.xpose.msra.mxu0 0.0
        %1007 = vmatprep.subr.mxu0 0.0
        %1008 = vmatpush1.xpose.msra.mxu0 0.0
        %1009 = vmatprep.subr.mxu0 0.0
        %1010 = vmatpush1.xpose.msra.mxu0 0.0
        %1011 = vmatprep.subr.mxu0 0.0
        %1012 = vmatpush1.xpose.msra.mxu0 0.0
        %1013 = vmatprep.subr.mxu0 0.0
        %1014 = vmatpush1.xpose.msra.mxu0 0.0
        %1015 = vmatprep.mubr.f32.mxu0 0.0
        %1016 = vmatmul.mubr.f32.gmra.mrb[0].mxu0 %v830
        %v1017 = vpop.f32.mrb[0].mxu0
        %v1018 = vadd.f32 0.0, %v1017
        %v1019 = vpop.f32.mrb[0].mxu0
        %1020 = vdwg.mxu0
        %1021 = vmatprep.subr.mxu0 0.0
        %1022 = vmatpush1.xpose.msra.mxu0 %v873
        %1023 = vmatprep.subr.mxu0 0.0
        %1024 = vmatpush1.xpose.msra.mxu0 0.0
        %1025 = vmatprep.subr.mxu0 0.0
        %1026 = vmatpush1.xpose.msra.mxu0 0.0
        %1027 = vmatprep.subr.mxu0 0.0
        %1028 = vmatpush1.xpose.msra.mxu0 0.0
        %1029 = vmatprep.subr.mxu0 0.0
        %1030 = vmatpush1.xpose.msra.mxu0 0.0
        %1031 = vmatprep.subr.mxu0 0.0
        %1032 = vmatpush1.xpose.msra.mxu0 0.0
        %1033 = vmatprep.subr.mxu0 0.0
        %1034 = vmatpush1.xpose.msra.mxu0 0.0
        %1035 = vmatprep.subr.mxu0 0.0
        %1036 = vmatpush1.xpose.msra.mxu0 0.0
        %1037 = vmatprep.subr.mxu0 0.0
        %1038 = vmatpush1.xpose.msra.mxu0 0.0
        %1039 = vmatprep.subr.mxu0 0.0
        %1040 = vmatpush1.xpose.msra.mxu0 0.0
        %1041 = vmatprep.subr.mxu0 0.0
        %1042 = vmatpush1.xpose.msra.mxu0 0.0
        %1043 = vmatprep.subr.mxu0 0.0
        %1044 = vmatpush1.xpose.msra.mxu0 0.0
        %1045 = vmatprep.subr.mxu0 0.0
        %1046 = vmatpush1.xpose.msra.mxu0 0.0
        %1047 = vmatprep.subr.mxu0 0.0
        %1048 = vmatpush1.xpose.msra.mxu0 0.0
        %1049 = vmatprep.subr.mxu0 0.0
        %1050 = vmatpush1.xpose.msra.mxu0 0.0
        %1051 = vmatprep.subr.mxu0 0.0
        %1052 = vmatpush1.xpose.msra.mxu0 0.0
        %1053 = vmatprep.subr.mxu0 0.0
        %1054 = vmatpush1.xpose.msra.mxu0 0.0
        %1055 = vmatprep.subr.mxu0 0.0
        %1056 = vmatpush1.xpose.msra.mxu0 0.0
        %1057 = vmatprep.subr.mxu0 0.0
        %1058 = vmatpush1.xpose.msra.mxu0 0.0
        %1059 = vmatprep.subr.mxu0 0.0
        %1060 = vmatpush1.xpose.msra.mxu0 0.0
        %1061 = vmatprep.subr.mxu0 0.0
        %1062 = vmatpush1.xpose.msra.mxu0 0.0
        %1063 = vmatprep.subr.mxu0 0.0
        %1064 = vmatpush1.xpose.msra.mxu0 0.0
        %1065 = vmatprep.subr.mxu0 0.0
        %1066 = vmatpush1.xpose.msra.mxu0 0.0
        %1067 = vmatprep.subr.mxu0 0.0
        %1068 = vmatpush1.xpose.msra.mxu0 0.0
        %1069 = vmatprep.subr.mxu0 0.0
        %1070 = vmatpush1.xpose.msra.mxu0 0.0
        %1071 = vmatprep.subr.mxu0 0.0
        %1072 = vmatpush1.xpose.msra.mxu0 0.0
        %1073 = vmatprep.subr.mxu0 0.0
        %1074 = vmatpush1.xpose.msra.mxu0 0.0
        %1075 = vmatprep.subr.mxu0 0.0
        %1076 = vmatpush1.xpose.msra.mxu0 0.0
        %1077 = vmatprep.subr.mxu0 0.0
        %1078 = vmatpush1.xpose.msra.mxu0 0.0
        %1079 = vmatprep.subr.mxu0 0.0
        %1080 = vmatpush1.xpose.msra.mxu0 0.0
        %1081 = vmatprep.subr.mxu0 0.0
        %1082 = vmatpush1.xpose.msra.mxu0 0.0
        %1083 = vmatprep.subr.mxu0 0.0
        %1084 = vmatpush1.xpose.msra.mxu0 0.0
        %1085 = vmatprep.mubr.f32.mxu0 0.0
        %1086 = vmatmul.mubr.f32.gmra.mrb[0].mxu0 %v832
        %v1087 = vpop.f32.mrb[0].mxu0
        %v1088 = vadd.f32 0.0, %v1087
        %v1089 = vpop.f32.mrb[0].mxu0
        %1090 = vdwg.mxu0
        %v1091 = vmul.f32 %v1018, 0.25
        %v1092 = vmul.f32 %v1088, 0.25
        %v1094 = vlaneseq
        %v1095 = vshrl.u32 %v1094, 7
        %v1096 = vsub.s32 0, %v1095
        %v1097 = vrot.slane %v469, %v1096
        %v1099 = vadd.f32 %v1091, %v1097
        %v1100 = vadd.f32 %v1092, %v1097
        %vm1101 = vcmask 64512
        %v1102 = vsel %vm1101, %v1099, -inf
        %1103 = vmax.xlane.f32.xlu0 %v1102
        %v1104 = vpop.xlane.xlu0 %1103
        %v1105 = vsel %vm1101, %v1100, -inf
        %1106 = vmax.xlane.f32.xlu0 %v1105
        %v1107 = vpop.xlane.xlu0 %1106
        %v1108 = vsub.f32 %v1099, %v1104
        %v1109 = vsub.f32 %v1100, %v1107
        %v1110 = vmul.f32 %v1108, 1.442695
        %v1111 = vpow.pop %v1110
        %v1112 = vmul.f32 %v1109, 1.442695
        %v1113 = vpow.pop %v1112
        %v1114 = vsel %vm1101, %v1111, 0.0
        %1115 = vadd.xlane.f32.xlu0 %v1114
        %v1116 = vpop.xlane.xlu0 %1115
        %v1117 = vsel %vm1101, %v1113, 0.0
        %1118 = vadd.xlane.f32.xlu0 %v1117
        %v1119 = vpop.xlane.xlu0 %1118
        %v1120 = vrcp.pop %v1116
        %v1121 = vmul.f32 %v1111, %v1120
        %v1122 = vrcp.pop %v1119
        %v1123 = vmul.f32 %v1113, %v1122
        %v1125 = vsel %vm1101, %v1121, 0
        %1127 = vmatprep.subr.mxu0 0.0
        %1128 = vmatpush1.msra.mxu0 %v912
        %1129 = vmatprep.subr.mxu0 0.0
        %1130 = vmatpush1.msra.mxu0 0.0
        %1131 = vmatprep.subr.mxu0 0.0
        %1132 = vmatpush1.msra.mxu0 0.0
        %1133 = vmatprep.subr.mxu0 0.0
        %1134 = vmatpush1.msra.mxu0 0.0
        %1135 = vmatprep.subr.mxu0 0.0
        %1136 = vmatpush1.msra.mxu0 0.0
        %1137 = vmatprep.subr.mxu0 0.0
        %1138 = vmatpush1.msra.mxu0 0.0
        %1139 = vmatprep.subr.mxu0 0.0
        %1140 = vmatpush1.msra.mxu0 0.0
        %1141 = vmatprep.subr.mxu0 0.0
        %1142 = vmatpush1.msra.mxu0 0.0
        %1143 = vmatprep.subr.mxu0 0.0
        %1144 = vmatpush1.msra.mxu0 0.0
        %1145 = vmatprep.subr.mxu0 0.0
        %1146 = vmatpush1.msra.mxu0 0.0
        %1147 = vmatprep.subr.mxu0 0.0
        %1148 = vmatpush1.msra.mxu0 0.0
        %1149 = vmatprep.subr.mxu0 0.0
        %1150 = vmatpush1.msra.mxu0 0.0
        %1151 = vmatprep.subr.mxu0 0.0
        %1152 = vmatpush1.msra.mxu0 0.0
        %1153 = vmatprep.subr.mxu0 0.0
        %1154 = vmatpush1.msra.mxu0 0.0
        %1155 = vmatprep.subr.mxu0 0.0
        %1156 = vmatpush1.msra.mxu0 0.0
        %1157 = vmatprep.subr.mxu0 0.0
        %1158 = vmatpush1.msra.mxu0 0.0
        %1159 = vmatprep.subr.mxu0 0.0
        %1160 = vmatpush1.msra.mxu0 0.0
        %1161 = vmatprep.subr.mxu0 0.0
        %1162 = vmatpush1.msra.mxu0 0.0
        %1163 = vmatprep.subr.mxu0 0.0
        %1164 = vmatpush1.msra.mxu0 0.0
        %1165 = vmatprep.subr.mxu0 0.0
        %1166 = vmatpush1.msra.mxu0 0.0
        %1167 = vmatprep.subr.mxu0 0.0
        %1168 = vmatpush1.msra.mxu0 0.0
        %1169 = vmatprep.subr.mxu0 0.0
        %1170 = vmatpush1.msra.mxu0 0.0
        %1171 = vmatprep.subr.mxu0 0.0
        %1172 = vmatpush1.msra.mxu0 0.0
        %1173 = vmatprep.subr.mxu0 0.0
        %1174 = vmatpush1.msra.mxu0 0.0
        %1175 = vmatprep.subr.mxu0 0.0
        %1176 = vmatpush1.msra.mxu0 0.0
        %1177 = vmatprep.subr.mxu0 0.0
        %1178 = vmatpush1.msra.mxu0 0.0
        %1179 = vmatprep.subr.mxu0 0.0
        %1180 = vmatpush1.msra.mxu0 0.0
        %1181 = vmatprep.subr.mxu0 0.0
        %1182 = vmatpush1.msra.mxu0 0.0
        %1183 = vmatprep.subr.mxu0 0.0
        %1184 = vmatpush1.msra.mxu0 0.0
        %1185 = vmatprep.subr.mxu0 0.0
        %1186 = vmatpush1.msra.mxu0 0.0
        %1187 = vmatprep.subr.mxu0 0.0
        %1188 = vmatpush1.msra.mxu0 0.0
        %1189 = vmatprep.subr.mxu0 0.0
        %1190 = vmatpush1.msra.mxu0 0.0
        %1191 = vmatprep.mubr.f32.mxu0 0.0
        %1192 = vmatmul.mubr.f32.gmra.mrb[0].mxu0 %v1125
        %v1193 = vpop.f32.mrb[0].mxu0
        %v1194 = vadd.f32 0.0, %v1193
        %v1195 = vpop.f32.mrb[0].mxu0
        %1196 = vdwg.mxu0
        %v1198 = vsel %vm1101, %v1123, 0
        %1200 = vmatprep.subr.mxu0 0.0
        %1201 = vmatpush1.msra.mxu0 %v914
        %1202 = vmatprep.subr.mxu0 0.0
        %1203 = vmatpush1.msra.mxu0 0.0
        %1204 = vmatprep.subr.mxu0 0.0
        %1205 = vmatpush1.msra.mxu0 0.0
        %1206 = vmatprep.subr.mxu0 0.0
        %1207 = vmatpush1.msra.mxu0 0.0
        %1208 = vmatprep.subr.mxu0 0.0
        %1209 = vmatpush1.msra.mxu0 0.0
        %1210 = vmatprep.subr.mxu0 0.0
        %1211 = vmatpush1.msra.mxu0 0.0
        %1212 = vmatprep.subr.mxu0 0.0
        %1213 = vmatpush1.msra.mxu0 0.0
        %1214 = vmatprep.subr.mxu0 0.0
        %1215 = vmatpush1.msra.mxu0 0.0
        %1216 = vmatprep.subr.mxu0 0.0
        %1217 = vmatpush1.msra.mxu0 0.0
        %1218 = vmatprep.subr.mxu0 0.0
        %1219 = vmatpush1.msra.mxu0 0.0
        %1220 = vmatprep.subr.mxu0 0.0
        %1221 = vmatpush1.msra.mxu0 0.0
        %1222 = vmatprep.subr.mxu0 0.0
        %1223 = vmatpush1.msra.mxu0 0.0
        %1224 = vmatprep.subr.mxu0 0.0
        %1225 = vmatpush1.msra.mxu0 0.0
        %1226 = vmatprep.subr.mxu0 0.0
        %1227 = vmatpush1.msra.mxu0 0.0
        %1228 = vmatprep.subr.mxu0 0.0
        %1229 = vmatpush1.msra.mxu0 0.0
        %1230 = vmatprep.subr.mxu0 0.0
        %1231 = vmatpush1.msra.mxu0 0.0
        %1232 = vmatprep.subr.mxu0 0.0
        %1233 = vmatpush1.msra.mxu0 0.0
        %1234 = vmatprep.subr.mxu0 0.0
        %1235 = vmatpush1.msra.mxu0 0.0
        %1236 = vmatprep.subr.mxu0 0.0
        %1237 = vmatpush1.msra.mxu0 0.0
        %1238 = vmatprep.subr.mxu0 0.0
        %1239 = vmatpush1.msra.mxu0 0.0
        %1240 = vmatprep.subr.mxu0 0.0
        %1241 = vmatpush1.msra.mxu0 0.0
        %1242 = vmatprep.subr.mxu0 0.0
        %1243 = vmatpush1.msra.mxu0 0.0
        %1244 = vmatprep.subr.mxu0 0.0
        %1245 = vmatpush1.msra.mxu0 0.0
        %1246 = vmatprep.subr.mxu0 0.0
        %1247 = vmatpush1.msra.mxu0 0.0
        %1248 = vmatprep.subr.mxu0 0.0
        %1249 = vmatpush1.msra.mxu0 0.0
        %1250 = vmatprep.subr.mxu0 0.0
        %1251 = vmatpush1.msra.mxu0 0.0
        %1252 = vmatprep.subr.mxu0 0.0
        %1253 = vmatpush1.msra.mxu0 0.0
        %1254 = vmatprep.subr.mxu0 0.0
        %1255 = vmatpush1.msra.mxu0 0.0
        %1256 = vmatprep.subr.mxu0 0.0
        %1257 = vmatpush1.msra.mxu0 0.0
        %1258 = vmatprep.subr.mxu0 0.0
        %1259 = vmatpush1.msra.mxu0 0.0
        %1260 = vmatprep.subr.mxu0 0.0
        %1261 = vmatpush1.msra.mxu0 0.0
        %1262 = vmatprep.subr.mxu0 0.0
        %1263 = vmatpush1.msra.mxu0 0.0
        %1264 = vmatprep.mubr.f32.mxu0 0.0
        %1265 = vmatmul.mubr.f32.gmra.mrb[0].mxu0 %v1198
        %v1266 = vpop.f32.mrb[0].mxu0
        %v1267 = vadd.f32 0.0, %v1266
        %v1268 = vpop.f32.mrb[0].mxu0
        %1269 = vdwg.mxu0
        %v1270 = vpack.c.bf16 %v1194, %v1194
        %v1271 = vpack.c.bf16 %v1267, %v1267
        %v1273 = vlaneseq
        %v1274 = vshrl.u32 %v1273, 7
        %v1275 = vsub.s32 0, %v1274
        %v1276 = vrot.slane %v950, %v1275
        %v1310 = vunpack.c.l.b16 %v918
        %v1311 = vunpack.c.l.b16 %v919
        %v1312 = vunpack.c.l.b16 %v920
        %v1313 = vunpack.c.l.b16 %v921
        %v1314 = vunpack.c.l.b16 %v922
        %v1315 = vunpack.c.l.b16 %v923
        %v1316 = vunpack.c.l.b16 %v924
        %v1317 = vunpack.c.l.b16 %v925
        %v1318 = vunpack.c.l.b16 %v926
        %v1319 = vunpack.c.l.b16 %v927
        %v1320 = vunpack.c.l.b16 %v928
        %v1321 = vunpack.c.l.b16 %v929
        %v1322 = vunpack.c.l.b16 %v930
        %v1323 = vunpack.c.l.b16 %v931
        %v1324 = vunpack.c.l.b16 %v932
        %v1325 = vunpack.c.l.b16 %v933
        %v1326 = vunpack.c.l.b16 %v934
        %v1327 = vunpack.c.l.b16 %v935
        %v1328 = vunpack.c.l.b16 %v936
        %v1329 = vunpack.c.l.b16 %v937
        %v1330 = vunpack.c.l.b16 %v938
        %v1331 = vunpack.c.l.b16 %v939
        %v1332 = vunpack.c.l.b16 %v940
        %v1333 = vunpack.c.l.b16 %v941
        %v1334 = vunpack.c.l.b16 %v942
        %v1335 = vunpack.c.l.b16 %v943
        %v1336 = vunpack.c.l.b16 %v944
        %v1337 = vunpack.c.l.b16 %v945
        %v1338 = vunpack.c.l.b16 %v946
        %v1339 = vunpack.c.l.b16 %v947
        %v1340 = vunpack.c.l.b16 %v948
        %v1341 = vunpack.c.l.b16 %v949
        %v1342 = vpack.c.b16 %v1311, %v1310
        %v1343 = vpack.c.b16 %v1313, %v1312
        %v1344 = vpack.c.b16 %v1315, %v1314
        %v1345 = vpack.c.b16 %v1317, %v1316
        %v1346 = vpack.c.b16 %v1319, %v1318
        %v1347 = vpack.c.b16 %v1321, %v1320
        %v1348 = vpack.c.b16 %v1323, %v1322
        %v1349 = vpack.c.b16 %v1325, %v1324
        %v1350 = vpack.c.b16 %v1327, %v1326
        %v1351 = vpack.c.b16 %v1329, %v1328
        %v1352 = vpack.c.b16 %v1331, %v1330
        %v1353 = vpack.c.b16 %v1333, %v1332
        %v1354 = vpack.c.b16 %v1335, %v1334
        %v1355 = vpack.c.b16 %v1337, %v1336
        %v1356 = vpack.c.b16 %v1339, %v1338
        %v1357 = vpack.c.b16 %v1341, %v1340
        %1374 = vmatprep.subr.bf16.mxu0 0
        %1375 = vmatpush1.bf16.msra.mxu0 %v1342
        %1376 = vmatprep.subr.bf16.mxu0 0
        %1377 = vmatpush1.bf16.msra.mxu0 %v1343
        %1378 = vmatprep.subr.bf16.mxu0 0
        %1379 = vmatpush1.bf16.msra.mxu0 %v1344
        %1380 = vmatprep.subr.bf16.mxu0 0
        %1381 = vmatpush1.bf16.msra.mxu0 %v1345
        %1382 = vmatprep.subr.bf16.mxu0 0
        %1383 = vmatpush1.bf16.msra.mxu0 %v1346
        %1384 = vmatprep.subr.bf16.mxu0 0
        %1385 = vmatpush1.bf16.msra.mxu0 %v1347
        %1386 = vmatprep.subr.bf16.mxu0 0
        %1387 = vmatpush1.bf16.msra.mxu0 %v1348
        %1388 = vmatprep.subr.bf16.mxu0 0
        %1389 = vmatpush1.bf16.msra.mxu0 %v1349
        %1390 = vmatprep.subr.bf16.mxu0 0
        %1391 = vmatpush1.bf16.msra.mxu0 %v1350
        %1392 = vmatprep.subr.bf16.mxu0 0
        %1393 = vmatpush1.bf16.msra.mxu0 %v1351
        %1394 = vmatprep.subr.bf16.mxu0 0
        %1395 = vmatpush1.bf16.msra.mxu0 %v1352
        %1396 = vmatprep.subr.bf16.mxu0 0
        %1397 = vmatpush1.bf16.msra.mxu0 %v1353
        %1398 = vmatprep.subr.bf16.mxu0 0
        %1399 = vmatpush1.bf16.msra.mxu0 %v1354
        %1400 = vmatprep.subr.bf16.mxu0 0
        %1401 = vmatpush1.bf16.msra.mxu0 %v1355
        %1402 = vmatprep.subr.bf16.mxu0 0
        %1403 = vmatpush1.bf16.msra.mxu0 %v1356
        %1404 = vmatprep.subr.bf16.mxu0 0
        %1405 = vmatpush1.bf16.msra.mxu0 %v1357
        %1406 = vmatprep.mubr.bf16.mxu0 %v1271
        %1407 = vmatmul.mubr.bf16.gmra.mrb[0].mxu0 %v1270
        %v1408 = vpop.f32.mrb[0].mxu0
        %v1409 = vadd.f32 %v1276, %v1408
        %v1410 = vpop.f32.mrb[0].mxu0
        %v1411 = vpop.f32.mrb[0].mxu0
        %v1412 = vpop.f32.mrb[0].mxu0
        %1413 = vdwg.mxu0
        %v1414 = vadd.f32 %v468, %v1409
        %1415 = vadd.xlane.f32.xlu0 %v1414
        %v1416 = vpop.xlane.xlu0 %1415
        %v1417 = vmul.f32 %v1416, 0.03125
        %v1418 = vmul.f32 %v1414, %v1414
        %1419 = vadd.xlane.f32.xlu0 %v1418
        %v1420 = vpop.xlane.xlu0 %1419
        %v1421 = vmul.f32 %v1420, 0.03125
        %v1422 = vmul.f32 %v1417, %v1417
        %v1423 = vsub.f32 %v1421, %v1422
        %v1424 = vsub.f32 %v1414, %v1417
        %v1425 = vadd.f32 %v1423, 1e-05
        %v1426 = vrsqrt.pop %v1425
        %v1427 = vmul.f32 %v1424, %v1426
        %v1429 = vlaneseq
        %v1430 = vshrl.u32 %v1429, 7
        %v1431 = vsub.s32 0, %v1430
        %v1432 = vrot.slane %v470, %v1431
        %v1434 = vmul.f32 %v1427, %v1432
        %v1436 = vlaneseq
        %v1437 = vshrl.u32 %v1436, 7
        %v1438 = vsub.s32 0, %v1437
        %v1439 = vrot.slane %v471, %v1438
        %v1441 = vadd.f32 %v1434, %v1439
        %v1442 = vld [vmem:[#allocation4] sm:$0xf]
        %v1443 = vld [vmem:[#allocation4 + $0x4] sm:$0xf]
        %v1444 = vld [vmem:[#allocation4 + $0x8] sm:$0xf]
        %v1445 = vld [vmem:[#allocation4 + $0xc] sm:$0xf]
        %v1446 = vld [vmem:[#allocation4 + $0x10] sm:$0xf]
        %v1447 = vld [vmem:[#allocation4 + $0x14] sm:$0xf]
        %v1448 = vld [vmem:[#allocation4 + $0x18] sm:$0xf]
        %v1449 = vld [vmem:[#allocation4 + $0x1c] sm:$0xf]
        %v1450 = vld [vmem:[#allocation4 + $0x20] sm:$0xf]
        %v1451 = vld [vmem:[#allocation4 + $0x24] sm:$0xf]
        %v1452 = vld [vmem:[#allocation4 + $0x28] sm:$0xf]
        %v1453 = vld [vmem:[#allocation4 + $0x2c] sm:$0xf]
        %v1454 = vld [vmem:[#allocation4 + $0x30] sm:$0xf]
        %v1455 = vld [vmem:[#allocation4 + $0x34] sm:$0xf]
        %v1456 = vld [vmem:[#allocation4 + $0x38] sm:$0xf]
        %v1457 = vld [vmem:[#allocation4 + $0x3c] sm:$0xf]
        %v1458 = vld [vmem:[%s7] sm:$0x1]
        %v1459 = vpack.c.bf16 %v1441, %v1441
        %v1461 = vlaneseq
        %v1462 = vshrl.u32 %v1461, 7
        %v1463 = vsub.s32 0, %v1462
        %v1464 = vrot.slane %v1458, %v1463
        %v1482 = vunpack.c.l.b16 %v1442
        %v1483 = vunpack.c.l.b16 %v1443
        %v1484 = vunpack.c.l.b16 %v1444
        %v1485 = vunpack.c.l.b16 %v1445
        %v1486 = vunpack.c.l.b16 %v1446
        %v1487 = vunpack.c.l.b16 %v1447
        %v1488 = vunpack.c.l.b16 %v1448
        %v1489 = vunpack.c.l.b16 %v1449
        %v1490 = vunpack.c.l.b16 %v1450
        %v1491 = vunpack.c.l.b16 %v1451
        %v1492 = vunpack.c.l.b16 %v1452
        %v1493 = vunpack.c.l.b16 %v1453
        %v1494 = vunpack.c.l.b16 %v1454
        %v1495 = vunpack.c.l.b16 %v1455
        %v1496 = vunpack.c.l.b16 %v1456
        %v1497 = vunpack.c.l.b16 %v1457
        %v1498 = vpack.c.b16 %v1483, %v1482
        %v1499 = vpack.c.b16 %v1485, %v1484
        %v1500 = vpack.c.b16 %v1487, %v1486
        %v1501 = vpack.c.b16 %v1489, %v1488
        %v1502 = vpack.c.b16 %v1491, %v1490
        %v1503 = vpack.c.b16 %v1493, %v1492
        %v1504 = vpack.c.b16 %v1495, %v1494
        %v1505 = vpack.c.b16 %v1497, %v1496
        %1514 = vmatprep.subr.bf16.mxu0 0
        %1515 = vmatpush1.bf16.msra.mxu0 %v1498
        %1516 = vmatprep.subr.bf16.mxu0 0
        %1517 = vmatpush1.bf16.msra.mxu0 %v1499
        %1518 = vmatprep.subr.bf16.mxu0 0
        %1519 = vmatpush1.bf16.msra.mxu0 %v1500
        %1520 = vmatprep.subr.bf16.mxu0 0
        %1521 = vmatpush1.bf16.msra.mxu0 %v1501
        %1522 = vmatprep.subr.bf16.mxu0 0
        %1523 = vmatpush1.bf16.msra.mxu0 %v1502
        %1524 = vmatprep.subr.bf16.mxu0 0
        %1525 = vmatpush1.bf16.msra.mxu0 %v1503
        %1526 = vmatprep.subr.bf16.mxu0 0
        %1527 = vmatpush1.bf16.msra.mxu0 %v1504
        %1528 = vmatprep.subr.bf16.mxu0 0
        %1529 = vmatpush1.bf16.msra.mxu0 %v1505
        %1530 = vmatprep.subr.bf16.mxu0 0
        %1531 = vmatpush1.bf16.msra.mxu0 0
        %1532 = vmatprep.subr.bf16.mxu0 0
        %1533 = vmatpush1.bf16.msra.mxu0 0
        %1534 = vmatprep.subr.bf16.mxu0 0
        %1535 = vmatpush1.bf16.msra.mxu0 0
        %1536 = vmatprep.subr.bf16.mxu0 0
        %1537 = vmatpush1.bf16.msra.mxu0 0
        %1538 = vmatprep.subr.bf16.mxu0 0
        %1539 = vmatpush1.bf16.msra.mxu0 0
        %1540 = vmatprep.subr.bf16.mxu0 0
        %1541 = vmatpush1.bf16.msra.mxu0 0
        %1542 = vmatprep.subr.bf16.mxu0 0
        %1543 = vmatpush1.bf16.msra.mxu0 0
        %1544 = vmatprep.subr.bf16.mxu0 0
        %1545 = vmatpush1.bf16.msra.mxu0 0
        %1546 = vmatprep.mubr.bf16.mxu0 0
        %1547 = vmatmul.mubr.bf16.gmra.mrb[0].mxu0 %v1459
        %v1548 = vpop.f32.mrb[0].mxu0
        %v1549 = vadd.f32 %v1464, %v1548
        %v1550 = vpop.f32.mrb[0].mxu0
        %v1551 = vpop.f32.mrb[0].mxu0
        %v1552 = vpop.f32.mrb[0].mxu0
        %1553 = vdwg.mxu0
        %v1554 = vmax.f32 %v1549, 0.0
        %v1555 = vld [vmem:[#allocation6] sm:$0xf]
        %v1556 = vld [vmem:[#allocation6 + $0x4] sm:$0xf]
        %v1557 = vld [vmem:[#allocation6 + $0x8] sm:$0xf]
        %v1558 = vld [vmem:[#allocation6 + $0xc] sm:$0xf]
        %v1559 = vld [vmem:[#allocation6 + $0x10] sm:$0xf]
        %v1560 = vld [vmem:[#allocation6 + $0x14] sm:$0xf]
        %v1561 = vld [vmem:[#allocation6 + $0x18] sm:$0xf]
        %v1562 = vld [vmem:[#allocation6 + $0x1c] sm:$0xf]
        %v1563 = vld [vmem:[#allocation6 + $0x20] sm:$0xf]
        %v1564 = vld [vmem:[#allocation6 + $0x24] sm:$0xf]
        %v1565 = vld [vmem:[#allocation6 + $0x28] sm:$0xf]
        %v1566 = vld [vmem:[#allocation6 + $0x2c] sm:$0xf]
        %v1567 = vld [vmem:[#allocation6 + $0x30] sm:$0xf]
        %v1568 = vld [vmem:[#allocation6 + $0x34] sm:$0xf]
        %v1569 = vld [vmem:[#allocation6 + $0x38] sm:$0xf]
        %v1570 = vld [vmem:[#allocation6 + $0x3c] sm:$0xf]
        %v1571 = vld [vmem:[%s9] sm:$0x1]
        %v1572 = vpack.c.bf16 %v1554, %v1554
        %v1574 = vlaneseq
        %v1575 = vshrl.u32 %v1574, 7
        %v1576 = vsub.s32 0, %v1575
        %v1577 = vrot.slane %v1571, %v1576
        %v1595 = vunpack.c.l.b16 %v1555
        %v1596 = vunpack.c.l.b16 %v1556
        %v1597 = vunpack.c.l.b16 %v1557
        %v1598 = vunpack.c.l.b16 %v1558
        %v1599 = vunpack.c.l.b16 %v1559
        %v1600 = vunpack.c.l.b16 %v1560
        %v1601 = vunpack.c.l.b16 %v1561
        %v1602 = vunpack.c.l.b16 %v1562
        %v1603 = vunpack.c.l.b16 %v1563
        %v1604 = vunpack.c.l.b16 %v1564
        %v1605 = vunpack.c.l.b16 %v1565
        %v1606 = vunpack.c.l.b16 %v1566
        %v1607 = vunpack.c.l.b16 %v1567
        %v1608 = vunpack.c.l.b16 %v1568
        %v1609 = vunpack.c.l.b16 %v1569
        %v1610 = vunpack.c.l.b16 %v1570
        %v1611 = vpack.c.b16 %v1596, %v1595
        %v1612 = vpack.c.b16 %v1598, %v1597
        %v1613 = vpack.c.b16 %v1600, %v1599
        %v1614 = vpack.c.b16 %v1602, %v1601
        %v1615 = vpack.c.b16 %v1604, %v1603
        %v1616 = vpack.c.b16 %v1606, %v1605
        %v1617 = vpack.c.b16 %v1608, %v1607
        %v1618 = vpack.c.b16 %v1610, %v1609
        %1627 = vmatprep.subr.bf16.mxu0 0
        %1628 = vmatpush1.bf16.msra.mxu0 %v1611
        %1629 = vmatprep.subr.bf16.mxu0 0
        %1630 = vmatpush1.bf16.msra.mxu0 %v1612
        %1631 = vmatprep.subr.bf16.mxu0 0
        %1632 = vmatpush1.bf16.msra.mxu0 %v1613
        %1633 = vmatprep.subr.bf16.mxu0 0
        %1634 = vmatpush1.bf16.msra.mxu0 %v1614
        %1635 = vmatprep.subr.bf16.mxu0 0
        %1636 = vmatpush1.bf16.msra.mxu0 %v1615
        %1637 = vmatprep.subr.bf16.mxu0 0
        %1638 = vmatpush1.bf16.msra.mxu0 %v1616
        %1639 = vmatprep.subr.bf16.mxu0 0
        %1640 = vmatpush1.bf16.msra.mxu0 %v1617
        %1641 = vmatprep.subr.bf16.mxu0 0
        %1642 = vmatpush1.bf16.msra.mxu0 %v1618
        %1643 = vmatprep.subr.bf16.mxu0 0
        %1644 = vmatpush1.bf16.msra.mxu0 0
        %1645 = vmatprep.subr.bf16.mxu0 0
        %1646 = vmatpush1.bf16.msra.mxu0 0
        %1647 = vmatprep.subr.bf16.mxu0 0
        %1648 = vmatpush1.bf16.msra.mxu0 0
        %1649 = vmatprep.subr.bf16.mxu0 0
        %1650 = vmatpush1.bf16.msra.mxu0 0
        %1651 = vmatprep.subr.bf16.mxu0 0
        %1652 = vmatpush1.bf16.msra.mxu0 0
        %1653 = vmatprep.subr.bf16.mxu0 0
        %1654 = vmatpush1.bf16.msra.mxu0 0
        %1655 = vmatprep.subr.bf16.mxu0 0
        %1656 = vmatpush1.bf16.msra.mxu0 0
        %1657 = vmatprep.subr.bf16.mxu0 0
        %1658 = vmatpush1.bf16.msra.mxu0 0
        %1659 = vmatprep.mubr.bf16.mxu0 0
        %1660 = vmatmul.mubr.bf16.gmra.mrb[0].mxu0 %v1572
        %v1661 = vpop.f32.mrb[0].mxu0
        %v1662 = vadd.f32 %v1577, %v1661
        %v1663 = vpop.f32.mrb[0].mxu0
        %v1664 = vpop.f32.mrb[0].mxu0
        %v1665 = vpop.f32.mrb[0].mxu0
        %1666 = vdwg.mxu0
        %v1667 = vadd.f32 %v1441, %v1662
        %1668 = vadd.xlane.f32.xlu0 %v1667
        %v1669 = vpop.xlane.xlu0 %1668
        %v1670 = vmul.f32 %v1669, 0.03125
        %v1671 = vmul.f32 %v1667, %v1667
        %1672 = vadd.xlane.f32.xlu0 %v1671
        %v1673 = vpop.xlane.xlu0 %1672
        %v1674 = vmul.f32 %v1673, 0.03125
        %v1675 = vmul.f32 %v1670, %v1670
        %v1676 = vsub.f32 %v1674, %v1675
        %v1677 = vsub.f32 %v1667, %v1670
        %v1678 = vadd.f32 %v1676, 1e-05
        %v1679 = vrsqrt.pop %v1678
        %v1680 = vmul.f32 %v1677, %v1679
        %v1682 = vlaneseq
        %v1683 = vshrl.u32 %v1682, 7
        %v1684 = vsub.s32 0, %v1683
        %v1685 = vrot.slane %v472, %v1684
        %v1687 = vmul.f32 %v1680, %v1685
        %v1689 = vlaneseq
        %v1690 = vshrl.u32 %v1689, 7
        %v1691 = vsub.s32 0, %v1690
        %v1692 = vrot.slane %v473, %v1691
        %v1694 = vadd.f32 %v1687, %v1692
        %s1695 = scalar_lea.vmem %s10, 4
        %v1696 = vld [vmem:[%s1695] sm:$0x1]
        %v1697 = vld [vmem:[%s1695 + $0x1] sm:$0x1]
        %v1698 = vld [vmem:[%s1695 + $0x2] sm:$0x1]
        %v1699 = vld [vmem:[%s1695 + $0x3] sm:$0x1]
        %s1700 = scalar_lea.vmem [#allocation2], 384
        %v1701 = vld [vmem:[%s1700] sm:$0xff]
        %v1702 = vld [vmem:[%s1700 + $0x8] sm:$0xff]
        %v1703 = vld [vmem:[%s1700 + $0x10] sm:$0xff]
        %v1704 = vld [vmem:[%s1700 + $0x18] sm:$0xff]
        %v1705 = vld [vmem:[%s1700 + $0x20] sm:$0xff]
        %v1706 = vld [vmem:[%s1700 + $0x28] sm:$0xff]
        %v1707 = vld [vmem:[%s1700 + $0x30] sm:$0xff]
        %v1708 = vld [vmem:[%s1700 + $0x38] sm:$0xff]
        %v1709 = vld [vmem:[%s1700 + $0x40] sm:$0xff]
        %v1710 = vld [vmem:[%s1700 + $0x48] sm:$0xff]
        %v1711 = vld [vmem:[%s1700 + $0x50] sm:$0xff]
        %v1712 = vld [vmem:[%s1700 + $0x58] sm:$0xff]
        %v1713 = vld [vmem:[%s1700 + $0x60] sm:$0xff]
        %v1714 = vld [vmem:[%s1700 + $0x68] sm:$0xff]
        %v1715 = vld [vmem:[%s1700 + $0x70] sm:$0xff]
        %v1716 = vld [vmem:[%s1700 + $0x78] sm:$0xff]
        %v1717 = vld [vmem:[%s1700 + $0x80] sm:$0xff]
        %v1718 = vld [vmem:[%s1700 + $0x88] sm:$0xff]
        %v1719 = vld [vmem:[%s1700 + $0x90] sm:$0xff]
        %v1720 = vld [vmem:[%s1700 + $0x98] sm:$0xff]
        %v1721 = vld [vmem:[%s1700 + $0xa0] sm:$0xff]
        %v1722 = vld [vmem:[%s1700 + $0xa8] sm:$0xff]
        %v1723 = vld [vmem:[%s1700 + $0xb0] sm:$0xff]
        %v1724 = vld [vmem:[%s1700 + $0xb8] sm:$0xff]
        %v1725 = vld [vmem:[%s1700 + $0xc0] sm:$0xff]
        %v1726 = vld [vmem:[%s1700 + $0xc8] sm:$0xff]
        %v1727 = vld [vmem:[%s1700 + $0xd0] sm:$0xff]
        %v1728 = vld [vmem:[%s1700 + $0xd8] sm:$0xff]
        %v1729 = vld [vmem:[%s1700 + $0xe0] sm:$0xff]
        %v1730 = vld [vmem:[%s1700 + $0xe8] sm:$0xff]
        %v1731 = vld [vmem:[%s1700 + $0xf0] sm:$0xff]
        %v1732 = vld [vmem:[%s1700 + $0xf8] sm:$0xff]
        %v1733 = vld [vmem:[%s1700 + $0x100] sm:$0xff]
        %v1734 = vld [vmem:[%s1700 + $0x108] sm:$0xff]
        %v1735 = vld [vmem:[%s1700 + $0x110] sm:$0xff]
        %v1736 = vld [vmem:[%s1700 + $0x118] sm:$0xff]
        %v1737 = vld [vmem:[%s1700 + $0x120] sm:$0xff]
        %v1738 = vld [vmem:[%s1700 + $0x128] sm:$0xff]
        %v1739 = vld [vmem:[%s1700 + $0x130] sm:$0xff]
        %v1740 = vld [vmem:[%s1700 + $0x138] sm:$0xff]
        %v1741 = vld [vmem:[%s1700 + $0x140] sm:$0xff]
        %v1742 = vld [vmem:[%s1700 + $0x148] sm:$0xff]
        %v1743 = vld [vmem:[%s1700 + $0x150] sm:$0xff]
        %v1744 = vld [vmem:[%s1700 + $0x158] sm:$0xff]
        %v1745 = vld [vmem:[%s1700 + $0x160] sm:$0xff]
        %v1746 = vld [vmem:[%s1700 + $0x168] sm:$0xff]
        %v1747 = vld [vmem:[%s1700 + $0x170] sm:$0xff]
        %v1748 = vld [vmem:[%s1700 + $0x178] sm:$0xff]
        %s1749 = scalar_lea.vmem %s3, 6
        %v1750 = vld [vmem:[%s1749] sm:$0x3f]
        %v1751 = vpack.c.bf16 %v1694, %v1694
        %v1753 = vlaneseq
        %v1754 = vshrl.u32 %v1753, 7
        %v1755 = vsub.s32 0, %v1754
        %v1756 = vrot.slane %v1750, %v1755
        %v1757 = vlaneseq
        %v1758 = vshrl.u32 %v1757, 7
        %v1759 = vsub.s32 1, %v1758
        %v1760 = vrot.slane %v1750, %v1759
        %v1761 = vlaneseq
        %v1762 = vshrl.u32 %v1761, 7
        %v1763 = vsub.s32 2, %v1762
        %v1764 = vrot.slane %v1750, %v1763
        %v1765 = vlaneseq
        %v1766 = vshrl.u32 %v1765, 7
        %v1767 = vsub.s32 3, %v1766
        %v1768 = vrot.slane %v1750, %v1767
        %v1769 = vlaneseq
        %v1770 = vshrl.u32 %v1769, 7
        %v1771 = vsub.s32 4, %v1770
        %v1772 = vrot.slane %v1750, %v1771
        %v1773 = vlaneseq
        %v1774 = vshrl.u32 %v1773, 7
        %v1775 = vsub.s32 5, %v1774
        %v1776 = vrot.slane %v1750, %v1775
        %v1831 = vunpack.c.l.b16 %v1701
        %v1832 = vunpack.c.h.b16 %v1701
        %v1833 = vunpack.c.l.b16 %v1702
        %v1834 = vunpack.c.h.b16 %v1702
        %v1835 = vunpack.c.l.b16 %v1703
        %v1836 = vunpack.c.h.b16 %v1703
        %v1837 = vunpack.c.l.b16 %v1704
        %v1838 = vunpack.c.h.b16 %v1704
        %v1839 = vunpack.c.l.b16 %v1705
        %v1840 = vunpack.c.h.b16 %v1705
        %v1841 = vunpack.c.l.b16 %v1706
        %v1842 = vunpack.c.h.b16 %v1706
        %v1843 = vunpack.c.l.b16 %v1707
        %v1844 = vunpack.c.h.b16 %v1707
        %v1845 = vunpack.c.l.b16 %v1708
        %v1846 = vunpack.c.h.b16 %v1708
        %v1847 = vunpack.c.l.b16 %v1709
        %v1848 = vunpack.c.h.b16 %v1709
        %v1849 = vunpack.c.l.b16 %v1710
        %v1850 = vunpack.c.h.b16 %v1710
        %v1851 = vunpack.c.l.b16 %v1711
        %v1852 = vunpack.c.h.b16 %v1711
        %v1853 = vunpack.c.l.b16 %v1712
        %v1854 = vunpack.c.h.b16 %v1712
        %v1855 = vunpack.c.l.b16 %v1713
        %v1856 = vunpack.c.h.b16 %v1713
        %v1857 = vunpack.c.l.b16 %v1714
        %v1858 = vunpack.c.h.b16 %v1714
        %v1859 = vunpack.c.l.b16 %v1715
        %v1860 = vunpack.c.h.b16 %v1715
        %v1861 = vunpack.c.l.b16 %v1716
        %v1862 = vunpack.c.h.b16 %v1716
        %v1863 = vunpack.c.l.b16 %v1717
        %v1864 = vunpack.c.h.b16 %v1717
        %v1865 = vunpack.c.l.b16 %v1718
        %v1866 = vunpack.c.h.b16 %v1718
        %v1867 = vunpack.c.l.b16 %v1719
        %v1868 = vunpack.c.h.b16 %v1719
        %v1869 = vunpack.c.l.b16 %v1720
        %v1870 = vunpack.c.h.b16 %v1720
        %v1871 = vunpack.c.l.b16 %v1721
        %v1872 = vunpack.c.h.b16 %v1721
        %v1873 = vunpack.c.l.b16 %v1722
        %v1874 = vunpack.c.h.b16 %v1722
        %v1875 = vunpack.c.l.b16 %v1723
        %v1876 = vunpack.c.h.b16 %v1723
        %v1877 = vunpack.c.l.b16 %v1724
        %v1878 = vunpack.c.h.b16 %v1724
        %v1879 = vunpack.c.l.b16 %v1725
        %v1880 = vunpack.c.h.b16 %v1725
        %v1881 = vunpack.c.l.b16 %v1726
        %v1882 = vunpack.c.h.b16 %v1726
        %v1883 = vunpack.c.l.b16 %v1727
        %v1884 = vunpack.c.h.b16 %v1727
        %v1885 = vunpack.c.l.b16 %v1728
        %v1886 = vunpack.c.h.b16 %v1728
        %v1887 = vunpack.c.l.b16 %v1729
        %v1888 = vunpack.c.h.b16 %v1729
        %v1889 = vunpack.c.l.b16 %v1730
        %v1890 = vunpack.c.h.b16 %v1730
        %v1891 = vunpack.c.l.b16 %v1731
        %v1892 = vunpack.c.h.b16 %v1731
        %v1893 = vunpack.c.l.b16 %v1732
        %v1894 = vunpack.c.h.b16 %v1732
        %v1895 = vunpack.c.l.b16 %v1733
        %v1896 = vunpack.c.h.b16 %v1733
        %v1897 = vunpack.c.l.b16 %v1734
        %v1898 = vunpack.c.h.b16 %v1734
        %v1899 = vunpack.c.l.b16 %v1735
        %v1900 = vunpack.c.h.b16 %v1735
        %v1901 = vunpack.c.l.b16 %v1736
        %v1902 = vunpack.c.h.b16 %v1736
        %v1903 = vunpack.c.l.b16 %v1737
        %v1904 = vunpack.c.h.b16 %v1737
        %v1905 = vunpack.c.l.b16 %v1738
        %v1906 = vunpack.c.h.b16 %v1738
        %v1907 = vunpack.c.l.b16 %v1739
        %v1908 = vunpack.c.h.b16 %v1739
        %v1909 = vunpack.c.l.b16 %v1740
        %v1910 = vunpack.c.h.b16 %v1740
        %v1911 = vunpack.c.l.b16 %v1741
        %v1912 = vunpack.c.h.b16 %v1741
        %v1913 = vunpack.c.l.b16 %v1742
        %v1914 = vunpack.c.h.b16 %v1742
        %v1915 = vunpack.c.l.b16 %v1743
        %v1916 = vunpack.c.h.b16 %v1743
        %v1917 = vunpack.c.l.b16 %v1744
        %v1918 = vunpack.c.h.b16 %v1744
        %v1919 = vunpack.c.l.b16 %v1745
        %v1920 = vunpack.c.h.b16 %v1745
        %v1921 = vunpack.c.l.b16 %v1746
        %v1922 = vunpack.c.h.b16 %v1746
        %v1923 = vunpack.c.l.b16 %v1747
        %v1924 = vunpack.c.h.b16 %v1747
        %v1925 = vunpack.c.l.b16 %v1748
        %v1926 = vunpack.c.h.b16 %v1748
        %v1927 = vpack.c.b16 %v1837, %v1831
        %v1928 = vpack.c.b16 %v1838, %v1832
        %v1929 = vpack.c.b16 %v1839, %v1833
        %v1930 = vpack.c.b16 %v1840, %v1834
        %v1931 = vpack.c.b16 %v1841, %v1835
        %v1932 = vpack.c.b16 %v1842, %v1836
        %v1933 = vpack.c.b16 %v1849, %v1843
        %v1934 = vpack.c.b16 %v1850, %v1844
        %v1935 = vpack.c.b16 %v1851, %v1845
        %v1936 = vpack.c.b16 %v1852, %v1846
        %v1937 = vpack.c.b16 %v1853, %v1847
        %v1938 = vpack.c.b16 %v1854, %v1848
        %v1939 = vpack.c.b16 %v1861, %v1855
        %v1940 = vpack.c.b16 %v1862, %v1856
        %v1941 = vpack.c.b16 %v1863, %v1857
        %v1942 = vpack.c.b16 %v1864, %v1858
        %v1943 = vpack.c.b16 %v1865, %v1859
        %v1944 = vpack.c.b16 %v1866, %v1860
        %v1945 = vpack.c.b16 %v1873, %v1867
        %v1946 = vpack.c.b16 %v1874, %v1868
        %v1947 = vpack.c.b16 %v1875, %v1869
        %v1948 = vpack.c.b16 %v1876, %v1870
        %v1949 = vpack.c.b16 %v1877, %v1871
        %v1950 = vpack.c.b16 %v1878, %v1872
        %v1951 = vpack.c.b16 %v1885, %v1879
        %v1952 = vpack.c.b16 %v1886, %v1880
        %v1953 = vpack.c.b16 %v1887, %v1881
        %v1954 = vpack.c.b16 %v1888, %v1882
        %v1955 = vpack.c.b16 %v1889, %v1883
        %v1956 = vpack.c.b16 %v1890, %v1884
        %v1957 = vpack.c.b16 %v1897, %v1891
        %v1958 = vpack.c.b16 %v1898, %v1892
        %v1959 = vpack.c.b16 %v1899, %v1893
        %v1960 = vpack.c.b16 %v1900, %v1894
        %v1961 = vpack.c.b16 %v1901, %v1895
        %v1962 = vpack.c.b16 %v1902, %v1896
        %v1963 = vpack.c.b16 %v1909, %v1903
        %v1964 = vpack.c.b16 %v1910, %v1904
        %v1965 = vpack.c.b16 %v1911, %v1905
        %v1966 = vpack.c.b16 %v1912, %v1906
        %v1967 = vpack.c.b16 %v1913, %v1907
        %v1968 = vpack.c.b16 %v1914, %v1908
        %v1969 = vpack.c.b16 %v1921, %v1915
        %v1970 = vpack.c.b16 %v1922, %v1916
        %v1971 = vpack.c.b16 %v1923, %v1917
        %v1972 = vpack.c.b16 %v1924, %v1918
        %v1973 = vpack.c.b16 %v1925, %v1919
        %v1974 = vpack.c.b16 %v1926, %v1920
        %2023 = vmatprep.subr.bf16.mxu0 %v1928
        %2024 = vmatpush1.bf16.msra.mxu0 %v1927
        %2025 = vmatprep.subr.bf16.mxu0 %v1934
        %2026 = vmatpush1.bf16.msra.mxu0 %v1933
        %2027 = vmatprep.subr.bf16.mxu0 %v1940
        %2028 = vmatpush1.bf16.msra.mxu0 %v1939
        %2029 = vmatprep.subr.bf16.mxu0 %v1946
        %2030 = vmatpush1.bf16.msra.mxu0 %v1945
        %2031 = vmatprep.subr.bf16.mxu0 %v1952
        %2032 = vmatpush1.bf16.msra.mxu0 %v1951
        %2033 = vmatprep.subr.bf16.mxu0 %v1958
        %2034 = vmatpush1.bf16.msra.mxu0 %v1957
        %2035 = vmatprep.subr.bf16.mxu0 %v1964
        %2036 = vmatpush1.bf16.msra.mxu0 %v1963
        %2037 = vmatprep.subr.bf16.mxu0 %v1970
        %2038 = vmatpush1.bf16.msra.mxu0 %v1969
        %2039 = vmatprep.subr.bf16.mxu0 0
        %2040 = vmatpush1.bf16.msra.mxu0 0
        %2041 = vmatprep.subr.bf16.mxu0 0
        %2042 = vmatpush1.bf16.msra.mxu0 0
        %2043 = vmatprep.subr.bf16.mxu0 0
        %2044 = vmatpush1.bf16.msra.mxu0 0
        %2045 = vmatprep.subr.bf16.mxu0 0
        %2046 = vmatpush1.bf16.msra.mxu0 0
        %2047 = vmatprep.subr.bf16.mxu0 0
        %2048 = vmatpush1.bf16.msra.mxu0 0
        %2049 = vmatprep.subr.bf16.mxu0 0
        %2050 = vmatpush1.bf16.msra.mxu0 0
        %2051 = vmatprep.subr.bf16.mxu0 0
        %2052 = vmatpush1.bf16.msra.mxu0 0
        %2053 = vmatprep.subr.bf16.mxu0 0
        %2054 = vmatpush1.bf16.msra.mxu0 0
        %2055 = vmatprep.mubr.bf16.mxu0 0
        %2056 = vmatmul.mubr.bf16.gmra.mrb[0].mxu0 %v1751
        %v2057 = vpop.f32.mrb[0].mxu0
        %v2058 = vadd.f32 %v1756, %v2057
        %v2059 = vpop.f32.mrb[0].mxu0
        %v2060 = vadd.f32 %v1760, %v2059
        %v2061 = vpop.f32.mrb[0].mxu0
        %v2062 = vpop.f32.mrb[0].mxu0
        %2063 = vdwg.mxu0
        %2064 = vmatprep.subr.bf16.mxu0 %v1930
        %2065 = vmatpush1.bf16.msra.mxu0 %v1929
        %2066 = vmatprep.subr.bf16.mxu0 %v1936
        %2067 = vmatpush1.bf16.msra.mxu0 %v1935
        %2068 = vmatprep.subr.bf16.mxu0 %v1942
        %2069 = vmatpush1.bf16.msra.mxu0 %v1941
        %2070 = vmatprep.subr.bf16.mxu0 %v1948
        %2071 = vmatpush1.bf16.msra.mxu0 %v1947
        %2072 = vmatprep.subr.bf16.mxu0 %v1954
        %2073 = vmatpush1.bf16.msra.mxu0 %v1953
        %2074 = vmatprep.subr.bf16.mxu0 %v1960
        %2075 = vmatpush1.bf16.msra.mxu0 %v1959
        %2076 = vmatprep.subr.bf16.mxu0 %v1966
        %2077 = vmatpush1.bf16.msra.mxu0 %v1965
        %2078 = vmatprep.subr.bf16.mxu0 %v1972
        %2079 = vmatpush1.bf16.msra.mxu0 %v1971
        %2080 = vmatprep.subr.bf16.mxu0 0
        %2081 = vmatpush1.bf16.msra.mxu0 0
        %2082 = vmatprep.subr.bf16.mxu0 0
        %2083 = vmatpush1.bf16.msra.mxu0 0
        %2084 = vmatprep.subr.bf16.mxu0 0
        %2085 = vmatpush1.bf16.msra.mxu0 0
        %2086 = vmatprep.subr.bf16.mxu0 0
        %2087 = vmatpush1.bf16.msra.mxu0 0
        %2088 = vmatprep.subr.bf16.mxu0 0
        %2089 = vmatpush1.bf16.msra.mxu0 0
        %2090 = vmatprep.subr.bf16.mxu0 0
        %2091 = vmatpush1.bf16.msra.mxu0 0
        %2092 = vmatprep.subr.bf16.mxu0 0
        %2093 = vmatpush1.bf16.msra.mxu0 0
        %2094 = vmatprep.subr.bf16.mxu0 0
        %2095 = vmatpush1.bf16.msra.mxu0 0
        %2096 = vmatprep.mubr.bf16.mxu0 0
        %2097 = vmatmul.mubr.bf16.gmra.mrb[0].mxu0 %v1751
        %v2098 = vpop.f32.mrb[0].mxu0
        %v2099 = vadd.f32 %v1764, %v2098
        %v2100 = vpop.f32.mrb[0].mxu0
        %v2101 = vadd.f32 %v1768, %v2100
        %v2102 = vpop.f32.mrb[0].mxu0
        %v2103 = vpop.f32.mrb[0].mxu0
        %2104 = vdwg.mxu0
        %2105 = vmatprep.subr.bf16.mxu0 %v1932
        %2106 = vmatpush1.bf16.msra.mxu0 %v1931
        %2107 = vmatprep.subr.bf16.mxu0 %v1938
        %2108 = vmatpush1.bf16.msra.mxu0 %v1937
        %2109 = vmatprep.subr.bf16.mxu0 %v1944
        %2110 = vmatpush1.bf16.msra.mxu0 %v1943
        %2111 = vmatprep.subr.bf16.mxu0 %v1950
        %2112 = vmatpush1.bf16.msra.mxu0 %v1949
        %2113 = vmatprep.subr.bf16.mxu0 %v1956
        %2114 = vmatpush1.bf16.msra.mxu0 %v1955
        %2115 = vmatprep.subr.bf16.mxu0 %v1962
        %2116 = vmatpush1.bf16.msra.mxu0 %v1961
        %2117 = vmatprep.subr.bf16.mxu0 %v1968
        %2118 = vmatpush1.bf16.msra.mxu0 %v1967
        %2119 = vmatprep.subr.bf16.mxu0 %v1974
        %2120 = vmatpush1.bf16.msra.mxu0 %v1973
        %2121 = vmatprep.subr.bf16.mxu0 0
        %2122 = vmatpush1.bf16.msra.mxu0 0
        %2123 = vmatprep.subr.bf16.mxu0 0
        %2124 = vmatpush1.bf16.msra.mxu0 0
        %2125 = vmatprep.subr.bf16.mxu0 0
        %2126 = vmatpush1.bf16.msra.mxu0 0
        %2127 = vmatprep.subr.bf16.mxu0 0
        %2128 = vmatpush1.bf16.msra.mxu0 0
        %2129 = vmatprep.subr.bf16.mxu0 0
        %2130 = vmatpush1.bf16.msra.mxu0 0
        %2131 = vmatprep.subr.bf16.mxu0 0
        %2132 = vmatpush1.bf16.msra.mxu0 0
        %2133 = vmatprep.subr.bf16.mxu0 0
        %2134 = vmatpush1.bf16.msra.mxu0 0
        %2135 = vmatprep.subr.bf16.mxu0 0
        %2136 = vmatpush1.bf16.msra.mxu0 0
        %2137 = vmatprep.mubr.bf16.mxu0 0
        %2138 = vmatmul.mubr.bf16.gmra.mrb[0].mxu0 %v1751
        %v2139 = vpop.f32.mrb[0].mxu0
        %v2140 = vadd.f32 %v1772, %v2139
        %v2141 = vpop.f32.mrb[0].mxu0
        %v2142 = vadd.f32 %v1776, %v2141
        %v2143 = vpop.f32.mrb[0].mxu0
        %v2144 = vpop.f32.mrb[0].mxu0
        %2145 = vdwg.mxu0
        %s2146 = scalar_lea.vmem %s4, 128
        %v2147 = vld [vmem:[%s2146] sm:$0xf]
        %v2148 = vld [vmem:[%s2146 + $0x4] sm:$0xf]
        %v2149 = vld [vmem:[%s2146 + $0x8] sm:$0xf]
        %v2150 = vld [vmem:[%s2146 + $0xc] sm:$0xf]
        %v2151 = vld [vmem:[%s2146 + $0x10] sm:$0xf]
        %v2152 = vld [vmem:[%s2146 + $0x14] sm:$0xf]
        %v2153 = vld [vmem:[%s2146 + $0x18] sm:$0xf]
        %v2154 = vld [vmem:[%s2146 + $0x1c] sm:$0xf]
        %v2155 = vld [vmem:[%s2146 + $0x20] sm:$0xf]
        %v2156 = vld [vmem:[%s2146 + $0x24] sm:$0xf]
        %v2157 = vld [vmem:[%s2146 + $0x28] sm:$0xf]
        %v2158 = vld [vmem:[%s2146 + $0x2c] sm:$0xf]
        %v2159 = vld [vmem:[%s2146 + $0x30] sm:$0xf]
        %v2160 = vld [vmem:[%s2146 + $0x34] sm:$0xf]
        %v2161 = vld [vmem:[%s2146 + $0x38] sm:$0xf]
        %v2162 = vld [vmem:[%s2146 + $0x3c] sm:$0xf]
        %v2163 = vld [vmem:[%s2146 + $0x40] sm:$0xf]
        %v2164 = vld [vmem:[%s2146 + $0x44] sm:$0xf]
        %v2165 = vld [vmem:[%s2146 + $0x48] sm:$0xf]
        %v2166 = vld [vmem:[%s2146 + $0x4c] sm:$0xf]
        %v2167 = vld [vmem:[%s2146 + $0x50] sm:$0xf]
        %v2168 = vld [vmem:[%s2146 + $0x54] sm:$0xf]
        %v2169 = vld [vmem:[%s2146 + $0x58] sm:$0xf]
        %v2170 = vld [vmem:[%s2146 + $0x5c] sm:$0xf]
        %v2171 = vld [vmem:[%s2146 + $0x60] sm:$0xf]
        %v2172 = vld [vmem:[%s2146 + $0x64] sm:$0xf]
        %v2173 = vld [vmem:[%s2146 + $0x68] sm:$0xf]
        %v2174 = vld [vmem:[%s2146 + $0x6c] sm:$0xf]
        %v2175 = vld [vmem:[%s2146 + $0x70] sm:$0xf]
        %v2176 = vld [vmem:[%s2146 + $0x74] sm:$0xf]
        %v2177 = vld [vmem:[%s2146 + $0x78] sm:$0xf]
        %v2178 = vld [vmem:[%s2146 + $0x7c] sm:$0xf]
        %s2179 = scalar_lea.vmem %s5, 1
        %v2180 = vld [vmem:[%s2179] sm:$0x1]
        %2181 = vmatprep.subr.mxu0 0.0
        %2182 = vmatpush1.xpose.msra.mxu0 %v2099
        %2183 = vmatprep.subr.mxu0 0.0
        %2184 = vmatpush1.xpose.msra.mxu0 0.0
        %2185 = vmatprep.subr.mxu0 0.0
        %2186 = vmatpush1.xpose.msra.mxu0 0.0
        %2187 = vmatprep.subr.mxu0 0.0
        %2188 = vmatpush1.xpose.msra.mxu0 0.0
        %2189 = vmatprep.subr.mxu0 0.0
        %2190 = vmatpush1.xpose.msra.mxu0 0.0
        %2191 = vmatprep.subr.mxu0 0.0
        %2192 = vmatpush1.xpose.msra.mxu0 0.0
        %2193 = vmatprep.subr.mxu0 0.0
        %2194 = vmatpush1.xpose.msra.mxu0 0.0
        %2195 = vmatprep.subr.mxu0 0.0
        %2196 = vmatpush1.xpose.msra.mxu0 0.0
        %2197 = vmatprep.subr.mxu0 0.0
        %2198 = vmatpush1.xpose.msra.mxu0 0.0
        %2199 = vmatprep.subr.mxu0 0.0
        %2200 = vmatpush1.xpose.msra.mxu0 0.0
        %2201 = vmatprep.subr.mxu0 0.0
        %2202 = vmatpush1.xpose.msra.mxu0 0.0
        %2203 = vmatprep.subr.mxu0 0.0
        %2204 = vmatpush1.xpose.msra.mxu0 0.0
        %2205 = vmatprep.subr.mxu0 0.0
        %2206 = vmatpush1.xpose.msra.mxu0 0.0
        %2207 = vmatprep.subr.mxu0 0.0
        %2208 = vmatpush1.xpose.msra.mxu0 0.0
        %2209 = vmatprep.subr.mxu0 0.0
        %2210 = vmatpush1.xpose.msra.mxu0 0.0
        %2211 = vmatprep.subr.mxu0 0.0
        %2212 = vmatpush1.xpose.msra.mxu0 0.0
        %2213 = vmatprep.subr.mxu0 0.0
        %2214 = vmatpush1.xpose.msra.mxu0 0.0
        %2215 = vmatprep.subr.mxu0 0.0
        %2216 = vmatpush1.xpose.msra.mxu0 0.0
        %2217 = vmatprep.subr.mxu0 0.0
        %2218 = vmatpush1.xpose.msra.mxu0 0.0
        %2219 = vmatprep.subr.mxu0 0.0
        %2220 = vmatpush1.xpose.msra.mxu0 0.0
        %2221 = vmatprep.subr.mxu0 0.0
        %2222 = vmatpush1.xpose.msra.mxu0 0.0
        %2223 = vmatprep.subr.mxu0 0.0
        %2224 = vmatpush1.xpose.msra.mxu0 0.0
        %2225 = vmatprep.subr.mxu0 0.0
        %2226 = vmatpush1.xpose.msra.mxu0 0.0
        %2227 = vmatprep.subr.mxu0 0.0
        %2228 = vmatpush1.xpose.msra.mxu0 0.0
        %2229 = vmatprep.subr.mxu0 0.0
        %2230 = vmatpush1.xpose.msra.mxu0 0.0
        %2231 = vmatprep.subr.mxu0 0.0
        %2232 = vmatpush1.xpose.msra.mxu0 0.0
        %2233 = vmatprep.subr.mxu0 0.0
        %2234 = vmatpush1.xpose.msra.mxu0 0.0
        %2235 = vmatprep.subr.mxu0 0.0
        %2236 = vmatpush1.xpose.msra.mxu0 0.0
        %2237 = vmatprep.subr.mxu0 0.0
        %2238 = vmatpush1.xpose.msra.mxu0 0.0
        %2239 = vmatprep.subr.mxu0 0.0
        %2240 = vmatpush1.xpose.msra.mxu0 0.0
        %2241 = vmatprep.subr.mxu0 0.0
        %2242 = vmatpush1.xpose.msra.mxu0 0.0
        %2243 = vmatprep.subr.mxu0 0.0
        %2244 = vmatpush1.xpose.msra.mxu0 0.0
        %2245 = vmatprep.mubr.f32.mxu0 0.0
        %2246 = vmatmul.mubr.f32.gmra.mrb[0].mxu0 %v2058
        %v2247 = vpop.f32.mrb[0].mxu0
        %v2248 = vadd.f32 0.0, %v2247
        %v2249 = vpop.f32.mrb[0].mxu0
        %2250 = vdwg.mxu0
        %2251 = vmatprep.subr.mxu0 0.0
        %2252 = vmatpush1.xpose.msra.mxu0 %v2101
        %2253 = vmatprep.subr.mxu0 0.0
        %2254 = vmatpush1.xpose.msra.mxu0 0.0
        %2255 = vmatprep.subr.mxu0 0.0
        %2256 = vmatpush1.xpose.msra.mxu0 0.0
        %2257 = vmatprep.subr.mxu0 0.0
        %2258 = vmatpush1.xpose.msra.mxu0 0.0
        %2259 = vmatprep.subr.mxu0 0.0
        %2260 = vmatpush1.xpose.msra.mxu0 0.0
        %2261 = vmatprep.subr.mxu0 0.0
        %2262 = vmatpush1.xpose.msra.mxu0 0.0
        %2263 = vmatprep.subr.mxu0 0.0
        %2264 = vmatpush1.xpose.msra.mxu0 0.0
        %2265 = vmatprep.subr.mxu0 0.0
        %2266 = vmatpush1.xpose.msra.mxu0 0.0
        %2267 = vmatprep.subr.mxu0 0.0
        %2268 = vmatpush1.xpose.msra.mxu0 0.0
        %2269 = vmatprep.subr.mxu0 0.0
        %2270 = vmatpush1.xpose.msra.mxu0 0.0
        %2271 = vmatprep.subr.mxu0 0.0
        %2272 = vmatpush1.xpose.msra.mxu0 0.0
        %2273 = vmatprep.subr.mxu0 0.0
        %2274 = vmatpush1.xpose.msra.mxu0 0.0
        %2275 = vmatprep.subr.mxu0 0.0
        %2276 = vmatpush1.xpose.msra.mxu0 0.0
        %2277 = vmatprep.subr.mxu0 0.0
        %2278 = vmatpush1.xpose.msra.mxu0 0.0
        %2279 = vmatprep.subr.mxu0 0.0
        %2280 = vmatpush1.xpose.msra.mxu0 0.0
        %2281 = vmatprep.subr.mxu0 0.0
        %2282 = vmatpush1.xpose.msra.mxu0 0.0
        %2283 = vmatprep.subr.mxu0 0.0
        %2284 = vmatpush1.xpose.msra.mxu0 0.0
        %2285 = vmatprep.subr.mxu0 0.0
        %2286 = vmatpush1.xpose.msra.mxu0 0.0
        %2287 = vmatprep.subr.mxu0 0.0
        %2288 = vmatpush1.xpose.msra.mxu0 0.0
        %2289 = vmatprep.subr.mxu0 0.0
        %2290 = vmatpush1.xpose.msra.mxu0 0.0
        %2291 = vmatprep.subr.mxu0 0.0
        %2292 = vmatpush1.xpose.msra.mxu0 0.0
        %2293 = vmatprep.subr.mxu0 0.0
        %2294 = vmatpush1.xpose.msra.mxu0 0.0
        %2295 = vmatprep.subr.mxu0 0.0
        %2296 = vmatpush1.xpose.msra.mxu0 0.0
        %2297 = vmatprep.subr.mxu0 0.0
        %2298 = vmatpush1.xpose.msra.mxu0 0.0
        %2299 = vmatprep.subr.mxu0 0.0
        %2300 = vmatpush1.xpose.msra.mxu0 0.0
        %2301 = vmatprep.subr.mxu0 0.0
        %2302 = vmatpush1.xpose.msra.mxu0 0.0
        %2303 = vmatprep.subr.mxu0 0.0
        %2304 = vmatpush1.xpose.msra.mxu0 0.0
        %2305 = vmatprep.subr.mxu0 0.0
        %2306 = vmatpush1.xpose.msra.mxu0 0.0
        %2307 = vmatprep.subr.mxu0 0.0
        %2308 = vmatpush1.xpose.msra.mxu0 0.0
        %2309 = vmatprep.subr.mxu0 0.0
        %2310 = vmatpush1.xpose.msra.mxu0 0.0
        %2311 = vmatprep.subr.mxu0 0.0
        %2312 = vmatpush1.xpose.msra.mxu0 0.0
        %2313 = vmatprep.subr.mxu0 0.0
        %2314 = vmatpush1.xpose.msra.mxu0 0.0
        %2315 = vmatprep.mubr.f32.mxu0 0.0
        %2316 = vmatmul.mubr.f32.gmra.mrb[0].mxu0 %v2060
        %v2317 = vpop.f32.mrb[0].mxu0
        %v2318 = vadd.f32 0.0, %v2317
        %v2319 = vpop.f32.mrb[0].mxu0
        %2320 = vdwg.mxu0
        %v2321 = vmul.f32 %v2248, 0.25
        %v2322 = vmul.f32 %v2318, 0.25
        %v2323 = vadd.f32 %v2321, %v1097
        %v2324 = vadd.f32 %v2322, %v1097
        %v2325 = vsel %vm1101, %v2323, -inf
        %2326 = vmax.xlane.f32.xlu0 %v2325
        %v2327 = vpop.xlane.xlu0 %2326
        %v2328 = vsel %vm1101, %v2324, -inf
        %2329 = vmax.xlane.f32.xlu0 %v2328
        %v2330 = vpop.xlane.xlu0 %2329
        %v2331 = vsub.f32 %v2323, %v2327
        %v2332 = vsub.f32 %v2324, %v2330
        %v2333 = vmul.f32 %v2331, 1.442695
        %v2334 = vpow.pop %v2333
        %v2335 = vmul.f32 %v2332, 1.442695
        %v2336 = vpow.pop %v2335
        %v2337 = vsel %vm1101, %v2334, 0.0
        %2338 = vadd.xlane.f32.xlu0 %v2337
        %v2339 = vpop.xlane.xlu0 %2338
        %v2340 = vsel %vm1101, %v2336, 0.0
        %2341 = vadd.xlane.f32.xlu0 %v2340
        %v2342 = vpop.xlane.xlu0 %2341
        %v2343 = vrcp.pop %v2339
        %v2344 = vmul.f32 %v2334, %v2343
        %v2345 = vrcp.pop %v2342
        %v2346 = vmul.f32 %v2336, %v2345
        %v2348 = vsel %vm1101, %v2344, 0
        %2350 = vmatprep.subr.mxu0 0.0
        %2351 = vmatpush1.msra.mxu0 %v2140
        %2352 = vmatprep.subr.mxu0 0.0
        %2353 = vmatpush1.msra.mxu0 0.0
        %2354 = vmatprep.subr.mxu0 0.0
        %2355 = vmatpush1.msra.mxu0 0.0
        %2356 = vmatprep.subr.mxu0 0.0
        %2357 = vmatpush1.msra.mxu0 0.0
        %2358 = vmatprep.subr.mxu0 0.0
        %2359 = vmatpush1.msra.mxu0 0.0
        %2360 = vmatprep.subr.mxu0 0.0
        %2361 = vmatpush1.msra.mxu0 0.0
        %2362 = vmatprep.subr.mxu0 0.0
        %2363 = vmatpush1.msra.mxu0 0.0
        %2364 = vmatprep.subr.mxu0 0.0
        %2365 = vmatpush1.msra.mxu0 0.0
        %2366 = vmatprep.subr.mxu0 0.0
        %2367 = vmatpush1.msra.mxu0 0.0
        %2368 = vmatprep.subr.mxu0 0.0
        %2369 = vmatpush1.msra.mxu0 0.0
        %2370 = vmatprep.subr.mxu0 0.0
        %2371 = vmatpush1.msra.mxu0 0.0
        %2372 = vmatprep.subr.mxu0 0.0
        %2373 = vmatpush1.msra.mxu0 0.0
        %2374 = vmatprep.subr.mxu0 0.0
        %2375 = vmatpush1.msra.mxu0 0.0
        %2376 = vmatprep.subr.mxu0 0.0
        %2377 = vmatpush1.msra.mxu0 0.0
        %2378 = vmatprep.subr.mxu0 0.0
        %2379 = vmatpush1.msra.mxu0 0.0
        %2380 = vmatprep.subr.mxu0 0.0
        %2381 = vmatpush1.msra.mxu0 0.0
        %2382 = vmatprep.subr.mxu0 0.0
        %2383 = vmatpush1.msra.mxu0 0.0
        %2384 = vmatprep.subr.mxu0 0.0
        %2385 = vmatpush1.msra.mxu0 0.0
        %2386 = vmatprep.subr.mxu0 0.0
        %2387 = vmatpush1.msra.mxu0 0.0
        %2388 = vmatprep.subr.mxu0 0.0
        %2389 = vmatpush1.msra.mxu0 0.0
        %2390 = vmatprep.subr.mxu0 0.0
        %2391 = vmatpush1.msra.mxu0 0.0
        %2392 = vmatprep.subr.mxu0 0.0
        %2393 = vmatpush1.msra.mxu0 0.0
        %2394 = vmatprep.subr.mxu0 0.0
        %2395 = vmatpush1.msra.mxu0 0.0
        %2396 = vmatprep.subr.mxu0 0.0
        %2397 = vmatpush1.msra.mxu0 0.0
        %2398 = vmatprep.subr.mxu0 0.0
        %2399 = vmatpush1.msra.mxu0 0.0
        %2400 = vmatprep.subr.mxu0 0.0
        %2401 = vmatpush1.msra.mxu0 0.0
        %2402 = vmatprep.subr.mxu0 0.0
        %2403 = vmatpush1.msra.mxu0 0.0
        %2404 = vmatprep.subr.mxu0 0.0
        %2405 = vmatpush1.msra.mxu0 0.0
        %2406 = vmatprep.subr.mxu0 0.0
        %2407 = vmatpush1.msra.mxu0 0.0
        %2408 = vmatprep.subr.mxu0 0.0
        %2409 = vmatpush1.msra.mxu0 0.0
        %2410 = vmatprep.subr.mxu0 0.0
        %2411 = vmatpush1.msra.mxu0 0.0
        %2412 = vmatprep.subr.mxu0 0.0
        %2413 = vmatpush1.msra.mxu0 0.0
        %2414 = vmatprep.mubr.f32.mxu0 0.0
        %2415 = vmatmul.mubr.f32.gmra.mrb[0].mxu0 %v2348
        %v2416 = vpop.f32.mrb[0].mxu0
        %v2417 = vadd.f32 0.0, %v2416
        %v2418 = vpop.f32.mrb[0].mxu0
        %2419 = vdwg.mxu0
        %v2421 = vsel %vm1101, %v2346, 0
        %2423 = vmatprep.subr.mxu0 0.0
        %2424 = vmatpush1.msra.mxu0 %v2142
        %2425 = vmatprep.subr.mxu0 0.0
        %2426 = vmatpush1.msra.mxu0 0.0
        %2427 = vmatprep.subr.mxu0 0.0
        %2428 = vmatpush1.msra.mxu0 0.0
        %2429 = vmatprep.subr.mxu0 0.0
        %2430 = vmatpush1.msra.mxu0 0.0
        %2431 = vmatprep.subr.mxu0 0.0
        %2432 = vmatpush1.msra.mxu0 0.0
        %2433 = vmatprep.subr.mxu0 0.0
        %2434 = vmatpush1.msra.mxu0 0.0
        %2435 = vmatprep.subr.mxu0 0.0
        %2436 = vmatpush1.msra.mxu0 0.0
        %2437 = vmatprep.subr.mxu0 0.0
        %2438 = vmatpush1.msra.mxu0 0.0
        %2439 = vmatprep.subr.mxu0 0.0
        %2440 = vmatpush1.msra.mxu0 0.0
        %2441 = vmatprep.subr.mxu0 0.0
        %2442 = vmatpush1.msra.mxu0 0.0
        %2443 = vmatprep.subr.mxu0 0.0
        %2444 = vmatpush1.msra.mxu0 0.0
        %2445 = vmatprep.subr.mxu0 0.0
        %2446 = vmatpush1.msra.mxu0 0.0
        %2447 = vmatprep.subr.mxu0 0.0
        %2448 = vmatpush1.msra.mxu0 0.0
        %2449 = vmatprep.subr.mxu0 0.0
        %2450 = vmatpush1.msra.mxu0 0.0
        %2451 = vmatprep.subr.mxu0 0.0
        %2452 = vmatpush1.msra.mxu0 0.0
        %2453 = vmatprep.subr.mxu0 0.0
        %2454 = vmatpush1.msra.mxu0 0.0
        %2455 = vmatprep.subr.mxu0 0.0
        %2456 = vmatpush1.msra.mxu0 0.0
        %2457 = vmatprep.subr.mxu0 0.0
        %2458 = vmatpush1.msra.mxu0 0.0
        %2459 = vmatprep.subr.mxu0 0.0
        %2460 = vmatpush1.msra.mxu0 0.0
        %2461 = vmatprep.subr.mxu0 0.0
        %2462 = vmatpush1.msra.mxu0 0.0
        %2463 = vmatprep.subr.mxu0 0.0
        %2464 = vmatpush1.msra.mxu0 0.0
        %2465 = vmatprep.subr.mxu0 0.0
        %2466 = vmatpush1.msra.mxu0 0.0
        %2467 = vmatprep.subr.mxu0 0.0
        %2468 = vmatpush1.msra.mxu0 0.0
        %2469 = vmatprep.subr.mxu0 0.0
        %2470 = vmatpush1.msra.mxu0 0.0
        %2471 = vmatprep.subr.mxu0 0.0
        %2472 = vmatpush1.msra.mxu0 0.0
        %2473 = vmatprep.subr.mxu0 0.0
        %2474 = vmatpush1.msra.mxu0 0.0
        %2475 = vmatprep.subr.mxu0 0.0
        %2476 = vmatpush1.msra.mxu0 0.0
        %2477 = vmatprep.subr.mxu0 0.0
        %2478 = vmatpush1.msra.mxu0 0.0
        %2479 = vmatprep.subr.mxu0 0.0
        %2480 = vmatpush1.msra.mxu0 0.0
        %2481 = vmatprep.subr.mxu0 0.0
        %2482 = vmatpush1.msra.mxu0 0.0
        %2483 = vmatprep.subr.mxu0 0.0
        %2484 = vmatpush1.msra.mxu0 0.0
        %2485 = vmatprep.subr.mxu0 0.0
        %2486 = vmatpush1.msra.mxu0 0.0
        %2487 = vmatprep.mubr.f32.mxu0 0.0
        %2488 = vmatmul.mubr.f32.gmra.mrb[0].mxu0 %v2421
        %v2489 = vpop.f32.mrb[0].mxu0
        %v2490 = vadd.f32 0.0, %v2489
        %v2491 = vpop.f32.mrb[0].mxu0
        %2492 = vdwg.mxu0
        %v2493 = vpack.c.bf16 %v2417, %v2417
        %v2494 = vpack.c.bf16 %v2490, %v2490
        %v2496 = vlaneseq
        %v2497 = vshrl.u32 %v2496, 7
        %v2498 = vsub.s32 0, %v2497
        %v2499 = vrot.slane %v2180, %v2498
        %v2533 = vunpack.c.l.b16 %v2147
        %v2534 = vunpack.c.l.b16 %v2148
        %v2535 = vunpack.c.l.b16 %v2149
        %v2536 = vunpack.c.l.b16 %v2150
        %v2537 = vunpack.c.l.b16 %v2151
        %v2538 = vunpack.c.l.b16 %v2152
        %v2539 = vunpack.c.l.b16 %v2153
        %v2540 = vunpack.c.l.b16 %v2154
        %v2541 = vunpack.c.l.b16 %v2155
        %v2542 = vunpack.c.l.b16 %v2156
        %v2543 = vunpack.c.l.b16 %v2157
        %v2544 = vunpack.c.l.b16 %v2158
        %v2545 = vunpack.c.l.b16 %v2159
        %v2546 = vunpack.c.l.b16 %v2160
        %v2547 = vunpack.c.l.b16 %v2161
        %v2548 = vunpack.c.l.b16 %v2162
        %v2549 = vunpack.c.l.b16 %v2163
        %v2550 = vunpack.c.l.b16 %v2164
        %v2551 = vunpack.c.l.b16 %v2165
        %v2552 = vunpack.c.l.b16 %v2166
        %v2553 = vunpack.c.l.b16 %v2167
        %v2554 = vunpack.c.l.b16 %v2168
        %v2555 = vunpack.c.l.b16 %v2169
        %v2556 = vunpack.c.l.b16 %v2170
        %v2557 = vunpack.c.l.b16 %v2171
        %v2558 = vunpack.c.l.b16 %v2172
        %v2559 = vunpack.c.l.b16 %v2173
        %v2560 = vunpack.c.l.b16 %v2174
        %v2561 = vunpack.c.l.b16 %v2175
        %v2562 = vunpack.c.l.b16 %v2176
        %v2563 = vunpack.c.l.b16 %v2177
        %v2564 = vunpack.c.l.b16 %v2178
        %v2565 = vpack.c.b16 %v2534, %v2533
        %v2566 = vpack.c.b16 %v2536, %v2535
        %v2567 = vpack.c.b16 %v2538, %v2537
        %v2568 = vpack.c.b16 %v2540, %v2539
        %v2569 = vpack.c.b16 %v2542, %v2541
        %v2570 = vpack.c.b16 %v2544, %v2543
        %v2571 = vpack.c.b16 %v2546, %v2545
        %v2572 = vpack.c.b16 %v2548, %v2547
        %v2573 = vpack.c.b16 %v2550, %v2549
        %v2574 = vpack.c.b16 %v2552, %v2551
        %v2575 = vpack.c.b16 %v2554, %v2553
        %v2576 = vpack.c.b16 %v2556, %v2555
        %v2577 = vpack.c.b16 %v2558, %v2557
        %v2578 = vpack.c.b16 %v2560, %v2559
        %v2579 = vpack.c.b16 %v2562, %v2561
        %v2580 = vpack.c.b16 %v2564, %v2563
        %2597 = vmatprep.subr.bf16.mxu0 0
        %2598 = vmatpush1.bf16.msra.mxu0 %v2565
        %2599 = vmatprep.subr.bf16.mxu0 0
        %2600 = vmatpush1.bf16.msra.mxu0 %v2566
        %2601 = vmatprep.subr.bf16.mxu0 0
        %2602 = vmatpush1.bf16.msra.mxu0 %v2567
        %2603 = vmatprep.subr.bf16.mxu0 0
        %2604 = vmatpush1.bf16.msra.mxu0 %v2568
        %2605 = vmatprep.subr.bf16.mxu0 0
        %2606 = vmatpush1.bf16.msra.mxu0 %v2569
        %2607 = vmatprep.subr.bf16.mxu0 0
        %2608 = vmatpush1.bf16.msra.mxu0 %v2570
        %2609 = vmatprep.subr.bf16.mxu0 0
        %2610 = vmatpush1.bf16.msra.mxu0 %v2571
        %2611 = vmatprep.subr.bf16.mxu0 0
        %2612 = vmatpush1.bf16.msra.mxu0 %v2572
        %2613 = vmatprep.subr.bf16.mxu0 0
        %2614 = vmatpush1.bf16.msra.mxu0 %v2573
        %2615 = vmatprep.subr.bf16.mxu0 0
        %2616 = vmatpush1.bf16.msra.mxu0 %v2574
        %2617 = vmatprep.subr.bf16.mxu0 0
        %2618 = vmatpush1.bf16.msra.mxu0 %v2575
        %2619 = vmatprep.subr.bf16.mxu0 0
        %2620 = vmatpush1.bf16.msra.mxu0 %v2576
        %2621 = vmatprep.subr.bf16.mxu0 0
        %2622 = vmatpush1.bf16.msra.mxu0 %v2577
        %2623 = vmatprep.subr.bf16.mxu0 0
        %2624 = vmatpush1.bf16.msra.mxu0 %v2578
        %2625 = vmatprep.subr.bf16.mxu0 0
        %2626 = vmatpush1.bf16.msra.mxu0 %v2579
        %2627 = vmatprep.subr.bf16.mxu0 0
        %2628 = vmatpush1.bf16.msra.mxu0 %v2580
        %2629 = vmatprep.mubr.bf16.mxu0 %v2494
        %2630 = vmatmul.mubr.bf16.gmra.mrb[0].mxu0 %v2493
        %v2631 = vpop.f32.mrb[0].mxu0
        %v2632 = vadd.f32 %v2499, %v2631
        %v2633 = vpop.f32.mrb[0].mxu0
        %v2634 = vpop.f32.mrb[0].mxu0
        %v2635 = vpop.f32.mrb[0].mxu0
        %2636 = vdwg.mxu0
        %v2637 = vadd.f32 %v1694, %v2632
        %2638 = vadd.xlane.f32.xlu0 %v2637
        %v2639 = vpop.xlane.xlu0 %2638
        %v2640 = vmul.f32 %v2639, 0.03125
        %v2641 = vmul.f32 %v2637, %v2637
        %2642 = vadd.xlane.f32.xlu0 %v2641
        %v2643 = vpop.xlane.xlu0 %2642
        %v2644 = vmul.f32 %v2643, 0.03125
        %v2645 = vmul.f32 %v2640, %v2640
        %v2646 = vsub.f32 %v2644, %v2645
        %v2647 = vsub.f32 %v2637, %v2640
        %v2648 = vadd.f32 %v2646, 1e-05
        %v2649 = vrsqrt.pop %v2648
        %v2650 = vmul.f32 %v2647, %v2649
        %v2652 = vlaneseq
        %v2653 = vshrl.u32 %v2652, 7
        %v2654 = vsub.s32 0, %v2653
        %v2655 = vrot.slane %v1696, %v2654
        %v2657 = vmul.f32 %v2650, %v2655
        %v2659 = vlaneseq
        %v2660 = vshrl.u32 %v2659, 7
        %v2661 = vsub.s32 0, %v2660
        %v2662 = vrot.slane %v1697, %v2661
        %v2664 = vadd.f32 %v2657, %v2662
        %s2665 = scalar_lea.vmem [#allocation4], 64
        %v2666 = vld [vmem:[%s2665] sm:$0xf]
        %v2667 = vld [vmem:[%s2665 + $0x4] sm:$0xf]
        %v2668 = vld [vmem:[%s2665 + $0x8] sm:$0xf]
        %v2669 = vld [vmem:[%s2665 + $0xc] sm:$0xf]
        %v2670 = vld [vmem:[%s2665 + $0x10] sm:$0xf]
        %v2671 = vld [vmem:[%s2665 + $0x14] sm:$0xf]
        %v2672 = vld [vmem:[%s2665 + $0x18] sm:$0xf]
        %v2673 = vld [vmem:[%s2665 + $0x1c] sm:$0xf]
        %v2674 = vld [vmem:[%s2665 + $0x20] sm:$0xf]
        %v2675 = vld [vmem:[%s2665 + $0x24] sm:$0xf]
        %v2676 = vld [vmem:[%s2665 + $0x28] sm:$0xf]
        %v2677 = vld [vmem:[%s2665 + $0x2c] sm:$0xf]
        %v2678 = vld [vmem:[%s2665 + $0x30] sm:$0xf]
        %v2679 = vld [vmem:[%s2665 + $0x34] sm:$0xf]
        %v2680 = vld [vmem:[%s2665 + $0x38] sm:$0xf]
        %v2681 = vld [vmem:[%s2665 + $0x3c] sm:$0xf]
        %s2682 = scalar_lea.vmem %s7, 1
        %v2683 = vld [vmem:[%s2682] sm:$0x1]
        %v2684 = vpack.c.bf16 %v2664, %v2664
        %v2686 = vlaneseq
        %v2687 = vshrl.u32 %v2686, 7
        %v2688 = vsub.s32 0, %v2687
        %v2689 = vrot.slane %v2683, %v2688
        %v2707 = vunpack.c.l.b16 %v2666
        %v2708 = vunpack.c.l.b16 %v2667
        %v2709 = vunpack.c.l.b16 %v2668
        %v2710 = vunpack.c.l.b16 %v2669
        %v2711 = vunpack.c.l.b16 %v2670
        %v2712 = vunpack.c.l.b16 %v2671
        %v2713 = vunpack.c.l.b16 %v2672
        %v2714 = vunpack.c.l.b16 %v2673
        %v2715 = vunpack.c.l.b16 %v2674
        %v2716 = vunpack.c.l.b16 %v2675
        %v2717 = vunpack.c.l.b16 %v2676
        %v2718 = vunpack.c.l.b16 %v2677
        %v2719 = vunpack.c.l.b16 %v2678
        %v2720 = vunpack.c.l.b16 %v2679
        %v2721 = vunpack.c.l.b16 %v2680
        %v2722 = vunpack.c.l.b16 %v2681
        %v2723 = vpack.c.b16 %v2708, %v2707
        %v2724 = vpack.c.b16 %v2710, %v2709
        %v2725 = vpack.c.b16 %v2712, %v2711
        %v2726 = vpack.c.b16 %v2714, %v2713
        %v2727 = vpack.c.b16 %v2716, %v2715
        %v2728 = vpack.c.b16 %v2718, %v2717
        %v2729 = vpack.c.b16 %v2720, %v2719
        %v2730 = vpack.c.b16 %v2722, %v2721
        %2739 = vmatprep.subr.bf16.mxu0 0
        %2740 = vmatpush1.bf16.msra.mxu0 %v2723
        %2741 = vmatprep.subr.bf16.mxu0 0
        %2742 = vmatpush1.bf16.msra.mxu0 %v2724
        %2743 = vmatprep.subr.bf16.mxu0 0
        %2744 = vmatpush1.bf16.msra.mxu0 %v2725
        %2745 = vmatprep.subr.bf16.mxu0 0
        %2746 = vmatpush1.bf16.msra.mxu0 %v2726
        %2747 = vmatprep.subr.bf16.mxu0 0
        %2748 = vmatpush1.bf16.msra.mxu0 %v2727
        %2749 = vmatprep.subr.bf16.mxu0 0
        %2750 = vmatpush1.bf16.msra.mxu0 %v2728
        %2751 = vmatprep.subr.bf16.mxu0 0
        %2752 = vmatpush1.bf16.msra.mxu0 %v2729
        %2753 = vmatprep.subr.bf16.mxu0 0
        %2754 = vmatpush1.bf16.msra.mxu0 %v2730
        %2755 = vmatprep.subr.bf16.mxu0 0
        %2756 = vmatpush1.bf16.msra.mxu0 0
        %2757 = vmatprep.subr.bf16.mxu0 0
        %2758 = vmatpush1.bf16.msra.mxu0 0
        %2759 = vmatprep.subr.bf16.mxu0 0
        %2760 = vmatpush1.bf16.msra.mxu0 0
        %2761 = vmatprep.subr.bf16.mxu0 0
        %2762 = vmatpush1.bf16.msra.mxu0 0
        %2763 = vmatprep.subr.bf16.mxu0 0
        %2764 = vmatpush1.bf16.msra.mxu0 0
        %2765 = vmatprep.subr.bf16.mxu0 0
        %2766 = vmatpush1.bf16.msra.mxu0 0
        %2767 = vmatprep.subr.bf16.mxu0 0
        %2768 = vmatpush1.bf16.msra.mxu0 0
        %2769 = vmatprep.subr.bf16.mxu0 0
        %2770 = vmatpush1.bf16.msra.mxu0 0
        %2771 = vmatprep.mubr.bf16.mxu0 0
        %2772 = vmatmul.mubr.bf16.gmra.mrb[0].mxu0 %v2684
        %v2773 = vpop.f32.mrb[0].mxu0
        %v2774 = vadd.f32 %v2689, %v2773
        %v2775 = vpop.f32.mrb[0].mxu0
        %v2776 = vpop.f32.mrb[0].mxu0
        %v2777 = vpop.f32.mrb[0].mxu0
        %2778 = vdwg.mxu0
        %v2779 = vmax.f32 %v2774, 0.0
        %s2780 = scalar_lea.vmem [#allocation6], 64
        %v2781 = vld [vmem:[%s2780] sm:$0xf]
        %v2782 = vld [vmem:[%s2780 + $0x4] sm:$0xf]
        %v2783 = vld [vmem:[%s2780 + $0x8] sm:$0xf]
        %v2784 = vld [vmem:[%s2780 + $0xc] sm:$0xf]
        %v2785 = vld [vmem:[%s2780 + $0x10] sm:$0xf]
        %v2786 = vld [vmem:[%s2780 + $0x14] sm:$0xf]
        %v2787 = vld [vmem:[%s2780 + $0x18] sm:$0xf]
        %v2788 = vld [vmem:[%s2780 + $0x1c] sm:$0xf]
        %v2789 = vld [vmem:[%s2780 + $0x20] sm:$0xf]
        %v2790 = vld [vmem:[%s2780 + $0x24] sm:$0xf]
        %v2791 = vld [vmem:[%s2780 + $0x28] sm:$0xf]
        %v2792 = vld [vmem:[%s2780 + $0x2c] sm:$0xf]
        %v2793 = vld [vmem:[%s2780 + $0x30] sm:$0xf]
        %v2794 = vld [vmem:[%s2780 + $0x34] sm:$0xf]
        %v2795 = vld [vmem:[%s2780 + $0x38] sm:$0xf]
        %v2796 = vld [vmem:[%s2780 + $0x3c] sm:$0xf]
        %s2797 = scalar_lea.vmem %s9, 1
        %v2798 = vld [vmem:[%s2797] sm:$0x1]
        %v2799 = vpack.c.bf16 %v2779, %v2779
        %v2801 = vlaneseq
        %v2802 = vshrl.u32 %v2801, 7
        %v2803 = vsub.s32 0, %v2802
        %v2804 = vrot.slane %v2798, %v2803
        %v2822 = vunpack.c.l.b16 %v2781
        %v2823 = vunpack.c.l.b16 %v2782
        %v2824 = vunpack.c.l.b16 %v2783
        %v2825 = vunpack.c.l.b16 %v2784
        %v2826 = vunpack.c.l.b16 %v2785
        %v2827 = vunpack.c.l.b16 %v2786
        %v2828 = vunpack.c.l.b16 %v2787
        %v2829 = vunpack.c.l.b16 %v2788
        %v2830 = vunpack.c.l.b16 %v2789
        %v2831 = vunpack.c.l.b16 %v2790
        %v2832 = vunpack.c.l.b16 %v2791
        %v2833 = vunpack.c.l.b16 %v2792
        %v2834 = vunpack.c.l.b16 %v2793
        %v2835 = vunpack.c.l.b16 %v2794
        %v2836 = vunpack.c.l.b16 %v2795
        %v2837 = vunpack.c.l.b16 %v2796
        %v2838 = vpack.c.b16 %v2823, %v2822
        %v2839 = vpack.c.b16 %v2825, %v2824
        %v2840 = vpack.c.b16 %v2827, %v2826
        %v2841 = vpack.c.b16 %v2829, %v2828
        %v2842 = vpack.c.b16 %v2831, %v2830
        %v2843 = vpack.c.b16 %v2833, %v2832
        %v2844 = vpack.c.b16 %v2835, %v2834
        %v2845 = vpack.c.b16 %v2837, %v2836
        %2854 = vmatprep.subr.bf16.mxu0 0
        %2855 = vmatpush1.bf16.msra.mxu0 %v2838
        %2856 = vmatprep.subr.bf16.mxu0 0
        %2857 = vmatpush1.bf16.msra.mxu0 %v2839
        %2858 = vmatprep.subr.bf16.mxu0 0
        %2859 = vmatpush1.bf16.msra.mxu0 %v2840
        %2860 = vmatprep.subr.bf16.mxu0 0
        %2861 = vmatpush1.bf16.msra.mxu0 %v2841
        %2862 = vmatprep.subr.bf16.mxu0 0
        %2863 = vmatpush1.bf16.msra.mxu0 %v2842
        %2864 = vmatprep.subr.bf16.mxu0 0
        %2865 = vmatpush1.bf16.msra.mxu0 %v2843
        %2866 = vmatprep.subr.bf16.mxu0 0
        %2867 = vmatpush1.bf16.msra.mxu0 %v2844
        %2868 = vmatprep.subr.bf16.mxu0 0
        %2869 = vmatpush1.bf16.msra.mxu0 %v2845
        %2870 = vmatprep.subr.bf16.mxu0 0
        %2871 = vmatpush1.bf16.msra.mxu0 0
        %2872 = vmatprep.subr.bf16.mxu0 0
        %2873 = vmatpush1.bf16.msra.mxu0 0
        %2874 = vmatprep.subr.bf16.mxu0 0
        %2875 = vmatpush1.bf16.msra.mxu0 0
        %2876 = vmatprep.subr.bf16.mxu0 0
        %2877 = vmatpush1.bf16.msra.mxu0 0
        %2878 = vmatprep.subr.bf16.mxu0 0
        %2879 = vmatpush1.bf16.msra.mxu0 0
        %2880 = vmatprep.subr.bf16.mxu0 0
        %2881 = vmatpush1.bf16.msra.mxu0 0
        %2882 = vmatprep.subr.bf16.mxu0 0
        %2883 = vmatpush1.bf16.msra.mxu0 0
        %2884 = vmatprep.subr.bf16.mxu0 0
        %2885 = vmatpush1.bf16.msra.mxu0 0
        %2886 = vmatprep.mubr.bf16.mxu0 0
        %2887 = vmatmul.mubr.bf16.gmra.mrb[0].mxu0 %v2799
        %v2888 = vpop.f32.mrb[0].mxu0
        %v2889 = vadd.f32 %v2804, %v2888
        %v2890 = vpop.f32.mrb[0].mxu0
        %v2891 = vpop.f32.mrb[0].mxu0
        %v2892 = vpop.f32.mrb[0].mxu0
        %2893 = vdwg.mxu0
        %v2894 = vadd.f32 %v2664, %v2889
        %2895 = vadd.xlane.f32.xlu0 %v2894
        %v2896 = vpop.xlane.xlu0 %2895
        %v2897 = vmul.f32 %v2896, 0.03125
        %v2898 = vmul.f32 %v2894, %v2894
        %2899 = vadd.xlane.f32.xlu0 %v2898
        %v2900 = vpop.xlane.xlu0 %2899
        %v2901 = vmul.f32 %v2900, 0.03125
        %v2902 = vmul.f32 %v2897, %v2897
        %v2903 = vsub.f32 %v2901, %v2902
        %v2904 = vsub.f32 %v2894, %v2897
        %v2905 = vadd.f32 %v2903, 1e-05
        %v2906 = vrsqrt.pop %v2905
        %v2907 = vmul.f32 %v2904, %v2906
        %v2909 = vlaneseq
        %v2910 = vshrl.u32 %v2909, 7
        %v2911 = vsub.s32 0, %v2910
        %v2912 = vrot.slane %v1698, %v2911
        %v2914 = vmul.f32 %v2907, %v2912
        %v2916 = vlaneseq
        %v2917 = vshrl.u32 %v2916, 7
        %v2918 = vsub.s32 0, %v2917
        %v2919 = vrot.slane %v1699, %v2918
        %v2921 = vadd.f32 %v2914, %v2919
        %v2922 = vld [vmem:[%s11] sm:$0x1]
        %v2923 = vld [vmem:[%s11 + $0x1] sm:$0x1]
        %2924 = vadd.xlane.f32.xlu0 %v2921
        %v2925 = vpop.xlane.xlu0 %2924
        %v2926 = vmul.f32 %v2925, 0.03125
        %v2927 = vmul.f32 %v2921, %v2921
        %2928 = vadd.xlane.f32.xlu0 %v2927
        %v2929 = vpop.xlane.xlu0 %2928
        %v2930 = vmul.f32 %v2929, 0.03125
        %v2931 = vmul.f32 %v2926, %v2926
        %v2932 = vsub.f32 %v2930, %v2931
        %v2933 = vsub.f32 %v2921, %v2926
        %v2934 = vadd.f32 %v2932, 1e-05
        %v2935 = vrsqrt.pop %v2934
        %v2936 = vmul.f32 %v2933, %v2935
        %v2938 = vlaneseq
        %v2939 = vshrl.u32 %v2938, 7
        %v2940 = vsub.s32 0, %v2939
        %v2941 = vrot.slane %v2922, %v2940
        %v2943 = vmul.f32 %v2936, %v2941
        %v2945 = vlaneseq
        %v2946 = vshrl.u32 %v2945, 7
        %v2947 = vsub.s32 0, %v2946
        %v2948 = vrot.slane %v2923, %v2947
        %v2950 = vadd.f32 %v2943, %v2948
        %2951 = vst [vmem:[%s466] sm:$0xff] %v2950
        %p2952 = scmp.lt.s32.totalorder %s25, 1
        %s2953 = scalar_select %p2952, %s25, 1
        %s2954 = smul.addr %s2953, 8
        %s2955 = scalar_lea.vmem %s12, %s2954
        // Predicated region
        $region81: #{transformer_forward.2} parent=67 // pred_check
          %p2956 = pneg %p305
        $region82: #{transformer_forward.2} parent=67 // pred_check_branch
          %2958 = sbr.rel (%p2956) target = $region84
        $region83: #{transformer_forward.2} parent=67 // pred_region
          _
        $region84: #{transformer_forward.2} parent=67 // pred_fallthru
          _
      $region68: #{transformer_forward.2} parent=5 // pred_fallthru
        _
      %p2959 = scmp.le.s32.totalorder 2, %s20
      // Predicated region
      $region85: #{transformer_forward.2} parent=5 // pred_check
        %p2960 = pneg %p2959
      $region86: #{transformer_forward.2} parent=5 // pred_check_branch
        %2962 = sbr.rel (%p2960) target = $region88
      $region87: #{transformer_forward.2} parent=5 // pred_region
        %s2963 = ssub.s32 %s20, 2
        // Predicated region
        $region89: #{transformer_forward.2} parent=87 // pred_check
          %p2964 = pneg %p311
        $region90: #{transformer_forward.2} parent=87 // pred_check_branch
          %2966 = sbr.rel (%p2964) target = $region92
        $region91: #{transformer_forward.2} parent=87 // pred_region
          %p2967 = scmp.lt.s32.totalorder %s26, 1
          %s2968 = scalar_select %p2967, %s26, 1
          %s2969 = smul.addr %s2968, 8
          %s2970 = scalar_lea.vmem %s12, %s2969
        $region92: #{transformer_forward.2} parent=87 // pred_fallthru
          _
      $region88: #{transformer_forward.2} parent=5 // pred_fallthru
        _
    $region6: #{transformer_forward.2} parent=1 // loop_footer
      %s24 = sadd.s32 1, %s20
    $region7: #{transformer_forward.2} parent=1 // loop_footer_branch
      %19 = sbr.rel target = $region3
    $region8: #{transformer_forward.2} parent=1 // loop_exit
      _
    %2971 = vsyncpa [#allocation3], 1
    %s2972 = scalar_lea.sflag [#allocation3], 1
    %2973 = vsyncpa %s2972, 1
    %2974 = vsyncpa [#allocation5], 1

// kernel: transformer_forward.3
$region0: #{transformer_forward.3}
  #allocation0 [shape = 'u32[]', space=smem, size = 0x4, offset = 0x4, fixed_abs, tag = 'smem constant byte address 0x4 - core index']
  #allocation1 [shape = 'u32[144,128]{1,0:T(1,128)}', space=vmem, size = 0x12000, scoped, tag = 'internal scratch']
  %s0 = inlined_call_operand.vmem [shape: f32[2,8,128], index: 0, kind: input, shape index: {}]
  %s1 = inlined_call_operand.vmem [shape: f32[2,8,128], index: 1, kind: input, shape index: {}]
  %s2 = inlined_call_operand.vmem [shape: f32[8,8], index: 2, kind: input, shape index: {}]
  %s3 = inlined_call_operand.vmem [shape: f32[2,1,8], index: 3, kind: input, shape index: {}]
  %s4 = inlined_call_operand.vmem [shape: f32[2,1,8], index: 4, kind: input, shape index: {}]
  %s5 = inlined_call_operand.vmem [shape: bf16[2,128,768], index: 5, kind: input, shape index: {}]
  %s6 = inlined_call_operand.vmem [shape: f32[2,1,768], index: 6, kind: input, shape index: {}]
  %s7 = inlined_call_operand.vmem [shape: bf16[2,256,128], index: 7, kind: input, shape index: {}]
  %s8 = inlined_call_operand.hbm [shape: f32[2,1,128], index: 8, kind: input, shape index: {}]
  %s9 = inlined_call_operand.hbm [shape: bf16[2,128,256], index: 9, kind: input, shape index: {}]
  %s10 = inlined_call_operand.hbm [shape: f32[2,1,256], index: 10, kind: input, shape index: {}]
  %s11 = inlined_call_operand.vmem [shape: bf16[2,128,512], index: 11, kind: input, shape index: {}]
  %s12 = inlined_call_operand.hbm [shape: f32[2,1,512], index: 12, kind: input, shape index: {}]
  %s13 = inlined_call_operand.hbm [shape: bf16[2,256,128], index: 13, kind: input, shape index: {}]
  %s14 = inlined_call_operand.hbm [shape: f32[2,1,128], index: 14, kind: input, shape index: {}]
  %s15 = inlined_call_operand.hbm [shape: bf16[2,128,128], index: 15, kind: input, shape index: {}]
  %s16 = inlined_call_operand.hbm [shape: f32[2,1,128], index: 16, kind: input, shape index: {}]
  %s17 = inlined_call_operand.hbm [shape: bf16[2,128,128], index: 17, kind: input, shape index: {}]
  %s18 = inlined_call_operand.hbm [shape: f32[2,1,128], index: 18, kind: input, shape index: {}]
  %s19 = inlined_call_operand.vmem [shape: f32[2,6,1,128], index: 19, kind: input, shape index: {}]
  %s20 = inlined_call_operand.hbm [shape: f32[2,1,128], index: 20, kind: input, shape index: {}]
  %s21 = inlined_call_operand.hbm [shape: bf16[128,128], index: 21, kind: input, shape index: {}]
  %s22 = inlined_call_operand.hbm [shape: f32[1,128], index: 22, kind: input, shape index: {}]
  %s23 = inlined_call_operand.hbm [shape: f32[2,8,128], index: 23, kind: output, shape index: {}]
  %s24 = sld [smem:[#allocation0]]
  $region177: #{transformer_forward.3} parent=0
    _
  %s26 = ssub.s32 1, %s24
  %s27 = scalar_select 0, %s26, %s24
  $region1: #{transformer_forward.3} parent=0
    #allocation2 [shape = 'u8[1024]{0}', space=vmem, size = 0x400, scoped, tag = 'input window, operand 8, single buffered']
    #allocation3 [shape = 's32[2]{0}', space=sflag, size = 0x8, scoped, tag = 'scoped memory for transformer_forward.3']
    #allocation4 [shape = 's32[2]{0}', space=sflag, size = 0x8, scoped, tag = 'scoped memory for transformer_forward.3']
    #allocation5 [shape = 'u8[131072]{0}', space=vmem, size = 0x20000, scoped, tag = 'input window, operand 9, single buffered']
    #allocation6 [shape = 's32[1]{0}', space=sflag, size = 0x4, scoped, tag = 'scoped memory for transformer_forward.3']
    #allocation7 [shape = 'u8[2048]{0}', space=vmem, size = 0x800, scoped, tag = 'input window, operand 10, single buffered']
    #allocation8 [shape = 'u8[4096]{0}', space=vmem, size = 0x1000, scoped, tag = 'input window, operand 12, single buffered']
    #allocation9 [shape = 's32[1]{0}', space=sflag, size = 0x4, scoped, tag = 'scoped memory for transformer_forward.3']
    #allocation10 [shape = 'u8[131072]{0}', space=vmem, size = 0x20000, scoped, tag = 'input window, operand 13, single buffered']
    #allocation11 [shape = 'u8[1024]{0}', space=vmem, size = 0x400, scoped, tag = 'input window, operand 14, single buffered']
    #allocation12 [shape = 's32[1]{0}', space=sflag, size = 0x4, scoped, tag = 'scoped memory for transformer_forward.3']
    #allocation13 [shape = 'u8[65536]{0}', space=vmem, size = 0x10000, scoped, tag = 'input window, operand 15, single buffered']
    #allocation14 [shape = 'u8[1024]{0}', space=vmem, size = 0x400, scoped, tag = 'input window, operand 16, single buffered']
    #allocation15 [shape = 's32[1]{0}', space=sflag, size = 0x4, scoped, tag = 'scoped memory for transformer_forward.3']
    #allocation16 [shape = 'u8[65536]{0}', space=vmem, size = 0x10000, scoped, tag = 'input window, operand 17, single buffered']
    #allocation17 [shape = 'u8[1024]{0}', space=vmem, size = 0x400, scoped, tag = 'input window, operand 18, single buffered']
    #allocation18 [shape = 's32[1]{0}', space=sflag, size = 0x4, scoped, tag = 'scoped memory for transformer_forward.3']
    #allocation19 [shape = 'u8[1024]{0}', space=vmem, size = 0x400, scoped, tag = 'input window, operand 20, single buffered']
    #allocation20 [shape = 'u8[32768]{0}', space=vmem, size = 0x8000, scoped, tag = 'input window, operand 21, single buffered']
    #allocation21 [shape = 's32[1]{0}', space=sflag, size = 0x4, scoped, tag = 'scoped memory for transformer_forward.3']
    #allocation22 [shape = 'u8[512]{0}', space=vmem, size = 0x400, scoped, tag = 'input window, operand 22, single buffered']
    #allocation23 [shape = 'u8[8192]{0}', space=vmem, size = 0x2000, scoped, tag = 'output window, operand 0']
    %28 = vsyncpa [#allocation3], 0
    %29 = vsyncpa [#allocation6], 0
    %30 = vsyncpa [#allocation9], 0
    %31 = vsyncpa [#allocation12], 0
    %32 = vsyncpa [#allocation15], 0
    %33 = vsyncpa [#allocation18], 0
    %34 = vsyncpa [#allocation21], 0
    %35 = vsyncpa [#allocation4], 0
    %s36 = scalar_lea.sflag [#allocation4], 1
    %37 = vsyncpa %s36, 0
    loop: start=0, step=1, limit=4
    $region2: #{transformer_forward.3} parent=1 // loop_pre_header
      _
    $region3: #{transformer_forward.3} parent=1 // loop_header
      %s39 = sphi 0, %s43
      %p40 = scmp.ge.s32.totalorder %s39, 4
      %s49 = sphi 0, %s51
      %s52 = sphi 0, %s49
      %s53 = sphi 0, %s52
      %s69 = sphi 0, %s53
      %s75 = sphi 0, %s77
      %s78 = sphi 0, %s75
      %s79 = sphi 0, %s78
      %s95 = sphi 0, %s79
      %s99 = sphi 0, %s99
      %s101 = sphi 0, %s99
      %s102 = sphi 0, %s101
      %s116 = sphi 0, %s102
      %s122 = sphi 0, %s124
      %s125 = sphi 0, %s122
      %s126 = sphi 0, %s125
      %s142 = sphi 0, %s126
      %s148 = sphi 0, %s150
      %s151 = sphi 0, %s148
      %s152 = sphi 0, %s151
      %s168 = sphi 0, %s152
      %s172 = sphi 0, %s172
      %s174 = sphi 0, %s172
      %s175 = sphi 0, %s174
      %s189 = sphi 0, %s175
      %s193 = sphi 0, %s193
      %s195 = sphi 0, %s193
      %s196 = sphi 0, %s195
      %s210 = sphi 0, %s196
      %s214 = sphi 0, %s214
      %s216 = sphi 0, %s214
      %s217 = sphi 0, %s216
      %s231 = sphi 0, %s217
      %s235 = sphi 0, %s235
      %s237 = sphi 0, %s235
      %s238 = sphi 0, %s237
      %s252 = sphi 0, %s238
      %s256 = sphi 0, %s256
      %s258 = sphi 0, %s256
      %s259 = sphi 0, %s258
      %s273 = sphi 0, %s259
      %s277 = sphi 0, %s277
      %s279 = sphi 0, %s277
      %s280 = sphi 0, %s279
      %s294 = sphi 0, %s280
      %s298 = sphi 0, %s298
      %s300 = sphi 0, %s298
      %s301 = sphi 0, %s300
      %s315 = sphi 0, %s301
      %s319 = sphi 0, %s319
      %s321 = sphi 0, %s319
      %s322 = sphi 0, %s321
      %s336 = sphi 0, %s322
      %s340 = sphi 0, %s340
      %s342 = sphi 0, %s340
      %s343 = sphi 0, %s342
      %s357 = sphi 0, %s343
      %s361 = sphi 0, %s361
      %s363 = sphi 0, %s361
      %s364 = sphi 0, %s363
      %s378 = sphi 0, %s364
      %s382 = sphi 0, %s382
      %s384 = sphi 0, %s382
      %s385 = sphi 0, %s384
      %s399 = sphi 0, %s385
      %s403 = sphi 0, %s403
      %s405 = sphi 0, %s403
      %s406 = sphi 0, %s405
      %s420 = sphi 0, %s406
      %s424 = sphi 0, %s424
      %s426 = sphi 0, %s424
      %s427 = sphi 0, %s426
      %s441 = sphi 0, %s427
      %s445 = sphi 0, %s445
      %s447 = sphi 0, %s445
      %s448 = sphi 0, %s447
      %s462 = sphi 0, %s448
      %s466 = sphi 0, %s466
      %s468 = sphi 0, %s466
      %s469 = sphi 0, %s468
      %s483 = sphi 0, %s469
      %s487 = sphi 0, %s487
      %s489 = sphi 0, %s487
      %s490 = sphi 0, %s489
      %s504 = sphi 0, %s490
      %s508 = sphi 0, %s508
      %s510 = sphi 0, %s508
      %s511 = sphi 0, %s510
      %s525 = sphi 0, %s511
      %s529 = sphi 0, %s529
      %s531 = sphi 0, %s529
      %s532 = sphi 0, %s531
      %s546 = sphi 0, %s532
      %s552 = sphi 0, %s554
      %s555 = sphi 0, %s552
      %s556 = sphi 0, %s555
      %s572 = sphi 0, %s556
    $region4: #{transformer_forward.3} parent=1 // loop_header_branch
      %42 = sbr.rel (%p40) target = $region8
    $region5: #{transformer_forward.3} parent=1 // loop_body
      %s44 = ssub.s32 %s39, 1
      %s45 = ssub.s32 %s39, 2
      %s46 = sadd.s32 %s39, 1
      %s47 = ssub.s32 %s39, %s46
      %p48 = scmp.eq.s32.totalorder %s47, 0
      %s50 = sadd.s32 %s49, 1
      %s51 = scalar_select %p48, %s49, %s50
      %p54 = pneg %p48
      %p55 = scmp.eq.s32.totalorder %s39, 1
      %p56 = por %p54, %p55
      %p57 = scmp.ne.s32.totalorder %s49, %s52
      %p58 = scmp.eq.s32.totalorder %s39, 0
      %p59 = por %p57, %p58
      %p60 = scmp.ne.s32.totalorder %s49, %s52
      %p61 = scmp.eq.s32.totalorder %s44, 1
      %p62 = por %p60, %p61
      %p63 = scmp.ne.s32.totalorder %s52, %s53
      %p64 = scmp.eq.s32.totalorder %s44, 0
      %p65 = por %p63, %p64
      %p66 = scmp.ne.s32.totalorder %s52, %s53
      %p67 = scmp.eq.s32.totalorder %s45, 1
      %p68 = por %p66, %p67
      %p70 = scmp.ne.s32.totalorder %s53, %s69
      %p71 = scmp.eq.s32.totalorder %s45, 0
      %p72 = por %p70, %p71
      %s73 = ssub.s32 %s39, %s46
      %p74 = scmp.eq.s32.totalorder %s73, 0
      %s76 = sadd.s32 %s75, 1
      %s77 = scalar_select %p74, %s75, %s76
      %p80 = pneg %p74
      %p81 = scmp.eq.s32.totalorder %s39, 1
      %p82 = por %p80, %p81
      %p83 = scmp.ne.s32.totalorder %s75, %s78
      %p84 = scmp.eq.s32.totalorder %s39, 0
      %p85 = por %p83, %p84
      %p86 = scmp.ne.s32.totalorder %s75, %s78
      %p87 = scmp.eq.s32.totalorder %s44, 1
      %p88 = por %p86, %p87
      %p89 = scmp.ne.s32.totalorder %s78, %s79
      %p90 = scmp.eq.s32.totalorder %s44, 0
      %p91 = por %p89, %p90
      %p92 = scmp.ne.s32.totalorder %s78, %s79
      %p93 = scmp.eq.s32.totalorder %s45, 1
      %p94 = por %p92, %p93
      %p96 = scmp.ne.s32.totalorder %s79, %s95
      %p97 = scmp.eq.s32.totalorder %s45, 0
      %p98 = por %p96, %p97
      %s100 = sadd.s32 %s99, 1
      %p103 = scmp.eq.s32.totalorder %s39, 1
      %p104 = scmp.ne.s32.totalorder %s99, %s101
      %p105 = scmp.eq.s32.totalorder %s39, 0
      %p106 = por %p104, %p105
      %p107 = scmp.ne.s32.totalorder %s99, %s101
      %p108 = scmp.eq.s32.totalorder %s44, 1
      %p109 = por %p107, %p108
      %p110 = scmp.ne.s32.totalorder %s101, %s102
      %p111 = scmp.eq.s32.totalorder %s44, 0
      %p112 = por %p110, %p111
      %p113 = scmp.ne.s32.totalorder %s101, %s102
      %p114 = scmp.eq.s32.totalorder %s45, 1
      %p115 = por %p113, %p114
      %p117 = scmp.ne.s32.totalorder %s102, %s116
      %p118 = scmp.eq.s32.totalorder %s45, 0
      %p119 = por %p117, %p118
      %s120 = ssub.s32 %s39, %s46
      %p121 = scmp.eq.s32.totalorder %s120, 0
      %s123 = sadd.s32 %s122, 1
      %s124 = scalar_select %p121, %s122, %s123
      %p127 = pneg %p121
      %p128 = scmp.eq.s32.totalorder %s39, 1
      %p129 = por %p127, %p128
      %p130 = scmp.ne.s32.totalorder %s122, %s125
      %p131 = scmp.eq.s32.totalorder %s39, 0
      %p132 = por %p130, %p131
      %p133 = scmp.ne.s32.totalorder %s122, %s125
      %p134 = scmp.eq.s32.totalorder %s44, 1
      %p135 = por %p133, %p134
      %p136 = scmp.ne.s32.totalorder %s125, %s126
      %p137 = scmp.eq.s32.totalorder %s44, 0
      %p138 = por %p136, %p137
      %p139 = scmp.ne.s32.totalorder %s125, %s126
      %p140 = scmp.eq.s32.totalorder %s45, 1
      %p141 = por %p139, %p140
      %p143 = scmp.ne.s32.totalorder %s126, %s142
      %p144 = scmp.eq.s32.totalorder %s45, 0
      %p145 = por %p143, %p144
      %s146 = ssub.s32 %s39, %s46
      %p147 = scmp.eq.s32.totalorder %s146, 0
      %s149 = sadd.s32 %s148, 1
      %s150 = scalar_select %p147, %s148, %s149
      %p153 = pneg %p147
      %p154 = scmp.eq.s32.totalorder %s39, 1
      %p155 = por %p153, %p154
      %p156 = scmp.ne.s32.totalorder %s148, %s151
      %p157 = scmp.eq.s32.totalorder %s39, 0
      %p158 = por %p156, %p157
      %p159 = scmp.ne.s32.totalorder %s148, %s151
      %p160 = scmp.eq.s32.totalorder %s44, 1
      %p161 = por %p159, %p160
      %p162 = scmp.ne.s32.totalorder %s151, %s152
      %p163 = scmp.eq.s32.totalorder %s44, 0
      %p164 = por %p162, %p163
      %p165 = scmp.ne.s32.totalorder %s151, %s152
      %p166 = scmp.eq.s32.totalorder %s45, 1
      %p167 = por %p165, %p166
      %p169 = scmp.ne.s32.totalorder %s152, %s168
      %p170 = scmp.eq.s32.totalorder %s45, 0
      %p171 = por %p169, %p170
      %s173 = sadd.s32 %s172, 1
      %p176 = scmp.eq.s32.totalorder %s39, 1
      %p177 = scmp.ne.s32.totalorder %s172, %s174
      %p178 = scmp.eq.s32.totalorder %s39, 0
      %p179 = por %p177, %p178
      %p180 = scmp.ne.s32.totalorder %s172, %s174
      %p181 = scmp.eq.s32.totalorder %s44, 1
      %p182 = por %p180, %p181
      %p183 = scmp.ne.s32.totalorder %s174, %s175
      %p184 = scmp.eq.s32.totalorder %s44, 0
      %p185 = por %p183, %p184
      %p186 = scmp.ne.s32.totalorder %s174, %s175
      %p187 = scmp.eq.s32.totalorder %s45, 1
      %p188 = por %p186, %p187
      %p190 = scmp.ne.s32.totalorder %s175, %s189
      %p191 = scmp.eq.s32.totalorder %s45, 0
      %p192 = por %p190, %p191
      %s194 = sadd.s32 %s193, 1
      %p197 = scmp.eq.s32.totalorder %s39, 1
      %p198 = scmp.ne.s32.totalorder %s193, %s195
      %p199 = scmp.eq.s32.totalorder %s39, 0
      %p200 = por %p198, %p199
      %p201 = scmp.ne.s32.totalorder %s193, %s195
      %p202 = scmp.eq.s32.totalorder %s44, 1
      %p203 = por %p201, %p202
      %p204 = scmp.ne.s32.totalorder %s195, %s196
      %p205 = scmp.eq.s32.totalorder %s44, 0
      %p206 = por %p204, %p205
      %p207 = scmp.ne.s32.totalorder %s195, %s196
      %p208 = scmp.eq.s32.totalorder %s45, 1
      %p209 = por %p207, %p208
      %p211 = scmp.ne.s32.totalorder %s196, %s210
      %p212 = scmp.eq.s32.totalorder %s45, 0
      %p213 = por %p211, %p212
      %s215 = sadd.s32 %s214, 1
      %p218 = scmp.eq.s32.totalorder %s39, 1
      %p219 = scmp.ne.s32.totalorder %s214, %s216
      %p220 = scmp.eq.s32.totalorder %s39, 0
      %p221 = por %p219, %p220
      %p222 = scmp.ne.s32.totalorder %s214, %s216
      %p223 = scmp.eq.s32.totalorder %s44, 1
      %p224 = por %p222, %p223
      %p225 = scmp.ne.s32.totalorder %s216, %s217
      %p226 = scmp.eq.s32.totalorder %s44, 0
      %p227 = por %p225, %p226
      %p228 = scmp.ne.s32.totalorder %s216, %s217
      %p229 = scmp.eq.s32.totalorder %s45, 1
      %p230 = por %p228, %p229
      %p232 = scmp.ne.s32.totalorder %s217, %s231
      %p233 = scmp.eq.s32.totalorder %s45, 0
      %p234 = por %p232, %p233
      %s236 = sadd.s32 %s235, 1
      %p239 = scmp.eq.s32.totalorder %s39, 1
      %p240 = scmp.ne.s32.totalorder %s235, %s237
      %p241 = scmp.eq.s32.totalorder %s39, 0
      %p242 = por %p240, %p241
      %p243 = scmp.ne.s32.totalorder %s235, %s237
      %p244 = scmp.eq.s32.totalorder %s44, 1
      %p245 = por %p243, %p244
      %p246 = scmp.ne.s32.totalorder %s237, %s238
      %p247 = scmp.eq.s32.totalorder %s44, 0
      %p248 = por %p246, %p247
      %p249 = scmp.ne.s32.totalorder %s237, %s238
      %p250 = scmp.eq.s32.totalorder %s45, 1
      %p251 = por %p249, %p250
      %p253 = scmp.ne.s32.totalorder %s238, %s252
      %p254 = scmp.eq.s32.totalorder %s45, 0
      %p255 = por %p253, %p254
      %s257 = sadd.s32 %s256, 1
      %p260 = scmp.eq.s32.totalorder %s39, 1
      %p261 = scmp.ne.s32.totalorder %s256, %s258
      %p262 = scmp.eq.s32.totalorder %s39, 0
      %p263 = por %p261, %p262
      %p264 = scmp.ne.s32.totalorder %s256, %s258
      %p265 = scmp.eq.s32.totalorder %s44, 1
      %p266 = por %p264, %p265
      %p267 = scmp.ne.s32.totalorder %s258, %s259
      %p268 = scmp.eq.s32.totalorder %s44, 0
      %p269 = por %p267, %p268
      %p270 = scmp.ne.s32.totalorder %s258, %s259
      %p271 = scmp.eq.s32.totalorder %s45, 1
      %p272 = por %p270, %p271
      %p274 = scmp.ne.s32.totalorder %s259, %s273
      %p275 = scmp.eq.s32.totalorder %s45, 0
      %p276 = por %p274, %p275
      %s278 = sadd.s32 %s277, 1
      %p281 = scmp.eq.s32.totalorder %s39, 1
      %p282 = scmp.ne.s32.totalorder %s277, %s279
      %p283 = scmp.eq.s32.totalorder %s39, 0
      %p284 = por %p282, %p283
      %p285 = scmp.ne.s32.totalorder %s277, %s279
      %p286 = scmp.eq.s32.totalorder %s44, 1
      %p287 = por %p285, %p286
      %p288 = scmp.ne.s32.totalorder %s279, %s280
      %p289 = scmp.eq.s32.totalorder %s44, 0
      %p290 = por %p288, %p289
      %p291 = scmp.ne.s32.totalorder %s279, %s280
      %p292 = scmp.eq.s32.totalorder %s45, 1
      %p293 = por %p291, %p292
      %p295 = scmp.ne.s32.totalorder %s280, %s294
      %p296 = scmp.eq.s32.totalorder %s45, 0
      %p297 = por %p295, %p296
      %s299 = sadd.s32 %s298, 1
      %p302 = scmp.eq.s32.totalorder %s39, 1
      %p303 = scmp.ne.s32.totalorder %s298, %s300
      %p304 = scmp.eq.s32.totalorder %s39, 0
      %p305 = por %p303, %p304
      %p306 = scmp.ne.s32.totalorder %s298, %s300
      %p307 = scmp.eq.s32.totalorder %s44, 1
      %p308 = por %p306, %p307
      %p309 = scmp.ne.s32.totalorder %s300, %s301
      %p310 = scmp.eq.s32.totalorder %s44, 0
      %p311 = por %p309, %p310
      %p312 = scmp.ne.s32.totalorder %s300, %s301
      %p313 = scmp.eq.s32.totalorder %s45, 1
      %p314 = por %p312, %p313
      %p316 = scmp.ne.s32.totalorder %s301, %s315
      %p317 = scmp.eq.s32.totalorder %s45, 0
      %p318 = por %p316, %p317
      %s320 = sadd.s32 %s319, 1
      %p323 = scmp.eq.s32.totalorder %s39, 1
      %p324 = scmp.ne.s32.totalorder %s319, %s321
      %p325 = scmp.eq.s32.totalorder %s39, 0
      %p326 = por %p324, %p325
      %p327 = scmp.ne.s32.totalorder %s319, %s321
      %p328 = scmp.eq.s32.totalorder %s44, 1
      %p329 = por %p327, %p328
      %p330 = scmp.ne.s32.totalorder %s321, %s322
      %p331 = scmp.eq.s32.totalorder %s44, 0
      %p332 = por %p330, %p331
      %p333 = scmp.ne.s32.totalorder %s321, %s322
      %p334 = scmp.eq.s32.totalorder %s45, 1
      %p335 = por %p333, %p334
      %p337 = scmp.ne.s32.totalorder %s322, %s336
      %p338 = scmp.eq.s32.totalorder %s45, 0
      %p339 = por %p337, %p338
      %s341 = sadd.s32 %s340, 1
      %p344 = scmp.eq.s32.totalorder %s39, 1
      %p345 = scmp.ne.s32.totalorder %s340, %s342
      %p346 = scmp.eq.s32.totalorder %s39, 0
      %p347 = por %p345, %p346
      %p348 = scmp.ne.s32.totalorder %s340, %s342
      %p349 = scmp.eq.s32.totalorder %s44, 1
      %p350 = por %p348, %p349
      %p351 = scmp.ne.s32.totalorder %s342, %s343
      %p352 = scmp.eq.s32.totalorder %s44, 0
      %p353 = por %p351, %p352
      %p354 = scmp.ne.s32.totalorder %s342, %s343
      %p355 = scmp.eq.s32.totalorder %s45, 1
      %p356 = por %p354, %p355
      %p358 = scmp.ne.s32.totalorder %s343, %s357
      %p359 = scmp.eq.s32.totalorder %s45, 0
      %p360 = por %p358, %p359
      %s362 = sadd.s32 %s361, 1
      %p365 = scmp.eq.s32.totalorder %s39, 1
      %p366 = scmp.ne.s32.totalorder %s361, %s363
      %p367 = scmp.eq.s32.totalorder %s39, 0
      %p368 = por %p366, %p367
      %p369 = scmp.ne.s32.totalorder %s361, %s363
      %p370 = scmp.eq.s32.totalorder %s44, 1
      %p371 = por %p369, %p370
      %p372 = scmp.ne.s32.totalorder %s363, %s364
      %p373 = scmp.eq.s32.totalorder %s44, 0
      %p374 = por %p372, %p373
      %p375 = scmp.ne.s32.totalorder %s363, %s364
      %p376 = scmp.eq.s32.totalorder %s45, 1
      %p377 = por %p375, %p376
      %p379 = scmp.ne.s32.totalorder %s364, %s378
      %p380 = scmp.eq.s32.totalorder %s45, 0
      %p381 = por %p379, %p380
      %s383 = sadd.s32 %s382, 1
      %p386 = scmp.eq.s32.totalorder %s39, 1
      %p387 = scmp.ne.s32.totalorder %s382, %s384
      %p388 = scmp.eq.s32.totalorder %s39, 0
      %p389 = por %p387, %p388
      %p390 = scmp.ne.s32.totalorder %s382, %s384
      %p391 = scmp.eq.s32.totalorder %s44, 1
      %p392 = por %p390, %p391
      %p393 = scmp.ne.s32.totalorder %s384, %s385
      %p394 = scmp.eq.s32.totalorder %s44, 0
      %p395 = por %p393, %p394
      %p396 = scmp.ne.s32.totalorder %s384, %s385
      %p397 = scmp.eq.s32.totalorder %s45, 1
      %p398 = por %p396, %p397
      %p400 = scmp.ne.s32.totalorder %s385, %s399
      %p401 = scmp.eq.s32.totalorder %s45, 0
      %p402 = por %p400, %p401
      %s404 = sadd.s32 %s403, 1
      %p407 = scmp.eq.s32.totalorder %s39, 1
      %p408 = scmp.ne.s32.totalorder %s403, %s405
      %p409 = scmp.eq.s32.totalorder %s39, 0
      %p410 = por %p408, %p409
      %p411 = scmp.ne.s32.totalorder %s403, %s405
      %p412 = scmp.eq.s32.totalorder %s44, 1
      %p413 = por %p411, %p412
      %p414 = scmp.ne.s32.totalorder %s405, %s406
      %p415 = scmp.eq.s32.totalorder %s44, 0
      %p416 = por %p414, %p415
      %p417 = scmp.ne.s32.totalorder %s405, %s406
      %p418 = scmp.eq.s32.totalorder %s45, 1
      %p419 = por %p417, %p418
      %p421 = scmp.ne.s32.totalorder %s406, %s420
      %p422 = scmp.eq.s32.totalorder %s45, 0
      %p423 = por %p421, %p422
      %s425 = sadd.s32 %s424, 1
      %p428 = scmp.eq.s32.totalorder %s39, 1
      %p429 = scmp.ne.s32.totalorder %s424, %s426
      %p430 = scmp.eq.s32.totalorder %s39, 0
      %p431 = por %p429, %p430
      %p432 = scmp.ne.s32.totalorder %s424, %s426
      %p433 = scmp.eq.s32.totalorder %s44, 1
      %p434 = por %p432, %p433
      %p435 = scmp.ne.s32.totalorder %s426, %s427
      %p436 = scmp.eq.s32.totalorder %s44, 0
      %p437 = por %p435, %p436
      %p438 = scmp.ne.s32.totalorder %s426, %s427
      %p439 = scmp.eq.s32.totalorder %s45, 1
      %p440 = por %p438, %p439
      %p442 = scmp.ne.s32.totalorder %s427, %s441
      %p443 = scmp.eq.s32.totalorder %s45, 0
      %p444 = por %p442, %p443
      %s446 = sadd.s32 %s445, 1
      %p449 = scmp.eq.s32.totalorder %s39, 1
      %p450 = scmp.ne.s32.totalorder %s445, %s447
      %p451 = scmp.eq.s32.totalorder %s39, 0
      %p452 = por %p450, %p451
      %p453 = scmp.ne.s32.totalorder %s445, %s447
      %p454 = scmp.eq.s32.totalorder %s44, 1
      %p455 = por %p453, %p454
      %p456 = scmp.ne.s32.totalorder %s447, %s448
      %p457 = scmp.eq.s32.totalorder %s44, 0
      %p458 = por %p456, %p457
      %p459 = scmp.ne.s32.totalorder %s447, %s448
      %p460 = scmp.eq.s32.totalorder %s45, 1
      %p461 = por %p459, %p460
      %p463 = scmp.ne.s32.totalorder %s448, %s462
      %p464 = scmp.eq.s32.totalorder %s45, 0
      %p465 = por %p463, %p464
      %s467 = sadd.s32 %s466, 1
      %p470 = scmp.eq.s32.totalorder %s39, 1
      %p471 = scmp.ne.s32.totalorder %s466, %s468
      %p472 = scmp.eq.s32.totalorder %s39, 0
      %p473 = por %p471, %p472
      %p474 = scmp.ne.s32.totalorder %s466, %s468
      %p475 = scmp.eq.s32.totalorder %s44, 1
      %p476 = por %p474, %p475
      %p477 = scmp.ne.s32.totalorder %s468, %s469
      %p478 = scmp.eq.s32.totalorder %s44, 0
      %p479 = por %p477, %p478
      %p480 = scmp.ne.s32.totalorder %s468, %s469
      %p481 = scmp.eq.s32.totalorder %s45, 1
      %p482 = por %p480, %p481
      %p484 = scmp.ne.s32.totalorder %s469, %s483
      %p485 = scmp.eq.s32.totalorder %s45, 0
      %p486 = por %p484, %p485
      %s488 = sadd.s32 %s487, 1
      %p491 = scmp.eq.s32.totalorder %s39, 1
      %p492 = scmp.ne.s32.totalorder %s487, %s489
      %p493 = scmp.eq.s32.totalorder %s39, 0
      %p494 = por %p492, %p493
      %p495 = scmp.ne.s32.totalorder %s487, %s489
      %p496 = scmp.eq.s32.totalorder %s44, 1
      %p497 = por %p495, %p496
      %p498 = scmp.ne.s32.totalorder %s489, %s490
      %p499 = scmp.eq.s32.totalorder %s44, 0
      %p500 = por %p498, %p499
      %p501 = scmp.ne.s32.totalorder %s489, %s490
      %p502 = scmp.eq.s32.totalorder %s45, 1
      %p503 = por %p501, %p502
      %p505 = scmp.ne.s32.totalorder %s490, %s504
      %p506 = scmp.eq.s32.totalorder %s45, 0
      %p507 = por %p505, %p506
      %s509 = sadd.s32 %s508, 1
      %p512 = scmp.eq.s32.totalorder %s39, 1
      %p513 = scmp.ne.s32.totalorder %s508, %s510
      %p514 = scmp.eq.s32.totalorder %s39, 0
      %p515 = por %p513, %p514
      %p516 = scmp.ne.s32.totalorder %s508, %s510
      %p517 = scmp.eq.s32.totalorder %s44, 1
      %p518 = por %p516, %p517
      %p519 = scmp.ne.s32.totalorder %s510, %s511
      %p520 = scmp.eq.s32.totalorder %s44, 0
      %p521 = por %p519, %p520
      %p522 = scmp.ne.s32.totalorder %s510, %s511
      %p523 = scmp.eq.s32.totalorder %s45, 1
      %p524 = por %p522, %p523
      %p526 = scmp.ne.s32.totalorder %s511, %s525
      %p527 = scmp.eq.s32.totalorder %s45, 0
      %p528 = por %p526, %p527
      %s530 = sadd.s32 %s529, 1
      %p533 = scmp.eq.s32.totalorder %s39, 1
      %p534 = scmp.ne.s32.totalorder %s529, %s531
      %p535 = scmp.eq.s32.totalorder %s39, 0
      %p536 = por %p534, %p535
      %p537 = scmp.ne.s32.totalorder %s529, %s531
      %p538 = scmp.eq.s32.totalorder %s44, 1
      %p539 = por %p537, %p538
      %p540 = scmp.ne.s32.totalorder %s531, %s532
      %p541 = scmp.eq.s32.totalorder %s44, 0
      %p542 = por %p540, %p541
      %p543 = scmp.ne.s32.totalorder %s531, %s532
      %p544 = scmp.eq.s32.totalorder %s45, 1
      %p545 = por %p543, %p544
      %p547 = scmp.ne.s32.totalorder %s532, %s546
      %p548 = scmp.eq.s32.totalorder %s45, 0
      %p549 = por %p547, %p548
      %s550 = ssub.s32 %s39, %s46
      %p551 = scmp.eq.s32.totalorder %s550, 0
      %s553 = sadd.s32 %s552, 1
      %s554 = scalar_select %p551, %s552, %s553
      %p557 = pneg %p551
      %p558 = scmp.eq.s32.totalorder %s39, 1
      %p559 = por %p557, %p558
      %p560 = scmp.ne.s32.totalorder %s552, %s555
      %p561 = scmp.eq.s32.totalorder %s39, 0
      %p562 = por %p560, %p561
      %p563 = scmp.ne.s32.totalorder %s552, %s555
      %p564 = scmp.eq.s32.totalorder %s44, 1
      %p565 = por %p563, %p564
      %p566 = scmp.ne.s32.totalorder %s555, %s556
      %p567 = scmp.eq.s32.totalorder %s44, 0
      %p568 = por %p566, %p567
      %p569 = scmp.ne.s32.totalorder %s555, %s556
      %p570 = scmp.eq.s32.totalorder %s45, 1
      %p571 = por %p569, %p570
      %p573 = scmp.ne.s32.totalorder %s556, %s572
      %p574 = scmp.eq.s32.totalorder %s45, 0
      %p575 = por %p573, %p574
      %p576 = scmp.le.s32.totalorder 1, %s39
      %p577 = scmp.lt.s32.totalorder %s39, 3
      %p578 = pnand %p576, %p577
      %p579 = pneg %p578
      // Predicated region
      $region9: #{transformer_forward.3} parent=5 // pred_check
        _
      $region10: #{transformer_forward.3} parent=5 // pred_check_branch
        %581 = sbr.rel (%p578) target = $region12
      $region11: #{transformer_forward.3} parent=5 // pred_region
        %s582 = ssub.s32 %s39, 1
        // Predicated region
        $region13: #{transformer_forward.3} parent=11 // pred_check
          %p583 = pneg %p112
        $region14: #{transformer_forward.3} parent=11 // pred_check_branch
          %585 = sbr.rel (%p583) target = $region16
        $region15: #{transformer_forward.3} parent=11 // pred_region
          _
        $region16: #{transformer_forward.3} parent=11 // pred_fallthru
          _
        // Predicated region
        $region17: #{transformer_forward.3} parent=11 // pred_check
          %p586 = pneg %p185
        $region18: #{transformer_forward.3} parent=11 // pred_check_branch
          %588 = sbr.rel (%p586) target = $region20
        $region19: #{transformer_forward.3} parent=11 // pred_region
          _
        $region20: #{transformer_forward.3} parent=11 // pred_fallthru
          _
        // Predicated region
        $region21: #{transformer_forward.3} parent=11 // pred_check
          %p589 = pneg %p206
        $region22: #{transformer_forward.3} parent=11 // pred_check_branch
          %591 = sbr.rel (%p589) target = $region24
        $region23: #{transformer_forward.3} parent=11 // pred_region
          _
        $region24: #{transformer_forward.3} parent=11 // pred_fallthru
          _
        // Predicated region
        $region25: #{transformer_forward.3} parent=11 // pred_check
          %p592 = pneg %p227
        $region26: #{transformer_forward.3} parent=11 // pred_check_branch
          %594 = sbr.rel (%p592) target = $region28
        $region27: #{transformer_forward.3} parent=11 // pred_region
          _
        $region28: #{transformer_forward.3} parent=11 // pred_fallthru
          _
        // Predicated region
        $region29: #{transformer_forward.3} parent=11 // pred_check
          %p595 = pneg %p248
        $region30: #{transformer_forward.3} parent=11 // pred_check_branch
          %597 = sbr.rel (%p595) target = $region32
        $region31: #{transformer_forward.3} parent=11 // pred_region
          %s599 = ssub.s32 32, 32
          %600 = vsyncadd [#allocation3], %s599
          %s601 = sshll.u32 [#allocation2], 4
          %s602 = int_to_ptr.vmem [resolvable:$true] %s601
          %607 = dma.hbm_to_vmem [thread:$0]  %s8, 32, %s602, [#allocation3], 16, 16, 1
        $region32: #{transformer_forward.3} parent=11 // pred_fallthru
          _
        // Predicated region
        $region33: #{transformer_forward.3} parent=11 // pred_check
          %p608 = pneg %p269
        $region34: #{transformer_forward.3} parent=11 // pred_check_branch
          %610 = sbr.rel (%p608) target = $region36
        $region35: #{transformer_forward.3} parent=11 // pred_region
          %s612 = ssub.s32 4096, 4096
          %613 = vsyncadd [#allocation6], %s612
          %s614 = sshll.u32 [#allocation5], 4
          %s615 = int_to_ptr.vmem [resolvable:$true] %s614
          %620 = dma.hbm_to_vmem [thread:$0]  %s9, 4096, %s615, [#allocation6], 128, 128, 8
        $region36: #{transformer_forward.3} parent=11 // pred_fallthru
          _
        // Predicated region
        $region37: #{transformer_forward.3} parent=11 // pred_check
          %p621 = pneg %p290
        $region38: #{transformer_forward.3} parent=11 // pred_check_branch
          %623 = sbr.rel (%p621) target = $region40
        $region39: #{transformer_forward.3} parent=11 // pred_region
          %s625 = ssub.s32 64, 64
          %626 = vsyncadd [#allocation6], %s625
          %s627 = sshll.u32 [#allocation7], 4
          %s628 = int_to_ptr.vmem [resolvable:$true] %s627
          %633 = dma.hbm_to_vmem [thread:$0]  %s10, 64, %s628, [#allocation6], 32, 32, 2
        $region40: #{transformer_forward.3} parent=11 // pred_fallthru
          _
        // Predicated region
        $region41: #{transformer_forward.3} parent=11 // pred_check
          %p634 = pneg %p311
        $region42: #{transformer_forward.3} parent=11 // pred_check_branch
          %636 = sbr.rel (%p634) target = $region44
        $region43: #{transformer_forward.3} parent=11 // pred_region
          _
        $region44: #{transformer_forward.3} parent=11 // pred_fallthru
          _
        // Predicated region
        $region45: #{transformer_forward.3} parent=11 // pred_check
          %p637 = pneg %p332
        $region46: #{transformer_forward.3} parent=11 // pred_check_branch
          %639 = sbr.rel (%p637) target = $region48
        $region47: #{transformer_forward.3} parent=11 // pred_region
          %s641 = ssub.s32 128, 128
          %642 = vsyncadd [#allocation9], %s641
          %s643 = sshll.u32 [#allocation8], 4
          %s644 = int_to_ptr.vmem [resolvable:$true] %s643
          %649 = dma.hbm_to_vmem [thread:$0]  %s12, 128, %s644, [#allocation9], 64, 64, 4
        $region48: #{transformer_forward.3} parent=11 // pred_fallthru
          _
        // Predicated region
        $region49: #{transformer_forward.3} parent=11 // pred_check
          %p650 = pneg %p353
        $region50: #{transformer_forward.3} parent=11 // pred_check_branch
          %652 = sbr.rel (%p650) target = $region52
        $region51: #{transformer_forward.3} parent=11 // pred_region
          %s654 = ssub.s32 4096, 4096
          %655 = vsyncadd [#allocation9], %s654
          %s656 = sshll.u32 [#allocation10], 4
          %s657 = int_to_ptr.vmem [resolvable:$true] %s656
          %662 = dma.hbm_to_vmem [thread:$0]  %s13, 4096, %s657, [#allocation9], 64, 64, 4
        $region52: #{transformer_forward.3} parent=11 // pred_fallthru
          _
        // Predicated region
        $region53: #{transformer_forward.3} parent=11 // pred_check
          %p663 = pneg %p374
        $region54: #{transformer_forward.3} parent=11 // pred_check_branch
          %665 = sbr.rel (%p663) target = $region56
        $region55: #{transformer_forward.3} parent=11 // pred_region
          %s667 = ssub.s32 32, 32
          %668 = vsyncadd [#allocation12], %s667
          %s669 = sshll.u32 [#allocation11], 4
          %s670 = int_to_ptr.vmem [resolvable:$true] %s669
          %675 = dma.hbm_to_vmem [thread:$0]  %s14, 32, %s670, [#allocation12], 16, 16, 1
        $region56: #{transformer_forward.3} parent=11 // pred_fallthru
          _
        // Predicated region
        $region57: #{transformer_forward.3} parent=11 // pred_check
          %p676 = pneg %p395
        $region58: #{transformer_forward.3} parent=11 // pred_check_branch
          %678 = sbr.rel (%p676) target = $region60
        $region59: #{transformer_forward.3} parent=11 // pred_region
          %s680 = ssub.s32 2048, 2048
          %681 = vsyncadd [#allocation12], %s680
          %s682 = sshll.u32 [#allocation13], 4
          %s683 = int_to_ptr.vmem [resolvable:$true] %s682
          %688 = dma.hbm_to_vmem [thread:$0]  %s15, 2048, %s683, [#allocation12], 64, 64, 4
        $region60: #{transformer_forward.3} parent=11 // pred_fallthru
          _
        // Predicated region
        $region61: #{transformer_forward.3} parent=11 // pred_check
          %p689 = pneg %p416
        $region62: #{transformer_forward.3} parent=11 // pred_check_branch
          %691 = sbr.rel (%p689) target = $region64
        $region63: #{transformer_forward.3} parent=11 // pred_region
          %s693 = ssub.s32 32, 32
          %694 = vsyncadd [#allocation15], %s693
          %s695 = sshll.u32 [#allocation14], 4
          %s696 = int_to_ptr.vmem [resolvable:$true] %s695
          %701 = dma.hbm_to_vmem [thread:$0]  %s16, 32, %s696, [#allocation15], 16, 16, 1
        $region64: #{transformer_forward.3} parent=11 // pred_fallthru
          _
        // Predicated region
        $region65: #{transformer_forward.3} parent=11 // pred_check
          %p702 = pneg %p437
        $region66: #{transformer_forward.3} parent=11 // pred_check_branch
          %704 = sbr.rel (%p702) target = $region68
        $region67: #{transformer_forward.3} parent=11 // pred_region
          %s706 = ssub.s32 2048, 2048
          %707 = vsyncadd [#allocation15], %s706
          %s708 = sshll.u32 [#allocation16], 4
          %s709 = int_to_ptr.vmem [resolvable:$true] %s708
          %714 = dma.hbm_to_vmem [thread:$0]  %s17, 2048, %s709, [#allocation15], 64, 64, 4
        $region68: #{transformer_forward.3} parent=11 // pred_fallthru
          _
        // Predicated region
        $region69: #{transformer_forward.3} parent=11 // pred_check
          %p715 = pneg %p458
        $region70: #{transformer_forward.3} parent=11 // pred_check_branch
          %717 = sbr.rel (%p715) target = $region72
        $region71: #{transformer_forward.3} parent=11 // pred_region
          %s719 = ssub.s32 32, 32
          %720 = vsyncadd [#allocation18], %s719
          %s721 = sshll.u32 [#allocation17], 4
          %s722 = int_to_ptr.vmem [resolvable:$true] %s721
          %727 = dma.hbm_to_vmem [thread:$0]  %s18, 32, %s722, [#allocation18], 16, 16, 1
        $region72: #{transformer_forward.3} parent=11 // pred_fallthru
          _
        // Predicated region
        $region73: #{transformer_forward.3} parent=11 // pred_check
          %p728 = pneg %p479
        $region74: #{transformer_forward.3} parent=11 // pred_check_branch
          %730 = sbr.rel (%p728) target = $region76
        $region75: #{transformer_forward.3} parent=11 // pred_region
          _
        $region76: #{transformer_forward.3} parent=11 // pred_fallthru
          _
        // Predicated region
        $region77: #{transformer_forward.3} parent=11 // pred_check
          %p731 = pneg %p500
        $region78: #{transformer_forward.3} parent=11 // pred_check_branch
          %733 = sbr.rel (%p731) target = $region80
        $region79: #{transformer_forward.3} parent=11 // pred_region
          %s735 = ssub.s32 32, 32
          %736 = vsyncadd [#allocation18], %s735
          %s737 = sshll.u32 [#allocation19], 4
          %s738 = int_to_ptr.vmem [resolvable:$true] %s737
          %743 = dma.hbm_to_vmem [thread:$0]  %s20, 32, %s738, [#allocation18], 16, 16, 1
        $region80: #{transformer_forward.3} parent=11 // pred_fallthru
          _
        // Predicated region
        $region81: #{transformer_forward.3} parent=11 // pred_check
          %p744 = pneg %p521
        $region82: #{transformer_forward.3} parent=11 // pred_check_branch
          %746 = sbr.rel (%p744) target = $region84
        $region83: #{transformer_forward.3} parent=11 // pred_region
          %s748 = ssub.s32 1024, 1024
          %749 = vsyncadd [#allocation21], %s748
          %s750 = sshll.u32 [#allocation20], 4
          %s751 = int_to_ptr.vmem [resolvable:$true] %s750
          %756 = dma.hbm_to_vmem [thread:$0]  %s21, 1024, %s751, [#allocation21], 64, 64, 4
        $region84: #{transformer_forward.3} parent=11 // pred_fallthru
          _
        // Predicated region
        $region85: #{transformer_forward.3} parent=11 // pred_check
          %p757 = pneg %p542
        $region86: #{transformer_forward.3} parent=11 // pred_check_branch
          %759 = sbr.rel (%p757) target = $region88
        $region87: #{transformer_forward.3} parent=11 // pred_region
          %s761 = ssub.s32 16, 16
          %762 = vsyncadd [#allocation21], %s761
          %s764 = sshll.u32 [#allocation22], 4
          %s765 = int_to_ptr.vmem [resolvable:$true] %s764
          %767 = dma.hbm_to_vmem [thread:$0]  %s22, 16, %s765, [#allocation21]
        $region88: #{transformer_forward.3} parent=11 // pred_fallthru
          _
      $region12: #{transformer_forward.3} parent=5 // pred_fallthru
        _
      %p768 = scmp.lt.s32.totalorder %s39, 2
      // Predicated region
      $region89: #{transformer_forward.3} parent=5 // pred_check
        %p769 = pneg %p768
      $region90: #{transformer_forward.3} parent=5 // pred_check_branch
        %771 = sbr.rel (%p769) target = $region92
      $region91: #{transformer_forward.3} parent=5 // pred_region
        // Predicated region
        $region93: #{transformer_forward.3} parent=91 // pred_check
          %p772 = pneg %p59
        $region94: #{transformer_forward.3} parent=91 // pred_check_branch
          %774 = sbr.rel (%p772) target = $region96
        $region95: #{transformer_forward.3} parent=91 // pred_region
          %p775 = scmp.lt.s32.totalorder %s39, 1
          %s776 = scalar_select %p775, %s39, 1
          %s777 = smul.addr %s776, 8
          %s778 = scalar_lea.vmem %s0, %s777
        $region96: #{transformer_forward.3} parent=91 // pred_fallthru
          _
        // Predicated region
        $region97: #{transformer_forward.3} parent=91 // pred_check
          %p779 = pneg %p85
        $region98: #{transformer_forward.3} parent=91 // pred_check_branch
          %781 = sbr.rel (%p779) target = $region100
        $region99: #{transformer_forward.3} parent=91 // pred_region
          %p782 = scmp.lt.s32.totalorder %s39, 1
          %s783 = scalar_select %p782, %s39, 1
          %s784 = smul.addr %s783, 8
          %s785 = scalar_lea.vmem %s1, %s784
        $region100: #{transformer_forward.3} parent=91 // pred_fallthru
          _
        // Predicated region
        $region101: #{transformer_forward.3} parent=91 // pred_check
          %p786 = pneg %p132
        $region102: #{transformer_forward.3} parent=91 // pred_check_branch
          %788 = sbr.rel (%p786) target = $region104
        $region103: #{transformer_forward.3} parent=91 // pred_region
          %p789 = scmp.lt.s32.totalorder %s39, 1
          %s790 = scalar_select %p789, %s39, 1
          %s791 = scalar_lea.vmem %s3, %s790
        $region104: #{transformer_forward.3} parent=91 // pred_fallthru
          _
        // Predicated region
        $region105: #{transformer_forward.3} parent=91 // pred_check
          %p792 = pneg %p158
        $region106: #{transformer_forward.3} parent=91 // pred_check_branch
          %794 = sbr.rel (%p792) target = $region108
        $region107: #{transformer_forward.3} parent=91 // pred_region
          %p795 = scmp.lt.s32.totalorder %s39, 1
          %s796 = scalar_select %p795, %s39, 1
          %s797 = scalar_lea.vmem %s4, %s796
        $region108: #{transformer_forward.3} parent=91 // pred_fallthru
          _
      $region92: #{transformer_forward.3} parent=5 // pred_fallthru
        _
      %p798 = scmp.le.s32.totalorder 1, %s39
      %p799 = scmp.lt.s32.totalorder %s39, 3
      %p800 = pnand %p798, %p799
      %p801 = pneg %p800
      // Predicated region
      $region109: #{transformer_forward.3} parent=5 // pred_check
        _
      $region110: #{transformer_forward.3} parent=5 // pred_check_branch
        %803 = sbr.rel (%p800) target = $region112
      $region111: #{transformer_forward.3} parent=5 // pred_region
        %s804 = ssub.s32 %s39, 1
        // Predicated region
        $region113: #{transformer_forward.3} parent=111 // pred_check
          %p805 = pneg %p248
        $region114: #{transformer_forward.3} parent=111 // pred_check_branch
          %807 = sbr.rel (%p805) target = $region116
        $region115: #{transformer_forward.3} parent=111 // pred_region
          %808 = dma.done [#allocation3], 32
        $region116: #{transformer_forward.3} parent=111 // pred_fallthru
          _
        // Predicated region
        $region117: #{transformer_forward.3} parent=111 // pred_check
          %p809 = pneg %p269
        $region118: #{transformer_forward.3} parent=111 // pred_check_branch
          %811 = sbr.rel (%p809) target = $region120
        $region119: #{transformer_forward.3} parent=111 // pred_region
          %812 = dma.done [#allocation6], 4096
        $region120: #{transformer_forward.3} parent=111 // pred_fallthru
          _
        // Predicated region
        $region121: #{transformer_forward.3} parent=111 // pred_check
          %p813 = pneg %p290
        $region122: #{transformer_forward.3} parent=111 // pred_check_branch
          %815 = sbr.rel (%p813) target = $region124
        $region123: #{transformer_forward.3} parent=111 // pred_region
          %816 = dma.done [#allocation6], 64
        $region124: #{transformer_forward.3} parent=111 // pred_fallthru
          _
        // Predicated region
        $region125: #{transformer_forward.3} parent=111 // pred_check
          %p817 = pneg %p332
        $region126: #{transformer_forward.3} parent=111 // pred_check_branch
          %819 = sbr.rel (%p817) target = $region128
        $region127: #{transformer_forward.3} parent=111 // pred_region
          %820 = dma.done [#allocation9], 128
        $region128: #{transformer_forward.3} parent=111 // pred_fallthru
          _
        // Predicated region
        $region129: #{transformer_forward.3} parent=111 // pred_check
          %p821 = pneg %p353
        $region130: #{transformer_forward.3} parent=111 // pred_check_branch
          %823 = sbr.rel (%p821) target = $region132
        $region131: #{transformer_forward.3} parent=111 // pred_region
          %824 = dma.done [#allocation9], 4096
        $region132: #{transformer_forward.3} parent=111 // pred_fallthru
          _
        // Predicated region
        $region133: #{transformer_forward.3} parent=111 // pred_check
          %p825 = pneg %p374
        $region134: #{transformer_forward.3} parent=111 // pred_check_branch
          %827 = sbr.rel (%p825) target = $region136
        $region135: #{transformer_forward.3} parent=111 // pred_region
          %828 = dma.done [#allocation12], 32
        $region136: #{transformer_forward.3} parent=111 // pred_fallthru
          _
        // Predicated region
        $region137: #{transformer_forward.3} parent=111 // pred_check
          %p829 = pneg %p395
        $region138: #{transformer_forward.3} parent=111 // pred_check_branch
          %831 = sbr.rel (%p829) target = $region140
        $region139: #{transformer_forward.3} parent=111 // pred_region
          %832 = dma.done [#allocation12], 2048
        $region140: #{transformer_forward.3} parent=111 // pred_fallthru
          _
        // Predicated region
        $region141: #{transformer_forward.3} parent=111 // pred_check
          %p833 = pneg %p416
        $region142: #{transformer_forward.3} parent=111 // pred_check_branch
          %835 = sbr.rel (%p833) target = $region144
        $region143: #{transformer_forward.3} parent=111 // pred_region
          %836 = dma.done [#allocation15], 32
        $region144: #{transformer_forward.3} parent=111 // pred_fallthru
          _
        // Predicated region
        $region145: #{transformer_forward.3} parent=111 // pred_check
          %p837 = pneg %p437
        $region146: #{transformer_forward.3} parent=111 // pred_check_branch
          %839 = sbr.rel (%p837) target = $region148
        $region147: #{transformer_forward.3} parent=111 // pred_region
          %840 = dma.done [#allocation15], 2048
        $region148: #{transformer_forward.3} parent=111 // pred_fallthru
          _
        // Predicated region
        $region149: #{transformer_forward.3} parent=111 // pred_check
          %p841 = pneg %p458
        $region150: #{transformer_forward.3} parent=111 // pred_check_branch
          %843 = sbr.rel (%p841) target = $region152
        $region151: #{transformer_forward.3} parent=111 // pred_region
          %844 = dma.done [#allocation18], 32
        $region152: #{transformer_forward.3} parent=111 // pred_fallthru
          _
        // Predicated region
        $region153: #{transformer_forward.3} parent=111 // pred_check
          %p845 = pneg %p500
        $region154: #{transformer_forward.3} parent=111 // pred_check_branch
          %847 = sbr.rel (%p845) target = $region156
        $region155: #{transformer_forward.3} parent=111 // pred_region
          %848 = dma.done [#allocation18], 32
        $region156: #{transformer_forward.3} parent=111 // pred_fallthru
          _
        // Predicated region
        $region157: #{transformer_forward.3} parent=111 // pred_check
          %p849 = pneg %p521
        $region158: #{transformer_forward.3} parent=111 // pred_check_branch
          %851 = sbr.rel (%p849) target = $region160
        $region159: #{transformer_forward.3} parent=111 // pred_region
          %852 = dma.done [#allocation21], 1024
        $region160: #{transformer_forward.3} parent=111 // pred_fallthru
          _
        // Predicated region
        $region161: #{transformer_forward.3} parent=111 // pred_check
          %p853 = pneg %p542
        $region162: #{transformer_forward.3} parent=111 // pred_check_branch
          %855 = sbr.rel (%p853) target = $region164
        $region163: #{transformer_forward.3} parent=111 // pred_region
          %856 = dma.done [#allocation21], 16
        $region164: #{transformer_forward.3} parent=111 // pred_fallthru
          _
        %p857 = scmp.lt.s32.totalorder %s44, 1
        %s858 = scalar_select %p857, %s44, 1
        %s859 = smul.addr %s858, 8
        %s860 = scalar_lea.vmem %s0, %s859
        %p861 = pneg %p65
        %p862 = pneg %p62
        %p863 = scmp.lt.s32.totalorder %s44, 1
        %s864 = scalar_select %p863, %s44, 1
        %s865 = smul.addr %s864, 8
        %s866 = scalar_lea.vmem %s1, %s865
        %p867 = pneg %p91
        %p868 = pneg %p88
        %p869 = pneg %p112
        %p870 = pneg %p109
        %p871 = scmp.lt.s32.totalorder %s44, 1
        %s872 = scalar_select %p871, %s44, 1
        %s873 = scalar_lea.vmem %s3, %s872
        %p874 = pneg %p138
        %p875 = pneg %p135
        %p876 = scmp.lt.s32.totalorder %s44, 1
        %s877 = scalar_select %p876, %s44, 1
        %s878 = scalar_lea.vmem %s4, %s877
        %p879 = pneg %p164
        %p880 = pneg %p161
        %p881 = pneg %p185
        %p882 = pneg %p182
        %p883 = pneg %p206
        %p884 = pneg %p203
        %p885 = pneg %p227
        %p886 = pneg %p224
        %p887 = pneg %p248
        %p888 = pneg %p245
        %p889 = pneg %p269
        %p890 = pneg %p266
        %p891 = pneg %p290
        %p892 = pneg %p287
        %p893 = pneg %p311
        %p894 = pneg %p308
        %p895 = pneg %p332
        %p896 = pneg %p329
        %p897 = pneg %p353
        %p898 = pneg %p350
        %p899 = pneg %p374
        %p900 = pneg %p371
        %p901 = pneg %p395
        %p902 = pneg %p392
        %p903 = pneg %p416
        %p904 = pneg %p413
        %p905 = pneg %p437
        %p906 = pneg %p434
        %p907 = pneg %p458
        %p908 = pneg %p455
        %p909 = pneg %p479
        %p910 = pneg %p476
        %p911 = pneg %p500
        %p912 = pneg %p497
        %p913 = pneg %p521
        %p914 = pneg %p518
        %p915 = pneg %p542
        %p916 = pneg %p539
        %p917 = pneg %p568
        %p918 = pneg %p565
        %s919 = sand.u32 %s555, 1
        %s920 = scalar_lea.sflag [#allocation4], %s919
        %s921 = sand.u32 %s555, 1
        %s922 = smul.addr %s921, 8
        %s923 = scalar_lea.vmem [#allocation23], %s922
        %p924 = scmp.lt.s32.totalorder %s44, 1
        %s925 = scalar_select %p924, %s44, 1
        %s926 = smul.addr %s925, 8
        %s927 = scalar_lea.vmem %s0, %s926
        %p928 = scmp.lt.s32.totalorder %s44, 1
        %s929 = scalar_select %p928, %s44, 1
        %s930 = smul.addr %s929, 8
        %s931 = scalar_lea.vmem %s1, %s930
        %p932 = scmp.lt.s32.totalorder %s44, 1
        %s933 = scalar_select %p932, %s44, 1
        %s934 = scalar_lea.vmem %s3, %s933
        %p935 = scmp.lt.s32.totalorder %s44, 1
        %s936 = scalar_select %p935, %s44, 1
        %s937 = scalar_lea.vmem %s4, %s936
        %v939 = vld [vmem:[%s927] sm:$0xff]
        %v940 = vld [vmem:[%s931] sm:$0xff]
        %v941 = vld [vmem:[%s2] sm:$0xff]
        %v942 = vld [vmem:[%s934] sm:$0x1]
        %v944 = vlaneseq
        %v945 = vshrl.u32 %v944, 7
        %v946 = vsub.s32 0, %v945
        %v947 = vrot.slane %v942, %v946
        %v949 = vadd.f32 %v941, %v947
        %v950 = vld [vmem:[%s937] sm:$0x1]
        %v951 = vld [vmem:[%s19] sm:$0x1]
        %v952 = vld [vmem:[%s19 + $0x1] sm:$0x1]
        %v953 = vld [vmem:[%s19 + $0x2] sm:$0x1]
        %v954 = vld [vmem:[%s19 + $0x3] sm:$0x1]
        %v955 = vld [vmem:[%s19 + $0x4] sm:$0x1]
        %v956 = vld [vmem:[%s19 + $0x5] sm:$0x1]
        %v957 = vld [vmem:[%s5] sm:$0xff]
        %v958 = vld [vmem:[%s5 + $0x8] sm:$0xff]
        %v959 = vld [vmem:[%s5 + $0x10] sm:$0xff]
        %v960 = vld [vmem:[%s5 + $0x18] sm:$0xff]
        %v961 = vld [vmem:[%s5 + $0x20] sm:$0xff]
        %v962 = vld [vmem:[%s5 + $0x28] sm:$0xff]
        %v963 = vld [vmem:[%s5 + $0x30] sm:$0xff]
        %v964 = vld [vmem:[%s5 + $0x38] sm:$0xff]
        %v965 = vld [vmem:[%s5 + $0x40] sm:$0xff]
        %v966 = vld [vmem:[%s5 + $0x48] sm:$0xff]
        %v967 = vld [vmem:[%s5 + $0x50] sm:$0xff]
        %v968 = vld [vmem:[%s5 + $0x58] sm:$0xff]
        %v969 = vld [vmem:[%s5 + $0x60] sm:$0xff]
        %v970 = vld [vmem:[%s5 + $0x68] sm:$0xff]
        %v971 = vld [vmem:[%s5 + $0x70] sm:$0xff]
        %v972 = vld [vmem:[%s5 + $0x78] sm:$0xff]
        %v973 = vld [vmem:[%s5 + $0x80] sm:$0xff]
        %v974 = vld [vmem:[%s5 + $0x88] sm:$0xff]
        %v975 = vld [vmem:[%s5 + $0x90] sm:$0xff]
        %v976 = vld [vmem:[%s5 + $0x98] sm:$0xff]
        %v977 = vld [vmem:[%s5 + $0xa0] sm:$0xff]
        %v978 = vld [vmem:[%s5 + $0xa8] sm:$0xff]
        %v979 = vld [vmem:[%s5 + $0xb0] sm:$0xff]
        %v980 = vld [vmem:[%s5 + $0xb8] sm:$0xff]
        %v981 = vld [vmem:[%s5 + $0xc0] sm:$0xff]
        %v982 = vld [vmem:[%s5 + $0xc8] sm:$0xff]
        %v983 = vld [vmem:[%s5 + $0xd0] sm:$0xff]
        %v984 = vld [vmem:[%s5 + $0xd8] sm:$0xff]
        %v985 = vld [vmem:[%s5 + $0xe0] sm:$0xff]
        %v986 = vld [vmem:[%s5 + $0xe8] sm:$0xff]
        %v987 = vld [vmem:[%s5 + $0xf0] sm:$0xff]
        %v988 = vld [vmem:[%s5 + $0xf8] sm:$0xff]
        %v989 = vld [vmem:[%s5 + $0x100] sm:$0xff]
        %v990 = vld [vmem:[%s5 + $0x108] sm:$0xff]
        %v991 = vld [vmem:[%s5 + $0x110] sm:$0xff]
        %v992 = vld [vmem:[%s5 + $0x118] sm:$0xff]
        %v993 = vld [vmem:[%s5 + $0x120] sm:$0xff]
        %v994 = vld [vmem:[%s5 + $0x128] sm:$0xff]
        %v995 = vld [vmem:[%s5 + $0x130] sm:$0xff]
        %v996 = vld [vmem:[%s5 + $0x138] sm:$0xff]
        %v997 = vld [vmem:[%s5 + $0x140] sm:$0xff]
        %v998 = vld [vmem:[%s5 + $0x148] sm:$0xff]
        %v999 = vld [vmem:[%s5 + $0x150] sm:$0xff]
        %v1000 = vld [vmem:[%s5 + $0x158] sm:$0xff]
        %v1001 = vld [vmem:[%s5 + $0x160] sm:$0xff]
        %v1002 = vld [vmem:[%s5 + $0x168] sm:$0xff]
        %v1003 = vld [vmem:[%s5 + $0x170] sm:$0xff]
        %v1004 = vld [vmem:[%s5 + $0x178] sm:$0xff]
        %v1005 = vld [vmem:[%s6] sm:$0x3f]
        %v1006 = vpack.c.bf16 %v939, %v939
        %v1008 = vlaneseq
        %v1009 = vshrl.u32 %v1008, 7
        %v1010 = vsub.s32 0, %v1009
        %v1011 = vrot.slane %v1005, %v1010
        %v1012 = vlaneseq
        %v1013 = vshrl.u32 %v1012, 7
        %v1014 = vsub.s32 1, %v1013
        %v1015 = vrot.slane %v1005, %v1014
        %v1016 = vlaneseq
        %v1017 = vshrl.u32 %v1016, 7
        %v1018 = vsub.s32 2, %v1017
        %v1019 = vrot.slane %v1005, %v1018
        %v1020 = vlaneseq
        %v1021 = vshrl.u32 %v1020, 7
        %v1022 = vsub.s32 3, %v1021
        %v1023 = vrot.slane %v1005, %v1022
        %v1024 = vlaneseq
        %v1025 = vshrl.u32 %v1024, 7
        %v1026 = vsub.s32 4, %v1025
        %v1027 = vrot.slane %v1005, %v1026
        %v1028 = vlaneseq
        %v1029 = vshrl.u32 %v1028, 7
        %v1030 = vsub.s32 5, %v1029
        %v1031 = vrot.slane %v1005, %v1030
        %v1086 = vunpack.c.l.b16 %v957
        %v1087 = vunpack.c.h.b16 %v957
        %v1088 = vunpack.c.l.b16 %v958
        %v1089 = vunpack.c.h.b16 %v958
        %v1090 = vunpack.c.l.b16 %v959
        %v1091 = vunpack.c.h.b16 %v959
        %v1092 = vunpack.c.l.b16 %v960
        %v1093 = vunpack.c.h.b16 %v960
        %v1094 = vunpack.c.l.b16 %v961
        %v1095 = vunpack.c.h.b16 %v961
        %v1096 = vunpack.c.l.b16 %v962
        %v1097 = vunpack.c.h.b16 %v962
        %v1098 = vunpack.c.l.b16 %v963
        %v1099 = vunpack.c.h.b16 %v963
        %v1100 = vunpack.c.l.b16 %v964
        %v1101 = vunpack.c.h.b16 %v964
        %v1102 = vunpack.c.l.b16 %v965
        %v1103 = vunpack.c.h.b16 %v965
        %v1104 = vunpack.c.l.b16 %v966
        %v1105 = vunpack.c.h.b16 %v966
        %v1106 = vunpack.c.l.b16 %v967
        %v1107 = vunpack.c.h.b16 %v967
        %v1108 = vunpack.c.l.b16 %v968
        %v1109 = vunpack.c.h.b16 %v968
        %v1110 = vunpack.c.l.b16 %v969
        %v1111 = vunpack.c.h.b16 %v969
        %v1112 = vunpack.c.l.b16 %v970
        %v1113 = vunpack.c.h.b16 %v970
        %v1114 = vunpack.c.l.b16 %v971
        %v1115 = vunpack.c.h.b16 %v971
        %v1116 = vunpack.c.l.b16 %v972
        %v1117 = vunpack.c.h.b16 %v972
        %v1118 = vunpack.c.l.b16 %v973
        %v1119 = vunpack.c.h.b16 %v973
        %v1120 = vunpack.c.l.b16 %v974
        %v1121 = vunpack.c.h.b16 %v974
        %v1122 = vunpack.c.l.b16 %v975
        %v1123 = vunpack.c.h.b16 %v975
        %v1124 = vunpack.c.l.b16 %v976
        %v1125 = vunpack.c.h.b16 %v976
        %v1126 = vunpack.c.l.b16 %v977
        %v1127 = vunpack.c.h.b16 %v977
        %v1128 = vunpack.c.l.b16 %v978
        %v1129 = vunpack.c.h.b16 %v978
        %v1130 = vunpack.c.l.b16 %v979
        %v1131 = vunpack.c.h.b16 %v979
        %v1132 = vunpack.c.l.b16 %v980
        %v1133 = vunpack.c.h.b16 %v980
        %v1134 = vunpack.c.l.b16 %v981
        %v1135 = vunpack.c.h.b16 %v981
        %v1136 = vunpack.c.l.b16 %v982
        %v1137 = vunpack.c.h.b16 %v982
        %v1138 = vunpack.c.l.b16 %v983
        %v1139 = vunpack.c.h.b16 %v983
        %v1140 = vunpack.c.l.b16 %v984
        %v1141 = vunpack.c.h.b16 %v984
        %v1142 = vunpack.c.l.b16 %v985
        %v1143 = vunpack.c.h.b16 %v985
        %v1144 = vunpack.c.l.b16 %v986
        %v1145 = vunpack.c.h.b16 %v986
        %v1146 = vunpack.c.l.b16 %v987
        %v1147 = vunpack.c.h.b16 %v987
        %v1148 = vunpack.c.l.b16 %v988
        %v1149 = vunpack.c.h.b16 %v988
        %v1150 = vunpack.c.l.b16 %v989
        %v1151 = vunpack.c.h.b16 %v989
        %v1152 = vunpack.c.l.b16 %v990
        %v1153 = vunpack.c.h.b16 %v990
        %v1154 = vunpack.c.l.b16 %v991
        %v1155 = vunpack.c.h.b16 %v991
        %v1156 = vunpack.c.l.b16 %v992
        %v1157 = vunpack.c.h.b16 %v992
        %v1158 = vunpack.c.l.b16 %v993
        %v1159 = vunpack.c.h.b16 %v993
        %v1160 = vunpack.c.l.b16 %v994
        %v1161 = vunpack.c.h.b16 %v994
        %v1162 = vunpack.c.l.b16 %v995
        %v1163 = vunpack.c.h.b16 %v995
        %v1164 = vunpack.c.l.b16 %v996
        %v1165 = vunpack.c.h.b16 %v996
        %v1166 = vunpack.c.l.b16 %v997
        %v1167 = vunpack.c.h.b16 %v997
        %v1168 = vunpack.c.l.b16 %v998
        %v1169 = vunpack.c.h.b16 %v998
        %v1170 = vunpack.c.l.b16 %v999
        %v1171 = vunpack.c.h.b16 %v999
        %v1172 = vunpack.c.l.b16 %v1000
        %v1173 = vunpack.c.h.b16 %v1000
        %v1174 = vunpack.c.l.b16 %v1001
        %v1175 = vunpack.c.h.b16 %v1001
        %v1176 = vunpack.c.l.b16 %v1002
        %v1177 = vunpack.c.h.b16 %v1002
        %v1178 = vunpack.c.l.b16 %v1003
        %v1179 = vunpack.c.h.b16 %v1003
        %v1180 = vunpack.c.l.b16 %v1004
        %v1181 = vunpack.c.h.b16 %v1004
        %v1182 = vpack.c.b16 %v1092, %v1086
        %v1183 = vpack.c.b16 %v1093, %v1087
        %v1184 = vpack.c.b16 %v1094, %v1088
        %v1185 = vpack.c.b16 %v1095, %v1089
        %v1186 = vpack.c.b16 %v1096, %v1090
        %v1187 = vpack.c.b16 %v1097, %v1091
        %v1188 = vpack.c.b16 %v1104, %v1098
        %v1189 = vpack.c.b16 %v1105, %v1099
        %v1190 = vpack.c.b16 %v1106, %v1100
        %v1191 = vpack.c.b16 %v1107, %v1101
        %v1192 = vpack.c.b16 %v1108, %v1102
        %v1193 = vpack.c.b16 %v1109, %v1103
        %v1194 = vpack.c.b16 %v1116, %v1110
        %v1195 = vpack.c.b16 %v1117, %v1111
        %v1196 = vpack.c.b16 %v1118, %v1112
        %v1197 = vpack.c.b16 %v1119, %v1113
        %v1198 = vpack.c.b16 %v1120, %v1114
        %v1199 = vpack.c.b16 %v1121, %v1115
        %v1200 = vpack.c.b16 %v1128, %v1122
        %v1201 = vpack.c.b16 %v1129, %v1123
        %v1202 = vpack.c.b16 %v1130, %v1124
        %v1203 = vpack.c.b16 %v1131, %v1125
        %v1204 = vpack.c.b16 %v1132, %v1126
        %v1205 = vpack.c.b16 %v1133, %v1127
        %v1206 = vpack.c.b16 %v1140, %v1134
        %v1207 = vpack.c.b16 %v1141, %v1135
        %v1208 = vpack.c.b16 %v1142, %v1136
        %v1209 = vpack.c.b16 %v1143, %v1137
        %v1210 = vpack.c.b16 %v1144, %v1138
        %v1211 = vpack.c.b16 %v1145, %v1139
        %v1212 = vpack.c.b16 %v1152, %v1146
        %v1213 = vpack.c.b16 %v1153, %v1147
        %v1214 = vpack.c.b16 %v1154, %v1148
        %v1215 = vpack.c.b16 %v1155, %v1149
        %v1216 = vpack.c.b16 %v1156, %v1150
        %v1217 = vpack.c.b16 %v1157, %v1151
        %v1218 = vpack.c.b16 %v1164, %v1158
        %v1219 = vpack.c.b16 %v1165, %v1159
        %v1220 = vpack.c.b16 %v1166, %v1160
        %v1221 = vpack.c.b16 %v1167, %v1161
        %v1222 = vpack.c.b16 %v1168, %v1162
        %v1223 = vpack.c.b16 %v1169, %v1163
        %v1224 = vpack.c.b16 %v1176, %v1170
        %v1225 = vpack.c.b16 %v1177, %v1171
        %v1226 = vpack.c.b16 %v1178, %v1172
        %v1227 = vpack.c.b16 %v1179, %v1173
        %v1228 = vpack.c.b16 %v1180, %v1174
        %v1229 = vpack.c.b16 %v1181, %v1175
        %1278 = vmatprep.subr.bf16.mxu0 %v1183
        %1279 = vmatpush1.bf16.msra.mxu0 %v1182
        %1280 = vmatprep.subr.bf16.mxu0 %v1189
        %1281 = vmatpush1.bf16.msra.mxu0 %v1188
        %1282 = vmatprep.subr.bf16.mxu0 %v1195
        %1283 = vmatpush1.bf16.msra.mxu0 %v1194
        %1284 = vmatprep.subr.bf16.mxu0 %v1201
        %1285 = vmatpush1.bf16.msra.mxu0 %v1200
        %1286 = vmatprep.subr.bf16.mxu0 %v1207
        %1287 = vmatpush1.bf16.msra.mxu0 %v1206
        %1288 = vmatprep.subr.bf16.mxu0 %v1213
        %1289 = vmatpush1.bf16.msra.mxu0 %v1212
        %1290 = vmatprep.subr.bf16.mxu0 %v1219
        %1291 = vmatpush1.bf16.msra.mxu0 %v1218
        %1292 = vmatprep.subr.bf16.mxu0 %v1225
        %1293 = vmatpush1.bf16.msra.mxu0 %v1224
        %1294 = vmatprep.subr.bf16.mxu0 0
        %1295 = vmatpush1.bf16.msra.mxu0 0
        %1296 = vmatprep.subr.bf16.mxu0 0
        %1297 = vmatpush1.bf16.msra.mxu0 0
        %1298 = vmatprep.subr.bf16.mxu0 0
        %1299 = vmatpush1.bf16.msra.mxu0 0
        %1300 = vmatprep.subr.bf16.mxu0 0
        %1301 = vmatpush1.bf16.msra.mxu0 0
        %1302 = vmatprep.subr.bf16.mxu0 0
        %1303 = vmatpush1.bf16.msra.mxu0 0
        %1304 = vmatprep.subr.bf16.mxu0 0
        %1305 = vmatpush1.bf16.msra.mxu0 0
        %1306 = vmatprep.subr.bf16.mxu0 0
        %1307 = vmatpush1.bf16.msra.mxu0 0
        %1308 = vmatprep.subr.bf16.mxu0 0
        %1309 = vmatpush1.bf16.msra.mxu0 0
        %1310 = vmatprep.mubr.bf16.mxu0 0
        %1311 = vmatmul.mubr.bf16.gmra.mrb[0].mxu0 %v1006
        %v1312 = vpop.f32.mrb[0].mxu0
        %v1313 = vadd.f32 %v1011, %v1312
        %v1314 = vpop.f32.mrb[0].mxu0
        %v1315 = vadd.f32 %v1015, %v1314
        %v1316 = vpop.f32.mrb[0].mxu0
        %v1317 = vpop.f32.mrb[0].mxu0
        %1318 = vdwg.mxu0
        %1319 = vmatprep.subr.bf16.mxu0 %v1185
        %1320 = vmatpush1.bf16.msra.mxu0 %v1184
        %1321 = vmatprep.subr.bf16.mxu0 %v1191
        %1322 = vmatpush1.bf16.msra.mxu0 %v1190
        %1323 = vmatprep.subr.bf16.mxu0 %v1197
        %1324 = vmatpush1.bf16.msra.mxu0 %v1196
        %1325 = vmatprep.subr.bf16.mxu0 %v1203
        %1326 = vmatpush1.bf16.msra.mxu0 %v1202
        %1327 = vmatprep.subr.bf16.mxu0 %v1209
        %1328 = vmatpush1.bf16.msra.mxu0 %v1208
        %1329 = vmatprep.subr.bf16.mxu0 %v1215
        %1330 = vmatpush1.bf16.msra.mxu0 %v1214
        %1331 = vmatprep.subr.bf16.mxu0 %v1221
        %1332 = vmatpush1.bf16.msra.mxu0 %v1220
        %1333 = vmatprep.subr.bf16.mxu0 %v1227
        %1334 = vmatpush1.bf16.msra.mxu0 %v1226
        %1335 = vmatprep.subr.bf16.mxu0 0
        %1336 = vmatpush1.bf16.msra.mxu0 0
        %1337 = vmatprep.subr.bf16.mxu0 0
        %1338 = vmatpush1.bf16.msra.mxu0 0
        %1339 = vmatprep.subr.bf16.mxu0 0
        %1340 = vmatpush1.bf16.msra.mxu0 0
        %1341 = vmatprep.subr.bf16.mxu0 0
        %1342 = vmatpush1.bf16.msra.mxu0 0
        %1343 = vmatprep.subr.bf16.mxu0 0
        %1344 = vmatpush1.bf16.msra.mxu0 0
        %1345 = vmatprep.subr.bf16.mxu0 0
        %1346 = vmatpush1.bf16.msra.mxu0 0
        %1347 = vmatprep.subr.bf16.mxu0 0
        %1348 = vmatpush1.bf16.msra.mxu0 0
        %1349 = vmatprep.subr.bf16.mxu0 0
        %1350 = vmatpush1.bf16.msra.mxu0 0
        %1351 = vmatprep.mubr.bf16.mxu0 0
        %1352 = vmatmul.mubr.bf16.gmra.mrb[0].mxu0 %v1006
        %v1353 = vpop.f32.mrb[0].mxu0
        %v1354 = vadd.f32 %v1019, %v1353
        %v1355 = vpop.f32.mrb[0].mxu0
        %v1356 = vadd.f32 %v1023, %v1355
        %v1357 = vpop.f32.mrb[0].mxu0
        %v1358 = vpop.f32.mrb[0].mxu0
        %1359 = vdwg.mxu0
        %1360 = vmatprep.subr.bf16.mxu0 %v1187
        %1361 = vmatpush1.bf16.msra.mxu0 %v1186
        %1362 = vmatprep.subr.bf16.mxu0 %v1193
        %1363 = vmatpush1.bf16.msra.mxu0 %v1192
        %1364 = vmatprep.subr.bf16.mxu0 %v1199
        %1365 = vmatpush1.bf16.msra.mxu0 %v1198
        %1366 = vmatprep.subr.bf16.mxu0 %v1205
        %1367 = vmatpush1.bf16.msra.mxu0 %v1204
        %1368 = vmatprep.subr.bf16.mxu0 %v1211
        %1369 = vmatpush1.bf16.msra.mxu0 %v1210
        %1370 = vmatprep.subr.bf16.mxu0 %v1217
        %1371 = vmatpush1.bf16.msra.mxu0 %v1216
        %1372 = vmatprep.subr.bf16.mxu0 %v1223
        %1373 = vmatpush1.bf16.msra.mxu0 %v1222
        %1374 = vmatprep.subr.bf16.mxu0 %v1229
        %1375 = vmatpush1.bf16.msra.mxu0 %v1228
        %1376 = vmatprep.subr.bf16.mxu0 0
        %1377 = vmatpush1.bf16.msra.mxu0 0
        %1378 = vmatprep.subr.bf16.mxu0 0
        %1379 = vmatpush1.bf16.msra.mxu0 0
        %1380 = vmatprep.subr.bf16.mxu0 0
        %1381 = vmatpush1.bf16.msra.mxu0 0
        %1382 = vmatprep.subr.bf16.mxu0 0
        %1383 = vmatpush1.bf16.msra.mxu0 0
        %1384 = vmatprep.subr.bf16.mxu0 0
        %1385 = vmatpush1.bf16.msra.mxu0 0
        %1386 = vmatprep.subr.bf16.mxu0 0
        %1387 = vmatpush1.bf16.msra.mxu0 0
        %1388 = vmatprep.subr.bf16.mxu0 0
        %1389 = vmatpush1.bf16.msra.mxu0 0
        %1390 = vmatprep.subr.bf16.mxu0 0
        %1391 = vmatpush1.bf16.msra.mxu0 0
        %1392 = vmatprep.mubr.bf16.mxu0 0
        %1393 = vmatmul.mubr.bf16.gmra.mrb[0].mxu0 %v1006
        %v1394 = vpop.f32.mrb[0].mxu0
        %v1395 = vadd.f32 %v1027, %v1394
        %v1396 = vpop.f32.mrb[0].mxu0
        %v1397 = vadd.f32 %v1031, %v1396
        %v1398 = vpop.f32.mrb[0].mxu0
        %v1399 = vpop.f32.mrb[0].mxu0
        %1400 = vdwg.mxu0
        %v1401 = vld [vmem:[%s7] sm:$0xf]
        %v1402 = vld [vmem:[%s7 + $0x4] sm:$0xf]
        %v1403 = vld [vmem:[%s7 + $0x8] sm:$0xf]
        %v1404 = vld [vmem:[%s7 + $0xc] sm:$0xf]
        %v1405 = vld [vmem:[%s7 + $0x10] sm:$0xf]
        %v1406 = vld [vmem:[%s7 + $0x14] sm:$0xf]
        %v1407 = vld [vmem:[%s7 + $0x18] sm:$0xf]
        %v1408 = vld [vmem:[%s7 + $0x1c] sm:$0xf]
        %v1409 = vld [vmem:[%s7 + $0x20] sm:$0xf]
        %v1410 = vld [vmem:[%s7 + $0x24] sm:$0xf]
        %v1411 = vld [vmem:[%s7 + $0x28] sm:$0xf]
        %v1412 = vld [vmem:[%s7 + $0x2c] sm:$0xf]
        %v1413 = vld [vmem:[%s7 + $0x30] sm:$0xf]
        %v1414 = vld [vmem:[%s7 + $0x34] sm:$0xf]
        %v1415 = vld [vmem:[%s7 + $0x38] sm:$0xf]
        %v1416 = vld [vmem:[%s7 + $0x3c] sm:$0xf]
        %v1417 = vld [vmem:[%s7 + $0x40] sm:$0xf]
        %v1418 = vld [vmem:[%s7 + $0x44] sm:$0xf]
        %v1419 = vld [vmem:[%s7 + $0x48] sm:$0xf]
        %v1420 = vld [vmem:[%s7 + $0x4c] sm:$0xf]
        %v1421 = vld [vmem:[%s7 + $0x50] sm:$0xf]
        %v1422 = vld [vmem:[%s7 + $0x54] sm:$0xf]
        %v1423 = vld [vmem:[%s7 + $0x58] sm:$0xf]
        %v1424 = vld [vmem:[%s7 + $0x5c] sm:$0xf]
        %v1425 = vld [vmem:[%s7 + $0x60] sm:$0xf]
        %v1426 = vld [vmem:[%s7 + $0x64] sm:$0xf]
        %v1427 = vld [vmem:[%s7 + $0x68] sm:$0xf]
        %v1428 = vld [vmem:[%s7 + $0x6c] sm:$0xf]
        %v1429 = vld [vmem:[%s7 + $0x70] sm:$0xf]
        %v1430 = vld [vmem:[%s7 + $0x74] sm:$0xf]
        %v1431 = vld [vmem:[%s7 + $0x78] sm:$0xf]
        %v1432 = vld [vmem:[%s7 + $0x7c] sm:$0xf]
        %v1433 = vld [vmem:[#allocation2] sm:$0x1]
        %1434 = vmatprep.subr.mxu0 0.0
        %1435 = vmatpush1.xpose.msra.mxu0 %v1354
        %1436 = vmatprep.subr.mxu0 0.0
        %1437 = vmatpush1.xpose.msra.mxu0 0.0
        %1438 = vmatprep.subr.mxu0 0.0
        %1439 = vmatpush1.xpose.msra.mxu0 0.0
        %1440 = vmatprep.subr.mxu0 0.0
        %1441 = vmatpush1.xpose.msra.mxu0 0.0
        %1442 = vmatprep.subr.mxu0 0.0
        %1443 = vmatpush1.xpose.msra.mxu0 0.0
        %1444 = vmatprep.subr.mxu0 0.0
        %1445 = vmatpush1.xpose.msra.mxu0 0.0
        %1446 = vmatprep.subr.mxu0 0.0
        %1447 = vmatpush1.xpose.msra.mxu0 0.0
        %1448 = vmatprep.subr.mxu0 0.0
        %1449 = vmatpush1.xpose.msra.mxu0 0.0
        %1450 = vmatprep.subr.mxu0 0.0
        %1451 = vmatpush1.xpose.msra.mxu0 0.0
        %1452 = vmatprep.subr.mxu0 0.0
        %1453 = vmatpush1.xpose.msra.mxu0 0.0
        %1454 = vmatprep.subr.mxu0 0.0
        %1455 = vmatpush1.xpose.msra.mxu0 0.0
        %1456 = vmatprep.subr.mxu0 0.0
        %1457 = vmatpush1.xpose.msra.mxu0 0.0
        %1458 = vmatprep.subr.mxu0 0.0
        %1459 = vmatpush1.xpose.msra.mxu0 0.0
        %1460 = vmatprep.subr.mxu0 0.0
        %1461 = vmatpush1.xpose.msra.mxu0 0.0
        %1462 = vmatprep.subr.mxu0 0.0
        %1463 = vmatpush1.xpose.msra.mxu0 0.0
        %1464 = vmatprep.subr.mxu0 0.0
        %1465 = vmatpush1.xpose.msra.mxu0 0.0
        %1466 = vmatprep.subr.mxu0 0.0
        %1467 = vmatpush1.xpose.msra.mxu0 0.0
        %1468 = vmatprep.subr.mxu0 0.0
        %1469 = vmatpush1.xpose.msra.mxu0 0.0
        %1470 = vmatprep.subr.mxu0 0.0
        %1471 = vmatpush1.xpose.msra.mxu0 0.0
        %1472 = vmatprep.subr.mxu0 0.0
        %1473 = vmatpush1.xpose.msra.mxu0 0.0
        %1474 = vmatprep.subr.mxu0 0.0
        %1475 = vmatpush1.xpose.msra.mxu0 0.0
        %1476 = vmatprep.subr.mxu0 0.0
        %1477 = vmatpush1.xpose.msra.mxu0 0.0
        %1478 = vmatprep.subr.mxu0 0.0
        %1479 = vmatpush1.xpose.msra.mxu0 0.0
        %1480 = vmatprep.subr.mxu0 0.0
        %1481 = vmatpush1.xpose.msra.mxu0 0.0
        %1482 = vmatprep.subr.mxu0 0.0
        %1483 = vmatpush1.xpose.msra.mxu0 0.0
        %1484 = vmatprep.subr.mxu0 0.0
        %1485 = vmatpush1.xpose.msra.mxu0 0.0
        %1486 = vmatprep.subr.mxu0 0.0
        %1487 = vmatpush1.xpose.msra.mxu0 0.0
        %1488 = vmatprep.subr.mxu0 0.0
        %1489 = vmatpush1.xpose.msra.mxu0 0.0
        %1490 = vmatprep.subr.mxu0 0.0
        %1491 = vmatpush1.xpose.msra.mxu0 0.0
        %1492 = vmatprep.subr.mxu0 0.0
        %1493 = vmatpush1.xpose.msra.mxu0 0.0
        %1494 = vmatprep.subr.mxu0 0.0
        %1495 = vmatpush1.xpose.msra.mxu0 0.0
        %1496 = vmatprep.subr.mxu0 0.0
        %1497 = vmatpush1.xpose.msra.mxu0 0.0
        %1498 = vmatprep.mubr.f32.mxu0 0.0
        %1499 = vmatmul.mubr.f32.gmra.mrb[0].mxu0 %v1313
        %v1500 = vpop.f32.mrb[0].mxu0
        %v1501 = vadd.f32 0.0, %v1500
        %v1502 = vpop.f32.mrb[0].mxu0
        %1503 = vdwg.mxu0
        %1504 = vmatprep.subr.mxu0 0.0
        %1505 = vmatpush1.xpose.msra.mxu0 %v1356
        %1506 = vmatprep.subr.mxu0 0.0
        %1507 = vmatpush1.xpose.msra.mxu0 0.0
        %1508 = vmatprep.subr.mxu0 0.0
        %1509 = vmatpush1.xpose.msra.mxu0 0.0
        %1510 = vmatprep.subr.mxu0 0.0
        %1511 = vmatpush1.xpose.msra.mxu0 0.0
        %1512 = vmatprep.subr.mxu0 0.0
        %1513 = vmatpush1.xpose.msra.mxu0 0.0
        %1514 = vmatprep.subr.mxu0 0.0
        %1515 = vmatpush1.xpose.msra.mxu0 0.0
        %1516 = vmatprep.subr.mxu0 0.0
        %1517 = vmatpush1.xpose.msra.mxu0 0.0
        %1518 = vmatprep.subr.mxu0 0.0
        %1519 = vmatpush1.xpose.msra.mxu0 0.0
        %1520 = vmatprep.subr.mxu0 0.0
        %1521 = vmatpush1.xpose.msra.mxu0 0.0
        %1522 = vmatprep.subr.mxu0 0.0
        %1523 = vmatpush1.xpose.msra.mxu0 0.0
        %1524 = vmatprep.subr.mxu0 0.0
        %1525 = vmatpush1.xpose.msra.mxu0 0.0
        %1526 = vmatprep.subr.mxu0 0.0
        %1527 = vmatpush1.xpose.msra.mxu0 0.0
        %1528 = vmatprep.subr.mxu0 0.0
        %1529 = vmatpush1.xpose.msra.mxu0 0.0
        %1530 = vmatprep.subr.mxu0 0.0
        %1531 = vmatpush1.xpose.msra.mxu0 0.0
        %1532 = vmatprep.subr.mxu0 0.0
        %1533 = vmatpush1.xpose.msra.mxu0 0.0
        %1534 = vmatprep.subr.mxu0 0.0
        %1535 = vmatpush1.xpose.msra.mxu0 0.0
        %1536 = vmatprep.subr.mxu0 0.0
        %1537 = vmatpush1.xpose.msra.mxu0 0.0
        %1538 = vmatprep.subr.mxu0 0.0
        %1539 = vmatpush1.xpose.msra.mxu0 0.0
        %1540 = vmatprep.subr.mxu0 0.0
        %1541 = vmatpush1.xpose.msra.mxu0 0.0
        %1542 = vmatprep.subr.mxu0 0.0
        %1543 = vmatpush1.xpose.msra.mxu0 0.0
        %1544 = vmatprep.subr.mxu0 0.0
        %1545 = vmatpush1.xpose.msra.mxu0 0.0
        %1546 = vmatprep.subr.mxu0 0.0
        %1547 = vmatpush1.xpose.msra.mxu0 0.0
        %1548 = vmatprep.subr.mxu0 0.0
        %1549 = vmatpush1.xpose.msra.mxu0 0.0
        %1550 = vmatprep.subr.mxu0 0.0
        %1551 = vmatpush1.xpose.msra.mxu0 0.0
        %1552 = vmatprep.subr.mxu0 0.0
        %1553 = vmatpush1.xpose.msra.mxu0 0.0
        %1554 = vmatprep.subr.mxu0 0.0
        %1555 = vmatpush1.xpose.msra.mxu0 0.0
        %1556 = vmatprep.subr.mxu0 0.0
        %1557 = vmatpush1.xpose.msra.mxu0 0.0
        %1558 = vmatprep.subr.mxu0 0.0
        %1559 = vmatpush1.xpose.msra.mxu0 0.0
        %1560 = vmatprep.subr.mxu0 0.0
        %1561 = vmatpush1.xpose.msra.mxu0 0.0
        %1562 = vmatprep.subr.mxu0 0.0
        %1563 = vmatpush1.xpose.msra.mxu0 0.0
        %1564 = vmatprep.subr.mxu0 0.0
        %1565 = vmatpush1.xpose.msra.mxu0 0.0
        %1566 = vmatprep.subr.mxu0 0.0
        %1567 = vmatpush1.xpose.msra.mxu0 0.0
        %1568 = vmatprep.mubr.f32.mxu0 0.0
        %1569 = vmatmul.mubr.f32.gmra.mrb[0].mxu0 %v1315
        %v1570 = vpop.f32.mrb[0].mxu0
        %v1571 = vadd.f32 0.0, %v1570
        %v1572 = vpop.f32.mrb[0].mxu0
        %1573 = vdwg.mxu0
        %v1574 = vmul.f32 %v1501, 0.25
        %v1575 = vmul.f32 %v1571, 0.25
        %v1576 = vadd.f32 %v1574, %v949
        %v1577 = vadd.f32 %v1575, %v949
        %vm1578 = vcmask 64512
        %v1579 = vsel %vm1578, %v1576, -inf
        %1580 = vmax.xlane.f32.xlu0 %v1579
        %v1581 = vpop.xlane.xlu0 %1580
        %v1582 = vsel %vm1578, %v1577, -inf
        %1583 = vmax.xlane.f32.xlu0 %v1582
        %v1584 = vpop.xlane.xlu0 %1583
        %v1585 = vsub.f32 %v1576, %v1581
        %v1586 = vsub.f32 %v1577, %v1584
        %v1587 = vmul.f32 %v1585, 1.442695
        %v1588 = vpow.pop %v1587
        %v1589 = vmul.f32 %v1586, 1.442695
        %v1590 = vpow.pop %v1589
        %v1591 = vsel %vm1578, %v1588, 0.0
        %1592 = vadd.xlane.f32.xlu0 %v1591
        %v1593 = vpop.xlane.xlu0 %1592
        %v1594 = vsel %vm1578, %v1590, 0.0
        %1595 = vadd.xlane.f32.xlu0 %v1594
        %v1596 = vpop.xlane.xlu0 %1595
        %v1597 = vrcp.pop %v1593
        %v1598 = vmul.f32 %v1588, %v1597
        %v1599 = vrcp.pop %v1596
        %v1600 = vmul.f32 %v1590, %v1599
        %v1602 = vsel %vm1578, %v1598, 0
        %1604 = vmatprep.subr.mxu0 0.0
        %1605 = vmatpush1.msra.mxu0 %v1395
        %1606 = vmatprep.subr.mxu0 0.0
        %1607 = vmatpush1.msra.mxu0 0.0
        %1608 = vmatprep.subr.mxu0 0.0
        %1609 = vmatpush1.msra.mxu0 0.0
        %1610 = vmatprep.subr.mxu0 0.0
        %1611 = vmatpush1.msra.mxu0 0.0
        %1612 = vmatprep.subr.mxu0 0.0
        %1613 = vmatpush1.msra.mxu0 0.0
        %1614 = vmatprep.subr.mxu0 0.0
        %1615 = vmatpush1.msra.mxu0 0.0
        %1616 = vmatprep.subr.mxu0 0.0
        %1617 = vmatpush1.msra.mxu0 0.0
        %1618 = vmatprep.subr.mxu0 0.0
        %1619 = vmatpush1.msra.mxu0 0.0
        %1620 = vmatprep.subr.mxu0 0.0
        %1621 = vmatpush1.msra.mxu0 0.0
        %1622 = vmatprep.subr.mxu0 0.0
        %1623 = vmatpush1.msra.mxu0 0.0
        %1624 = vmatprep.subr.mxu0 0.0
        %1625 = vmatpush1.msra.mxu0 0.0
        %1626 = vmatprep.subr.mxu0 0.0
        %1627 = vmatpush1.msra.mxu0 0.0
        %1628 = vmatprep.subr.mxu0 0.0
        %1629 = vmatpush1.msra.mxu0 0.0
        %1630 = vmatprep.subr.mxu0 0.0
        %1631 = vmatpush1.msra.mxu0 0.0
        %1632 = vmatprep.subr.mxu0 0.0
        %1633 = vmatpush1.msra.mxu0 0.0
        %1634 = vmatprep.subr.mxu0 0.0
        %1635 = vmatpush1.msra.mxu0 0.0
        %1636 = vmatprep.subr.mxu0 0.0
        %1637 = vmatpush1.msra.mxu0 0.0
        %1638 = vmatprep.subr.mxu0 0.0
        %1639 = vmatpush1.msra.mxu0 0.0
        %1640 = vmatprep.subr.mxu0 0.0
        %1641 = vmatpush1.msra.mxu0 0.0
        %1642 = vmatprep.subr.mxu0 0.0
        %1643 = vmatpush1.msra.mxu0 0.0
        %1644 = vmatprep.subr.mxu0 0.0
        %1645 = vmatpush1.msra.mxu0 0.0
        %1646 = vmatprep.subr.mxu0 0.0
        %1647 = vmatpush1.msra.mxu0 0.0
        %1648 = vmatprep.subr.mxu0 0.0
        %1649 = vmatpush1.msra.mxu0 0.0
        %1650 = vmatprep.subr.mxu0 0.0
        %1651 = vmatpush1.msra.mxu0 0.0
        %1652 = vmatprep.subr.mxu0 0.0
        %1653 = vmatpush1.msra.mxu0 0.0
        %1654 = vmatprep.subr.mxu0 0.0
        %1655 = vmatpush1.msra.mxu0 0.0
        %1656 = vmatprep.subr.mxu0 0.0
        %1657 = vmatpush1.msra.mxu0 0.0
        %1658 = vmatprep.subr.mxu0 0.0
        %1659 = vmatpush1.msra.mxu0 0.0
        %1660 = vmatprep.subr.mxu0 0.0
        %1661 = vmatpush1.msra.mxu0 0.0
        %1662 = vmatprep.subr.mxu0 0.0
        %1663 = vmatpush1.msra.mxu0 0.0
        %1664 = vmatprep.subr.mxu0 0.0
        %1665 = vmatpush1.msra.mxu0 0.0
        %1666 = vmatprep.subr.mxu0 0.0
        %1667 = vmatpush1.msra.mxu0 0.0
        %1668 = vmatprep.mubr.f32.mxu0 0.0
        %1669 = vmatmul.mubr.f32.gmra.mrb[0].mxu0 %v1602
        %v1670 = vpop.f32.mrb[0].mxu0
        %v1671 = vadd.f32 0.0, %v1670
        %v1672 = vpop.f32.mrb[0].mxu0
        %1673 = vdwg.mxu0
        %v1675 = vsel %vm1578, %v1600, 0
        %1677 = vmatprep.subr.mxu0 0.0
        %1678 = vmatpush1.msra.mxu0 %v1397
        %1679 = vmatprep.subr.mxu0 0.0
        %1680 = vmatpush1.msra.mxu0 0.0
        %1681 = vmatprep.subr.mxu0 0.0
        %1682 = vmatpush1.msra.mxu0 0.0
        %1683 = vmatprep.subr.mxu0 0.0
        %1684 = vmatpush1.msra.mxu0 0.0
        %1685 = vmatprep.subr.mxu0 0.0
        %1686 = vmatpush1.msra.mxu0 0.0
        %1687 = vmatprep.subr.mxu0 0.0
        %1688 = vmatpush1.msra.mxu0 0.0
        %1689 = vmatprep.subr.mxu0 0.0
        %1690 = vmatpush1.msra.mxu0 0.0
        %1691 = vmatprep.subr.mxu0 0.0
        %1692 = vmatpush1.msra.mxu0 0.0
        %1693 = vmatprep.subr.mxu0 0.0
        %1694 = vmatpush1.msra.mxu0 0.0
        %1695 = vmatprep.subr.mxu0 0.0
        %1696 = vmatpush1.msra.mxu0 0.0
        %1697 = vmatprep.subr.mxu0 0.0
        %1698 = vmatpush1.msra.mxu0 0.0
        %1699 = vmatprep.subr.mxu0 0.0
        %1700 = vmatpush1.msra.mxu0 0.0
        %1701 = vmatprep.subr.mxu0 0.0
        %1702 = vmatpush1.msra.mxu0 0.0
        %1703 = vmatprep.subr.mxu0 0.0
        %1704 = vmatpush1.msra.mxu0 0.0
        %1705 = vmatprep.subr.mxu0 0.0
        %1706 = vmatpush1.msra.mxu0 0.0
        %1707 = vmatprep.subr.mxu0 0.0
        %1708 = vmatpush1.msra.mxu0 0.0
        %1709 = vmatprep.subr.mxu0 0.0
        %1710 = vmatpush1.msra.mxu0 0.0
        %1711 = vmatprep.subr.mxu0 0.0
        %1712 = vmatpush1.msra.mxu0 0.0
        %1713 = vmatprep.subr.mxu0 0.0
        %1714 = vmatpush1.msra.mxu0 0.0
        %1715 = vmatprep.subr.mxu0 0.0
        %1716 = vmatpush1.msra.mxu0 0.0
        %1717 = vmatprep.subr.mxu0 0.0
        %1718 = vmatpush1.msra.mxu0 0.0
        %1719 = vmatprep.subr.mxu0 0.0
        %1720 = vmatpush1.msra.mxu0 0.0
        %1721 = vmatprep.subr.mxu0 0.0
        %1722 = vmatpush1.msra.mxu0 0.0
        %1723 = vmatprep.subr.mxu0 0.0
        %1724 = vmatpush1.msra.mxu0 0.0
        %1725 = vmatprep.subr.mxu0 0.0
        %1726 = vmatpush1.msra.mxu0 0.0
        %1727 = vmatprep.subr.mxu0 0.0
        %1728 = vmatpush1.msra.mxu0 0.0
        %1729 = vmatprep.subr.mxu0 0.0
        %1730 = vmatpush1.msra.mxu0 0.0
        %1731 = vmatprep.subr.mxu0 0.0
        %1732 = vmatpush1.msra.mxu0 0.0
        %1733 = vmatprep.subr.mxu0 0.0
        %1734 = vmatpush1.msra.mxu0 0.0
        %1735 = vmatprep.subr.mxu0 0.0
        %1736 = vmatpush1.msra.mxu0 0.0
        %1737 = vmatprep.subr.mxu0 0.0
        %1738 = vmatpush1.msra.mxu0 0.0
        %1739 = vmatprep.subr.mxu0 0.0
        %1740 = vmatpush1.msra.mxu0 0.0
        %1741 = vmatprep.mubr.f32.mxu0 0.0
        %1742 = vmatmul.mubr.f32.gmra.mrb[0].mxu0 %v1675
        %v1743 = vpop.f32.mrb[0].mxu0
        %v1744 = vadd.f32 0.0, %v1743
        %v1745 = vpop.f32.mrb[0].mxu0
        %1746 = vdwg.mxu0
        %v1747 = vpack.c.bf16 %v1671, %v1671
        %v1748 = vpack.c.bf16 %v1744, %v1744
        %v1750 = vlaneseq
        %v1751 = vshrl.u32 %v1750, 7
        %v1752 = vsub.s32 0, %v1751
        %v1753 = vrot.slane %v1433, %v1752
        %v1787 = vunpack.c.l.b16 %v1401
        %v1788 = vunpack.c.l.b16 %v1402
        %v1789 = vunpack.c.l.b16 %v1403
        %v1790 = vunpack.c.l.b16 %v1404
        %v1791 = vunpack.c.l.b16 %v1405
        %v1792 = vunpack.c.l.b16 %v1406
        %v1793 = vunpack.c.l.b16 %v1407
        %v1794 = vunpack.c.l.b16 %v1408
        %v1795 = vunpack.c.l.b16 %v1409
        %v1796 = vunpack.c.l.b16 %v1410
        %v1797 = vunpack.c.l.b16 %v1411
        %v1798 = vunpack.c.l.b16 %v1412
        %v1799 = vunpack.c.l.b16 %v1413
        %v1800 = vunpack.c.l.b16 %v1414
        %v1801 = vunpack.c.l.b16 %v1415
        %v1802 = vunpack.c.l.b16 %v1416
        %v1803 = vunpack.c.l.b16 %v1417
        %v1804 = vunpack.c.l.b16 %v1418
        %v1805 = vunpack.c.l.b16 %v1419
        %v1806 = vunpack.c.l.b16 %v1420
        %v1807 = vunpack.c.l.b16 %v1421
        %v1808 = vunpack.c.l.b16 %v1422
        %v1809 = vunpack.c.l.b16 %v1423
        %v1810 = vunpack.c.l.b16 %v1424
        %v1811 = vunpack.c.l.b16 %v1425
        %v1812 = vunpack.c.l.b16 %v1426
        %v1813 = vunpack.c.l.b16 %v1427
        %v1814 = vunpack.c.l.b16 %v1428
        %v1815 = vunpack.c.l.b16 %v1429
        %v1816 = vunpack.c.l.b16 %v1430
        %v1817 = vunpack.c.l.b16 %v1431
        %v1818 = vunpack.c.l.b16 %v1432
        %v1819 = vpack.c.b16 %v1788, %v1787
        %v1820 = vpack.c.b16 %v1790, %v1789
        %v1821 = vpack.c.b16 %v1792, %v1791
        %v1822 = vpack.c.b16 %v1794, %v1793
        %v1823 = vpack.c.b16 %v1796, %v1795
        %v1824 = vpack.c.b16 %v1798, %v1797
        %v1825 = vpack.c.b16 %v1800, %v1799
        %v1826 = vpack.c.b16 %v1802, %v1801
        %v1827 = vpack.c.b16 %v1804, %v1803
        %v1828 = vpack.c.b16 %v1806, %v1805
        %v1829 = vpack.c.b16 %v1808, %v1807
        %v1830 = vpack.c.b16 %v1810, %v1809
        %v1831 = vpack.c.b16 %v1812, %v1811
        %v1832 = vpack.c.b16 %v1814, %v1813
        %v1833 = vpack.c.b16 %v1816, %v1815
        %v1834 = vpack.c.b16 %v1818, %v1817
        %1851 = vmatprep.subr.bf16.mxu0 0
        %1852 = vmatpush1.bf16.msra.mxu0 %v1819
        %1853 = vmatprep.subr.bf16.mxu0 0
        %1854 = vmatpush1.bf16.msra.mxu0 %v1820
        %1855 = vmatprep.subr.bf16.mxu0 0
        %1856 = vmatpush1.bf16.msra.mxu0 %v1821
        %1857 = vmatprep.subr.bf16.mxu0 0
        %1858 = vmatpush1.bf16.msra.mxu0 %v1822
        %1859 = vmatprep.subr.bf16.mxu0 0
        %1860 = vmatpush1.bf16.msra.mxu0 %v1823
        %1861 = vmatprep.subr.bf16.mxu0 0
        %1862 = vmatpush1.bf16.msra.mxu0 %v1824
        %1863 = vmatprep.subr.bf16.mxu0 0
        %1864 = vmatpush1.bf16.msra.mxu0 %v1825
        %1865 = vmatprep.subr.bf16.mxu0 0
        %1866 = vmatpush1.bf16.msra.mxu0 %v1826
        %1867 = vmatprep.subr.bf16.mxu0 0
        %1868 = vmatpush1.bf16.msra.mxu0 %v1827
        %1869 = vmatprep.subr.bf16.mxu0 0
        %1870 = vmatpush1.bf16.msra.mxu0 %v1828
        %1871 = vmatprep.subr.bf16.mxu0 0
        %1872 = vmatpush1.bf16.msra.mxu0 %v1829
        %1873 = vmatprep.subr.bf16.mxu0 0
        %1874 = vmatpush1.bf16.msra.mxu0 %v1830
        %1875 = vmatprep.subr.bf16.mxu0 0
        %1876 = vmatpush1.bf16.msra.mxu0 %v1831
        %1877 = vmatprep.subr.bf16.mxu0 0
        %1878 = vmatpush1.bf16.msra.mxu0 %v1832
        %1879 = vmatprep.subr.bf16.mxu0 0
        %1880 = vmatpush1.bf16.msra.mxu0 %v1833
        %1881 = vmatprep.subr.bf16.mxu0 0
        %1882 = vmatpush1.bf16.msra.mxu0 %v1834
        %1883 = vmatprep.mubr.bf16.mxu0 %v1748
        %1884 = vmatmul.mubr.bf16.gmra.mrb[0].mxu0 %v1747
        %v1885 = vpop.f32.mrb[0].mxu0
        %v1886 = vadd.f32 %v1753, %v1885
        %v1887 = vpop.f32.mrb[0].mxu0
        %v1888 = vpop.f32.mrb[0].mxu0
        %v1889 = vpop.f32.mrb[0].mxu0
        %1890 = vdwg.mxu0
        %v1891 = vadd.f32 %v939, %v1886
        %1892 = vadd.xlane.f32.xlu0 %v1891
        %v1893 = vpop.xlane.xlu0 %1892
        %v1894 = vmul.f32 %v1893, 0.03125
        %v1895 = vmul.f32 %v1891, %v1891
        %1896 = vadd.xlane.f32.xlu0 %v1895
        %v1897 = vpop.xlane.xlu0 %1896
        %v1898 = vmul.f32 %v1897, 0.03125
        %v1899 = vmul.f32 %v1894, %v1894
        %v1900 = vsub.f32 %v1898, %v1899
        %v1901 = vsub.f32 %v1891, %v1894
        %v1902 = vadd.f32 %v1900, 1e-05
        %v1903 = vrsqrt.pop %v1902
        %v1904 = vmul.f32 %v1901, %v1903
        %v1906 = vlaneseq
        %v1907 = vshrl.u32 %v1906, 7
        %v1908 = vsub.s32 0, %v1907
        %v1909 = vrot.slane %v951, %v1908
        %v1911 = vmul.f32 %v1904, %v1909
        %v1913 = vlaneseq
        %v1914 = vshrl.u32 %v1913, 7
        %v1915 = vsub.s32 0, %v1914
        %v1916 = vrot.slane %v952, %v1915
        %v1918 = vadd.f32 %v1911, %v1916
        %v1919 = vld [vmem:[#allocation5] sm:$0xff]
        %v1920 = vld [vmem:[#allocation5 + $0x8] sm:$0xff]
        %v1921 = vld [vmem:[#allocation5 + $0x10] sm:$0xff]
        %v1922 = vld [vmem:[#allocation5 + $0x18] sm:$0xff]
        %v1923 = vld [vmem:[#allocation5 + $0x20] sm:$0xff]
        %v1924 = vld [vmem:[#allocation5 + $0x28] sm:$0xff]
        %v1925 = vld [vmem:[#allocation5 + $0x30] sm:$0xff]
        %v1926 = vld [vmem:[#allocation5 + $0x38] sm:$0xff]
        %v1927 = vld [vmem:[#allocation5 + $0x40] sm:$0xff]
        %v1928 = vld [vmem:[#allocation5 + $0x48] sm:$0xff]
        %v1929 = vld [vmem:[#allocation5 + $0x50] sm:$0xff]
        %v1930 = vld [vmem:[#allocation5 + $0x58] sm:$0xff]
        %v1931 = vld [vmem:[#allocation5 + $0x60] sm:$0xff]
        %v1932 = vld [vmem:[#allocation5 + $0x68] sm:$0xff]
        %v1933 = vld [vmem:[#allocation5 + $0x70] sm:$0xff]
        %v1934 = vld [vmem:[#allocation5 + $0x78] sm:$0xff]
        %v1935 = vld [vmem:[#allocation7] sm:$0x3]
        %v1936 = vpack.c.bf16 %v1918, %v1918
        %v1938 = vlaneseq
        %v1939 = vshrl.u32 %v1938, 7
        %v1940 = vsub.s32 0, %v1939
        %v1941 = vrot.slane %v1935, %v1940
        %v1942 = vlaneseq
        %v1943 = vshrl.u32 %v1942, 7
        %v1944 = vsub.s32 1, %v1943
        %v1945 = vrot.slane %v1935, %v1944
        %v1964 = vunpack.c.l.b16 %v1919
        %v1965 = vunpack.c.h.b16 %v1919
        %v1966 = vunpack.c.l.b16 %v1920
        %v1967 = vunpack.c.h.b16 %v1920
        %v1968 = vunpack.c.l.b16 %v1921
        %v1969 = vunpack.c.h.b16 %v1921
        %v1970 = vunpack.c.l.b16 %v1922
        %v1971 = vunpack.c.h.b16 %v1922
        %v1972 = vunpack.c.l.b16 %v1923
        %v1973 = vunpack.c.h.b16 %v1923
        %v1974 = vunpack.c.l.b16 %v1924
        %v1975 = vunpack.c.h.b16 %v1924
        %v1976 = vunpack.c.l.b16 %v1925
        %v1977 = vunpack.c.h.b16 %v1925
        %v1978 = vunpack.c.l.b16 %v1926
        %v1979 = vunpack.c.h.b16 %v1926
        %v1980 = vunpack.c.l.b16 %v1927
        %v1981 = vunpack.c.h.b16 %v1927
        %v1982 = vunpack.c.l.b16 %v1928
        %v1983 = vunpack.c.h.b16 %v1928
        %v1984 = vunpack.c.l.b16 %v1929
        %v1985 = vunpack.c.h.b16 %v1929
        %v1986 = vunpack.c.l.b16 %v1930
        %v1987 = vunpack.c.h.b16 %v1930
        %v1988 = vunpack.c.l.b16 %v1931
        %v1989 = vunpack.c.h.b16 %v1931
        %v1990 = vunpack.c.l.b16 %v1932
        %v1991 = vunpack.c.h.b16 %v1932
        %v1992 = vunpack.c.l.b16 %v1933
        %v1993 = vunpack.c.h.b16 %v1933
        %v1994 = vunpack.c.l.b16 %v1934
        %v1995 = vunpack.c.h.b16 %v1934
        %v1996 = vpack.c.b16 %v1966, %v1964
        %v1997 = vpack.c.b16 %v1967, %v1965
        %v1998 = vpack.c.b16 %v1970, %v1968
        %v1999 = vpack.c.b16 %v1971, %v1969
        %v2000 = vpack.c.b16 %v1974, %v1972
        %v2001 = vpack.c.b16 %v1975, %v1973
        %v2002 = vpack.c.b16 %v1978, %v1976
        %v2003 = vpack.c.b16 %v1979, %v1977
        %v2004 = vpack.c.b16 %v1982, %v1980
        %v2005 = vpack.c.b16 %v1983, %v1981
        %v2006 = vpack.c.b16 %v1986, %v1984
        %v2007 = vpack.c.b16 %v1987, %v1985
        %v2008 = vpack.c.b16 %v1990, %v1988
        %v2009 = vpack.c.b16 %v1991, %v1989
        %v2010 = vpack.c.b16 %v1994, %v1992
        %v2011 = vpack.c.b16 %v1995, %v1993
        %2028 = vmatprep.subr.bf16.mxu0 %v1997
        %2029 = vmatpush1.bf16.msra.mxu0 %v1996
        %2030 = vmatprep.subr.bf16.mxu0 %v1999
        %2031 = vmatpush1.bf16.msra.mxu0 %v1998
        %2032 = vmatprep.subr.bf16.mxu0 %v2001
        %2033 = vmatpush1.bf16.msra.mxu0 %v2000
        %2034 = vmatprep.subr.bf16.mxu0 %v2003
        %2035 = vmatpush1.bf16.msra.mxu0 %v2002
        %2036 = vmatprep.subr.bf16.mxu0 %v2005
        %2037 = vmatpush1.bf16.msra.mxu0 %v2004
        %2038 = vmatprep.subr.bf16.mxu0 %v2007
        %2039 = vmatpush1.bf16.msra.mxu0 %v2006
        %2040 = vmatprep.subr.bf16.mxu0 %v2009
        %2041 = vmatpush1.bf16.msra.mxu0 %v2008
        %2042 = vmatprep.subr.bf16.mxu0 %v2011
        %2043 = vmatpush1.bf16.msra.mxu0 %v2010
        %2044 = vmatprep.subr.bf16.mxu0 0
        %2045 = vmatpush1.bf16.msra.mxu0 0
        %2046 = vmatprep.subr.bf16.mxu0 0
        %2047 = vmatpush1.bf16.msra.mxu0 0
        %2048 = vmatprep.subr.bf16.mxu0 0
        %2049 = vmatpush1.bf16.msra.mxu0 0
        %2050 = vmatprep.subr.bf16.mxu0 0
        %2051 = vmatpush1.bf16.msra.mxu0 0
        %2052 = vmatprep.subr.bf16.mxu0 0
        %2053 = vmatpush1.bf16.msra.mxu0 0
        %2054 = vmatprep.subr.bf16.mxu0 0
        %2055 = vmatpush1.bf16.msra.mxu0 0
        %2056 = vmatprep.subr.bf16.mxu0 0
        %2057 = vmatpush1.bf16.msra.mxu0 0
        %2058 = vmatprep.subr.bf16.mxu0 0
        %2059 = vmatpush1.bf16.msra.mxu0 0
        %2060 = vmatprep.mubr.bf16.mxu0 0
        %2061 = vmatmul.mubr.bf16.gmra.mrb[0].mxu0 %v1936
        %v2062 = vpop.f32.mrb[0].mxu0
        %v2063 = vadd.f32 %v1941, %v2062
        %v2064 = vpop.f32.mrb[0].mxu0
        %v2065 = vadd.f32 %v1945, %v2064
        %v2066 = vpop.f32.mrb[0].mxu0
        %v2067 = vpop.f32.mrb[0].mxu0
        %2068 = vdwg.mxu0
        %v2069 = vld [vmem:[%s11] sm:$0xff]
        %v2070 = vld [vmem:[%s11 + $0x8] sm:$0xff]
        %v2071 = vld [vmem:[%s11 + $0x10] sm:$0xff]
        %v2072 = vld [vmem:[%s11 + $0x18] sm:$0xff]
        %v2073 = vld [vmem:[%s11 + $0x20] sm:$0xff]
        %v2074 = vld [vmem:[%s11 + $0x28] sm:$0xff]
        %v2075 = vld [vmem:[%s11 + $0x30] sm:$0xff]
        %v2076 = vld [vmem:[%s11 + $0x38] sm:$0xff]
        %v2077 = vld [vmem:[%s11 + $0x40] sm:$0xff]
        %v2078 = vld [vmem:[%s11 + $0x48] sm:$0xff]
        %v2079 = vld [vmem:[%s11 + $0x50] sm:$0xff]
        %v2080 = vld [vmem:[%s11 + $0x58] sm:$0xff]
        %v2081 = vld [vmem:[%s11 + $0x60] sm:$0xff]
        %v2082 = vld [vmem:[%s11 + $0x68] sm:$0xff]
        %v2083 = vld [vmem:[%s11 + $0x70] sm:$0xff]
        %v2084 = vld [vmem:[%s11 + $0x78] sm:$0xff]
        %v2085 = vld [vmem:[%s11 + $0x80] sm:$0xff]
        %v2086 = vld [vmem:[%s11 + $0x88] sm:$0xff]
        %v2087 = vld [vmem:[%s11 + $0x90] sm:$0xff]
        %v2088 = vld [vmem:[%s11 + $0x98] sm:$0xff]
        %v2089 = vld [vmem:[%s11 + $0xa0] sm:$0xff]
        %v2090 = vld [vmem:[%s11 + $0xa8] sm:$0xff]
        %v2091 = vld [vmem:[%s11 + $0xb0] sm:$0xff]
        %v2092 = vld [vmem:[%s11 + $0xb8] sm:$0xff]
        %v2093 = vld [vmem:[%s11 + $0xc0] sm:$0xff]
        %v2094 = vld [vmem:[%s11 + $0xc8] sm:$0xff]
        %v2095 = vld [vmem:[%s11 + $0xd0] sm:$0xff]
        %v2096 = vld [vmem:[%s11 + $0xd8] sm:$0xff]
        %v2097 = vld [vmem:[%s11 + $0xe0] sm:$0xff]
        %v2098 = vld [vmem:[%s11 + $0xe8] sm:$0xff]
        %v2099 = vld [vmem:[%s11 + $0xf0] sm:$0xff]
        %v2100 = vld [vmem:[%s11 + $0xf8] sm:$0xff]
        %v2101 = vld [vmem:[#allocation8] sm:$0xf]
        %v2102 = vpack.c.bf16 %v940, %v940
        %v2104 = vlaneseq
        %v2105 = vshrl.u32 %v2104, 7
        %v2106 = vsub.s32 0, %v2105
        %v2107 = vrot.slane %v2101, %v2106
        %v2108 = vlaneseq
        %v2109 = vshrl.u32 %v2108, 7
        %v2110 = vsub.s32 1, %v2109
        %v2111 = vrot.slane %v2101, %v2110
        %v2112 = vlaneseq
        %v2113 = vshrl.u32 %v2112, 7
        %v2114 = vsub.s32 2, %v2113
        %v2115 = vrot.slane %v2101, %v2114
        %v2116 = vlaneseq
        %v2117 = vshrl.u32 %v2116, 7
        %v2118 = vsub.s32 3, %v2117
        %v2119 = vrot.slane %v2101, %v2118
        %v2156 = vunpack.c.l.b16 %v2069
        %v2157 = vunpack.c.h.b16 %v2069
        %v2158 = vunpack.c.l.b16 %v2070
        %v2159 = vunpack.c.h.b16 %v2070
        %v2160 = vunpack.c.l.b16 %v2071
        %v2161 = vunpack.c.h.b16 %v2071
        %v2162 = vunpack.c.l.b16 %v2072
        %v2163 = vunpack.c.h.b16 %v2072
        %v2164 = vunpack.c.l.b16 %v2073
        %v2165 = vunpack.c.h.b16 %v2073
        %v2166 = vunpack.c.l.b16 %v2074
        %v2167 = vunpack.c.h.b16 %v2074
        %v2168 = vunpack.c.l.b16 %v2075
        %v2169 = vunpack.c.h.b16 %v2075
        %v2170 = vunpack.c.l.b16 %v2076
        %v2171 = vunpack.c.h.b16 %v2076
        %v2172 = vunpack.c.l.b16 %v2077
        %v2173 = vunpack.c.h.b16 %v2077
        %v2174 = vunpack.c.l.b16 %v2078
        %v2175 = vunpack.c.h.b16 %v2078
        %v2176 = vunpack.c.l.b16 %v2079
        %v2177 = vunpack.c.h.b16 %v2079
        %v2178 = vunpack.c.l.b16 %v2080
        %v2179 = vunpack.c.h.b16 %v2080
        %v2180 = vunpack.c.l.b16 %v2081
        %v2181 = vunpack.c.h.b16 %v2081
        %v2182 = vunpack.c.l.b16 %v2082
        %v2183 = vunpack.c.h.b16 %v2082
        %v2184 = vunpack.c.l.b16 %v2083
        %v2185 = vunpack.c.h.b16 %v2083
        %v2186 = vunpack.c.l.b16 %v2084
        %v2187 = vunpack.c.h.b16 %v2084
        %v2188 = vunpack.c.l.b16 %v2085
        %v2189 = vunpack.c.h.b16 %v2085
        %v2190 = vunpack.c.l.b16 %v2086
        %v2191 = vunpack.c.h.b16 %v2086
        %v2192 = vunpack.c.l.b16 %v2087
        %v2193 = vunpack.c.h.b16 %v2087
        %v2194 = vunpack.c.l.b16 %v2088
        %v2195 = vunpack.c.h.b16 %v2088
        %v2196 = vunpack.c.l.b16 %v2089
        %v2197 = vunpack.c.h.b16 %v2089
        %v2198 = vunpack.c.l.b16 %v2090
        %v2199 = vunpack.c.h.b16 %v2090
        %v2200 = vunpack.c.l.b16 %v2091
        %v2201 = vunpack.c.h.b16 %v2091
        %v2202 = vunpack.c.l.b16 %v2092
        %v2203 = vunpack.c.h.b16 %v2092
        %v2204 = vunpack.c.l.b16 %v2093
        %v2205 = vunpack.c.h.b16 %v2093
        %v2206 = vunpack.c.l.b16 %v2094
        %v2207 = vunpack.c.h.b16 %v2094
        %v2208 = vunpack.c.l.b16 %v2095
        %v2209 = vunpack.c.h.b16 %v2095
        %v2210 = vunpack.c.l.b16 %v2096
        %v2211 = vunpack.c.h.b16 %v2096
        %v2212 = vunpack.c.l.b16 %v2097
        %v2213 = vunpack.c.h.b16 %v2097
        %v2214 = vunpack.c.l.b16 %v2098
        %v2215 = vunpack.c.h.b16 %v2098
        %v2216 = vunpack.c.l.b16 %v2099
        %v2217 = vunpack.c.h.b16 %v2099
        %v2218 = vunpack.c.l.b16 %v2100
        %v2219 = vunpack.c.h.b16 %v2100
        %v2220 = vpack.c.b16 %v2160, %v2156
        %v2221 = vpack.c.b16 %v2161, %v2157
        %v2222 = vpack.c.b16 %v2162, %v2158
        %v2223 = vpack.c.b16 %v2163, %v2159
        %v2224 = vpack.c.b16 %v2168, %v2164
        %v2225 = vpack.c.b16 %v2169, %v2165
        %v2226 = vpack.c.b16 %v2170, %v2166
        %v2227 = vpack.c.b16 %v2171, %v2167
        %v2228 = vpack.c.b16 %v2176, %v2172
        %v2229 = vpack.c.b16 %v2177, %v2173
        %v2230 = vpack.c.b16 %v2178, %v2174
        %v2231 = vpack.c.b16 %v2179, %v2175
        %v2232 = vpack.c.b16 %v2184, %v2180
        %v2233 = vpack.c.b16 %v2185, %v2181
        %v2234 = vpack.c.b16 %v2186, %v2182
        %v2235 = vpack.c.b16 %v2187, %v2183
        %v2236 = vpack.c.b16 %v2192, %v2188
        %v2237 = vpack.c.b16 %v2193, %v2189
        %v2238 = vpack.c.b16 %v2194, %v2190
        %v2239 = vpack.c.b16 %v2195, %v2191
        %v2240 = vpack.c.b16 %v2200, %v2196
        %v2241 = vpack.c.b16 %v2201, %v2197
        %v2242 = vpack.c.b16 %v2202, %v2198
        %v2243 = vpack.c.b16 %v2203, %v2199
        %v2244 = vpack.c.b16 %v2208, %v2204
        %v2245 = vpack.c.b16 %v2209, %v2205
        %v2246 = vpack.c.b16 %v2210, %v2206
        %v2247 = vpack.c.b16 %v2211, %v2207
        %v2248 = vpack.c.b16 %v2216, %v2212
        %v2249 = vpack.c.b16 %v2217, %v2213
        %v2250 = vpack.c.b16 %v2218, %v2214
        %v2251 = vpack.c.b16 %v2219, %v2215
        %2284 = vmatprep.subr.bf16.mxu0 %v2221
        %2285 = vmatpush1.bf16.msra.mxu0 %v2220
        %2286 = vmatprep.subr.bf16.mxu0 %v2225
        %2287 = vmatpush1.bf16.msra.mxu0 %v2224
        %2288 = vmatprep.subr.bf16.mxu0 %v2229
        %2289 = vmatpush1.bf16.msra.mxu0 %v2228
        %2290 = vmatprep.subr.bf16.mxu0 %v2233
        %2291 = vmatpush1.bf16.msra.mxu0 %v2232
        %2292 = vmatprep.subr.bf16.mxu0 %v2237
        %2293 = vmatpush1.bf16.msra.mxu0 %v2236
        %2294 = vmatprep.subr.bf16.mxu0 %v2241
        %2295 = vmatpush1.bf16.msra.mxu0 %v2240
        %2296 = vmatprep.subr.bf16.mxu0 %v2245
        %2297 = vmatpush1.bf16.msra.mxu0 %v2244
        %2298 = vmatprep.subr.bf16.mxu0 %v2249
        %2299 = vmatpush1.bf16.msra.mxu0 %v2248
        %2300 = vmatprep.subr.bf16.mxu0 0
        %2301 = vmatpush1.bf16.msra.mxu0 0
        %2302 = vmatprep.subr.bf16.mxu0 0
        %2303 = vmatpush1.bf16.msra.mxu0 0
        %2304 = vmatprep.subr.bf16.mxu0 0
        %2305 = vmatpush1.bf16.msra.mxu0 0
        %2306 = vmatprep.subr.bf16.mxu0 0
        %2307 = vmatpush1.bf16.msra.mxu0 0
        %2308 = vmatprep.subr.bf16.mxu0 0
        %2309 = vmatpush1.bf16.msra.mxu0 0
        %2310 = vmatprep.subr.bf16.mxu0 0
        %2311 = vmatpush1.bf16.msra.mxu0 0
        %2312 = vmatprep.subr.bf16.mxu0 0
        %2313 = vmatpush1.bf16.msra.mxu0 0
        %2314 = vmatprep.subr.bf16.mxu0 0
        %2315 = vmatpush1.bf16.msra.mxu0 0
        %2316 = vmatprep.mubr.bf16.mxu0 0
        %2317 = vmatmul.mubr.bf16.gmra.mrb[0].mxu0 %v2102
        %v2318 = vpop.f32.mrb[0].mxu0
        %v2319 = vadd.f32 %v2107, %v2318
        %v2320 = vpop.f32.mrb[0].mxu0
        %v2321 = vadd.f32 %v2111, %v2320
        %v2322 = vpop.f32.mrb[0].mxu0
        %v2323 = vpop.f32.mrb[0].mxu0
        %2324 = vdwg.mxu0
        %2325 = vmatprep.subr.bf16.mxu0 %v2223
        %2326 = vmatpush1.bf16.msra.mxu0 %v2222
        %2327 = vmatprep.subr.bf16.mxu0 %v2227
        %2328 = vmatpush1.bf16.msra.mxu0 %v2226
        %2329 = vmatprep.subr.bf16.mxu0 %v2231
        %2330 = vmatpush1.bf16.msra.mxu0 %v2230
        %2331 = vmatprep.subr.bf16.mxu0 %v2235
        %2332 = vmatpush1.bf16.msra.mxu0 %v2234
        %2333 = vmatprep.subr.bf16.mxu0 %v2239
        %2334 = vmatpush1.bf16.msra.mxu0 %v2238
        %2335 = vmatprep.subr.bf16.mxu0 %v2243
        %2336 = vmatpush1.bf16.msra.mxu0 %v2242
        %2337 = vmatprep.subr.bf16.mxu0 %v2247
        %2338 = vmatpush1.bf16.msra.mxu0 %v2246
        %2339 = vmatprep.subr.bf16.mxu0 %v2251
        %2340 = vmatpush1.bf16.msra.mxu0 %v2250
        %2341 = vmatprep.subr.bf16.mxu0 0
        %2342 = vmatpush1.bf16.msra.mxu0 0
        %2343 = vmatprep.subr.bf16.mxu0 0
        %2344 = vmatpush1.bf16.msra.mxu0 0
        %2345 = vmatprep.subr.bf16.mxu0 0
        %2346 = vmatpush1.bf16.msra.mxu0 0
        %2347 = vmatprep.subr.bf16.mxu0 0
        %2348 = vmatpush1.bf16.msra.mxu0 0
        %2349 = vmatprep.subr.bf16.mxu0 0
        %2350 = vmatpush1.bf16.msra.mxu0 0
        %2351 = vmatprep.subr.bf16.mxu0 0
        %2352 = vmatpush1.bf16.msra.mxu0 0
        %2353 = vmatprep.subr.bf16.mxu0 0
        %2354 = vmatpush1.bf16.msra.mxu0 0
        %2355 = vmatprep.subr.bf16.mxu0 0
        %2356 = vmatpush1.bf16.msra.mxu0 0
        %2357 = vmatprep.mubr.bf16.mxu0 0
        %2358 = vmatmul.mubr.bf16.gmra.mrb[0].mxu0 %v2102
        %v2359 = vpop.f32.mrb[0].mxu0
        %v2360 = vadd.f32 %v2115, %v2359
        %v2361 = vpop.f32.mrb[0].mxu0
        %v2362 = vadd.f32 %v2119, %v2361
        %v2363 = vpop.f32.mrb[0].mxu0
        %v2364 = vpop.f32.mrb[0].mxu0
        %2365 = vdwg.mxu0
        %v2366 = vld [vmem:[#allocation10] sm:$0xf]
        %v2367 = vld [vmem:[#allocation10 + $0x4] sm:$0xf]
        %v2368 = vld [vmem:[#allocation10 + $0x8] sm:$0xf]
        %v2369 = vld [vmem:[#allocation10 + $0xc] sm:$0xf]
        %v2370 = vld [vmem:[#allocation10 + $0x10] sm:$0xf]
        %v2371 = vld [vmem:[#allocation10 + $0x14] sm:$0xf]
        %v2372 = vld [vmem:[#allocation10 + $0x18] sm:$0xf]
        %v2373 = vld [vmem:[#allocation10 + $0x1c] sm:$0xf]
        %v2374 = vld [vmem:[#allocation10 + $0x20] sm:$0xf]
        %v2375 = vld [vmem:[#allocation10 + $0x24] sm:$0xf]
        %v2376 = vld [vmem:[#allocation10 + $0x28] sm:$0xf]
        %v2377 = vld [vmem:[#allocation10 + $0x2c] sm:$0xf]
        %v2378 = vld [vmem:[#allocation10 + $0x30] sm:$0xf]
        %v2379 = vld [vmem:[#allocation10 + $0x34] sm:$0xf]
        %v2380 = vld [vmem:[#allocation10 + $0x38] sm:$0xf]
        %v2381 = vld [vmem:[#allocation10 + $0x3c] sm:$0xf]
        %v2382 = vld [vmem:[#allocation10 + $0x40] sm:$0xf]
        %v2383 = vld [vmem:[#allocation10 + $0x44] sm:$0xf]
        %v2384 = vld [vmem:[#allocation10 + $0x48] sm:$0xf]
        %v2385 = vld [vmem:[#allocation10 + $0x4c] sm:$0xf]
        %v2386 = vld [vmem:[#allocation10 + $0x50] sm:$0xf]
        %v2387 = vld [vmem:[#allocation10 + $0x54] sm:$0xf]
        %v2388 = vld [vmem:[#allocation10 + $0x58] sm:$0xf]
        %v2389 = vld [vmem:[#allocation10 + $0x5c] sm:$0xf]
        %v2390 = vld [vmem:[#allocation10 + $0x60] sm:$0xf]
        %v2391 = vld [vmem:[#allocation10 + $0x64] sm:$0xf]
        %v2392 = vld [vmem:[#allocation10 + $0x68] sm:$0xf]
        %v2393 = vld [vmem:[#allocation10 + $0x6c] sm:$0xf]
        %v2394 = vld [vmem:[#allocation10 + $0x70] sm:$0xf]
        %v2395 = vld [vmem:[#allocation10 + $0x74] sm:$0xf]
        %v2396 = vld [vmem:[#allocation10 + $0x78] sm:$0xf]
        %v2397 = vld [vmem:[#allocation10 + $0x7c] sm:$0xf]
        %v2398 = vld [vmem:[#allocation11] sm:$0x1]
        %2399 = vmatprep.subr.mxu0 0.0
        %2400 = vmatpush1.xpose.msra.mxu0 %v2319
        %2401 = vmatprep.subr.mxu0 0.0
        %2402 = vmatpush1.xpose.msra.mxu0 0.0
        %2403 = vmatprep.subr.mxu0 0.0
        %2404 = vmatpush1.xpose.msra.mxu0 0.0
        %2405 = vmatprep.subr.mxu0 0.0
        %2406 = vmatpush1.xpose.msra.mxu0 0.0
        %2407 = vmatprep.subr.mxu0 0.0
        %2408 = vmatpush1.xpose.msra.mxu0 0.0
        %2409 = vmatprep.subr.mxu0 0.0
        %2410 = vmatpush1.xpose.msra.mxu0 0.0
        %2411 = vmatprep.subr.mxu0 0.0
        %2412 = vmatpush1.xpose.msra.mxu0 0.0
        %2413 = vmatprep.subr.mxu0 0.0
        %2414 = vmatpush1.xpose.msra.mxu0 0.0
        %2415 = vmatprep.subr.mxu0 0.0
        %2416 = vmatpush1.xpose.msra.mxu0 0.0
        %2417 = vmatprep.subr.mxu0 0.0
        %2418 = vmatpush1.xpose.msra.mxu0 0.0
        %2419 = vmatprep.subr.mxu0 0.0
        %2420 = vmatpush1.xpose.msra.mxu0 0.0
        %2421 = vmatprep.subr.mxu0 0.0
        %2422 = vmatpush1.xpose.msra.mxu0 0.0
        %2423 = vmatprep.subr.mxu0 0.0
        %2424 = vmatpush1.xpose.msra.mxu0 0.0
        %2425 = vmatprep.subr.mxu0 0.0
        %2426 = vmatpush1.xpose.msra.mxu0 0.0
        %2427 = vmatprep.subr.mxu0 0.0
        %2428 = vmatpush1.xpose.msra.mxu0 0.0
        %2429 = vmatprep.subr.mxu0 0.0
        %2430 = vmatpush1.xpose.msra.mxu0 0.0
        %2431 = vmatprep.subr.mxu0 0.0
        %2432 = vmatpush1.xpose.msra.mxu0 0.0
        %2433 = vmatprep.subr.mxu0 0.0
        %2434 = vmatpush1.xpose.msra.mxu0 0.0
        %2435 = vmatprep.subr.mxu0 0.0
        %2436 = vmatpush1.xpose.msra.mxu0 0.0
        %2437 = vmatprep.subr.mxu0 0.0
        %2438 = vmatpush1.xpose.msra.mxu0 0.0
        %2439 = vmatprep.subr.mxu0 0.0
        %2440 = vmatpush1.xpose.msra.mxu0 0.0
        %2441 = vmatprep.subr.mxu0 0.0
        %2442 = vmatpush1.xpose.msra.mxu0 0.0
        %2443 = vmatprep.subr.mxu0 0.0
        %2444 = vmatpush1.xpose.msra.mxu0 0.0
        %2445 = vmatprep.subr.mxu0 0.0
        %2446 = vmatpush1.xpose.msra.mxu0 0.0
        %2447 = vmatprep.subr.mxu0 0.0
        %2448 = vmatpush1.xpose.msra.mxu0 0.0
        %2449 = vmatprep.subr.mxu0 0.0
        %2450 = vmatpush1.xpose.msra.mxu0 0.0
        %2451 = vmatprep.subr.mxu0 0.0
        %2452 = vmatpush1.xpose.msra.mxu0 0.0
        %2453 = vmatprep.subr.mxu0 0.0
        %2454 = vmatpush1.xpose.msra.mxu0 0.0
        %2455 = vmatprep.subr.mxu0 0.0
        %2456 = vmatpush1.xpose.msra.mxu0 0.0
        %2457 = vmatprep.subr.mxu0 0.0
        %2458 = vmatpush1.xpose.msra.mxu0 0.0
        %2459 = vmatprep.subr.mxu0 0.0
        %2460 = vmatpush1.xpose.msra.mxu0 0.0
        %2461 = vmatprep.subr.mxu0 0.0
        %2462 = vmatpush1.xpose.msra.mxu0 0.0
        %2463 = vmatprep.mubr.f32.mxu0 0.0
        %2464 = vmatmul.mubr.f32.gmra.mrb[0].mxu0 %v2063
        %v2465 = vpop.f32.mrb[0].mxu0
        %v2466 = vadd.f32 0.0, %v2465
        %v2467 = vpop.f32.mrb[0].mxu0
        %2468 = vdwg.mxu0
        %2469 = vmatprep.subr.mxu0 0.0
        %2470 = vmatpush1.xpose.msra.mxu0 %v2321
        %2471 = vmatprep.subr.mxu0 0.0
        %2472 = vmatpush1.xpose.msra.mxu0 0.0
        %2473 = vmatprep.subr.mxu0 0.0
        %2474 = vmatpush1.xpose.msra.mxu0 0.0
        %2475 = vmatprep.subr.mxu0 0.0
        %2476 = vmatpush1.xpose.msra.mxu0 0.0
        %2477 = vmatprep.subr.mxu0 0.0
        %2478 = vmatpush1.xpose.msra.mxu0 0.0
        %2479 = vmatprep.subr.mxu0 0.0
        %2480 = vmatpush1.xpose.msra.mxu0 0.0
        %2481 = vmatprep.subr.mxu0 0.0
        %2482 = vmatpush1.xpose.msra.mxu0 0.0
        %2483 = vmatprep.subr.mxu0 0.0
        %2484 = vmatpush1.xpose.msra.mxu0 0.0
        %2485 = vmatprep.subr.mxu0 0.0
        %2486 = vmatpush1.xpose.msra.mxu0 0.0
        %2487 = vmatprep.subr.mxu0 0.0
        %2488 = vmatpush1.xpose.msra.mxu0 0.0
        %2489 = vmatprep.subr.mxu0 0.0
        %2490 = vmatpush1.xpose.msra.mxu0 0.0
        %2491 = vmatprep.subr.mxu0 0.0
        %2492 = vmatpush1.xpose.msra.mxu0 0.0
        %2493 = vmatprep.subr.mxu0 0.0
        %2494 = vmatpush1.xpose.msra.mxu0 0.0
        %2495 = vmatprep.subr.mxu0 0.0
        %2496 = vmatpush1.xpose.msra.mxu0 0.0
        %2497 = vmatprep.subr.mxu0 0.0
        %2498 = vmatpush1.xpose.msra.mxu0 0.0
        %2499 = vmatprep.subr.mxu0 0.0
        %2500 = vmatpush1.xpose.msra.mxu0 0.0
        %2501 = vmatprep.subr.mxu0 0.0
        %2502 = vmatpush1.xpose.msra.mxu0 0.0
        %2503 = vmatprep.subr.mxu0 0.0
        %2504 = vmatpush1.xpose.msra.mxu0 0.0
        %2505 = vmatprep.subr.mxu0 0.0
        %2506 = vmatpush1.xpose.msra.mxu0 0.0
        %2507 = vmatprep.subr.mxu0 0.0
        %2508 = vmatpush1.xpose.msra.mxu0 0.0
        %2509 = vmatprep.subr.mxu0 0.0
        %2510 = vmatpush1.xpose.msra.mxu0 0.0
        %2511 = vmatprep.subr.mxu0 0.0
        %2512 = vmatpush1.xpose.msra.mxu0 0.0
        %2513 = vmatprep.subr.mxu0 0.0
        %2514 = vmatpush1.xpose.msra.mxu0 0.0
        %2515 = vmatprep.subr.mxu0 0.0
        %2516 = vmatpush1.xpose.msra.mxu0 0.0
        %2517 = vmatprep.subr.mxu0 0.0
        %2518 = vmatpush1.xpose.msra.mxu0 0.0
        %2519 = vmatprep.subr.mxu0 0.0
        %2520 = vmatpush1.xpose.msra.mxu0 0.0
        %2521 = vmatprep.subr.mxu0 0.0
        %2522 = vmatpush1.xpose.msra.mxu0 0.0
        %2523 = vmatprep.subr.mxu0 0.0
        %2524 = vmatpush1.xpose.msra.mxu0 0.0
        %2525 = vmatprep.subr.mxu0 0.0
        %2526 = vmatpush1.xpose.msra.mxu0 0.0
        %2527 = vmatprep.subr.mxu0 0.0
        %2528 = vmatpush1.xpose.msra.mxu0 0.0
        %2529 = vmatprep.subr.mxu0 0.0
        %2530 = vmatpush1.xpose.msra.mxu0 0.0
        %2531 = vmatprep.subr.mxu0 0.0
        %2532 = vmatpush1.xpose.msra.mxu0 0.0
        %2533 = vmatprep.mubr.f32.mxu0 0.0
        %2534 = vmatmul.mubr.f32.gmra.mrb[0].mxu0 %v2065
        %v2535 = vpop.f32.mrb[0].mxu0
        %v2536 = vadd.f32 0.0, %v2535
        %v2537 = vpop.f32.mrb[0].mxu0
        %2538 = vdwg.mxu0
        %v2539 = vmul.f32 %v2466, 0.25
        %v2540 = vmul.f32 %v2536, 0.25
        %v2542 = vlaneseq
        %v2543 = vshrl.u32 %v2542, 7
        %v2544 = vsub.s32 0, %v2543
        %v2545 = vrot.slane %v950, %v2544
        %v2547 = vadd.f32 %v2539, %v2545
        %v2548 = vadd.f32 %v2540, %v2545
        %v2549 = vsel %vm1578, %v2547, -inf
        %2550 = vmax.xlane.f32.xlu0 %v2549
        %v2551 = vpop.xlane.xlu0 %2550
        %v2552 = vsel %vm1578, %v2548, -inf
        %2553 = vmax.xlane.f32.xlu0 %v2552
        %v2554 = vpop.xlane.xlu0 %2553
        %v2555 = vsub.f32 %v2547, %v2551
        %v2556 = vsub.f32 %v2548, %v2554
        %v2557 = vmul.f32 %v2555, 1.442695
        %v2558 = vpow.pop %v2557
        %v2559 = vmul.f32 %v2556, 1.442695
        %v2560 = vpow.pop %v2559
        %v2561 = vsel %vm1578, %v2558, 0.0
        %2562 = vadd.xlane.f32.xlu0 %v2561
        %v2563 = vpop.xlane.xlu0 %2562
        %v2564 = vsel %vm1578, %v2560, 0.0
        %2565 = vadd.xlane.f32.xlu0 %v2564
        %v2566 = vpop.xlane.xlu0 %2565
        %v2567 = vrcp.pop %v2563
        %v2568 = vmul.f32 %v2558, %v2567
        %v2569 = vrcp.pop %v2566
        %v2570 = vmul.f32 %v2560, %v2569
        %v2572 = vsel %vm1578, %v2568, 0
        %2574 = vmatprep.subr.mxu0 0.0
        %2575 = vmatpush1.msra.mxu0 %v2360
        %2576 = vmatprep.subr.mxu0 0.0
        %2577 = vmatpush1.msra.mxu0 0.0
        %2578 = vmatprep.subr.mxu0 0.0
        %2579 = vmatpush1.msra.mxu0 0.0
        %2580 = vmatprep.subr.mxu0 0.0
        %2581 = vmatpush1.msra.mxu0 0.0
        %2582 = vmatprep.subr.mxu0 0.0
        %2583 = vmatpush1.msra.mxu0 0.0
        %2584 = vmatprep.subr.mxu0 0.0
        %2585 = vmatpush1.msra.mxu0 0.0
        %2586 = vmatprep.subr.mxu0 0.0
        %2587 = vmatpush1.msra.mxu0 0.0
        %2588 = vmatprep.subr.mxu0 0.0
        %2589 = vmatpush1.msra.mxu0 0.0
        %2590 = vmatprep.subr.mxu0 0.0
        %2591 = vmatpush1.msra.mxu0 0.0
        %2592 = vmatprep.subr.mxu0 0.0
        %2593 = vmatpush1.msra.mxu0 0.0
        %2594 = vmatprep.subr.mxu0 0.0
        %2595 = vmatpush1.msra.mxu0 0.0
        %2596 = vmatprep.subr.mxu0 0.0
        %2597 = vmatpush1.msra.mxu0 0.0
        %2598 = vmatprep.subr.mxu0 0.0
        %2599 = vmatpush1.msra.mxu0 0.0
        %2600 = vmatprep.subr.mxu0 0.0
        %2601 = vmatpush1.msra.mxu0 0.0
        %2602 = vmatprep.subr.mxu0 0.0
        %2603 = vmatpush1.msra.mxu0 0.0
        %2604 = vmatprep.subr.mxu0 0.0
        %2605 = vmatpush1.msra.mxu0 0.0
        %2606 = vmatprep.subr.mxu0 0.0
        %2607 = vmatpush1.msra.mxu0 0.0
        %2608 = vmatprep.subr.mxu0 0.0
        %2609 = vmatpush1.msra.mxu0 0.0
        %2610 = vmatprep.subr.mxu0 0.0
        %2611 = vmatpush1.msra.mxu0 0.0
        %2612 = vmatprep.subr.mxu0 0.0
        %2613 = vmatpush1.msra.mxu0 0.0
        %2614 = vmatprep.subr.mxu0 0.0
        %2615 = vmatpush1.msra.mxu0 0.0
        %2616 = vmatprep.subr.mxu0 0.0
        %2617 = vmatpush1.msra.mxu0 0.0
        %2618 = vmatprep.subr.mxu0 0.0
        %2619 = vmatpush1.msra.mxu0 0.0
        %2620 = vmatprep.subr.mxu0 0.0
        %2621 = vmatpush1.msra.mxu0 0.0
        %2622 = vmatprep.subr.mxu0 0.0
        %2623 = vmatpush1.msra.mxu0 0.0
        %2624 = vmatprep.subr.mxu0 0.0
        %2625 = vmatpush1.msra.mxu0 0.0
        %2626 = vmatprep.subr.mxu0 0.0
        %2627 = vmatpush1.msra.mxu0 0.0
        %2628 = vmatprep.subr.mxu0 0.0
        %2629 = vmatpush1.msra.mxu0 0.0
        %2630 = vmatprep.subr.mxu0 0.0
        %2631 = vmatpush1.msra.mxu0 0.0
        %2632 = vmatprep.subr.mxu0 0.0
        %2633 = vmatpush1.msra.mxu0 0.0
        %2634 = vmatprep.subr.mxu0 0.0
        %2635 = vmatpush1.msra.mxu0 0.0
        %2636 = vmatprep.subr.mxu0 0.0
        %2637 = vmatpush1.msra.mxu0 0.0
        %2638 = vmatprep.mubr.f32.mxu0 0.0
        %2639 = vmatmul.mubr.f32.gmra.mrb[0].mxu0 %v2572
        %v2640 = vpop.f32.mrb[0].mxu0
        %v2641 = vadd.f32 0.0, %v2640
        %v2642 = vpop.f32.mrb[0].mxu0
        %2643 = vdwg.mxu0
        %v2645 = vsel %vm1578, %v2570, 0
        %2647 = vmatprep.subr.mxu0 0.0
        %2648 = vmatpush1.msra.mxu0 %v2362
        %2649 = vmatprep.subr.mxu0 0.0
        %2650 = vmatpush1.msra.mxu0 0.0
        %2651 = vmatprep.subr.mxu0 0.0
        %2652 = vmatpush1.msra.mxu0 0.0
        %2653 = vmatprep.subr.mxu0 0.0
        %2654 = vmatpush1.msra.mxu0 0.0
        %2655 = vmatprep.subr.mxu0 0.0
        %2656 = vmatpush1.msra.mxu0 0.0
        %2657 = vmatprep.subr.mxu0 0.0
        %2658 = vmatpush1.msra.mxu0 0.0
        %2659 = vmatprep.subr.mxu0 0.0
        %2660 = vmatpush1.msra.mxu0 0.0
        %2661 = vmatprep.subr.mxu0 0.0
        %2662 = vmatpush1.msra.mxu0 0.0
        %2663 = vmatprep.subr.mxu0 0.0
        %2664 = vmatpush1.msra.mxu0 0.0
        %2665 = vmatprep.subr.mxu0 0.0
        %2666 = vmatpush1.msra.mxu0 0.0
        %2667 = vmatprep.subr.mxu0 0.0
        %2668 = vmatpush1.msra.mxu0 0.0
        %2669 = vmatprep.subr.mxu0 0.0
        %2670 = vmatpush1.msra.mxu0 0.0
        %2671 = vmatprep.subr.mxu0 0.0
        %2672 = vmatpush1.msra.mxu0 0.0
        %2673 = vmatprep.subr.mxu0 0.0
        %2674 = vmatpush1.msra.mxu0 0.0
        %2675 = vmatprep.subr.mxu0 0.0
        %2676 = vmatpush1.msra.mxu0 0.0
        %2677 = vmatprep.subr.mxu0 0.0
        %2678 = vmatpush1.msra.mxu0 0.0
        %2679 = vmatprep.subr.mxu0 0.0
        %2680 = vmatpush1.msra.mxu0 0.0
        %2681 = vmatprep.subr.mxu0 0.0
        %2682 = vmatpush1.msra.mxu0 0.0
        %2683 = vmatprep.subr.mxu0 0.0
        %2684 = vmatpush1.msra.mxu0 0.0
        %2685 = vmatprep.subr.mxu0 0.0
        %2686 = vmatpush1.msra.mxu0 0.0
        %2687 = vmatprep.subr.mxu0 0.0
        %2688 = vmatpush1.msra.mxu0 0.0
        %2689 = vmatprep.subr.mxu0 0.0
        %2690 = vmatpush1.msra.mxu0 0.0
        %2691 = vmatprep.subr.mxu0 0.0
        %2692 = vmatpush1.msra.mxu0 0.0
        %2693 = vmatprep.subr.mxu0 0.0
        %2694 = vmatpush1.msra.mxu0 0.0
        %2695 = vmatprep.subr.mxu0 0.0
        %2696 = vmatpush1.msra.mxu0 0.0
        %2697 = vmatprep.subr.mxu0 0.0
        %2698 = vmatpush1.msra.mxu0 0.0
        %2699 = vmatprep.subr.mxu0 0.0
        %2700 = vmatpush1.msra.mxu0 0.0
        %2701 = vmatprep.subr.mxu0 0.0
        %2702 = vmatpush1.msra.mxu0 0.0
        %2703 = vmatprep.subr.mxu0 0.0
        %2704 = vmatpush1.msra.mxu0 0.0
        %2705 = vmatprep.subr.mxu0 0.0
        %2706 = vmatpush1.msra.mxu0 0.0
        %2707 = vmatprep.subr.mxu0 0.0
        %2708 = vmatpush1.msra.mxu0 0.0
        %2709 = vmatprep.subr.mxu0 0.0
        %2710 = vmatpush1.msra.mxu0 0.0
        %2711 = vmatprep.mubr.f32.mxu0 0.0
        %2712 = vmatmul.mubr.f32.gmra.mrb[0].mxu0 %v2645
        %v2713 = vpop.f32.mrb[0].mxu0
        %v2714 = vadd.f32 0.0, %v2713
        %v2715 = vpop.f32.mrb[0].mxu0
        %2716 = vdwg.mxu0
        %v2717 = vpack.c.bf16 %v2641, %v2641
        %v2718 = vpack.c.bf16 %v2714, %v2714
        %v2720 = vlaneseq
        %v2721 = vshrl.u32 %v2720, 7
        %v2722 = vsub.s32 0, %v2721
        %v2723 = vrot.slane %v2398, %v2722
        %v2757 = vunpack.c.l.b16 %v2366
        %v2758 = vunpack.c.l.b16 %v2367
        %v2759 = vunpack.c.l.b16 %v2368
        %v2760 = vunpack.c.l.b16 %v2369
        %v2761 = vunpack.c.l.b16 %v2370
        %v2762 = vunpack.c.l.b16 %v2371
        %v2763 = vunpack.c.l.b16 %v2372
        %v2764 = vunpack.c.l.b16 %v2373
        %v2765 = vunpack.c.l.b16 %v2374
        %v2766 = vunpack.c.l.b16 %v2375
        %v2767 = vunpack.c.l.b16 %v2376
        %v2768 = vunpack.c.l.b16 %v2377
        %v2769 = vunpack.c.l.b16 %v2378
        %v2770 = vunpack.c.l.b16 %v2379
        %v2771 = vunpack.c.l.b16 %v2380
        %v2772 = vunpack.c.l.b16 %v2381
        %v2773 = vunpack.c.l.b16 %v2382
        %v2774 = vunpack.c.l.b16 %v2383
        %v2775 = vunpack.c.l.b16 %v2384
        %v2776 = vunpack.c.l.b16 %v2385
        %v2777 = vunpack.c.l.b16 %v2386
        %v2778 = vunpack.c.l.b16 %v2387
        %v2779 = vunpack.c.l.b16 %v2388
        %v2780 = vunpack.c.l.b16 %v2389
        %v2781 = vunpack.c.l.b16 %v2390
        %v2782 = vunpack.c.l.b16 %v2391
        %v2783 = vunpack.c.l.b16 %v2392
        %v2784 = vunpack.c.l.b16 %v2393
        %v2785 = vunpack.c.l.b16 %v2394
        %v2786 = vunpack.c.l.b16 %v2395
        %v2787 = vunpack.c.l.b16 %v2396
        %v2788 = vunpack.c.l.b16 %v2397
        %v2789 = vpack.c.b16 %v2758, %v2757
        %v2790 = vpack.c.b16 %v2760, %v2759
        %v2791 = vpack.c.b16 %v2762, %v2761
        %v2792 = vpack.c.b16 %v2764, %v2763
        %v2793 = vpack.c.b16 %v2766, %v2765
        %v2794 = vpack.c.b16 %v2768, %v2767
        %v2795 = vpack.c.b16 %v2770, %v2769
        %v2796 = vpack.c.b16 %v2772, %v2771
        %v2797 = vpack.c.b16 %v2774, %v2773
        %v2798 = vpack.c.b16 %v2776, %v2775
        %v2799 = vpack.c.b16 %v2778, %v2777
        %v2800 = vpack.c.b16 %v2780, %v2779
        %v2801 = vpack.c.b16 %v2782, %v2781
        %v2802 = vpack.c.b16 %v2784, %v2783
        %v2803 = vpack.c.b16 %v2786, %v2785
        %v2804 = vpack.c.b16 %v2788, %v2787
        %2821 = vmatprep.subr.bf16.mxu0 0
        %2822 = vmatpush1.bf16.msra.mxu0 %v2789
        %2823 = vmatprep.subr.bf16.mxu0 0
        %2824 = vmatpush1.bf16.msra.mxu0 %v2790
        %2825 = vmatprep.subr.bf16.mxu0 0
        %2826 = vmatpush1.bf16.msra.mxu0 %v2791
        %2827 = vmatprep.subr.bf16.mxu0 0
        %2828 = vmatpush1.bf16.msra.mxu0 %v2792
        %2829 = vmatprep.subr.bf16.mxu0 0
        %2830 = vmatpush1.bf16.msra.mxu0 %v2793
        %2831 = vmatprep.subr.bf16.mxu0 0
        %2832 = vmatpush1.bf16.msra.mxu0 %v2794
        %2833 = vmatprep.subr.bf16.mxu0 0
        %2834 = vmatpush1.bf16.msra.mxu0 %v2795
        %2835 = vmatprep.subr.bf16.mxu0 0
        %2836 = vmatpush1.bf16.msra.mxu0 %v2796
        %2837 = vmatprep.subr.bf16.mxu0 0
        %2838 = vmatpush1.bf16.msra.mxu0 %v2797
        %2839 = vmatprep.subr.bf16.mxu0 0
        %2840 = vmatpush1.bf16.msra.mxu0 %v2798
        %2841 = vmatprep.subr.bf16.mxu0 0
        %2842 = vmatpush1.bf16.msra.mxu0 %v2799
        %2843 = vmatprep.subr.bf16.mxu0 0
        %2844 = vmatpush1.bf16.msra.mxu0 %v2800
        %2845 = vmatprep.subr.bf16.mxu0 0
        %2846 = vmatpush1.bf16.msra.mxu0 %v2801
        %2847 = vmatprep.subr.bf16.mxu0 0
        %2848 = vmatpush1.bf16.msra.mxu0 %v2802
        %2849 = vmatprep.subr.bf16.mxu0 0
        %2850 = vmatpush1.bf16.msra.mxu0 %v2803
        %2851 = vmatprep.subr.bf16.mxu0 0
        %2852 = vmatpush1.bf16.msra.mxu0 %v2804
        %2853 = vmatprep.mubr.bf16.mxu0 %v2718
        %2854 = vmatmul.mubr.bf16.gmra.mrb[0].mxu0 %v2717
        %v2855 = vpop.f32.mrb[0].mxu0
        %v2856 = vadd.f32 %v2723, %v2855
        %v2857 = vpop.f32.mrb[0].mxu0
        %v2858 = vpop.f32.mrb[0].mxu0
        %v2859 = vpop.f32.mrb[0].mxu0
        %2860 = vdwg.mxu0
        %v2861 = vadd.f32 %v1918, %v2856
        %2862 = vadd.xlane.f32.xlu0 %v2861
        %v2863 = vpop.xlane.xlu0 %2862
        %v2864 = vmul.f32 %v2863, 0.03125
        %v2865 = vmul.f32 %v2861, %v2861
        %2866 = vadd.xlane.f32.xlu0 %v2865
        %v2867 = vpop.xlane.xlu0 %2866
        %v2868 = vmul.f32 %v2867, 0.03125
        %v2869 = vmul.f32 %v2864, %v2864
        %v2870 = vsub.f32 %v2868, %v2869
        %v2871 = vsub.f32 %v2861, %v2864
        %v2872 = vadd.f32 %v2870, 1e-05
        %v2873 = vrsqrt.pop %v2872
        %v2874 = vmul.f32 %v2871, %v2873
        %v2876 = vlaneseq
        %v2877 = vshrl.u32 %v2876, 7
        %v2878 = vsub.s32 0, %v2877
        %v2879 = vrot.slane %v953, %v2878
        %v2881 = vmul.f32 %v2874, %v2879
        %v2883 = vlaneseq
        %v2884 = vshrl.u32 %v2883, 7
        %v2885 = vsub.s32 0, %v2884
        %v2886 = vrot.slane %v954, %v2885
        %v2888 = vadd.f32 %v2881, %v2886
        %v2889 = vld [vmem:[#allocation13] sm:$0xf]
        %v2890 = vld [vmem:[#allocation13 + $0x4] sm:$0xf]
        %v2891 = vld [vmem:[#allocation13 + $0x8] sm:$0xf]
        %v2892 = vld [vmem:[#allocation13 + $0xc] sm:$0xf]
        %v2893 = vld [vmem:[#allocation13 + $0x10] sm:$0xf]
        %v2894 = vld [vmem:[#allocation13 + $0x14] sm:$0xf]
        %v2895 = vld [vmem:[#allocation13 + $0x18] sm:$0xf]
        %v2896 = vld [vmem:[#allocation13 + $0x1c] sm:$0xf]
        %v2897 = vld [vmem:[#allocation13 + $0x20] sm:$0xf]
        %v2898 = vld [vmem:[#allocation13 + $0x24] sm:$0xf]
        %v2899 = vld [vmem:[#allocation13 + $0x28] sm:$0xf]
        %v2900 = vld [vmem:[#allocation13 + $0x2c] sm:$0xf]
        %v2901 = vld [vmem:[#allocation13 + $0x30] sm:$0xf]
        %v2902 = vld [vmem:[#allocation13 + $0x34] sm:$0xf]
        %v2903 = vld [vmem:[#allocation13 + $0x38] sm:$0xf]
        %v2904 = vld [vmem:[#allocation13 + $0x3c] sm:$0xf]
        %v2905 = vld [vmem:[#allocation14] sm:$0x1]
        %v2906 = vpack.c.bf16 %v2888, %v2888
        %v2908 = vlaneseq
        %v2909 = vshrl.u32 %v2908, 7
        %v2910 = vsub.s32 0, %v2909
        %v2911 = vrot.slane %v2905, %v2910
        %v2929 = vunpack.c.l.b16 %v2889
        %v2930 = vunpack.c.l.b16 %v2890
        %v2931 = vunpack.c.l.b16 %v2891
        %v2932 = vunpack.c.l.b16 %v2892
        %v2933 = vunpack.c.l.b16 %v2893
        %v2934 = vunpack.c.l.b16 %v2894
        %v2935 = vunpack.c.l.b16 %v2895
        %v2936 = vunpack.c.l.b16 %v2896
        %v2937 = vunpack.c.l.b16 %v2897
        %v2938 = vunpack.c.l.b16 %v2898
        %v2939 = vunpack.c.l.b16 %v2899
        %v2940 = vunpack.c.l.b16 %v2900
        %v2941 = vunpack.c.l.b16 %v2901
        %v2942 = vunpack.c.l.b16 %v2902
        %v2943 = vunpack.c.l.b16 %v2903
        %v2944 = vunpack.c.l.b16 %v2904
        %v2945 = vpack.c.b16 %v2930, %v2929
        %v2946 = vpack.c.b16 %v2932, %v2931
        %v2947 = vpack.c.b16 %v2934, %v2933
        %v2948 = vpack.c.b16 %v2936, %v2935
        %v2949 = vpack.c.b16 %v2938, %v2937
        %v2950 = vpack.c.b16 %v2940, %v2939
        %v2951 = vpack.c.b16 %v2942, %v2941
        %v2952 = vpack.c.b16 %v2944, %v2943
        %2961 = vmatprep.subr.bf16.mxu0 0
        %2962 = vmatpush1.bf16.msra.mxu0 %v2945
        %2963 = vmatprep.subr.bf16.mxu0 0
        %2964 = vmatpush1.bf16.msra.mxu0 %v2946
        %2965 = vmatprep.subr.bf16.mxu0 0
        %2966 = vmatpush1.bf16.msra.mxu0 %v2947
        %2967 = vmatprep.subr.bf16.mxu0 0
        %2968 = vmatpush1.bf16.msra.mxu0 %v2948
        %2969 = vmatprep.subr.bf16.mxu0 0
        %2970 = vmatpush1.bf16.msra.mxu0 %v2949
        %2971 = vmatprep.subr.bf16.mxu0 0
        %2972 = vmatpush1.bf16.msra.mxu0 %v2950
        %2973 = vmatprep.subr.bf16.mxu0 0
        %2974 = vmatpush1.bf16.msra.mxu0 %v2951
        %2975 = vmatprep.subr.bf16.mxu0 0
        %2976 = vmatpush1.bf16.msra.mxu0 %v2952
        %2977 = vmatprep.subr.bf16.mxu0 0
        %2978 = vmatpush1.bf16.msra.mxu0 0
        %2979 = vmatprep.subr.bf16.mxu0 0
        %2980 = vmatpush1.bf16.msra.mxu0 0
        %2981 = vmatprep.subr.bf16.mxu0 0
        %2982 = vmatpush1.bf16.msra.mxu0 0
        %2983 = vmatprep.subr.bf16.mxu0 0
        %2984 = vmatpush1.bf16.msra.mxu0 0
        %2985 = vmatprep.subr.bf16.mxu0 0
        %2986 = vmatpush1.bf16.msra.mxu0 0
        %2987 = vmatprep.subr.bf16.mxu0 0
        %2988 = vmatpush1.bf16.msra.mxu0 0
        %2989 = vmatprep.subr.bf16.mxu0 0
        %2990 = vmatpush1.bf16.msra.mxu0 0
        %2991 = vmatprep.subr.bf16.mxu0 0
        %2992 = vmatpush1.bf16.msra.mxu0 0
        %2993 = vmatprep.mubr.bf16.mxu0 0
        %2994 = vmatmul.mubr.bf16.gmra.mrb[0].mxu0 %v2906
        %v2995 = vpop.f32.mrb[0].mxu0
        %v2996 = vadd.f32 %v2911, %v2995
        %v2997 = vpop.f32.mrb[0].mxu0
        %v2998 = vpop.f32.mrb[0].mxu0
        %v2999 = vpop.f32.mrb[0].mxu0
        %3000 = vdwg.mxu0
        %v3001 = vmax.f32 %v2996, 0.0
        %v3002 = vld [vmem:[#allocation16] sm:$0xf]
        %v3003 = vld [vmem:[#allocation16 + $0x4] sm:$0xf]
        %v3004 = vld [vmem:[#allocation16 + $0x8] sm:$0xf]
        %v3005 = vld [vmem:[#allocation16 + $0xc] sm:$0xf]
        %v3006 = vld [vmem:[#allocation16 + $0x10] sm:$0xf]
        %v3007 = vld [vmem:[#allocation16 + $0x14] sm:$0xf]
        %v3008 = vld [vmem:[#allocation16 + $0x18] sm:$0xf]
        %v3009 = vld [vmem:[#allocation16 + $0x1c] sm:$0xf]
        %v3010 = vld [vmem:[#allocation16 + $0x20] sm:$0xf]
        %v3011 = vld [vmem:[#allocation16 + $0x24] sm:$0xf]
        %v3012 = vld [vmem:[#allocation16 + $0x28] sm:$0xf]
        %v3013 = vld [vmem:[#allocation16 + $0x2c] sm:$0xf]
        %v3014 = vld [vmem:[#allocation16 + $0x30] sm:$0xf]
        %v3015 = vld [vmem:[#allocation16 + $0x34] sm:$0xf]
        %v3016 = vld [vmem:[#allocation16 + $0x38] sm:$0xf]
        %v3017 = vld [vmem:[#allocation16 + $0x3c] sm:$0xf]
        %v3018 = vld [vmem:[#allocation17] sm:$0x1]
        %v3019 = vpack.c.bf16 %v3001, %v3001
        %v3021 = vlaneseq
        %v3022 = vshrl.u32 %v3021, 7
        %v3023 = vsub.s32 0, %v3022
        %v3024 = vrot.slane %v3018, %v3023
        %v3042 = vunpack.c.l.b16 %v3002
        %v3043 = vunpack.c.l.b16 %v3003
        %v3044 = vunpack.c.l.b16 %v3004
        %v3045 = vunpack.c.l.b16 %v3005
        %v3046 = vunpack.c.l.b16 %v3006
        %v3047 = vunpack.c.l.b16 %v3007
        %v3048 = vunpack.c.l.b16 %v3008
        %v3049 = vunpack.c.l.b16 %v3009
        %v3050 = vunpack.c.l.b16 %v3010
        %v3051 = vunpack.c.l.b16 %v3011
        %v3052 = vunpack.c.l.b16 %v3012
        %v3053 = vunpack.c.l.b16 %v3013
        %v3054 = vunpack.c.l.b16 %v3014
        %v3055 = vunpack.c.l.b16 %v3015
        %v3056 = vunpack.c.l.b16 %v3016
        %v3057 = vunpack.c.l.b16 %v3017
        %v3058 = vpack.c.b16 %v3043, %v3042
        %v3059 = vpack.c.b16 %v3045, %v3044
        %v3060 = vpack.c.b16 %v3047, %v3046
        %v3061 = vpack.c.b16 %v3049, %v3048
        %v3062 = vpack.c.b16 %v3051, %v3050
        %v3063 = vpack.c.b16 %v3053, %v3052
        %v3064 = vpack.c.b16 %v3055, %v3054
        %v3065 = vpack.c.b16 %v3057, %v3056
        %3074 = vmatprep.subr.bf16.mxu0 0
        %3075 = vmatpush1.bf16.msra.mxu0 %v3058
        %3076 = vmatprep.subr.bf16.mxu0 0
        %3077 = vmatpush1.bf16.msra.mxu0 %v3059
        %3078 = vmatprep.subr.bf16.mxu0 0
        %3079 = vmatpush1.bf16.msra.mxu0 %v3060
        %3080 = vmatprep.subr.bf16.mxu0 0
        %3081 = vmatpush1.bf16.msra.mxu0 %v3061
        %3082 = vmatprep.subr.bf16.mxu0 0
        %3083 = vmatpush1.bf16.msra.mxu0 %v3062
        %3084 = vmatprep.subr.bf16.mxu0 0
        %3085 = vmatpush1.bf16.msra.mxu0 %v3063
        %3086 = vmatprep.subr.bf16.mxu0 0
        %3087 = vmatpush1.bf16.msra.mxu0 %v3064
        %3088 = vmatprep.subr.bf16.mxu0 0
        %3089 = vmatpush1.bf16.msra.mxu0 %v3065
        %3090 = vmatprep.subr.bf16.mxu0 0
        %3091 = vmatpush1.bf16.msra.mxu0 0
        %3092 = vmatprep.subr.bf16.mxu0 0
        %3093 = vmatpush1.bf16.msra.mxu0 0
        %3094 = vmatprep.subr.bf16.mxu0 0
        %3095 = vmatpush1.bf16.msra.mxu0 0
        %3096 = vmatprep.subr.bf16.mxu0 0
        %3097 = vmatpush1.bf16.msra.mxu0 0
        %3098 = vmatprep.subr.bf16.mxu0 0
        %3099 = vmatpush1.bf16.msra.mxu0 0
        %3100 = vmatprep.subr.bf16.mxu0 0
        %3101 = vmatpush1.bf16.msra.mxu0 0
        %3102 = vmatprep.subr.bf16.mxu0 0
        %3103 = vmatpush1.bf16.msra.mxu0 0
        %3104 = vmatprep.subr.bf16.mxu0 0
        %3105 = vmatpush1.bf16.msra.mxu0 0
        %3106 = vmatprep.mubr.bf16.mxu0 0
        %3107 = vmatmul.mubr.bf16.gmra.mrb[0].mxu0 %v3019
        %v3108 = vpop.f32.mrb[0].mxu0
        %v3109 = vadd.f32 %v3024, %v3108
        %v3110 = vpop.f32.mrb[0].mxu0
        %v3111 = vpop.f32.mrb[0].mxu0
        %v3112 = vpop.f32.mrb[0].mxu0
        %3113 = vdwg.mxu0
        %v3114 = vadd.f32 %v2888, %v3109
        %3115 = vadd.xlane.f32.xlu0 %v3114
        %v3116 = vpop.xlane.xlu0 %3115
        %v3117 = vmul.f32 %v3116, 0.03125
        %v3118 = vmul.f32 %v3114, %v3114
        %3119 = vadd.xlane.f32.xlu0 %v3118
        %v3120 = vpop.xlane.xlu0 %3119
        %v3121 = vmul.f32 %v3120, 0.03125
        %v3122 = vmul.f32 %v3117, %v3117
        %v3123 = vsub.f32 %v3121, %v3122
        %v3124 = vsub.f32 %v3114, %v3117
        %v3125 = vadd.f32 %v3123, 1e-05
        %v3126 = vrsqrt.pop %v3125
        %v3127 = vmul.f32 %v3124, %v3126
        %v3129 = vlaneseq
        %v3130 = vshrl.u32 %v3129, 7
        %v3131 = vsub.s32 0, %v3130
        %v3132 = vrot.slane %v955, %v3131
        %v3134 = vmul.f32 %v3127, %v3132
        %v3136 = vlaneseq
        %v3137 = vshrl.u32 %v3136, 7
        %v3138 = vsub.s32 0, %v3137
        %v3139 = vrot.slane %v956, %v3138
        %v3141 = vadd.f32 %v3134, %v3139
        %s3142 = scalar_lea.vmem %s19, 6
        %v3143 = vld [vmem:[%s3142] sm:$0x1]
        %v3144 = vld [vmem:[%s3142 + $0x1] sm:$0x1]
        %v3145 = vld [vmem:[%s3142 + $0x2] sm:$0x1]
        %v3146 = vld [vmem:[%s3142 + $0x3] sm:$0x1]
        %v3147 = vld [vmem:[%s3142 + $0x4] sm:$0x1]
        %v3148 = vld [vmem:[%s3142 + $0x5] sm:$0x1]
        %s3149 = scalar_lea.vmem %s5, 384
        %v3150 = vld [vmem:[%s3149] sm:$0xff]
        %v3151 = vld [vmem:[%s3149 + $0x8] sm:$0xff]
        %v3152 = vld [vmem:[%s3149 + $0x10] sm:$0xff]
        %v3153 = vld [vmem:[%s3149 + $0x18] sm:$0xff]
        %v3154 = vld [vmem:[%s3149 + $0x20] sm:$0xff]
        %v3155 = vld [vmem:[%s3149 + $0x28] sm:$0xff]
        %v3156 = vld [vmem:[%s3149 + $0x30] sm:$0xff]
        %v3157 = vld [vmem:[%s3149 + $0x38] sm:$0xff]
        %v3158 = vld [vmem:[%s3149 + $0x40] sm:$0xff]
        %v3159 = vld [vmem:[%s3149 + $0x48] sm:$0xff]
        %v3160 = vld [vmem:[%s3149 + $0x50] sm:$0xff]
        %v3161 = vld [vmem:[%s3149 + $0x58] sm:$0xff]
        %v3162 = vld [vmem:[%s3149 + $0x60] sm:$0xff]
        %v3163 = vld [vmem:[%s3149 + $0x68] sm:$0xff]
        %v3164 = vld [vmem:[%s3149 + $0x70] sm:$0xff]
        %v3165 = vld [vmem:[%s3149 + $0x78] sm:$0xff]
        %v3166 = vld [vmem:[%s3149 + $0x80] sm:$0xff]
        %v3167 = vld [vmem:[%s3149 + $0x88] sm:$0xff]
        %v3168 = vld [vmem:[%s3149 + $0x90] sm:$0xff]
        %v3169 = vld [vmem:[%s3149 + $0x98] sm:$0xff]
        %v3170 = vld [vmem:[%s3149 + $0xa0] sm:$0xff]
        %v3171 = vld [vmem:[%s3149 + $0xa8] sm:$0xff]
        %v3172 = vld [vmem:[%s3149 + $0xb0] sm:$0xff]
        %v3173 = vld [vmem:[%s3149 + $0xb8] sm:$0xff]
        %v3174 = vld [vmem:[%s3149 + $0xc0] sm:$0xff]
        %v3175 = vld [vmem:[%s3149 + $0xc8] sm:$0xff]
        %v3176 = vld [vmem:[%s3149 + $0xd0] sm:$0xff]
        %v3177 = vld [vmem:[%s3149 + $0xd8] sm:$0xff]
        %v3178 = vld [vmem:[%s3149 + $0xe0] sm:$0xff]
        %v3179 = vld [vmem:[%s3149 + $0xe8] sm:$0xff]
        %v3180 = vld [vmem:[%s3149 + $0xf0] sm:$0xff]
        %v3181 = vld [vmem:[%s3149 + $0xf8] sm:$0xff]
        %v3182 = vld [vmem:[%s3149 + $0x100] sm:$0xff]
        %v3183 = vld [vmem:[%s3149 + $0x108] sm:$0xff]
        %v3184 = vld [vmem:[%s3149 + $0x110] sm:$0xff]
        %v3185 = vld [vmem:[%s3149 + $0x118] sm:$0xff]
        %v3186 = vld [vmem:[%s3149 + $0x120] sm:$0xff]
        %v3187 = vld [vmem:[%s3149 + $0x128] sm:$0xff]
        %v3188 = vld [vmem:[%s3149 + $0x130] sm:$0xff]
        %v3189 = vld [vmem:[%s3149 + $0x138] sm:$0xff]
        %v3190 = vld [vmem:[%s3149 + $0x140] sm:$0xff]
        %v3191 = vld [vmem:[%s3149 + $0x148] sm:$0xff]
        %v3192 = vld [vmem:[%s3149 + $0x150] sm:$0xff]
        %v3193 = vld [vmem:[%s3149 + $0x158] sm:$0xff]
        %v3194 = vld [vmem:[%s3149 + $0x160] sm:$0xff]
        %v3195 = vld [vmem:[%s3149 + $0x168] sm:$0xff]
        %v3196 = vld [vmem:[%s3149 + $0x170] sm:$0xff]
        %v3197 = vld [vmem:[%s3149 + $0x178] sm:$0xff]
        %s3198 = scalar_lea.vmem %s6, 6
        %v3199 = vld [vmem:[%s3198] sm:$0x3f]
        %v3200 = vpack.c.bf16 %v3141, %v3141
        %v3202 = vlaneseq
        %v3203 = vshrl.u32 %v3202, 7
        %v3204 = vsub.s32 0, %v3203
        %v3205 = vrot.slane %v3199, %v3204
        %v3206 = vlaneseq
        %v3207 = vshrl.u32 %v3206, 7
        %v3208 = vsub.s32 1, %v3207
        %v3209 = vrot.slane %v3199, %v3208
        %v3210 = vlaneseq
        %v3211 = vshrl.u32 %v3210, 7
        %v3212 = vsub.s32 2, %v3211
        %v3213 = vrot.slane %v3199, %v3212
        %v3214 = vlaneseq
        %v3215 = vshrl.u32 %v3214, 7
        %v3216 = vsub.s32 3, %v3215
        %v3217 = vrot.slane %v3199, %v3216
        %v3218 = vlaneseq
        %v3219 = vshrl.u32 %v3218, 7
        %v3220 = vsub.s32 4, %v3219
        %v3221 = vrot.slane %v3199, %v3220
        %v3222 = vlaneseq
        %v3223 = vshrl.u32 %v3222, 7
        %v3224 = vsub.s32 5, %v3223
        %v3225 = vrot.slane %v3199, %v3224
        %v3280 = vunpack.c.l.b16 %v3150
        %v3281 = vunpack.c.h.b16 %v3150
        %v3282 = vunpack.c.l.b16 %v3151
        %v3283 = vunpack.c.h.b16 %v3151
        %v3284 = vunpack.c.l.b16 %v3152
        %v3285 = vunpack.c.h.b16 %v3152
        %v3286 = vunpack.c.l.b16 %v3153
        %v3287 = vunpack.c.h.b16 %v3153
        %v3288 = vunpack.c.l.b16 %v3154
        %v3289 = vunpack.c.h.b16 %v3154
        %v3290 = vunpack.c.l.b16 %v3155
        %v3291 = vunpack.c.h.b16 %v3155
        %v3292 = vunpack.c.l.b16 %v3156
        %v3293 = vunpack.c.h.b16 %v3156
        %v3294 = vunpack.c.l.b16 %v3157
        %v3295 = vunpack.c.h.b16 %v3157
        %v3296 = vunpack.c.l.b16 %v3158
        %v3297 = vunpack.c.h.b16 %v3158
        %v3298 = vunpack.c.l.b16 %v3159
        %v3299 = vunpack.c.h.b16 %v3159
        %v3300 = vunpack.c.l.b16 %v3160
        %v3301 = vunpack.c.h.b16 %v3160
        %v3302 = vunpack.c.l.b16 %v3161
        %v3303 = vunpack.c.h.b16 %v3161
        %v3304 = vunpack.c.l.b16 %v3162
        %v3305 = vunpack.c.h.b16 %v3162
        %v3306 = vunpack.c.l.b16 %v3163
        %v3307 = vunpack.c.h.b16 %v3163
        %v3308 = vunpack.c.l.b16 %v3164
        %v3309 = vunpack.c.h.b16 %v3164
        %v3310 = vunpack.c.l.b16 %v3165
        %v3311 = vunpack.c.h.b16 %v3165
        %v3312 = vunpack.c.l.b16 %v3166
        %v3313 = vunpack.c.h.b16 %v3166
        %v3314 = vunpack.c.l.b16 %v3167
        %v3315 = vunpack.c.h.b16 %v3167
        %v3316 = vunpack.c.l.b16 %v3168
        %v3317 = vunpack.c.h.b16 %v3168
        %v3318 = vunpack.c.l.b16 %v3169
        %v3319 = vunpack.c.h.b16 %v3169
        %v3320 = vunpack.c.l.b16 %v3170
        %v3321 = vunpack.c.h.b16 %v3170
        %v3322 = vunpack.c.l.b16 %v3171
        %v3323 = vunpack.c.h.b16 %v3171
        %v3324 = vunpack.c.l.b16 %v3172
        %v3325 = vunpack.c.h.b16 %v3172
        %v3326 = vunpack.c.l.b16 %v3173
        %v3327 = vunpack.c.h.b16 %v3173
        %v3328 = vunpack.c.l.b16 %v3174
        %v3329 = vunpack.c.h.b16 %v3174
        %v3330 = vunpack.c.l.b16 %v3175
        %v3331 = vunpack.c.h.b16 %v3175
        %v3332 = vunpack.c.l.b16 %v3176
        %v3333 = vunpack.c.h.b16 %v3176
        %v3334 = vunpack.c.l.b16 %v3177
        %v3335 = vunpack.c.h.b16 %v3177
        %v3336 = vunpack.c.l.b16 %v3178
        %v3337 = vunpack.c.h.b16 %v3178
        %v3338 = vunpack.c.l.b16 %v3179
        %v3339 = vunpack.c.h.b16 %v3179
        %v3340 = vunpack.c.l.b16 %v3180
        %v3341 = vunpack.c.h.b16 %v3180
        %v3342 = vunpack.c.l.b16 %v3181
        %v3343 = vunpack.c.h.b16 %v3181
        %v3344 = vunpack.c.l.b16 %v3182
        %v3345 = vunpack.c.h.b16 %v3182
        %v3346 = vunpack.c.l.b16 %v3183
        %v3347 = vunpack.c.h.b16 %v3183
        %v3348 = vunpack.c.l.b16 %v3184
        %v3349 = vunpack.c.h.b16 %v3184
        %v3350 = vunpack.c.l.b16 %v3185
        %v3351 = vunpack.c.h.b16 %v3185
        %v3352 = vunpack.c.l.b16 %v3186
        %v3353 = vunpack.c.h.b16 %v3186
        %v3354 = vunpack.c.l.b16 %v3187
        %v3355 = vunpack.c.h.b16 %v3187
        %v3356 = vunpack.c.l.b16 %v3188
        %v3357 = vunpack.c.h.b16 %v3188
        %v3358 = vunpack.c.l.b16 %v3189
        %v3359 = vunpack.c.h.b16 %v3189
        %v3360 = vunpack.c.l.b16 %v3190
        %v3361 = vunpack.c.h.b16 %v3190
        %v3362 = vunpack.c.l.b16 %v3191
        %v3363 = vunpack.c.h.b16 %v3191
        %v3364 = vunpack.c.l.b16 %v3192
        %v3365 = vunpack.c.h.b16 %v3192
        %v3366 = vunpack.c.l.b16 %v3193
        %v3367 = vunpack.c.h.b16 %v3193
        %v3368 = vunpack.c.l.b16 %v3194
        %v3369 = vunpack.c.h.b16 %v3194
        %v3370 = vunpack.c.l.b16 %v3195
        %v3371 = vunpack.c.h.b16 %v3195
        %v3372 = vunpack.c.l.b16 %v3196
        %v3373 = vunpack.c.h.b16 %v3196
        %v3374 = vunpack.c.l.b16 %v3197
        %v3375 = vunpack.c.h.b16 %v3197
        %v3376 = vpack.c.b16 %v3286, %v3280
        %v3377 = vpack.c.b16 %v3287, %v3281
        %v3378 = vpack.c.b16 %v3288, %v3282
        %v3379 = vpack.c.b16 %v3289, %v3283
        %v3380 = vpack.c.b16 %v3290, %v3284
        %v3381 = vpack.c.b16 %v3291, %v3285
        %v3382 = vpack.c.b16 %v3298, %v3292
        %v3383 = vpack.c.b16 %v3299, %v3293
        %v3384 = vpack.c.b16 %v3300, %v3294
        %v3385 = vpack.c.b16 %v3301, %v3295
        %v3386 = vpack.c.b16 %v3302, %v3296
        %v3387 = vpack.c.b16 %v3303, %v3297
        %v3388 = vpack.c.b16 %v3310, %v3304
        %v3389 = vpack.c.b16 %v3311, %v3305
        %v3390 = vpack.c.b16 %v3312, %v3306
        %v3391 = vpack.c.b16 %v3313, %v3307
        %v3392 = vpack.c.b16 %v3314, %v3308
        %v3393 = vpack.c.b16 %v3315, %v3309
        %v3394 = vpack.c.b16 %v3322, %v3316
        %v3395 = vpack.c.b16 %v3323, %v3317
        %v3396 = vpack.c.b16 %v3324, %v3318
        %v3397 = vpack.c.b16 %v3325, %v3319
        %v3398 = vpack.c.b16 %v3326, %v3320
        %v3399 = vpack.c.b16 %v3327, %v3321
        %v3400 = vpack.c.b16 %v3334, %v3328
        %v3401 = vpack.c.b16 %v3335, %v3329
        %v3402 = vpack.c.b16 %v3336, %v3330
        %v3403 = vpack.c.b16 %v3337, %v3331
        %v3404 = vpack.c.b16 %v3338, %v3332
        %v3405 = vpack.c.b16 %v3339, %v3333
        %v3406 = vpack.c.b16 %v3346, %v3340
        %v3407 = vpack.c.b16 %v3347, %v3341
        %v3408 = vpack.c.b16 %v3348, %v3342
        %v3409 = vpack.c.b16 %v3349, %v3343
        %v3410 = vpack.c.b16 %v3350, %v3344
        %v3411 = vpack.c.b16 %v3351, %v3345
        %v3412 = vpack.c.b16 %v3358, %v3352
        %v3413 = vpack.c.b16 %v3359, %v3353
        %v3414 = vpack.c.b16 %v3360, %v3354
        %v3415 = vpack.c.b16 %v3361, %v3355
        %v3416 = vpack.c.b16 %v3362, %v3356
        %v3417 = vpack.c.b16 %v3363, %v3357
        %v3418 = vpack.c.b16 %v3370, %v3364
        %v3419 = vpack.c.b16 %v3371, %v3365
        %v3420 = vpack.c.b16 %v3372, %v3366
        %v3421 = vpack.c.b16 %v3373, %v3367
        %v3422 = vpack.c.b16 %v3374, %v3368
        %v3423 = vpack.c.b16 %v3375, %v3369
        %3472 = vmatprep.subr.bf16.mxu0 %v3377
        %3473 = vmatpush1.bf16.msra.mxu0 %v3376
        %3474 = vmatprep.subr.bf16.mxu0 %v3383
        %3475 = vmatpush1.bf16.msra.mxu0 %v3382
        %3476 = vmatprep.subr.bf16.mxu0 %v3389
        %3477 = vmatpush1.bf16.msra.mxu0 %v3388
        %3478 = vmatprep.subr.bf16.mxu0 %v3395
        %3479 = vmatpush1.bf16.msra.mxu0 %v3394
        %3480 = vmatprep.subr.bf16.mxu0 %v3401
        %3481 = vmatpush1.bf16.msra.mxu0 %v3400
        %3482 = vmatprep.subr.bf16.mxu0 %v3407
        %3483 = vmatpush1.bf16.msra.mxu0 %v3406
        %3484 = vmatprep.subr.bf16.mxu0 %v3413
        %3485 = vmatpush1.bf16.msra.mxu0 %v3412
        %3486 = vmatprep.subr.bf16.mxu0 %v3419
        %3487 = vmatpush1.bf16.msra.mxu0 %v3418
        %3488 = vmatprep.subr.bf16.mxu0 0
        %3489 = vmatpush1.bf16.msra.mxu0 0
        %3490 = vmatprep.subr.bf16.mxu0 0
        %3491 = vmatpush1.bf16.msra.mxu0 0
        %3492 = vmatprep.subr.bf16.mxu0 0
        %3493 = vmatpush1.bf16.msra.mxu0 0
        %3494 = vmatprep.subr.bf16.mxu0 0
        %3495 = vmatpush1.bf16.msra.mxu0 0
        %3496 = vmatprep.subr.bf16.mxu0 0
        %3497 = vmatpush1.bf16.msra.mxu0 0
        %3498 = vmatprep.subr.bf16.mxu0 0
        %3499 = vmatpush1.bf16.msra.mxu0 0
        %3500 = vmatprep.subr.bf16.mxu0 0
        %3501 = vmatpush1.bf16.msra.mxu0 0
        %3502 = vmatprep.subr.bf16.mxu0 0
        %3503 = vmatpush1.bf16.msra.mxu0 0
        %3504 = vmatprep.mubr.bf16.mxu0 0
        %3505 = vmatmul.mubr.bf16.gmra.mrb[0].mxu0 %v3200
        %v3506 = vpop.f32.mrb[0].mxu0
        %v3507 = vadd.f32 %v3205, %v3506
        %v3508 = vpop.f32.mrb[0].mxu0
        %v3509 = vadd.f32 %v3209, %v3508
        %v3510 = vpop.f32.mrb[0].mxu0
        %v3511 = vpop.f32.mrb[0].mxu0
        %3512 = vdwg.mxu0
        %3513 = vmatprep.subr.bf16.mxu0 %v3379
        %3514 = vmatpush1.bf16.msra.mxu0 %v3378
        %3515 = vmatprep.subr.bf16.mxu0 %v3385
        %3516 = vmatpush1.bf16.msra.mxu0 %v3384
        %3517 = vmatprep.subr.bf16.mxu0 %v3391
        %3518 = vmatpush1.bf16.msra.mxu0 %v3390
        %3519 = vmatprep.subr.bf16.mxu0 %v3397
        %3520 = vmatpush1.bf16.msra.mxu0 %v3396
        %3521 = vmatprep.subr.bf16.mxu0 %v3403
        %3522 = vmatpush1.bf16.msra.mxu0 %v3402
        %3523 = vmatprep.subr.bf16.mxu0 %v3409
        %3524 = vmatpush1.bf16.msra.mxu0 %v3408
        %3525 = vmatprep.subr.bf16.mxu0 %v3415
        %3526 = vmatpush1.bf16.msra.mxu0 %v3414
        %3527 = vmatprep.subr.bf16.mxu0 %v3421
        %3528 = vmatpush1.bf16.msra.mxu0 %v3420
        %3529 = vmatprep.subr.bf16.mxu0 0
        %3530 = vmatpush1.bf16.msra.mxu0 0
        %3531 = vmatprep.subr.bf16.mxu0 0
        %3532 = vmatpush1.bf16.msra.mxu0 0
        %3533 = vmatprep.subr.bf16.mxu0 0
        %3534 = vmatpush1.bf16.msra.mxu0 0
        %3535 = vmatprep.subr.bf16.mxu0 0
        %3536 = vmatpush1.bf16.msra.mxu0 0
        %3537 = vmatprep.subr.bf16.mxu0 0
        %3538 = vmatpush1.bf16.msra.mxu0 0
        %3539 = vmatprep.subr.bf16.mxu0 0
        %3540 = vmatpush1.bf16.msra.mxu0 0
        %3541 = vmatprep.subr.bf16.mxu0 0
        %3542 = vmatpush1.bf16.msra.mxu0 0
        %3543 = vmatprep.subr.bf16.mxu0 0
        %3544 = vmatpush1.bf16.msra.mxu0 0
        %3545 = vmatprep.mubr.bf16.mxu0 0
        %3546 = vmatmul.mubr.bf16.gmra.mrb[0].mxu0 %v3200
        %v3547 = vpop.f32.mrb[0].mxu0
        %v3548 = vadd.f32 %v3213, %v3547
        %v3549 = vpop.f32.mrb[0].mxu0
        %v3550 = vadd.f32 %v3217, %v3549
        %v3551 = vpop.f32.mrb[0].mxu0
        %v3552 = vpop.f32.mrb[0].mxu0
        %3553 = vdwg.mxu0
        %3554 = vmatprep.subr.bf16.mxu0 %v3381
        %3555 = vmatpush1.bf16.msra.mxu0 %v3380
        %3556 = vmatprep.subr.bf16.mxu0 %v3387
        %3557 = vmatpush1.bf16.msra.mxu0 %v3386
        %3558 = vmatprep.subr.bf16.mxu0 %v3393
        %3559 = vmatpush1.bf16.msra.mxu0 %v3392
        %3560 = vmatprep.subr.bf16.mxu0 %v3399
        %3561 = vmatpush1.bf16.msra.mxu0 %v3398
        %3562 = vmatprep.subr.bf16.mxu0 %v3405
        %3563 = vmatpush1.bf16.msra.mxu0 %v3404
        %3564 = vmatprep.subr.bf16.mxu0 %v3411
        %3565 = vmatpush1.bf16.msra.mxu0 %v3410
        %3566 = vmatprep.subr.bf16.mxu0 %v3417
        %3567 = vmatpush1.bf16.msra.mxu0 %v3416
        %3568 = vmatprep.subr.bf16.mxu0 %v3423
        %3569 = vmatpush1.bf16.msra.mxu0 %v3422
        %3570 = vmatprep.subr.bf16.mxu0 0
        %3571 = vmatpush1.bf16.msra.mxu0 0
        %3572 = vmatprep.subr.bf16.mxu0 0
        %3573 = vmatpush1.bf16.msra.mxu0 0
        %3574 = vmatprep.subr.bf16.mxu0 0
        %3575 = vmatpush1.bf16.msra.mxu0 0
        %3576 = vmatprep.subr.bf16.mxu0 0
        %3577 = vmatpush1.bf16.msra.mxu0 0
        %3578 = vmatprep.subr.bf16.mxu0 0
        %3579 = vmatpush1.bf16.msra.mxu0 0
        %3580 = vmatprep.subr.bf16.mxu0 0
        %3581 = vmatpush1.bf16.msra.mxu0 0
        %3582 = vmatprep.subr.bf16.mxu0 0
        %3583 = vmatpush1.bf16.msra.mxu0 0
        %3584 = vmatprep.subr.bf16.mxu0 0
        %3585 = vmatpush1.bf16.msra.mxu0 0
        %3586 = vmatprep.mubr.bf16.mxu0 0
        %3587 = vmatmul.mubr.bf16.gmra.mrb[0].mxu0 %v3200
        %v3588 = vpop.f32.mrb[0].mxu0
        %v3589 = vadd.f32 %v3221, %v3588
        %v3590 = vpop.f32.mrb[0].mxu0
        %v3591 = vadd.f32 %v3225, %v3590
        %v3592 = vpop.f32.mrb[0].mxu0
        %v3593 = vpop.f32.mrb[0].mxu0
        %3594 = vdwg.mxu0
        %s3595 = scalar_lea.vmem %s7, 128
        %v3596 = vld [vmem:[%s3595] sm:$0xf]
        %v3597 = vld [vmem:[%s3595 + $0x4] sm:$0xf]
        %v3598 = vld [vmem:[%s3595 + $0x8] sm:$0xf]
        %v3599 = vld [vmem:[%s3595 + $0xc] sm:$0xf]
        %v3600 = vld [vmem:[%s3595 + $0x10] sm:$0xf]
        %v3601 = vld [vmem:[%s3595 + $0x14] sm:$0xf]
        %v3602 = vld [vmem:[%s3595 + $0x18] sm:$0xf]
        %v3603 = vld [vmem:[%s3595 + $0x1c] sm:$0xf]
        %v3604 = vld [vmem:[%s3595 + $0x20] sm:$0xf]
        %v3605 = vld [vmem:[%s3595 + $0x24] sm:$0xf]
        %v3606 = vld [vmem:[%s3595 + $0x28] sm:$0xf]
        %v3607 = vld [vmem:[%s3595 + $0x2c] sm:$0xf]
        %v3608 = vld [vmem:[%s3595 + $0x30] sm:$0xf]
        %v3609 = vld [vmem:[%s3595 + $0x34] sm:$0xf]
        %v3610 = vld [vmem:[%s3595 + $0x38] sm:$0xf]
        %v3611 = vld [vmem:[%s3595 + $0x3c] sm:$0xf]
        %v3612 = vld [vmem:[%s3595 + $0x40] sm:$0xf]
        %v3613 = vld [vmem:[%s3595 + $0x44] sm:$0xf]
        %v3614 = vld [vmem:[%s3595 + $0x48] sm:$0xf]
        %v3615 = vld [vmem:[%s3595 + $0x4c] sm:$0xf]
        %v3616 = vld [vmem:[%s3595 + $0x50] sm:$0xf]
        %v3617 = vld [vmem:[%s3595 + $0x54] sm:$0xf]
        %v3618 = vld [vmem:[%s3595 + $0x58] sm:$0xf]
        %v3619 = vld [vmem:[%s3595 + $0x5c] sm:$0xf]
        %v3620 = vld [vmem:[%s3595 + $0x60] sm:$0xf]
        %v3621 = vld [vmem:[%s3595 + $0x64] sm:$0xf]
        %v3622 = vld [vmem:[%s3595 + $0x68] sm:$0xf]
        %v3623 = vld [vmem:[%s3595 + $0x6c] sm:$0xf]
        %v3624 = vld [vmem:[%s3595 + $0x70] sm:$0xf]
        %v3625 = vld [vmem:[%s3595 + $0x74] sm:$0xf]
        %v3626 = vld [vmem:[%s3595 + $0x78] sm:$0xf]
        %v3627 = vld [vmem:[%s3595 + $0x7c] sm:$0xf]
        %s3628 = scalar_lea.vmem [#allocation2], 1
        %v3629 = vld [vmem:[%s3628] sm:$0x1]
        %3630 = vmatprep.subr.mxu0 0.0
        %3631 = vmatpush1.xpose.msra.mxu0 %v3548
        %3632 = vmatprep.subr.mxu0 0.0
        %3633 = vmatpush1.xpose.msra.mxu0 0.0
        %3634 = vmatprep.subr.mxu0 0.0
        %3635 = vmatpush1.xpose.msra.mxu0 0.0
        %3636 = vmatprep.subr.mxu0 0.0
        %3637 = vmatpush1.xpose.msra.mxu0 0.0
        %3638 = vmatprep.subr.mxu0 0.0
        %3639 = vmatpush1.xpose.msra.mxu0 0.0
        %3640 = vmatprep.subr.mxu0 0.0
        %3641 = vmatpush1.xpose.msra.mxu0 0.0
        %3642 = vmatprep.subr.mxu0 0.0
        %3643 = vmatpush1.xpose.msra.mxu0 0.0
        %3644 = vmatprep.subr.mxu0 0.0
        %3645 = vmatpush1.xpose.msra.mxu0 0.0
        %3646 = vmatprep.subr.mxu0 0.0
        %3647 = vmatpush1.xpose.msra.mxu0 0.0
        %3648 = vmatprep.subr.mxu0 0.0
        %3649 = vmatpush1.xpose.msra.mxu0 0.0
        %3650 = vmatprep.subr.mxu0 0.0
        %3651 = vmatpush1.xpose.msra.mxu0 0.0
        %3652 = vmatprep.subr.mxu0 0.0
        %3653 = vmatpush1.xpose.msra.mxu0 0.0
        %3654 = vmatprep.subr.mxu0 0.0
        %3655 = vmatpush1.xpose.msra.mxu0 0.0
        %3656 = vmatprep.subr.mxu0 0.0
        %3657 = vmatpush1.xpose.msra.mxu0 0.0
        %3658 = vmatprep.subr.mxu0 0.0
        %3659 = vmatpush1.xpose.msra.mxu0 0.0
        %3660 = vmatprep.subr.mxu0 0.0
        %3661 = vmatpush1.xpose.msra.mxu0 0.0
        %3662 = vmatprep.subr.mxu0 0.0
        %3663 = vmatpush1.xpose.msra.mxu0 0.0
        %3664 = vmatprep.subr.mxu0 0.0
        %3665 = vmatpush1.xpose.msra.mxu0 0.0
        %3666 = vmatprep.subr.mxu0 0.0
        %3667 = vmatpush1.xpose.msra.mxu0 0.0
        %3668 = vmatprep.subr.mxu0 0.0
        %3669 = vmatpush1.xpose.msra.mxu0 0.0
        %3670 = vmatprep.subr.mxu0 0.0
        %3671 = vmatpush1.xpose.msra.mxu0 0.0
        %3672 = vmatprep.subr.mxu0 0.0
        %3673 = vmatpush1.xpose.msra.mxu0 0.0
        %3674 = vmatprep.subr.mxu0 0.0
        %3675 = vmatpush1.xpose.msra.mxu0 0.0
        %3676 = vmatprep.subr.mxu0 0.0
        %3677 = vmatpush1.xpose.msra.mxu0 0.0
        %3678 = vmatprep.subr.mxu0 0.0
        %3679 = vmatpush1.xpose.msra.mxu0 0.0
        %3680 = vmatprep.subr.mxu0 0.0
        %3681 = vmatpush1.xpose.msra.mxu0 0.0
        %3682 = vmatprep.subr.mxu0 0.0
        %3683 = vmatpush1.xpose.msra.mxu0 0.0
        %3684 = vmatprep.subr.mxu0 0.0
        %3685 = vmatpush1.xpose.msra.mxu0 0.0
        %3686 = vmatprep.subr.mxu0 0.0
        %3687 = vmatpush1.xpose.msra.mxu0 0.0
        %3688 = vmatprep.subr.mxu0 0.0
        %3689 = vmatpush1.xpose.msra.mxu0 0.0
        %3690 = vmatprep.subr.mxu0 0.0
        %3691 = vmatpush1.xpose.msra.mxu0 0.0
        %3692 = vmatprep.subr.mxu0 0.0
        %3693 = vmatpush1.xpose.msra.mxu0 0.0
        %3694 = vmatprep.mubr.f32.mxu0 0.0
        %3695 = vmatmul.mubr.f32.gmra.mrb[0].mxu0 %v3507
        %v3696 = vpop.f32.mrb[0].mxu0
        %v3697 = vadd.f32 0.0, %v3696
        %v3698 = vpop.f32.mrb[0].mxu0
        %3699 = vdwg.mxu0
        %3700 = vmatprep.subr.mxu0 0.0
        %3701 = vmatpush1.xpose.msra.mxu0 %v3550
        %3702 = vmatprep.subr.mxu0 0.0
        %3703 = vmatpush1.xpose.msra.mxu0 0.0
        %3704 = vmatprep.subr.mxu0 0.0
        %3705 = vmatpush1.xpose.msra.mxu0 0.0
        %3706 = vmatprep.subr.mxu0 0.0
        %3707 = vmatpush1.xpose.msra.mxu0 0.0
        %3708 = vmatprep.subr.mxu0 0.0
        %3709 = vmatpush1.xpose.msra.mxu0 0.0
        %3710 = vmatprep.subr.mxu0 0.0
        %3711 = vmatpush1.xpose.msra.mxu0 0.0
        %3712 = vmatprep.subr.mxu0 0.0
        %3713 = vmatpush1.xpose.msra.mxu0 0.0
        %3714 = vmatprep.subr.mxu0 0.0
        %3715 = vmatpush1.xpose.msra.mxu0 0.0
        %3716 = vmatprep.subr.mxu0 0.0
        %3717 = vmatpush1.xpose.msra.mxu0 0.0
        %3718 = vmatprep.subr.mxu0 0.0
        %3719 = vmatpush1.xpose.msra.mxu0 0.0
        %3720 = vmatprep.subr.mxu0 0.0
        %3721 = vmatpush1.xpose.msra.mxu0 0.0
        %3722 = vmatprep.subr.mxu0 0.0
        %3723 = vmatpush1.xpose.msra.mxu0 0.0
        %3724 = vmatprep.subr.mxu0 0.0
        %3725 = vmatpush1.xpose.msra.mxu0 0.0
        %3726 = vmatprep.subr.mxu0 0.0
        %3727 = vmatpush1.xpose.msra.mxu0 0.0
        %3728 = vmatprep.subr.mxu0 0.0
        %3729 = vmatpush1.xpose.msra.mxu0 0.0
        %3730 = vmatprep.subr.mxu0 0.0
        %3731 = vmatpush1.xpose.msra.mxu0 0.0
        %3732 = vmatprep.subr.mxu0 0.0
        %3733 = vmatpush1.xpose.msra.mxu0 0.0
        %3734 = vmatprep.subr.mxu0 0.0
        %3735 = vmatpush1.xpose.msra.mxu0 0.0
        %3736 = vmatprep.subr.mxu0 0.0
        %3737 = vmatpush1.xpose.msra.mxu0 0.0
        %3738 = vmatprep.subr.mxu0 0.0
        %3739 = vmatpush1.xpose.msra.mxu0 0.0
        %3740 = vmatprep.subr.mxu0 0.0
        %3741 = vmatpush1.xpose.msra.mxu0 0.0
        %3742 = vmatprep.subr.mxu0 0.0
        %3743 = vmatpush1.xpose.msra.mxu0 0.0
        %3744 = vmatprep.subr.mxu0 0.0
        %3745 = vmatpush1.xpose.msra.mxu0 0.0
        %3746 = vmatprep.subr.mxu0 0.0
        %3747 = vmatpush1.xpose.msra.mxu0 0.0
        %3748 = vmatprep.subr.mxu0 0.0
        %3749 = vmatpush1.xpose.msra.mxu0 0.0
        %3750 = vmatprep.subr.mxu0 0.0
        %3751 = vmatpush1.xpose.msra.mxu0 0.0
        %3752 = vmatprep.subr.mxu0 0.0
        %3753 = vmatpush1.xpose.msra.mxu0 0.0
        %3754 = vmatprep.subr.mxu0 0.0
        %3755 = vmatpush1.xpose.msra.mxu0 0.0
        %3756 = vmatprep.subr.mxu0 0.0
        %3757 = vmatpush1.xpose.msra.mxu0 0.0
        %3758 = vmatprep.subr.mxu0 0.0
        %3759 = vmatpush1.xpose.msra.mxu0 0.0
        %3760 = vmatprep.subr.mxu0 0.0
        %3761 = vmatpush1.xpose.msra.mxu0 0.0
        %3762 = vmatprep.subr.mxu0 0.0
        %3763 = vmatpush1.xpose.msra.mxu0 0.0
        %3764 = vmatprep.mubr.f32.mxu0 0.0
        %3765 = vmatmul.mubr.f32.gmra.mrb[0].mxu0 %v3509
        %v3766 = vpop.f32.mrb[0].mxu0
        %v3767 = vadd.f32 0.0, %v3766
        %v3768 = vpop.f32.mrb[0].mxu0
        %3769 = vdwg.mxu0
        %v3770 = vmul.f32 %v3697, 0.25
        %v3771 = vmul.f32 %v3767, 0.25
        %v3772 = vadd.f32 %v3770, %v949
        %v3773 = vadd.f32 %v3771, %v949
        %v3774 = vsel %vm1578, %v3772, -inf
        %3775 = vmax.xlane.f32.xlu0 %v3774
        %v3776 = vpop.xlane.xlu0 %3775
        %v3777 = vsel %vm1578, %v3773, -inf
        %3778 = vmax.xlane.f32.xlu0 %v3777
        %v3779 = vpop.xlane.xlu0 %3778
        %v3780 = vsub.f32 %v3772, %v3776
        %v3781 = vsub.f32 %v3773, %v3779
        %v3782 = vmul.f32 %v3780, 1.442695
        %v3783 = vpow.pop %v3782
        %v3784 = vmul.f32 %v3781, 1.442695
        %v3785 = vpow.pop %v3784
        %v3786 = vsel %vm1578, %v3783, 0.0
        %3787 = vadd.xlane.f32.xlu0 %v3786
        %v3788 = vpop.xlane.xlu0 %3787
        %v3789 = vsel %vm1578, %v3785, 0.0
        %3790 = vadd.xlane.f32.xlu0 %v3789
        %v3791 = vpop.xlane.xlu0 %3790
        %v3792 = vrcp.pop %v3788
        %v3793 = vmul.f32 %v3783, %v3792
        %v3794 = vrcp.pop %v3791
        %v3795 = vmul.f32 %v3785, %v3794
        %v3797 = vsel %vm1578, %v3793, 0
        %3799 = vmatprep.subr.mxu0 0.0
        %3800 = vmatpush1.msra.mxu0 %v3589
        %3801 = vmatprep.subr.mxu0 0.0
        %3802 = vmatpush1.msra.mxu0 0.0
        %3803 = vmatprep.subr.mxu0 0.0
        %3804 = vmatpush1.msra.mxu0 0.0
        %3805 = vmatprep.subr.mxu0 0.0
        %3806 = vmatpush1.msra.mxu0 0.0
        %3807 = vmatprep.subr.mxu0 0.0
        %3808 = vmatpush1.msra.mxu0 0.0
        %3809 = vmatprep.subr.mxu0 0.0
        %3810 = vmatpush1.msra.mxu0 0.0
        %3811 = vmatprep.subr.mxu0 0.0
        %3812 = vmatpush1.msra.mxu0 0.0
        %3813 = vmatprep.subr.mxu0 0.0
        %3814 = vmatpush1.msra.mxu0 0.0
        %3815 = vmatprep.subr.mxu0 0.0
        %3816 = vmatpush1.msra.mxu0 0.0
        %3817 = vmatprep.subr.mxu0 0.0
        %3818 = vmatpush1.msra.mxu0 0.0
        %3819 = vmatprep.subr.mxu0 0.0
        %3820 = vmatpush1.msra.mxu0 0.0
        %3821 = vmatprep.subr.mxu0 0.0
        %3822 = vmatpush1.msra.mxu0 0.0
        %3823 = vmatprep.subr.mxu0 0.0
        %3824 = vmatpush1.msra.mxu0 0.0
        %3825 = vmatprep.subr.mxu0 0.0
        %3826 = vmatpush1.msra.mxu0 0.0
        %3827 = vmatprep.subr.mxu0 0.0
        %3828 = vmatpush1.msra.mxu0 0.0
        %3829 = vmatprep.subr.mxu0 0.0
        %3830 = vmatpush1.msra.mxu0 0.0
        %3831 = vmatprep.subr.mxu0 0.0
        %3832 = vmatpush1.msra.mxu0 0.0
        %3833 = vmatprep.subr.mxu0 0.0
        %3834 = vmatpush1.msra.mxu0 0.0
        %3835 = vmatprep.subr.mxu0 0.0
        %3836 = vmatpush1.msra.mxu0 0.0
        %3837 = vmatprep.subr.mxu0 0.0
        %3838 = vmatpush1.msra.mxu0 0.0
        %3839 = vmatprep.subr.mxu0 0.0
        %3840 = vmatpush1.msra.mxu0 0.0
        %3841 = vmatprep.subr.mxu0 0.0
        %3842 = vmatpush1.msra.mxu0 0.0
        %3843 = vmatprep.subr.mxu0 0.0
        %3844 = vmatpush1.msra.mxu0 0.0
        %3845 = vmatprep.subr.mxu0 0.0
        %3846 = vmatpush1.msra.mxu0 0.0
        %3847 = vmatprep.subr.mxu0 0.0
        %3848 = vmatpush1.msra.mxu0 0.0
        %3849 = vmatprep.subr.mxu0 0.0
        %3850 = vmatpush1.msra.mxu0 0.0
        %3851 = vmatprep.subr.mxu0 0.0
        %3852 = vmatpush1.msra.mxu0 0.0
        %3853 = vmatprep.subr.mxu0 0.0
        %3854 = vmatpush1.msra.mxu0 0.0
        %3855 = vmatprep.subr.mxu0 0.0
        %3856 = vmatpush1.msra.mxu0 0.0
        %3857 = vmatprep.subr.mxu0 0.0
        %3858 = vmatpush1.msra.mxu0 0.0
        %3859 = vmatprep.subr.mxu0 0.0
        %3860 = vmatpush1.msra.mxu0 0.0
        %3861 = vmatprep.subr.mxu0 0.0
        %3862 = vmatpush1.msra.mxu0 0.0
        %3863 = vmatprep.mubr.f32.mxu0 0.0
        %3864 = vmatmul.mubr.f32.gmra.mrb[0].mxu0 %v3797
        %v3865 = vpop.f32.mrb[0].mxu0
        %v3866 = vadd.f32 0.0, %v3865
        %v3867 = vpop.f32.mrb[0].mxu0
        %3868 = vdwg.mxu0
        %v3870 = vsel %vm1578, %v3795, 0
        %3872 = vmatprep.subr.mxu0 0.0
        %3873 = vmatpush1.msra.mxu0 %v3591
        %3874 = vmatprep.subr.mxu0 0.0
        %3875 = vmatpush1.msra.mxu0 0.0
        %3876 = vmatprep.subr.mxu0 0.0
        %3877 = vmatpush1.msra.mxu0 0.0
        %3878 = vmatprep.subr.mxu0 0.0
        %3879 = vmatpush1.msra.mxu0 0.0
        %3880 = vmatprep.subr.mxu0 0.0
        %3881 = vmatpush1.msra.mxu0 0.0
        %3882 = vmatprep.subr.mxu0 0.0
        %3883 = vmatpush1.msra.mxu0 0.0
        %3884 = vmatprep.subr.mxu0 0.0
        %3885 = vmatpush1.msra.mxu0 0.0
        %3886 = vmatprep.subr.mxu0 0.0
        %3887 = vmatpush1.msra.mxu0 0.0
        %3888 = vmatprep.subr.mxu0 0.0
        %3889 = vmatpush1.msra.mxu0 0.0
        %3890 = vmatprep.subr.mxu0 0.0
        %3891 = vmatpush1.msra.mxu0 0.0
        %3892 = vmatprep.subr.mxu0 0.0
        %3893 = vmatpush1.msra.mxu0 0.0
        %3894 = vmatprep.subr.mxu0 0.0
        %3895 = vmatpush1.msra.mxu0 0.0
        %3896 = vmatprep.subr.mxu0 0.0
        %3897 = vmatpush1.msra.mxu0 0.0
        %3898 = vmatprep.subr.mxu0 0.0
        %3899 = vmatpush1.msra.mxu0 0.0
        %3900 = vmatprep.subr.mxu0 0.0
        %3901 = vmatpush1.msra.mxu0 0.0
        %3902 = vmatprep.subr.mxu0 0.0
        %3903 = vmatpush1.msra.mxu0 0.0
        %3904 = vmatprep.subr.mxu0 0.0
        %3905 = vmatpush1.msra.mxu0 0.0
        %3906 = vmatprep.subr.mxu0 0.0
        %3907 = vmatpush1.msra.mxu0 0.0
        %3908 = vmatprep.subr.mxu0 0.0
        %3909 = vmatpush1.msra.mxu0 0.0
        %3910 = vmatprep.subr.mxu0 0.0
        %3911 = vmatpush1.msra.mxu0 0.0
        %3912 = vmatprep.subr.mxu0 0.0
        %3913 = vmatpush1.msra.mxu0 0.0
        %3914 = vmatprep.subr.mxu0 0.0
        %3915 = vmatpush1.msra.mxu0 0.0
        %3916 = vmatprep.subr.mxu0 0.0
        %3917 = vmatpush1.msra.mxu0 0.0
        %3918 = vmatprep.subr.mxu0 0.0
        %3919 = vmatpush1.msra.mxu0 0.0
        %3920 = vmatprep.subr.mxu0 0.0
        %3921 = vmatpush1.msra.mxu0 0.0
        %3922 = vmatprep.subr.mxu0 0.0
        %3923 = vmatpush1.msra.mxu0 0.0
        %3924 = vmatprep.subr.mxu0 0.0
        %3925 = vmatpush1.msra.mxu0 0.0
        %3926 = vmatprep.subr.mxu0 0.0
        %3927 = vmatpush1.msra.mxu0 0.0
        %3928 = vmatprep.subr.mxu0 0.0
        %3929 = vmatpush1.msra.mxu0 0.0
        %3930 = vmatprep.subr.mxu0 0.0
        %3931 = vmatpush1.msra.mxu0 0.0
        %3932 = vmatprep.subr.mxu0 0.0
        %3933 = vmatpush1.msra.mxu0 0.0
        %3934 = vmatprep.subr.mxu0 0.0
        %3935 = vmatpush1.msra.mxu0 0.0
        %3936 = vmatprep.mubr.f32.mxu0 0.0
        %3937 = vmatmul.mubr.f32.gmra.mrb[0].mxu0 %v3870
        %v3938 = vpop.f32.mrb[0].mxu0
        %v3939 = vadd.f32 0.0, %v3938
        %v3940 = vpop.f32.mrb[0].mxu0
        %3941 = vdwg.mxu0
        %v3942 = vpack.c.bf16 %v3866, %v3866
        %v3943 = vpack.c.bf16 %v3939, %v3939
        %v3945 = vlaneseq
        %v3946 = vshrl.u32 %v3945, 7
        %v3947 = vsub.s32 0, %v3946
        %v3948 = vrot.slane %v3629, %v3947
        %v3982 = vunpack.c.l.b16 %v3596
        %v3983 = vunpack.c.l.b16 %v3597
        %v3984 = vunpack.c.l.b16 %v3598
        %v3985 = vunpack.c.l.b16 %v3599
        %v3986 = vunpack.c.l.b16 %v3600
        %v3987 = vunpack.c.l.b16 %v3601
        %v3988 = vunpack.c.l.b16 %v3602
        %v3989 = vunpack.c.l.b16 %v3603
        %v3990 = vunpack.c.l.b16 %v3604
        %v3991 = vunpack.c.l.b16 %v3605
        %v3992 = vunpack.c.l.b16 %v3606
        %v3993 = vunpack.c.l.b16 %v3607
        %v3994 = vunpack.c.l.b16 %v3608
        %v3995 = vunpack.c.l.b16 %v3609
        %v3996 = vunpack.c.l.b16 %v3610
        %v3997 = vunpack.c.l.b16 %v3611
        %v3998 = vunpack.c.l.b16 %v3612
        %v3999 = vunpack.c.l.b16 %v3613
        %v4000 = vunpack.c.l.b16 %v3614
        %v4001 = vunpack.c.l.b16 %v3615
        %v4002 = vunpack.c.l.b16 %v3616
        %v4003 = vunpack.c.l.b16 %v3617
        %v4004 = vunpack.c.l.b16 %v3618
        %v4005 = vunpack.c.l.b16 %v3619
        %v4006 = vunpack.c.l.b16 %v3620
        %v4007 = vunpack.c.l.b16 %v3621
        %v4008 = vunpack.c.l.b16 %v3622
        %v4009 = vunpack.c.l.b16 %v3623
        %v4010 = vunpack.c.l.b16 %v3624
        %v4011 = vunpack.c.l.b16 %v3625
        %v4012 = vunpack.c.l.b16 %v3626
        %v4013 = vunpack.c.l.b16 %v3627
        %v4014 = vpack.c.b16 %v3983, %v3982
        %v4015 = vpack.c.b16 %v3985, %v3984
        %v4016 = vpack.c.b16 %v3987, %v3986
        %v4017 = vpack.c.b16 %v3989, %v3988
        %v4018 = vpack.c.b16 %v3991, %v3990
        %v4019 = vpack.c.b16 %v3993, %v3992
        %v4020 = vpack.c.b16 %v3995, %v3994
        %v4021 = vpack.c.b16 %v3997, %v3996
        %v4022 = vpack.c.b16 %v3999, %v3998
        %v4023 = vpack.c.b16 %v4001, %v4000
        %v4024 = vpack.c.b16 %v4003, %v4002
        %v4025 = vpack.c.b16 %v4005, %v4004
        %v4026 = vpack.c.b16 %v4007, %v4006
        %v4027 = vpack.c.b16 %v4009, %v4008
        %v4028 = vpack.c.b16 %v4011, %v4010
        %v4029 = vpack.c.b16 %v4013, %v4012
        %4046 = vmatprep.subr.bf16.mxu0 0
        %4047 = vmatpush1.bf16.msra.mxu0 %v4014
        %4048 = vmatprep.subr.bf16.mxu0 0
        %4049 = vmatpush1.bf16.msra.mxu0 %v4015
        %4050 = vmatprep.subr.bf16.mxu0 0
        %4051 = vmatpush1.bf16.msra.mxu0 %v4016
        %4052 = vmatprep.subr.bf16.mxu0 0
        %4053 = vmatpush1.bf16.msra.mxu0 %v4017
        %4054 = vmatprep.subr.bf16.mxu0 0
        %4055 = vmatpush1.bf16.msra.mxu0 %v4018
        %4056 = vmatprep.subr.bf16.mxu0 0
        %4057 = vmatpush1.bf16.msra.mxu0 %v4019
        %4058 = vmatprep.subr.bf16.mxu0 0
        %4059 = vmatpush1.bf16.msra.mxu0 %v4020
        %4060 = vmatprep.subr.bf16.mxu0 0
        %4061 = vmatpush1.bf16.msra.mxu0 %v4021
        %4062 = vmatprep.subr.bf16.mxu0 0
        %4063 = vmatpush1.bf16.msra.mxu0 %v4022
        %4064 = vmatprep.subr.bf16.mxu0 0
        %4065 = vmatpush1.bf16.msra.mxu0 %v4023
        %4066 = vmatprep.subr.bf16.mxu0 0
        %4067 = vmatpush1.bf16.msra.mxu0 %v4024
        %4068 = vmatprep.subr.bf16.mxu0 0
        %4069 = vmatpush1.bf16.msra.mxu0 %v4025
        %4070 = vmatprep.subr.bf16.mxu0 0
        %4071 = vmatpush1.bf16.msra.mxu0 %v4026
        %4072 = vmatprep.subr.bf16.mxu0 0
        %4073 = vmatpush1.bf16.msra.mxu0 %v4027
        %4074 = vmatprep.subr.bf16.mxu0 0
        %4075 = vmatpush1.bf16.msra.mxu0 %v4028
        %4076 = vmatprep.subr.bf16.mxu0 0
        %4077 = vmatpush1.bf16.msra.mxu0 %v4029
        %4078 = vmatprep.mubr.bf16.mxu0 %v3943
        %4079 = vmatmul.mubr.bf16.gmra.mrb[0].mxu0 %v3942
        %v4080 = vpop.f32.mrb[0].mxu0
        %v4081 = vadd.f32 %v3948, %v4080
        %v4082 = vpop.f32.mrb[0].mxu0
        %v4083 = vpop.f32.mrb[0].mxu0
        %v4084 = vpop.f32.mrb[0].mxu0
        %4085 = vdwg.mxu0
        %v4086 = vadd.f32 %v3141, %v4081
        %4087 = vadd.xlane.f32.xlu0 %v4086
        %v4088 = vpop.xlane.xlu0 %4087
        %v4089 = vmul.f32 %v4088, 0.03125
        %v4090 = vmul.f32 %v4086, %v4086
        %4091 = vadd.xlane.f32.xlu0 %v4090
        %v4092 = vpop.xlane.xlu0 %4091
        %v4093 = vmul.f32 %v4092, 0.03125
        %v4094 = vmul.f32 %v4089, %v4089
        %v4095 = vsub.f32 %v4093, %v4094
        %v4096 = vsub.f32 %v4086, %v4089
        %v4097 = vadd.f32 %v4095, 1e-05
        %v4098 = vrsqrt.pop %v4097
        %v4099 = vmul.f32 %v4096, %v4098
        %v4101 = vlaneseq
        %v4102 = vshrl.u32 %v4101, 7
        %v4103 = vsub.s32 0, %v4102
        %v4104 = vrot.slane %v3143, %v4103
        %v4106 = vmul.f32 %v4099, %v4104
        %v4108 = vlaneseq
        %v4109 = vshrl.u32 %v4108, 7
        %v4110 = vsub.s32 0, %v4109
        %v4111 = vrot.slane %v3144, %v4110
        %v4113 = vadd.f32 %v4106, %v4111
        %s4114 = scalar_lea.vmem [#allocation5], 128
        %v4115 = vld [vmem:[%s4114] sm:$0xff]
        %v4116 = vld [vmem:[%s4114 + $0x8] sm:$0xff]
        %v4117 = vld [vmem:[%s4114 + $0x10] sm:$0xff]
        %v4118 = vld [vmem:[%s4114 + $0x18] sm:$0xff]
        %v4119 = vld [vmem:[%s4114 + $0x20] sm:$0xff]
        %v4120 = vld [vmem:[%s4114 + $0x28] sm:$0xff]
        %v4121 = vld [vmem:[%s4114 + $0x30] sm:$0xff]
        %v4122 = vld [vmem:[%s4114 + $0x38] sm:$0xff]
        %v4123 = vld [vmem:[%s4114 + $0x40] sm:$0xff]
        %v4124 = vld [vmem:[%s4114 + $0x48] sm:$0xff]
        %v4125 = vld [vmem:[%s4114 + $0x50] sm:$0xff]
        %v4126 = vld [vmem:[%s4114 + $0x58] sm:$0xff]
        %v4127 = vld [vmem:[%s4114 + $0x60] sm:$0xff]
        %v4128 = vld [vmem:[%s4114 + $0x68] sm:$0xff]
        %v4129 = vld [vmem:[%s4114 + $0x70] sm:$0xff]
        %v4130 = vld [vmem:[%s4114 + $0x78] sm:$0xff]
        %s4131 = scalar_lea.vmem [#allocation7], 2
        %v4132 = vld [vmem:[%s4131] sm:$0x3]
        %v4133 = vpack.c.bf16 %v4113, %v4113
        %v4135 = vlaneseq
        %v4136 = vshrl.u32 %v4135, 7
        %v4137 = vsub.s32 0, %v4136
        %v4138 = vrot.slane %v4132, %v4137
        %v4139 = vlaneseq
        %v4140 = vshrl.u32 %v4139, 7
        %v4141 = vsub.s32 1, %v4140
        %v4142 = vrot.slane %v4132, %v4141
        %v4161 = vunpack.c.l.b16 %v4115
        %v4162 = vunpack.c.h.b16 %v4115
        %v4163 = vunpack.c.l.b16 %v4116
        %v4164 = vunpack.c.h.b16 %v4116
        %v4165 = vunpack.c.l.b16 %v4117
        %v4166 = vunpack.c.h.b16 %v4117
        %v4167 = vunpack.c.l.b16 %v4118
        %v4168 = vunpack.c.h.b16 %v4118
        %v4169 = vunpack.c.l.b16 %v4119
        %v4170 = vunpack.c.h.b16 %v4119
        %v4171 = vunpack.c.l.b16 %v4120
        %v4172 = vunpack.c.h.b16 %v4120
        %v4173 = vunpack.c.l.b16 %v4121
        %v4174 = vunpack.c.h.b16 %v4121
        %v4175 = vunpack.c.l.b16 %v4122
        %v4176 = vunpack.c.h.b16 %v4122
        %v4177 = vunpack.c.l.b16 %v4123
        %v4178 = vunpack.c.h.b16 %v4123
        %v4179 = vunpack.c.l.b16 %v4124
        %v4180 = vunpack.c.h.b16 %v4124
        %v4181 = vunpack.c.l.b16 %v4125
        %v4182 = vunpack.c.h.b16 %v4125
        %v4183 = vunpack.c.l.b16 %v4126
        %v4184 = vunpack.c.h.b16 %v4126
        %v4185 = vunpack.c.l.b16 %v4127
        %v4186 = vunpack.c.h.b16 %v4127
        %v4187 = vunpack.c.l.b16 %v4128
        %v4188 = vunpack.c.h.b16 %v4128
        %v4189 = vunpack.c.l.b16 %v4129
        %v4190 = vunpack.c.h.b16 %v4129
        %v4191 = vunpack.c.l.b16 %v4130
        %v4192 = vunpack.c.h.b16 %v4130
        %v4193 = vpack.c.b16 %v4163, %v4161
        %v4194 = vpack.c.b16 %v4164, %v4162
        %v4195 = vpack.c.b16 %v4167, %v4165
        %v4196 = vpack.c.b16 %v4168, %v4166
        %v4197 = vpack.c.b16 %v4171, %v4169
        %v4198 = vpack.c.b16 %v4172, %v4170
        %v4199 = vpack.c.b16 %v4175, %v4173
        %v4200 = vpack.c.b16 %v4176, %v4174
        %v4201 = vpack.c.b16 %v4179, %v4177
        %v4202 = vpack.c.b16 %v4180, %v4178
        %v4203 = vpack.c.b16 %v4183, %v4181
        %v4204 = vpack.c.b16 %v4184, %v4182
        %v4205 = vpack.c.b16 %v4187, %v4185
        %v4206 = vpack.c.b16 %v4188, %v4186
        %v4207 = vpack.c.b16 %v4191, %v4189
        %v4208 = vpack.c.b16 %v4192, %v4190
        %4225 = vmatprep.subr.bf16.mxu0 %v4194
        %4226 = vmatpush1.bf16.msra.mxu0 %v4193
        %4227 = vmatprep.subr.bf16.mxu0 %v4196
        %4228 = vmatpush1.bf16.msra.mxu0 %v4195
        %4229 = vmatprep.subr.bf16.mxu0 %v4198
        %4230 = vmatpush1.bf16.msra.mxu0 %v4197
        %4231 = vmatprep.subr.bf16.mxu0 %v4200
        %4232 = vmatpush1.bf16.msra.mxu0 %v4199
        %4233 = vmatprep.subr.bf16.mxu0 %v4202
        %4234 = vmatpush1.bf16.msra.mxu0 %v4201
        %4235 = vmatprep.subr.bf16.mxu0 %v4204
        %4236 = vmatpush1.bf16.msra.mxu0 %v4203
        %4237 = vmatprep.subr.bf16.mxu0 %v4206
        %4238 = vmatpush1.bf16.msra.mxu0 %v4205
        %4239 = vmatprep.subr.bf16.mxu0 %v4208
        %4240 = vmatpush1.bf16.msra.mxu0 %v4207
        %4241 = vmatprep.subr.bf16.mxu0 0
        %4242 = vmatpush1.bf16.msra.mxu0 0
        %4243 = vmatprep.subr.bf16.mxu0 0
        %4244 = vmatpush1.bf16.msra.mxu0 0
        %4245 = vmatprep.subr.bf16.mxu0 0
        %4246 = vmatpush1.bf16.msra.mxu0 0
        %4247 = vmatprep.subr.bf16.mxu0 0
        %4248 = vmatpush1.bf16.msra.mxu0 0
        %4249 = vmatprep.subr.bf16.mxu0 0
        %4250 = vmatpush1.bf16.msra.mxu0 0
        %4251 = vmatprep.subr.bf16.mxu0 0
        %4252 = vmatpush1.bf16.msra.mxu0 0
        %4253 = vmatprep.subr.bf16.mxu0 0
        %4254 = vmatpush1.bf16.msra.mxu0 0
        %4255 = vmatprep.subr.bf16.mxu0 0
        %4256 = vmatpush1.bf16.msra.mxu0 0
        %4257 = vmatprep.mubr.bf16.mxu0 0
        %4258 = vmatmul.mubr.bf16.gmra.mrb[0].mxu0 %v4133
        %v4259 = vpop.f32.mrb[0].mxu0
        %v4260 = vadd.f32 %v4138, %v4259
        %v4261 = vpop.f32.mrb[0].mxu0
        %v4262 = vadd.f32 %v4142, %v4261
        %v4263 = vpop.f32.mrb[0].mxu0
        %v4264 = vpop.f32.mrb[0].mxu0
        %4265 = vdwg.mxu0
        %s4266 = scalar_lea.vmem %s11, 256
        %v4267 = vld [vmem:[%s4266] sm:$0xff]
        %v4268 = vld [vmem:[%s4266 + $0x8] sm:$0xff]
        %v4269 = vld [vmem:[%s4266 + $0x10] sm:$0xff]
        %v4270 = vld [vmem:[%s4266 + $0x18] sm:$0xff]
        %v4271 = vld [vmem:[%s4266 + $0x20] sm:$0xff]
        %v4272 = vld [vmem:[%s4266 + $0x28] sm:$0xff]
        %v4273 = vld [vmem:[%s4266 + $0x30] sm:$0xff]
        %v4274 = vld [vmem:[%s4266 + $0x38] sm:$0xff]
        %v4275 = vld [vmem:[%s4266 + $0x40] sm:$0xff]
        %v4276 = vld [vmem:[%s4266 + $0x48] sm:$0xff]
        %v4277 = vld [vmem:[%s4266 + $0x50] sm:$0xff]
        %v4278 = vld [vmem:[%s4266 + $0x58] sm:$0xff]
        %v4279 = vld [vmem:[%s4266 + $0x60] sm:$0xff]
        %v4280 = vld [vmem:[%s4266 + $0x68] sm:$0xff]
        %v4281 = vld [vmem:[%s4266 + $0x70] sm:$0xff]
        %v4282 = vld [vmem:[%s4266 + $0x78] sm:$0xff]
        %v4283 = vld [vmem:[%s4266 + $0x80] sm:$0xff]
        %v4284 = vld [vmem:[%s4266 + $0x88] sm:$0xff]
        %v4285 = vld [vmem:[%s4266 + $0x90] sm:$0xff]
        %v4286 = vld [vmem:[%s4266 + $0x98] sm:$0xff]
        %v4287 = vld [vmem:[%s4266 + $0xa0] sm:$0xff]
        %v4288 = vld [vmem:[%s4266 + $0xa8] sm:$0xff]
        %v4289 = vld [vmem:[%s4266 + $0xb0] sm:$0xff]
        %v4290 = vld [vmem:[%s4266 + $0xb8] sm:$0xff]
        %v4291 = vld [vmem:[%s4266 + $0xc0] sm:$0xff]
        %v4292 = vld [vmem:[%s4266 + $0xc8] sm:$0xff]
        %v4293 = vld [vmem:[%s4266 + $0xd0] sm:$0xff]
        %v4294 = vld [vmem:[%s4266 + $0xd8] sm:$0xff]
        %v4295 = vld [vmem:[%s4266 + $0xe0] sm:$0xff]
        %v4296 = vld [vmem:[%s4266 + $0xe8] sm:$0xff]
        %v4297 = vld [vmem:[%s4266 + $0xf0] sm:$0xff]
        %v4298 = vld [vmem:[%s4266 + $0xf8] sm:$0xff]
        %s4299 = scalar_lea.vmem [#allocation8], 4
        %v4300 = vld [vmem:[%s4299] sm:$0xf]
        %v4302 = vlaneseq
        %v4303 = vshrl.u32 %v4302, 7
        %v4304 = vsub.s32 0, %v4303
        %v4305 = vrot.slane %v4300, %v4304
        %v4306 = vlaneseq
        %v4307 = vshrl.u32 %v4306, 7
        %v4308 = vsub.s32 1, %v4307
        %v4309 = vrot.slane %v4300, %v4308
        %v4310 = vlaneseq
        %v4311 = vshrl.u32 %v4310, 7
        %v4312 = vsub.s32 2, %v4311
        %v4313 = vrot.slane %v4300, %v4312
        %v4314 = vlaneseq
        %v4315 = vshrl.u32 %v4314, 7
        %v4316 = vsub.s32 3, %v4315
        %v4317 = vrot.slane %v4300, %v4316
        %v4354 = vunpack.c.l.b16 %v4267
        %v4355 = vunpack.c.h.b16 %v4267
        %v4356 = vunpack.c.l.b16 %v4268
        %v4357 = vunpack.c.h.b16 %v4268
        %v4358 = vunpack.c.l.b16 %v4269
        %v4359 = vunpack.c.h.b16 %v4269
        %v4360 = vunpack.c.l.b16 %v4270
        %v4361 = vunpack.c.h.b16 %v4270
        %v4362 = vunpack.c.l.b16 %v4271
        %v4363 = vunpack.c.h.b16 %v4271
        %v4364 = vunpack.c.l.b16 %v4272
        %v4365 = vunpack.c.h.b16 %v4272
        %v4366 = vunpack.c.l.b16 %v4273
        %v4367 = vunpack.c.h.b16 %v4273
        %v4368 = vunpack.c.l.b16 %v4274
        %v4369 = vunpack.c.h.b16 %v4274
        %v4370 = vunpack.c.l.b16 %v4275
        %v4371 = vunpack.c.h.b16 %v4275
        %v4372 = vunpack.c.l.b16 %v4276
        %v4373 = vunpack.c.h.b16 %v4276
        %v4374 = vunpack.c.l.b16 %v4277
        %v4375 = vunpack.c.h.b16 %v4277
        %v4376 = vunpack.c.l.b16 %v4278
        %v4377 = vunpack.c.h.b16 %v4278
        %v4378 = vunpack.c.l.b16 %v4279
        %v4379 = vunpack.c.h.b16 %v4279
        %v4380 = vunpack.c.l.b16 %v4280
        %v4381 = vunpack.c.h.b16 %v4280
        %v4382 = vunpack.c.l.b16 %v4281
        %v4383 = vunpack.c.h.b16 %v4281
        %v4384 = vunpack.c.l.b16 %v4282
        %v4385 = vunpack.c.h.b16 %v4282
        %v4386 = vunpack.c.l.b16 %v4283
        %v4387 = vunpack.c.h.b16 %v4283
        %v4388 = vunpack.c.l.b16 %v4284
        %v4389 = vunpack.c.h.b16 %v4284
        %v4390 = vunpack.c.l.b16 %v4285
        %v4391 = vunpack.c.h.b16 %v4285
        %v4392 = vunpack.c.l.b16 %v4286
        %v4393 = vunpack.c.h.b16 %v4286
        %v4394 = vunpack.c.l.b16 %v4287
        %v4395 = vunpack.c.h.b16 %v4287
        %v4396 = vunpack.c.l.b16 %v4288
        %v4397 = vunpack.c.h.b16 %v4288
        %v4398 = vunpack.c.l.b16 %v4289
        %v4399 = vunpack.c.h.b16 %v4289
        %v4400 = vunpack.c.l.b16 %v4290
        %v4401 = vunpack.c.h.b16 %v4290
        %v4402 = vunpack.c.l.b16 %v4291
        %v4403 = vunpack.c.h.b16 %v4291
        %v4404 = vunpack.c.l.b16 %v4292
        %v4405 = vunpack.c.h.b16 %v4292
        %v4406 = vunpack.c.l.b16 %v4293
        %v4407 = vunpack.c.h.b16 %v4293
        %v4408 = vunpack.c.l.b16 %v4294
        %v4409 = vunpack.c.h.b16 %v4294
        %v4410 = vunpack.c.l.b16 %v4295
        %v4411 = vunpack.c.h.b16 %v4295
        %v4412 = vunpack.c.l.b16 %v4296
        %v4413 = vunpack.c.h.b16 %v4296
        %v4414 = vunpack.c.l.b16 %v4297
        %v4415 = vunpack.c.h.b16 %v4297
        %v4416 = vunpack.c.l.b16 %v4298
        %v4417 = vunpack.c.h.b16 %v4298
        %v4418 = vpack.c.b16 %v4358, %v4354
        %v4419 = vpack.c.b16 %v4359, %v4355
        %v4420 = vpack.c.b16 %v4360, %v4356
        %v4421 = vpack.c.b16 %v4361, %v4357
        %v4422 = vpack.c.b16 %v4366, %v4362
        %v4423 = vpack.c.b16 %v4367, %v4363
        %v4424 = vpack.c.b16 %v4368, %v4364
        %v4425 = vpack.c.b16 %v4369, %v4365
        %v4426 = vpack.c.b16 %v4374, %v4370
        %v4427 = vpack.c.b16 %v4375, %v4371
        %v4428 = vpack.c.b16 %v4376, %v4372
        %v4429 = vpack.c.b16 %v4377, %v4373
        %v4430 = vpack.c.b16 %v4382, %v4378
        %v4431 = vpack.c.b16 %v4383, %v4379
        %v4432 = vpack.c.b16 %v4384, %v4380
        %v4433 = vpack.c.b16 %v4385, %v4381
        %v4434 = vpack.c.b16 %v4390, %v4386
        %v4435 = vpack.c.b16 %v4391, %v4387
        %v4436 = vpack.c.b16 %v4392, %v4388
        %v4437 = vpack.c.b16 %v4393, %v4389
        %v4438 = vpack.c.b16 %v4398, %v4394
        %v4439 = vpack.c.b16 %v4399, %v4395
        %v4440 = vpack.c.b16 %v4400, %v4396
        %v4441 = vpack.c.b16 %v4401, %v4397
        %v4442 = vpack.c.b16 %v4406, %v4402
        %v4443 = vpack.c.b16 %v4407, %v4403
        %v4444 = vpack.c.b16 %v4408, %v4404
        %v4445 = vpack.c.b16 %v4409, %v4405
        %v4446 = vpack.c.b16 %v4414, %v4410
        %v4447 = vpack.c.b16 %v4415, %v4411
        %v4448 = vpack.c.b16 %v4416, %v4412
        %v4449 = vpack.c.b16 %v4417, %v4413
        %4482 = vmatprep.subr.bf16.mxu0 %v4419
        %4483 = vmatpush1.bf16.msra.mxu0 %v4418
        %4484 = vmatprep.subr.bf16.mxu0 %v4423
        %4485 = vmatpush1.bf16.msra.mxu0 %v4422
        %4486 = vmatprep.subr.bf16.mxu0 %v4427
        %4487 = vmatpush1.bf16.msra.mxu0 %v4426
        %4488 = vmatprep.subr.bf16.mxu0 %v4431
        %4489 = vmatpush1.bf16.msra.mxu0 %v4430
        %4490 = vmatprep.subr.bf16.mxu0 %v4435
        %4491 = vmatpush1.bf16.msra.mxu0 %v4434
        %4492 = vmatprep.subr.bf16.mxu0 %v4439
        %4493 = vmatpush1.bf16.msra.mxu0 %v4438
        %4494 = vmatprep.subr.bf16.mxu0 %v4443
        %4495 = vmatpush1.bf16.msra.mxu0 %v4442
        %4496 = vmatprep.subr.bf16.mxu0 %v4447
        %4497 = vmatpush1.bf16.msra.mxu0 %v4446
        %4498 = vmatprep.subr.bf16.mxu0 0
        %4499 = vmatpush1.bf16.msra.mxu0 0
        %4500 = vmatprep.subr.bf16.mxu0 0
        %4501 = vmatpush1.bf16.msra.mxu0 0
        %4502 = vmatprep.subr.bf16.mxu0 0
        %4503 = vmatpush1.bf16.msra.mxu0 0
        %4504 = vmatprep.subr.bf16.mxu0 0
        %4505 = vmatpush1.bf16.msra.mxu0 0
        %4506 = vmatprep.subr.bf16.mxu0 0
        %4507 = vmatpush1.bf16.msra.mxu0 0
        %4508 = vmatprep.subr.bf16.mxu0 0
        %4509 = vmatpush1.bf16.msra.mxu0 0
        %4510 = vmatprep.subr.bf16.mxu0 0
        %4511 = vmatpush1.bf16.msra.mxu0 0
        %4512 = vmatprep.subr.bf16.mxu0 0
        %4513 = vmatpush1.bf16.msra.mxu0 0
        %4514 = vmatprep.mubr.bf16.mxu0 0
        %4515 = vmatmul.mubr.bf16.gmra.mrb[0].mxu0 %v2102
        %v4516 = vpop.f32.mrb[0].mxu0
        %v4517 = vadd.f32 %v4305, %v4516
        %v4518 = vpop.f32.mrb[0].mxu0
        %v4519 = vadd.f32 %v4309, %v4518
        %v4520 = vpop.f32.mrb[0].mxu0
        %v4521 = vpop.f32.mrb[0].mxu0
        %4522 = vdwg.mxu0
        %4523 = vmatprep.subr.bf16.mxu0 %v4421
        %4524 = vmatpush1.bf16.msra.mxu0 %v4420
        %4525 = vmatprep.subr.bf16.mxu0 %v4425
        %4526 = vmatpush1.bf16.msra.mxu0 %v4424
        %4527 = vmatprep.subr.bf16.mxu0 %v4429
        %4528 = vmatpush1.bf16.msra.mxu0 %v4428
        %4529 = vmatprep.subr.bf16.mxu0 %v4433
        %4530 = vmatpush1.bf16.msra.mxu0 %v4432
        %4531 = vmatprep.subr.bf16.mxu0 %v4437
        %4532 = vmatpush1.bf16.msra.mxu0 %v4436
        %4533 = vmatprep.subr.bf16.mxu0 %v4441
        %4534 = vmatpush1.bf16.msra.mxu0 %v4440
        %4535 = vmatprep.subr.bf16.mxu0 %v4445
        %4536 = vmatpush1.bf16.msra.mxu0 %v4444
        %4537 = vmatprep.subr.bf16.mxu0 %v4449
        %4538 = vmatpush1.bf16.msra.mxu0 %v4448
        %4539 = vmatprep.subr.bf16.mxu0 0
        %4540 = vmatpush1.bf16.msra.mxu0 0
        %4541 = vmatprep.subr.bf16.mxu0 0
        %4542 = vmatpush1.bf16.msra.mxu0 0
        %4543 = vmatprep.subr.bf16.mxu0 0
        %4544 = vmatpush1.bf16.msra.mxu0 0
        %4545 = vmatprep.subr.bf16.mxu0 0
        %4546 = vmatpush1.bf16.msra.mxu0 0
        %4547 = vmatprep.subr.bf16.mxu0 0
        %4548 = vmatpush1.bf16.msra.mxu0 0
        %4549 = vmatprep.subr.bf16.mxu0 0
        %4550 = vmatpush1.bf16.msra.mxu0 0
        %4551 = vmatprep.subr.bf16.mxu0 0
        %4552 = vmatpush1.bf16.msra.mxu0 0
        %4553 = vmatprep.subr.bf16.mxu0 0
        %4554 = vmatpush1.bf16.msra.mxu0 0
        %4555 = vmatprep.mubr.bf16.mxu0 0
        %4556 = vmatmul.mubr.bf16.gmra.mrb[0].mxu0 %v2102
        %v4557 = vpop.f32.mrb[0].mxu0
        %v4558 = vadd.f32 %v4313, %v4557
        %v4559 = vpop.f32.mrb[0].mxu0
        %v4560 = vadd.f32 %v4317, %v4559
        %v4561 = vpop.f32.mrb[0].mxu0
        %v4562 = vpop.f32.mrb[0].mxu0
        %4563 = vdwg.mxu0
        %s4564 = scalar_lea.vmem [#allocation10], 128
        %v4565 = vld [vmem:[%s4564] sm:$0xf]
        %v4566 = vld [vmem:[%s4564 + $0x4] sm:$0xf]
        %v4567 = vld [vmem:[%s4564 + $0x8] sm:$0xf]
        %v4568 = vld [vmem:[%s4564 + $0xc] sm:$0xf]
        %v4569 = vld [vmem:[%s4564 + $0x10] sm:$0xf]
        %v4570 = vld [vmem:[%s4564 + $0x14] sm:$0xf]
        %v4571 = vld [vmem:[%s4564 + $0x18] sm:$0xf]
        %v4572 = vld [vmem:[%s4564 + $0x1c] sm:$0xf]
        %v4573 = vld [vmem:[%s4564 + $0x20] sm:$0xf]
        %v4574 = vld [vmem:[%s4564 + $0x24] sm:$0xf]
        %v4575 = vld [vmem:[%s4564 + $0x28] sm:$0xf]
        %v4576 = vld [vmem:[%s4564 + $0x2c] sm:$0xf]
        %v4577 = vld [vmem:[%s4564 + $0x30] sm:$0xf]
        %v4578 = vld [vmem:[%s4564 + $0x34] sm:$0xf]
        %v4579 = vld [vmem:[%s4564 + $0x38] sm:$0xf]
        %v4580 = vld [vmem:[%s4564 + $0x3c] sm:$0xf]
        %v4581 = vld [vmem:[%s4564 + $0x40] sm:$0xf]
        %v4582 = vld [vmem:[%s4564 + $0x44] sm:$0xf]
        %v4583 = vld [vmem:[%s4564 + $0x48] sm:$0xf]
        %v4584 = vld [vmem:[%s4564 + $0x4c] sm:$0xf]
        %v4585 = vld [vmem:[%s4564 + $0x50] sm:$0xf]
        %v4586 = vld [vmem:[%s4564 + $0x54] sm:$0xf]
        %v4587 = vld [vmem:[%s4564 + $0x58] sm:$0xf]
        %v4588 = vld [vmem:[%s4564 + $0x5c] sm:$0xf]
        %v4589 = vld [vmem:[%s4564 + $0x60] sm:$0xf]
        %v4590 = vld [vmem:[%s4564 + $0x64] sm:$0xf]
        %v4591 = vld [vmem:[%s4564 + $0x68] sm:$0xf]
        %v4592 = vld [vmem:[%s4564 + $0x6c] sm:$0xf]
        %v4593 = vld [vmem:[%s4564 + $0x70] sm:$0xf]
        %v4594 = vld [vmem:[%s4564 + $0x74] sm:$0xf]
        %v4595 = vld [vmem:[%s4564 + $0x78] sm:$0xf]
        %v4596 = vld [vmem:[%s4564 + $0x7c] sm:$0xf]
        %s4597 = scalar_lea.vmem [#allocation11], 1
        %v4598 = vld [vmem:[%s4597] sm:$0x1]
        %4599 = vmatprep.subr.mxu0 0.0
        %4600 = vmatpush1.xpose.msra.mxu0 %v4517
        %4601 = vmatprep.subr.mxu0 0.0
        %4602 = vmatpush1.xpose.msra.mxu0 0.0
        %4603 = vmatprep.subr.mxu0 0.0
        %4604 = vmatpush1.xpose.msra.mxu0 0.0
        %4605 = vmatprep.subr.mxu0 0.0
        %4606 = vmatpush1.xpose.msra.mxu0 0.0
        %4607 = vmatprep.subr.mxu0 0.0
        %4608 = vmatpush1.xpose.msra.mxu0 0.0
        %4609 = vmatprep.subr.mxu0 0.0
        %4610 = vmatpush1.xpose.msra.mxu0 0.0
        %4611 = vmatprep.subr.mxu0 0.0
        %4612 = vmatpush1.xpose.msra.mxu0 0.0
        %4613 = vmatprep.subr.mxu0 0.0
        %4614 = vmatpush1.xpose.msra.mxu0 0.0
        %4615 = vmatprep.subr.mxu0 0.0
        %4616 = vmatpush1.xpose.msra.mxu0 0.0
        %4617 = vmatprep.subr.mxu0 0.0
        %4618 = vmatpush1.xpose.msra.mxu0 0.0
        %4619 = vmatprep.subr.mxu0 0.0
        %4620 = vmatpush1.xpose.msra.mxu0 0.0
        %4621 = vmatprep.subr.mxu0 0.0
        %4622 = vmatpush1.xpose.msra.mxu0 0.0
        %4623 = vmatprep.subr.mxu0 0.0
        %4624 = vmatpush1.xpose.msra.mxu0 0.0
        %4625 = vmatprep.subr.mxu0 0.0
        %4626 = vmatpush1.xpose.msra.mxu0 0.0
        %4627 = vmatprep.subr.mxu0 0.0
        %4628 = vmatpush1.xpose.msra.mxu0 0.0
        %4629 = vmatprep.subr.mxu0 0.0
        %4630 = vmatpush1.xpose.msra.mxu0 0.0
        %4631 = vmatprep.subr.mxu0 0.0
        %4632 = vmatpush1.xpose.msra.mxu0 0.0
        %4633 = vmatprep.subr.mxu0 0.0
        %4634 = vmatpush1.xpose.msra.mxu0 0.0
        %4635 = vmatprep.subr.mxu0 0.0
        %4636 = vmatpush1.xpose.msra.mxu0 0.0
        %4637 = vmatprep.subr.mxu0 0.0
        %4638 = vmatpush1.xpose.msra.mxu0 0.0
        %4639 = vmatprep.subr.mxu0 0.0
        %4640 = vmatpush1.xpose.msra.mxu0 0.0
        %4641 = vmatprep.subr.mxu0 0.0
        %4642 = vmatpush1.xpose.msra.mxu0 0.0
        %4643 = vmatprep.subr.mxu0 0.0
        %4644 = vmatpush1.xpose.msra.mxu0 0.0
        %4645 = vmatprep.subr.mxu0 0.0
        %4646 = vmatpush1.xpose.msra.mxu0 0.0
        %4647 = vmatprep.subr.mxu0 0.0
        %4648 = vmatpush1.xpose.msra.mxu0 0.0
        %4649 = vmatprep.subr.mxu0 0.0
        %4650 = vmatpush1.xpose.msra.mxu0 0.0
        %4651 = vmatprep.subr.mxu0 0.0
        %4652 = vmatpush1.xpose.msra.mxu0 0.0
        %4653 = vmatprep.subr.mxu0 0.0
        %4654 = vmatpush1.xpose.msra.mxu0 0.0
        %4655 = vmatprep.subr.mxu0 0.0
        %4656 = vmatpush1.xpose.msra.mxu0 0.0
        %4657 = vmatprep.subr.mxu0 0.0
        %4658 = vmatpush1.xpose.msra.mxu0 0.0
        %4659 = vmatprep.subr.mxu0 0.0
        %4660 = vmatpush1.xpose.msra.mxu0 0.0
        %4661 = vmatprep.subr.mxu0 0.0
        %4662 = vmatpush1.xpose.msra.mxu0 0.0
        %4663 = vmatprep.mubr.f32.mxu0 0.0
        %4664 = vmatmul.mubr.f32.gmra.mrb[0].mxu0 %v4260
        %v4665 = vpop.f32.mrb[0].mxu0
        %v4666 = vadd.f32 0.0, %v4665
        %v4667 = vpop.f32.mrb[0].mxu0
        %4668 = vdwg.mxu0
        %4669 = vmatprep.subr.mxu0 0.0
        %4670 = vmatpush1.xpose.msra.mxu0 %v4519
        %4671 = vmatprep.subr.mxu0 0.0
        %4672 = vmatpush1.xpose.msra.mxu0 0.0
        %4673 = vmatprep.subr.mxu0 0.0
        %4674 = vmatpush1.xpose.msra.mxu0 0.0
        %4675 = vmatprep.subr.mxu0 0.0
        %4676 = vmatpush1.xpose.msra.mxu0 0.0
        %4677 = vmatprep.subr.mxu0 0.0
        %4678 = vmatpush1.xpose.msra.mxu0 0.0
        %4679 = vmatprep.subr.mxu0 0.0
        %4680 = vmatpush1.xpose.msra.mxu0 0.0
        %4681 = vmatprep.subr.mxu0 0.0
        %4682 = vmatpush1.xpose.msra.mxu0 0.0
        %4683 = vmatprep.subr.mxu0 0.0
        %4684 = vmatpush1.xpose.msra.mxu0 0.0
        %4685 = vmatprep.subr.mxu0 0.0
        %4686 = vmatpush1.xpose.msra.mxu0 0.0
        %4687 = vmatprep.subr.mxu0 0.0
        %4688 = vmatpush1.xpose.msra.mxu0 0.0
        %4689 = vmatprep.subr.mxu0 0.0
        %4690 = vmatpush1.xpose.msra.mxu0 0.0
        %4691 = vmatprep.subr.mxu0 0.0
        %4692 = vmatpush1.xpose.msra.mxu0 0.0
        %4693 = vmatprep.subr.mxu0 0.0
        %4694 = vmatpush1.xpose.msra.mxu0 0.0
        %4695 = vmatprep.subr.mxu0 0.0
        %4696 = vmatpush1.xpose.msra.mxu0 0.0
        %4697 = vmatprep.subr.mxu0 0.0
        %4698 = vmatpush1.xpose.msra.mxu0 0.0
        %4699 = vmatprep.subr.mxu0 0.0
        %4700 = vmatpush1.xpose.msra.mxu0 0.0
        %4701 = vmatprep.subr.mxu0 0.0
        %4702 = vmatpush1.xpose.msra.mxu0 0.0
        %4703 = vmatprep.subr.mxu0 0.0
        %4704 = vmatpush1.xpose.msra.mxu0 0.0
        %4705 = vmatprep.subr.mxu0 0.0
        %4706 = vmatpush1.xpose.msra.mxu0 0.0
        %4707 = vmatprep.subr.mxu0 0.0
        %4708 = vmatpush1.xpose.msra.mxu0 0.0
        %4709 = vmatprep.subr.mxu0 0.0
        %4710 = vmatpush1.xpose.msra.mxu0 0.0
        %4711 = vmatprep.subr.mxu0 0.0
        %4712 = vmatpush1.xpose.msra.mxu0 0.0
        %4713 = vmatprep.subr.mxu0 0.0
        %4714 = vmatpush1.xpose.msra.mxu0 0.0
        %4715 = vmatprep.subr.mxu0 0.0
        %4716 = vmatpush1.xpose.msra.mxu0 0.0
        %4717 = vmatprep.subr.mxu0 0.0
        %4718 = vmatpush1.xpose.msra.mxu0 0.0
        %4719 = vmatprep.subr.mxu0 0.0
        %4720 = vmatpush1.xpose.msra.mxu0 0.0
        %4721 = vmatprep.subr.mxu0 0.0
        %4722 = vmatpush1.xpose.msra.mxu0 0.0
        %4723 = vmatprep.subr.mxu0 0.0
        %4724 = vmatpush1.xpose.msra.mxu0 0.0
        %4725 = vmatprep.subr.mxu0 0.0
        %4726 = vmatpush1.xpose.msra.mxu0 0.0
        %4727 = vmatprep.subr.mxu0 0.0
        %4728 = vmatpush1.xpose.msra.mxu0 0.0
        %4729 = vmatprep.subr.mxu0 0.0
        %4730 = vmatpush1.xpose.msra.mxu0 0.0
        %4731 = vmatprep.subr.mxu0 0.0
        %4732 = vmatpush1.xpose.msra.mxu0 0.0
        %4733 = vmatprep.mubr.f32.mxu0 0.0
        %4734 = vmatmul.mubr.f32.gmra.mrb[0].mxu0 %v4262
        %v4735 = vpop.f32.mrb[0].mxu0
        %v4736 = vadd.f32 0.0, %v4735
        %v4737 = vpop.f32.mrb[0].mxu0
        %4738 = vdwg.mxu0
        %v4739 = vmul.f32 %v4666, 0.25
        %v4740 = vmul.f32 %v4736, 0.25
        %v4741 = vadd.f32 %v4739, %v2545
        %v4742 = vadd.f32 %v4740, %v2545
        %v4743 = vsel %vm1578, %v4741, -inf
        %4744 = vmax.xlane.f32.xlu0 %v4743
        %v4745 = vpop.xlane.xlu0 %4744
        %v4746 = vsel %vm1578, %v4742, -inf
        %4747 = vmax.xlane.f32.xlu0 %v4746
        %v4748 = vpop.xlane.xlu0 %4747
        %v4749 = vsub.f32 %v4741, %v4745
        %v4750 = vsub.f32 %v4742, %v4748
        %v4751 = vmul.f32 %v4749, 1.442695
        %v4752 = vpow.pop %v4751
        %v4753 = vmul.f32 %v4750, 1.442695
        %v4754 = vpow.pop %v4753
        %v4755 = vsel %vm1578, %v4752, 0.0
        %4756 = vadd.xlane.f32.xlu0 %v4755
        %v4757 = vpop.xlane.xlu0 %4756
        %v4758 = vsel %vm1578, %v4754, 0.0
        %4759 = vadd.xlane.f32.xlu0 %v4758
        %v4760 = vpop.xlane.xlu0 %4759
        %v4761 = vrcp.pop %v4757
        %v4762 = vmul.f32 %v4752, %v4761
        %v4763 = vrcp.pop %v4760
        %v4764 = vmul.f32 %v4754, %v4763
        %v4766 = vsel %vm1578, %v4762, 0
        %4768 = vmatprep.subr.mxu0 0.0
        %4769 = vmatpush1.msra.mxu0 %v4558
        %4770 = vmatprep.subr.mxu0 0.0
        %4771 = vmatpush1.msra.mxu0 0.0
        %4772 = vmatprep.subr.mxu0 0.0
        %4773 = vmatpush1.msra.mxu0 0.0
        %4774 = vmatprep.subr.mxu0 0.0
        %4775 = vmatpush1.msra.mxu0 0.0
        %4776 = vmatprep.subr.mxu0 0.0
        %4777 = vmatpush1.msra.mxu0 0.0
        %4778 = vmatprep.subr.mxu0 0.0
        %4779 = vmatpush1.msra.mxu0 0.0
        %4780 = vmatprep.subr.mxu0 0.0
        %4781 = vmatpush1.msra.mxu0 0.0
        %4782 = vmatprep.subr.mxu0 0.0
        %4783 = vmatpush1.msra.mxu0 0.0
        %4784 = vmatprep.subr.mxu0 0.0
        %4785 = vmatpush1.msra.mxu0 0.0
        %4786 = vmatprep.subr.mxu0 0.0
        %4787 = vmatpush1.msra.mxu0 0.0
        %4788 = vmatprep.subr.mxu0 0.0
        %4789 = vmatpush1.msra.mxu0 0.0
        %4790 = vmatprep.subr.mxu0 0.0
        %4791 = vmatpush1.msra.mxu0 0.0
        %4792 = vmatprep.subr.mxu0 0.0
        %4793 = vmatpush1.msra.mxu0 0.0
        %4794 = vmatprep.subr.mxu0 0.0
        %4795 = vmatpush1.msra.mxu0 0.0
        %4796 = vmatprep.subr.mxu0 0.0
        %4797 = vmatpush1.msra.mxu0 0.0
        %4798 = vmatprep.subr.mxu0 0.0
        %4799 = vmatpush1.msra.mxu0 0.0
        %4800 = vmatprep.subr.mxu0 0.0
        %4801 = vmatpush1.msra.mxu0 0.0
        %4802 = vmatprep.subr.mxu0 0.0
        %4803 = vmatpush1.msra.mxu0 0.0
        %4804 = vmatprep.subr.mxu0 0.0
        %4805 = vmatpush1.msra.mxu0 0.0
        %4806 = vmatprep.subr.mxu0 0.0
        %4807 = vmatpush1.msra.mxu0 0.0
        %4808 = vmatprep.subr.mxu0 0.0
        %4809 = vmatpush1.msra.mxu0 0.0
        %4810 = vmatprep.subr.mxu0 0.0
        %4811 = vmatpush1.msra.mxu0 0.0
        %4812 = vmatprep.subr.mxu0 0.0
        %4813 = vmatpush1.msra.mxu0 0.0
        %4814 = vmatprep.subr.mxu0 0.0
        %4815 = vmatpush1.msra.mxu0 0.0
        %4816 = vmatprep.subr.mxu0 0.0
        %4817 = vmatpush1.msra.mxu0 0.0
        %4818 = vmatprep.subr.mxu0 0.0
        %4819 = vmatpush1.msra.mxu0 0.0
        %4820 = vmatprep.subr.mxu0 0.0
        %4821 = vmatpush1.msra.mxu0 0.0
        %4822 = vmatprep.subr.mxu0 0.0
        %4823 = vmatpush1.msra.mxu0 0.0
        %4824 = vmatprep.subr.mxu0 0.0
        %4825 = vmatpush1.msra.mxu0 0.0
        %4826 = vmatprep.subr.mxu0 0.0
        %4827 = vmatpush1.msra.mxu0 0.0
        %4828 = vmatprep.subr.mxu0 0.0
        %4829 = vmatpush1.msra.mxu0 0.0
        %4830 = vmatprep.subr.mxu0 0.0
        %4831 = vmatpush1.msra.mxu0 0.0
        %4832 = vmatprep.mubr.f32.mxu0 0.0
        %4833 = vmatmul.mubr.f32.gmra.mrb[0].mxu0 %v4766
        %v4834 = vpop.f32.mrb[0].mxu0
        %v4835 = vadd.f32 0.0, %v4834
        %v4836 = vpop.f32.mrb[0].mxu0
        %4837 = vdwg.mxu0
        %v4839 = vsel %vm1578, %v4764, 0
        %4841 = vmatprep.subr.mxu0 0.0
        %4842 = vmatpush1.msra.mxu0 %v4560
        %4843 = vmatprep.subr.mxu0 0.0
        %4844 = vmatpush1.msra.mxu0 0.0
        %4845 = vmatprep.subr.mxu0 0.0
        %4846 = vmatpush1.msra.mxu0 0.0
        %4847 = vmatprep.subr.mxu0 0.0
        %4848 = vmatpush1.msra.mxu0 0.0
        %4849 = vmatprep.subr.mxu0 0.0
        %4850 = vmatpush1.msra.mxu0 0.0
        %4851 = vmatprep.subr.mxu0 0.0
        %4852 = vmatpush1.msra.mxu0 0.0
        %4853 = vmatprep.subr.mxu0 0.0
        %4854 = vmatpush1.msra.mxu0 0.0
        %4855 = vmatprep.subr.mxu0 0.0
        %4856 = vmatpush1.msra.mxu0 0.0
        %4857 = vmatprep.subr.mxu0 0.0
        %4858 = vmatpush1.msra.mxu0 0.0
        %4859 = vmatprep.subr.mxu0 0.0
        %4860 = vmatpush1.msra.mxu0 0.0
        %4861 = vmatprep.subr.mxu0 0.0
        %4862 = vmatpush1.msra.mxu0 0.0
        %4863 = vmatprep.subr.mxu0 0.0
        %4864 = vmatpush1.msra.mxu0 0.0
        %4865 = vmatprep.subr.mxu0 0.0
        %4866 = vmatpush1.msra.mxu0 0.0
        %4867 = vmatprep.subr.mxu0 0.0
        %4868 = vmatpush1.msra.mxu0 0.0
        %4869 = vmatprep.subr.mxu0 0.0
        %4870 = vmatpush1.msra.mxu0 0.0
        %4871 = vmatprep.subr.mxu0 0.0
        %4872 = vmatpush1.msra.mxu0 0.0
        %4873 = vmatprep.subr.mxu0 0.0
        %4874 = vmatpush1.msra.mxu0 0.0
        %4875 = vmatprep.subr.mxu0 0.0
        %4876 = vmatpush1.msra.mxu0 0.0
        %4877 = vmatprep.subr.mxu0 0.0
        %4878 = vmatpush1.msra.mxu0 0.0
        %4879 = vmatprep.subr.mxu0 0.0
        %4880 = vmatpush1.msra.mxu0 0.0
        %4881 = vmatprep.subr.mxu0 0.0
        %4882 = vmatpush1.msra.mxu0 0.0
        %4883 = vmatprep.subr.mxu0 0.0
        %4884 = vmatpush1.msra.mxu0 0.0
        %4885 = vmatprep.subr.mxu0 0.0
        %4886 = vmatpush1.msra.mxu0 0.0
        %4887 = vmatprep.subr.mxu0 0.0
        %4888 = vmatpush1.msra.mxu0 0.0
        %4889 = vmatprep.subr.mxu0 0.0
        %4890 = vmatpush1.msra.mxu0 0.0
        %4891 = vmatprep.subr.mxu0 0.0
        %4892 = vmatpush1.msra.mxu0 0.0
        %4893 = vmatprep.subr.mxu0 0.0
        %4894 = vmatpush1.msra.mxu0 0.0
        %4895 = vmatprep.subr.mxu0 0.0
        %4896 = vmatpush1.msra.mxu0 0.0
        %4897 = vmatprep.subr.mxu0 0.0
        %4898 = vmatpush1.msra.mxu0 0.0
        %4899 = vmatprep.subr.mxu0 0.0
        %4900 = vmatpush1.msra.mxu0 0.0
        %4901 = vmatprep.subr.mxu0 0.0
        %4902 = vmatpush1.msra.mxu0 0.0
        %4903 = vmatprep.subr.mxu0 0.0
        %4904 = vmatpush1.msra.mxu0 0.0
        %4905 = vmatprep.mubr.f32.mxu0 0.0
        %4906 = vmatmul.mubr.f32.gmra.mrb[0].mxu0 %v4839
        %v4907 = vpop.f32.mrb[0].mxu0
        %v4908 = vadd.f32 0.0, %v4907
        %v4909 = vpop.f32.mrb[0].mxu0
        %4910 = vdwg.mxu0
        %v4911 = vpack.c.bf16 %v4835, %v4835
        %v4912 = vpack.c.bf16 %v4908, %v4908
        %v4914 = vlaneseq
        %v4915 = vshrl.u32 %v4914, 7
        %v4916 = vsub.s32 0, %v4915
        %v4917 = vrot.slane %v4598, %v4916
        %v4951 = vunpack.c.l.b16 %v4565
        %v4952 = vunpack.c.l.b16 %v4566
        %v4953 = vunpack.c.l.b16 %v4567
        %v4954 = vunpack.c.l.b16 %v4568
        %v4955 = vunpack.c.l.b16 %v4569
        %v4956 = vunpack.c.l.b16 %v4570
        %v4957 = vunpack.c.l.b16 %v4571
        %v4958 = vunpack.c.l.b16 %v4572
        %v4959 = vunpack.c.l.b16 %v4573
        %v4960 = vunpack.c.l.b16 %v4574
        %v4961 = vunpack.c.l.b16 %v4575
        %v4962 = vunpack.c.l.b16 %v4576
        %v4963 = vunpack.c.l.b16 %v4577
        %v4964 = vunpack.c.l.b16 %v4578
        %v4965 = vunpack.c.l.b16 %v4579
        %v4966 = vunpack.c.l.b16 %v4580
        %v4967 = vunpack.c.l.b16 %v4581
        %v4968 = vunpack.c.l.b16 %v4582
        %v4969 = vunpack.c.l.b16 %v4583
        %v4970 = vunpack.c.l.b16 %v4584
        %v4971 = vunpack.c.l.b16 %v4585
        %v4972 = vunpack.c.l.b16 %v4586
        %v4973 = vunpack.c.l.b16 %v4587
        %v4974 = vunpack.c.l.b16 %v4588
        %v4975 = vunpack.c.l.b16 %v4589
        %v4976 = vunpack.c.l.b16 %v4590
        %v4977 = vunpack.c.l.b16 %v4591
        %v4978 = vunpack.c.l.b16 %v4592
        %v4979 = vunpack.c.l.b16 %v4593
        %v4980 = vunpack.c.l.b16 %v4594
        %v4981 = vunpack.c.l.b16 %v4595
        %v4982 = vunpack.c.l.b16 %v4596
        %v4983 = vpack.c.b16 %v4952, %v4951
        %v4984 = vpack.c.b16 %v4954, %v4953
        %v4985 = vpack.c.b16 %v4956, %v4955
        %v4986 = vpack.c.b16 %v4958, %v4957
        %v4987 = vpack.c.b16 %v4960, %v4959
        %v4988 = vpack.c.b16 %v4962, %v4961
        %v4989 = vpack.c.b16 %v4964, %v4963
        %v4990 = vpack.c.b16 %v4966, %v4965
        %v4991 = vpack.c.b16 %v4968, %v4967
        %v4992 = vpack.c.b16 %v4970, %v4969
        %v4993 = vpack.c.b16 %v4972, %v4971
        %v4994 = vpack.c.b16 %v4974, %v4973
        %v4995 = vpack.c.b16 %v4976, %v4975
        %v4996 = vpack.c.b16 %v4978, %v4977
        %v4997 = vpack.c.b16 %v4980, %v4979
        %v4998 = vpack.c.b16 %v4982, %v4981
        %5015 = vmatprep.subr.bf16.mxu0 0
        %5016 = vmatpush1.bf16.msra.mxu0 %v4983
        %5017 = vmatprep.subr.bf16.mxu0 0
        %5018 = vmatpush1.bf16.msra.mxu0 %v4984
        %5019 = vmatprep.subr.bf16.mxu0 0
        %5020 = vmatpush1.bf16.msra.mxu0 %v4985
        %5021 = vmatprep.subr.bf16.mxu0 0
        %5022 = vmatpush1.bf16.msra.mxu0 %v4986
        %5023 = vmatprep.subr.bf16.mxu0 0
        %5024 = vmatpush1.bf16.msra.mxu0 %v4987
        %5025 = vmatprep.subr.bf16.mxu0 0
        %5026 = vmatpush1.bf16.msra.mxu0 %v4988
        %5027 = vmatprep.subr.bf16.mxu0 0
        %5028 = vmatpush1.bf16.msra.mxu0 %v4989
        %5029 = vmatprep.subr.bf16.mxu0 0
        %5030 = vmatpush1.bf16.msra.mxu0 %v4990
        %5031 = vmatprep.subr.bf16.mxu0 0
        %5032 = vmatpush1.bf16.msra.mxu0 %v4991
        %5033 = vmatprep.subr.bf16.mxu0 0
        %5034 = vmatpush1.bf16.msra.mxu0 %v4992
        %5035 = vmatprep.subr.bf16.mxu0 0
        %5036 = vmatpush1.bf16.msra.mxu0 %v4993
        %5037 = vmatprep.subr.bf16.mxu0 0
        %5038 = vmatpush1.bf16.msra.mxu0 %v4994
        %5039 = vmatprep.subr.bf16.mxu0 0
        %5040 = vmatpush1.bf16.msra.mxu0 %v4995
        %5041 = vmatprep.subr.bf16.mxu0 0
        %5042 = vmatpush1.bf16.msra.mxu0 %v4996
        %5043 = vmatprep.subr.bf16.mxu0 0
        %5044 = vmatpush1.bf16.msra.mxu0 %v4997
        %5045 = vmatprep.subr.bf16.mxu0 0
        %5046 = vmatpush1.bf16.msra.mxu0 %v4998
        %5047 = vmatprep.mubr.bf16.mxu0 %v4912
        %5048 = vmatmul.mubr.bf16.gmra.mrb[0].mxu0 %v4911
        %v5049 = vpop.f32.mrb[0].mxu0
        %v5050 = vadd.f32 %v4917, %v5049
        %v5051 = vpop.f32.mrb[0].mxu0
        %v5052 = vpop.f32.mrb[0].mxu0
        %v5053 = vpop.f32.mrb[0].mxu0
        %5054 = vdwg.mxu0
        %v5055 = vadd.f32 %v4113, %v5050
        %5056 = vadd.xlane.f32.xlu0 %v5055
        %v5057 = vpop.xlane.xlu0 %5056
        %v5058 = vmul.f32 %v5057, 0.03125
        %v5059 = vmul.f32 %v5055, %v5055
        %5060 = vadd.xlane.f32.xlu0 %v5059
        %v5061 = vpop.xlane.xlu0 %5060
        %v5062 = vmul.f32 %v5061, 0.03125
        %v5063 = vmul.f32 %v5058, %v5058
        %v5064 = vsub.f32 %v5062, %v5063
        %v5065 = vsub.f32 %v5055, %v5058
        %v5066 = vadd.f32 %v5064, 1e-05
        %v5067 = vrsqrt.pop %v5066
        %v5068 = vmul.f32 %v5065, %v5067
        %v5070 = vlaneseq
        %v5071 = vshrl.u32 %v5070, 7
        %v5072 = vsub.s32 0, %v5071
        %v5073 = vrot.slane %v3145, %v5072
        %v5075 = vmul.f32 %v5068, %v5073
        %v5077 = vlaneseq
        %v5078 = vshrl.u32 %v5077, 7
        %v5079 = vsub.s32 0, %v5078
        %v5080 = vrot.slane %v3146, %v5079
        %v5082 = vadd.f32 %v5075, %v5080
        %s5083 = scalar_lea.vmem [#allocation13], 64
        %v5084 = vld [vmem:[%s5083] sm:$0xf]
        %v5085 = vld [vmem:[%s5083 + $0x4] sm:$0xf]
        %v5086 = vld [vmem:[%s5083 + $0x8] sm:$0xf]
        %v5087 = vld [vmem:[%s5083 + $0xc] sm:$0xf]
        %v5088 = vld [vmem:[%s5083 + $0x10] sm:$0xf]
        %v5089 = vld [vmem:[%s5083 + $0x14] sm:$0xf]
        %v5090 = vld [vmem:[%s5083 + $0x18] sm:$0xf]
        %v5091 = vld [vmem:[%s5083 + $0x1c] sm:$0xf]
        %v5092 = vld [vmem:[%s5083 + $0x20] sm:$0xf]
        %v5093 = vld [vmem:[%s5083 + $0x24] sm:$0xf]
        %v5094 = vld [vmem:[%s5083 + $0x28] sm:$0xf]
        %v5095 = vld [vmem:[%s5083 + $0x2c] sm:$0xf]
        %v5096 = vld [vmem:[%s5083 + $0x30] sm:$0xf]
        %v5097 = vld [vmem:[%s5083 + $0x34] sm:$0xf]
        %v5098 = vld [vmem:[%s5083 + $0x38] sm:$0xf]
        %v5099 = vld [vmem:[%s5083 + $0x3c] sm:$0xf]
        %s5100 = scalar_lea.vmem [#allocation14], 1
        %v5101 = vld [vmem:[%s5100] sm:$0x1]
        %v5102 = vpack.c.bf16 %v5082, %v5082
        %v5104 = vlaneseq
        %v5105 = vshrl.u32 %v5104, 7
        %v5106 = vsub.s32 0, %v5105
        %v5107 = vrot.slane %v5101, %v5106
        %v5125 = vunpack.c.l.b16 %v5084
        %v5126 = vunpack.c.l.b16 %v5085
        %v5127 = vunpack.c.l.b16 %v5086
        %v5128 = vunpack.c.l.b16 %v5087
        %v5129 = vunpack.c.l.b16 %v5088
        %v5130 = vunpack.c.l.b16 %v5089
        %v5131 = vunpack.c.l.b16 %v5090
        %v5132 = vunpack.c.l.b16 %v5091
        %v5133 = vunpack.c.l.b16 %v5092
        %v5134 = vunpack.c.l.b16 %v5093
        %v5135 = vunpack.c.l.b16 %v5094
        %v5136 = vunpack.c.l.b16 %v5095
        %v5137 = vunpack.c.l.b16 %v5096
        %v5138 = vunpack.c.l.b16 %v5097
        %v5139 = vunpack.c.l.b16 %v5098
        %v5140 = vunpack.c.l.b16 %v5099
        %v5141 = vpack.c.b16 %v5126, %v5125
        %v5142 = vpack.c.b16 %v5128, %v5127
        %v5143 = vpack.c.b16 %v5130, %v5129
        %v5144 = vpack.c.b16 %v5132, %v5131
        %v5145 = vpack.c.b16 %v5134, %v5133
        %v5146 = vpack.c.b16 %v5136, %v5135
        %v5147 = vpack.c.b16 %v5138, %v5137
        %v5148 = vpack.c.b16 %v5140, %v5139
        %5157 = vmatprep.subr.bf16.mxu0 0
        %5158 = vmatpush1.bf16.msra.mxu0 %v5141
        %5159 = vmatprep.subr.bf16.mxu0 0
        %5160 = vmatpush1.bf16.msra.mxu0 %v5142
        %5161 = vmatprep.subr.bf16.mxu0 0
        %5162 = vmatpush1.bf16.msra.mxu0 %v5143
        %5163 = vmatprep.subr.bf16.mxu0 0
        %5164 = vmatpush1.bf16.msra.mxu0 %v5144
        %5165 = vmatprep.subr.bf16.mxu0 0
        %5166 = vmatpush1.bf16.msra.mxu0 %v5145
        %5167 = vmatprep.subr.bf16.mxu0 0
        %5168 = vmatpush1.bf16.msra.mxu0 %v5146
        %5169 = vmatprep.subr.bf16.mxu0 0
        %5170 = vmatpush1.bf16.msra.mxu0 %v5147
        %5171 = vmatprep.subr.bf16.mxu0 0
        %5172 = vmatpush1.bf16.msra.mxu0 %v5148
        %5173 = vmatprep.subr.bf16.mxu0 0
        %5174 = vmatpush1.bf16.msra.mxu0 0
        %5175 = vmatprep.subr.bf16.mxu0 0
        %5176 = vmatpush1.bf16.msra.mxu0 0
        %5177 = vmatprep.subr.bf16.mxu0 0
        %5178 = vmatpush1.bf16.msra.mxu0 0
        %5179 = vmatprep.subr.bf16.mxu0 0
        %5180 = vmatpush1.bf16.msra.mxu0 0
        %5181 = vmatprep.subr.bf16.mxu0 0
        %5182 = vmatpush1.bf16.msra.mxu0 0
        %5183 = vmatprep.subr.bf16.mxu0 0
        %5184 = vmatpush1.bf16.msra.mxu0 0
        %5185 = vmatprep.subr.bf16.mxu0 0
        %5186 = vmatpush1.bf16.msra.mxu0 0
        %5187 = vmatprep.subr.bf16.mxu0 0
        %5188 = vmatpush1.bf16.msra.mxu0 0
        %5189 = vmatprep.mubr.bf16.mxu0 0
        %5190 = vmatmul.mubr.bf16.gmra.mrb[0].mxu0 %v5102
        %v5191 = vpop.f32.mrb[0].mxu0
        %v5192 = vadd.f32 %v5107, %v5191
        %v5193 = vpop.f32.mrb[0].mxu0
        %v5194 = vpop.f32.mrb[0].mxu0
        %v5195 = vpop.f32.mrb[0].mxu0
        %5196 = vdwg.mxu0
        %v5197 = vmax.f32 %v5192, 0.0
        %s5198 = scalar_lea.vmem [#allocation16], 64
        %v5199 = vld [vmem:[%s5198] sm:$0xf]
        %v5200 = vld [vmem:[%s5198 + $0x4] sm:$0xf]
        %v5201 = vld [vmem:[%s5198 + $0x8] sm:$0xf]
        %v5202 = vld [vmem:[%s5198 + $0xc] sm:$0xf]
        %v5203 = vld [vmem:[%s5198 + $0x10] sm:$0xf]
        %v5204 = vld [vmem:[%s5198 + $0x14] sm:$0xf]
        %v5205 = vld [vmem:[%s5198 + $0x18] sm:$0xf]
        %v5206 = vld [vmem:[%s5198 + $0x1c] sm:$0xf]
        %v5207 = vld [vmem:[%s5198 + $0x20] sm:$0xf]
        %v5208 = vld [vmem:[%s5198 + $0x24] sm:$0xf]
        %v5209 = vld [vmem:[%s5198 + $0x28] sm:$0xf]
        %v5210 = vld [vmem:[%s5198 + $0x2c] sm:$0xf]
        %v5211 = vld [vmem:[%s5198 + $0x30] sm:$0xf]
        %v5212 = vld [vmem:[%s5198 + $0x34] sm:$0xf]
        %v5213 = vld [vmem:[%s5198 + $0x38] sm:$0xf]
        %v5214 = vld [vmem:[%s5198 + $0x3c] sm:$0xf]
        %s5215 = scalar_lea.vmem [#allocation17], 1
        %v5216 = vld [vmem:[%s5215] sm:$0x1]
        %v5217 = vpack.c.bf16 %v5197, %v5197
        %v5219 = vlaneseq
        %v5220 = vshrl.u32 %v5219, 7
        %v5221 = vsub.s32 0, %v5220
        %v5222 = vrot.slane %v5216, %v5221
        %v5240 = vunpack.c.l.b16 %v5199
        %v5241 = vunpack.c.l.b16 %v5200
        %v5242 = vunpack.c.l.b16 %v5201
        %v5243 = vunpack.c.l.b16 %v5202
        %v5244 = vunpack.c.l.b16 %v5203
        %v5245 = vunpack.c.l.b16 %v5204
        %v5246 = vunpack.c.l.b16 %v5205
        %v5247 = vunpack.c.l.b16 %v5206
        %v5248 = vunpack.c.l.b16 %v5207
        %v5249 = vunpack.c.l.b16 %v5208
        %v5250 = vunpack.c.l.b16 %v5209
        %v5251 = vunpack.c.l.b16 %v5210
        %v5252 = vunpack.c.l.b16 %v5211
        %v5253 = vunpack.c.l.b16 %v5212
        %v5254 = vunpack.c.l.b16 %v5213
        %v5255 = vunpack.c.l.b16 %v5214
        %v5256 = vpack.c.b16 %v5241, %v5240
        %v5257 = vpack.c.b16 %v5243, %v5242
        %v5258 = vpack.c.b16 %v5245, %v5244
        %v5259 = vpack.c.b16 %v5247, %v5246
        %v5260 = vpack.c.b16 %v5249, %v5248
        %v5261 = vpack.c.b16 %v5251, %v5250
        %v5262 = vpack.c.b16 %v5253, %v5252
        %v5263 = vpack.c.b16 %v5255, %v5254
        %5272 = vmatprep.subr.bf16.mxu0 0
        %5273 = vmatpush1.bf16.msra.mxu0 %v5256
        %5274 = vmatprep.subr.bf16.mxu0 0
        %5275 = vmatpush1.bf16.msra.mxu0 %v5257
        %5276 = vmatprep.subr.bf16.mxu0 0
        %5277 = vmatpush1.bf16.msra.mxu0 %v5258
        %5278 = vmatprep.subr.bf16.mxu0 0
        %5279 = vmatpush1.bf16.msra.mxu0 %v5259
        %5280 = vmatprep.subr.bf16.mxu0 0
        %5281 = vmatpush1.bf16.msra.mxu0 %v5260
        %5282 = vmatprep.subr.bf16.mxu0 0
        %5283 = vmatpush1.bf16.msra.mxu0 %v5261
        %5284 = vmatprep.subr.bf16.mxu0 0
        %5285 = vmatpush1.bf16.msra.mxu0 %v5262
        %5286 = vmatprep.subr.bf16.mxu0 0
        %5287 = vmatpush1.bf16.msra.mxu0 %v5263
        %5288 = vmatprep.subr.bf16.mxu0 0
        %5289 = vmatpush1.bf16.msra.mxu0 0
        %5290 = vmatprep.subr.bf16.mxu0 0
        %5291 = vmatpush1.bf16.msra.mxu0 0
        %5292 = vmatprep.subr.bf16.mxu0 0
        %5293 = vmatpush1.bf16.msra.mxu0 0
        %5294 = vmatprep.subr.bf16.mxu0 0
        %5295 = vmatpush1.bf16.msra.mxu0 0
        %5296 = vmatprep.subr.bf16.mxu0 0
        %5297 = vmatpush1.bf16.msra.mxu0 0
        %5298 = vmatprep.subr.bf16.mxu0 0
        %5299 = vmatpush1.bf16.msra.mxu0 0
        %5300 = vmatprep.subr.bf16.mxu0 0
        %5301 = vmatpush1.bf16.msra.mxu0 0
        %5302 = vmatprep.subr.bf16.mxu0 0
        %5303 = vmatpush1.bf16.msra.mxu0 0
        %5304 = vmatprep.mubr.bf16.mxu0 0
        %5305 = vmatmul.mubr.bf16.gmra.mrb[0].mxu0 %v5217
        %v5306 = vpop.f32.mrb[0].mxu0
        %v5307 = vadd.f32 %v5222, %v5306
        %v5308 = vpop.f32.mrb[0].mxu0
        %v5309 = vpop.f32.mrb[0].mxu0
        %v5310 = vpop.f32.mrb[0].mxu0
        %5311 = vdwg.mxu0
        %v5312 = vadd.f32 %v5082, %v5307
        %5313 = vadd.xlane.f32.xlu0 %v5312
        %v5314 = vpop.xlane.xlu0 %5313
        %v5315 = vmul.f32 %v5314, 0.03125
        %v5316 = vmul.f32 %v5312, %v5312
        %5317 = vadd.xlane.f32.xlu0 %v5316
        %v5318 = vpop.xlane.xlu0 %5317
        %v5319 = vmul.f32 %v5318, 0.03125
        %v5320 = vmul.f32 %v5315, %v5315
        %v5321 = vsub.f32 %v5319, %v5320
        %v5322 = vsub.f32 %v5312, %v5315
        %v5323 = vadd.f32 %v5321, 1e-05
        %v5324 = vrsqrt.pop %v5323
        %v5325 = vmul.f32 %v5322, %v5324
        %v5327 = vlaneseq
        %v5328 = vshrl.u32 %v5327, 7
        %v5329 = vsub.s32 0, %v5328
        %v5330 = vrot.slane %v3147, %v5329
        %v5332 = vmul.f32 %v5325, %v5330
        %v5334 = vlaneseq
        %v5335 = vshrl.u32 %v5334, 7
        %v5336 = vsub.s32 0, %v5335
        %v5337 = vrot.slane %v3148, %v5336
        %v5339 = vadd.f32 %v5332, %v5337
        %v5340 = vld [vmem:[#allocation19] sm:$0x1]
        %v5341 = vld [vmem:[#allocation19 + $0x1] sm:$0x1]
        %5342 = vadd.xlane.f32.xlu0 %v5339
        %v5343 = vpop.xlane.xlu0 %5342
        %v5344 = vmul.f32 %v5343, 0.03125
        %v5345 = vmul.f32 %v5339, %v5339
        %5346 = vadd.xlane.f32.xlu0 %v5345
        %v5347 = vpop.xlane.xlu0 %5346
        %v5348 = vmul.f32 %v5347, 0.03125
        %v5349 = vmul.f32 %v5344, %v5344
        %v5350 = vsub.f32 %v5348, %v5349
        %v5351 = vsub.f32 %v5339, %v5344
        %v5352 = vadd.f32 %v5350, 1e-05
        %v5353 = vrsqrt.pop %v5352
        %v5354 = vmul.f32 %v5351, %v5353
        %v5356 = vlaneseq
        %v5357 = vshrl.u32 %v5356, 7
        %v5358 = vsub.s32 0, %v5357
        %v5359 = vrot.slane %v5340, %v5358
        %v5361 = vmul.f32 %v5354, %v5359
        %v5363 = vlaneseq
        %v5364 = vshrl.u32 %v5363, 7
        %v5365 = vsub.s32 0, %v5364
        %v5366 = vrot.slane %v5341, %v5365
        %v5368 = vadd.f32 %v5361, %v5366
        %v5369 = vld [vmem:[#allocation20] sm:$0xf]
        %v5370 = vld [vmem:[#allocation20 + $0x4] sm:$0xf]
        %v5371 = vld [vmem:[#allocation20 + $0x8] sm:$0xf]
        %v5372 = vld [vmem:[#allocation20 + $0xc] sm:$0xf]
        %v5373 = vld [vmem:[#allocation20 + $0x10] sm:$0xf]
        %v5374 = vld [vmem:[#allocation20 + $0x14] sm:$0xf]
        %v5375 = vld [vmem:[#allocation20 + $0x18] sm:$0xf]
        %v5376 = vld [vmem:[#allocation20 + $0x1c] sm:$0xf]
        %v5377 = vld [vmem:[#allocation20 + $0x20] sm:$0xf]
        %v5378 = vld [vmem:[#allocation20 + $0x24] sm:$0xf]
        %v5379 = vld [vmem:[#allocation20 + $0x28] sm:$0xf]
        %v5380 = vld [vmem:[#allocation20 + $0x2c] sm:$0xf]
        %v5381 = vld [vmem:[#allocation20 + $0x30] sm:$0xf]
        %v5382 = vld [vmem:[#allocation20 + $0x34] sm:$0xf]
        %v5383 = vld [vmem:[#allocation20 + $0x38] sm:$0xf]
        %v5384 = vld [vmem:[#allocation20 + $0x3c] sm:$0xf]
        %v5385 = vld [vmem:[#allocation22] sm:$0x1]
        %v5386 = vpack.c.bf16 %v5368, %v5368
        %v5388 = vlaneseq
        %v5389 = vshrl.u32 %v5388, 7
        %v5390 = vsub.s32 0, %v5389
        %v5391 = vrot.slane %v5385, %v5390
        %v5409 = vunpack.c.l.b16 %v5369
        %v5410 = vunpack.c.l.b16 %v5370
        %v5411 = vunpack.c.l.b16 %v5371
        %v5412 = vunpack.c.l.b16 %v5372
        %v5413 = vunpack.c.l.b16 %v5373
        %v5414 = vunpack.c.l.b16 %v5374
        %v5415 = vunpack.c.l.b16 %v5375
        %v5416 = vunpack.c.l.b16 %v5376
        %v5417 = vunpack.c.l.b16 %v5377
        %v5418 = vunpack.c.l.b16 %v5378
        %v5419 = vunpack.c.l.b16 %v5379
        %v5420 = vunpack.c.l.b16 %v5380
        %v5421 = vunpack.c.l.b16 %v5381
        %v5422 = vunpack.c.l.b16 %v5382
        %v5423 = vunpack.c.l.b16 %v5383
        %v5424 = vunpack.c.l.b16 %v5384
        %v5425 = vpack.c.b16 %v5410, %v5409
        %v5426 = vpack.c.b16 %v5412, %v5411
        %v5427 = vpack.c.b16 %v5414, %v5413
        %v5428 = vpack.c.b16 %v5416, %v5415
        %v5429 = vpack.c.b16 %v5418, %v5417
        %v5430 = vpack.c.b16 %v5420, %v5419
        %v5431 = vpack.c.b16 %v5422, %v5421
        %v5432 = vpack.c.b16 %v5424, %v5423
        %5441 = vmatprep.subr.bf16.mxu0 0
        %5442 = vmatpush1.bf16.msra.mxu0 %v5425
        %5443 = vmatprep.subr.bf16.mxu0 0
        %5444 = vmatpush1.bf16.msra.mxu0 %v5426
        %5445 = vmatprep.subr.bf16.mxu0 0
        %5446 = vmatpush1.bf16.msra.mxu0 %v5427
        %5447 = vmatprep.subr.bf16.mxu0 0
        %5448 = vmatpush1.bf16.msra.mxu0 %v5428
        %5449 = vmatprep.subr.bf16.mxu0 0
        %5450 = vmatpush1.bf16.msra.mxu0 %v5429
        %5451 = vmatprep.subr.bf16.mxu0 0
        %5452 = vmatpush1.bf16.msra.mxu0 %v5430
        %5453 = vmatprep.subr.bf16.mxu0 0
        %5454 = vmatpush1.bf16.msra.mxu0 %v5431
        %5455 = vmatprep.subr.bf16.mxu0 0
        %5456 = vmatpush1.bf16.msra.mxu0 %v5432
        %5457 = vmatprep.subr.bf16.mxu0 0
        %5458 = vmatpush1.bf16.msra.mxu0 0
        %5459 = vmatprep.subr.bf16.mxu0 0
        %5460 = vmatpush1.bf16.msra.mxu0 0
        %5461 = vmatprep.subr.bf16.mxu0 0
        %5462 = vmatpush1.bf16.msra.mxu0 0
        %5463 = vmatprep.subr.bf16.mxu0 0
        %5464 = vmatpush1.bf16.msra.mxu0 0
        %5465 = vmatprep.subr.bf16.mxu0 0
        %5466 = vmatpush1.bf16.msra.mxu0 0
        %5467 = vmatprep.subr.bf16.mxu0 0
        %5468 = vmatpush1.bf16.msra.mxu0 0
        %5469 = vmatprep.subr.bf16.mxu0 0
        %5470 = vmatpush1.bf16.msra.mxu0 0
        %5471 = vmatprep.subr.bf16.mxu0 0
        %5472 = vmatpush1.bf16.msra.mxu0 0
        %5473 = vmatprep.mubr.bf16.mxu0 0
        %5474 = vmatmul.mubr.bf16.gmra.mrb[0].mxu0 %v5386
        %v5475 = vpop.f32.mrb[0].mxu0
        %v5476 = vadd.f32 %v5391, %v5475
        %v5477 = vpop.f32.mrb[0].mxu0
        %v5478 = vpop.f32.mrb[0].mxu0
        %v5479 = vpop.f32.mrb[0].mxu0
        %5480 = vdwg.mxu0
        %5481 = vst [vmem:[%s923] sm:$0xff] %v5476
        %s5482 = sand.u32 %s555, 1
        %s5483 = scalar_lea.sflag [#allocation4], %s5482
        %s5484 = sand.u32 %s555, 1
        %s5485 = smul.addr %s5484, 8
        %s5486 = scalar_lea.vmem [#allocation23], %s5485
        // Predicated region
        $region165: #{transformer_forward.3} parent=111 // pred_check
          %p5487 = pneg %p565
        $region166: #{transformer_forward.3} parent=111 // pred_check_branch
          %5489 = sbr.rel (%p5487) target = $region168
        $region167: #{transformer_forward.3} parent=111 // pred_region
          %s5491 = ssub.s32 128, 128
          %5492 = vsyncadd %s5483, %s5491
          %s5493 = smul.addr %s44, 128
          %s5494 = scalar_lea.hbm %s23, %s5493
          %s5496 = sshll.u32 %s5486, 4
          %s5497 = int_to_ptr.vmem [resolvable:$true] %s5496
          %5499 = dma.vmem_to_hbm [thread:$0]  %s5497, 128, %s5494, %s5483
        $region168: #{transformer_forward.3} parent=111 // pred_fallthru
          _
      $region112: #{transformer_forward.3} parent=5 // pred_fallthru
        _
      %p5500 = scmp.le.s32.totalorder 2, %s39
      // Predicated region
      $region169: #{transformer_forward.3} parent=5 // pred_check
        %p5501 = pneg %p5500
      $region170: #{transformer_forward.3} parent=5 // pred_check_branch
        %5503 = sbr.rel (%p5501) target = $region172
      $region171: #{transformer_forward.3} parent=5 // pred_region
        %s5504 = ssub.s32 %s39, 2
        // Predicated region
        $region173: #{transformer_forward.3} parent=171 // pred_check
          %p5505 = pneg %p571
        $region174: #{transformer_forward.3} parent=171 // pred_check_branch
          %5507 = sbr.rel (%p5505) target = $region176
        $region175: #{transformer_forward.3} parent=171 // pred_region
          %s5508 = sand.u32 %s556, 1
          %s5509 = scalar_lea.sflag [#allocation4], %s5508
          %s5510 = sand.u32 %s556, 1
          %s5511 = smul.addr %s5510, 8
          %s5512 = scalar_lea.vmem [#allocation23], %s5511
          %5513 = dma.done %s5509, 128
        $region176: #{transformer_forward.3} parent=171 // pred_fallthru
          _
      $region172: #{transformer_forward.3} parent=5 // pred_fallthru
        _
    $region6: #{transformer_forward.3} parent=1 // loop_footer
      %s43 = sadd.s32 1, %s39
    $region7: #{transformer_forward.3} parent=1 // loop_footer_branch
      %38 = sbr.rel target = $region3
    $region8: #{transformer_forward.3} parent=1 // loop_exit
      _
    %5514 = vsyncpa [#allocation3], 1
    %s5515 = scalar_lea.sflag [#allocation3], 1
    %5516 = vsyncpa %s5515, 1
    %5517 = vsyncpa [#allocation6], 1
    %5518 = vsyncpa [#allocation9], 1
    %5519 = vsyncpa [#allocation12], 1
    %5520 = vsyncpa [#allocation15], 1
    %5521 = vsyncpa [#allocation18], 1
    %5522 = vsyncpa [#allocation21], 1
    %5523 = vsyncpa [#allocation4], 1
    %s5524 = scalar_lea.sflag [#allocation4], 1
    %5525 = vsyncpa %s5524, 1

</llo_original>
